<compile_context>
chip_gen: v7x
topology: tpu7x:2x2x1
jax: 0.10.0
libtpu: 0.0.40
codegen_flags: <defaults>
</compile_context>

<pallas_src>
import functools

import jax
import jax.numpy as jnp
from jax import lax
from jax.experimental import pallas as pl
from jax.experimental.pallas import tpu as pltpu

HIDDEN = 96
NUM_LAYERS = 3
VOCAB_SIZE = 48
LANE = 128


def _gru_mlp_kernel(x_ref, wi_ref, wh_ref, bi_ref, bhn_ref,
                    w1_ref, b1_ref, w2_ref, b2_ref, out_ref, *, T, B):
    """Single-program GRU stack + MLP head, fully unrolled.

    x_ref  : (T*B, Hp)     embedded tokens, time-major rows (t*B + b).
    wi_ref : (L, Hp, 3*Hp) input weights, pre-transposed, gates fused [r|z|n].
    wh_ref : (L, Hp, 3*Hp) hidden weights, same layout.
    bi_ref : (L, 1, 3*Hp)  input bias with the r/z parts of the hidden bias folded in.
    bhn_ref: (L, 1, Hp)    n-gate hidden bias (must stay separate: r * (W_hn h + b_hn)).
    w1/b1/w2/b2            MLP head (lane-padded).
    out_ref: (B*T, Vp)     logits, batch-major rows (b*T + t).
    Padded lanes of all weights/biases are zero, so padded hidden lanes stay 0.
    """
    Hp = x_ref.shape[-1]
    L = wi_ref.shape[0]

    wi = [wi_ref[l] for l in range(L)]     # (Hp, 3*Hp) each
    wh = [wh_ref[l] for l in range(L)]
    bi = [bi_ref[l] for l in range(L)]     # (1, 3*Hp)
    bhn = [bhn_ref[l] for l in range(L)]   # (1, Hp)

    # Layer-0 input pre-activations for the WHOLE sequence in one lane-dense
    # matmul, hoisted off the serial recurrence (bias folded in).
    gx0 = jnp.dot(x_ref[...], wi[0], preferred_element_type=jnp.float32) + bi[0]

    h = [jnp.zeros((B, Hp), jnp.float32) for _ in range(L)]
    outs = {}

    # Wavefront over (layer, time): wave w holds the mutually independent cells
    # {(l, t) : l + t == w}; every operand comes from wave w-1, so Mosaic can
    # interleave up to L independent matmul/EUP chains per serial wave.
    for w in range(T + L - 1):
        for l in range(L):
            t = w - l
            if t < 0 or t >= T:
                continue
            if l == 0:
                gx = gx0[t * B:(t + 1) * B]                      # (B, 3*Hp)
            else:
                gx = jnp.dot(outs[(l - 1, t)], wi[l],
                             preferred_element_type=jnp.float32) + bi[l]
            if t == 0:
                # h_prev == 0: skip the hidden-state matmul entirely.
                rz = jax.nn.sigmoid(gx[:, :2 * Hp])
                r, z = rz[:, :Hp], rz[:, Hp:]
                n = jnp.tanh(gx[:, 2 * Hp:] + r * bhn[l])
                h_new = (1.0 - z) * n
            else:
                gh = jnp.dot(h[l], wh[l], preferred_element_type=jnp.float32)
                # r and z share one sigmoid over the fused [B, 2*Hp] slab.
                rz = jax.nn.sigmoid(gx[:, :2 * Hp] + gh[:, :2 * Hp])
                r, z = rz[:, :Hp], rz[:, Hp:]
                n = jnp.tanh(gx[:, 2 * Hp:] + r * (gh[:, 2 * Hp:] + bhn[l]))
                h_new = (1.0 - z) * n + z * h[l]
            h[l] = h_new
            outs[(l, t)] = h_new

    # Final-layer states assembled batch-major (rows b*T + t) so the wrapper
    # reshape to (B, T, V) is free.  One small relayout, off the serial chain.
    seq = jnp.stack([outs[(L - 1, t)] for t in range(T)], axis=1)   # (B, T, Hp)
    seq = seq.reshape(B * T, Hp)

    # MLP head: two lane-dense matmuls + ReLU + one unmasked (B*T, Vp) store.
    hid = jnp.maximum(
        jnp.dot(seq, w1_ref[...], preferred_element_type=jnp.float32) + b1_ref[...],
        0.0)
    out_ref[...] = (jnp.dot(hid, w2_ref[...], preferred_element_type=jnp.float32)
                    + b2_ref[...])


@functools.partial(jax.jit, static_argnames=("vocab_size",))
def recurrent_net_forward(tokens, kparams, vocab_size):
    """tokens: int32 (B, T)  ->  logits float32 (B, T, vocab_size)."""
    B, T = tokens.shape
    Hp = kparams["emb"].shape[1]
    Vp = kparams["w2"].shape[1]

    # Embedding lookup (data-dependent row gather) stays in JAX glue; flat
    # time-major indices avoid any activation-sized transpose around the kernel.
    # TODO(synk): move the gather in-kernel via PrefetchScalarGridSpec + pl.Element.
    flat_tok = jnp.transpose(tokens).reshape(-1)           # (T*B,), rows t*B + b
    x = jnp.take(kparams["emb"], flat_tok, axis=0)         # (T*B, Hp)

    weights = (kparams["wi"], kparams["wh"], kparams["bi"], kparams["bhn"],
               kparams["w1"], kparams["b1"], kparams["w2"], kparams["b2"])

    def whole_spec(arr):
        nd = arr.ndim
        return pl.BlockSpec(arr.shape, lambda g, _nd=nd: (0,) * _nd)

    kernel = functools.partial(_gru_mlp_kernel, T=T, B=B)

    out = pl.pallas_call(
        kernel,
        out_shape=jax.ShapeDtypeStruct((B * T, Vp), jnp.float32),
        grid=(1,),   # TODO(synk): batch-tile ("parallel") once B >= 16 for v7x.
        in_specs=[pl.BlockSpec((T * B, Hp), lambda g: (0, 0))]
                 + [whole_spec(w) for w in weights],
        out_specs=pl.BlockSpec((B * T, Vp), lambda g: (0, 0)),
        compiler_params=pltpu.CompilerParams(
            dimension_semantics=("arbitrary",)),
    )(x, *weights)

    out = out.reshape(B, T, Vp)                            # free: already batch-major
    return out[:, :, :vocab_size]                          # drop padded vocab lanes


def init_params(key, vocab_size=VOCAB_SIZE, hidden=HIDDEN, num_layers=NUM_LAYERS):
    """Logical (unpadded, per-gate, pre-transposed) parameters."""
    keys = jax.random.split(key, 9)
    scale = 1.0 / jnp.sqrt(hidden).astype(jnp.float32)

    def u(k, shape):
        return jax.random.uniform(k, shape, jnp.float32, -scale, scale)

    return dict(
        emb=jax.random.normal(keys[0], (vocab_size, hidden), jnp.float32),
        wi=u(keys[1], (num_layers, 3, hidden, hidden)),    # W_i{r,z,n}^T per layer
        wh=u(keys[2], (num_layers, 3, hidden, hidden)),    # W_h{r,z,n}^T per layer
        bi=u(keys[3], (num_layers, 3, 1, hidden)),
        bh=u(keys[4], (num_layers, 3, 1, hidden)),
        w1=u(keys[5], (hidden, hidden)),
        b1=u(keys[6], (1, hidden)),
        w2=u(keys[7], (hidden, vocab_size)),
        b2=u(keys[8], (1, vocab_size)),
    )


def _pad_axis(x, axis, target):
    pad = target - x.shape[axis]
    if pad <= 0:
        return x
    widths = [(0, 0)] * x.ndim
    widths[axis] = (0, pad)
    return jnp.pad(x, widths)


def pack_params(params, lane=LANE):
    """Zero-pad H/V to lane multiples, fuse GRU gates [r|z|n], fold r/z hidden bias."""
    H = params["w1"].shape[0]
    V = params["w2"].shape[1]
    Hp = ((H + lane - 1) // lane) * lane
    Vp = ((V + lane - 1) // lane) * lane

    wi = _pad_axis(_pad_axis(params["wi"], 2, Hp), 3, Hp)   # (L, 3, Hp, Hp)
    wh = _pad_axis(_pad_axis(params["wh"], 2, Hp), 3, Hp)
    bi = _pad_axis(params["bi"], 3, Hp)                     # (L, 3, 1, Hp)
    bh = _pad_axis(params["bh"], 3, Hp)

    wi_f = jnp.concatenate([wi[:, 0], wi[:, 1], wi[:, 2]], axis=-1)  # (L, Hp, 3*Hp)
    wh_f = jnp.concatenate([wh[:, 0], wh[:, 1], wh[:, 2]], axis=-1)
    # Fold the r/z halves of the hidden bias into the input bias (one add at
    # pack time instead of one per serial step); keep the n-gate hidden bias.
    bi_f = jnp.concatenate([bi[:, 0] + bh[:, 0],
                            bi[:, 1] + bh[:, 1],
                            bi[:, 2]], axis=-1)             # (L, 1, 3*Hp)
    bhn = bh[:, 2]                                          # (L, 1, Hp)

    return dict(
        emb=_pad_axis(params["emb"], 1, Hp),
        wi=wi_f, wh=wh_f, bi=bi_f, bhn=bhn,
        w1=_pad_axis(_pad_axis(params["w1"], 0, Hp), 1, Hp),
        b1=_pad_axis(params["b1"], 1, Hp),
        w2=_pad_axis(_pad_axis(params["w2"], 0, Hp), 1, Vp),
        b2=_pad_axis(params["b2"], 1, Vp),
    )


def ref_forward(tokens, params):
    """Pure-JAX reference with PyTorch GRU semantics (unpadded, per-gate)."""
    hp = functools.partial(jnp.dot, precision=lax.Precision.HIGHEST)
    x = params["emb"][tokens]                  # (B, T, H)
    B, T, H = x.shape
    for l in range(NUM_LAYERS):
        h = jnp.zeros((B, H), jnp.float32)
        outs = []
        for t in range(T):
            xt = x[:, t]
            r = jax.nn.sigmoid(hp(xt, params["wi"][l, 0]) + params["bi"][l, 0]
                               + hp(h, params["wh"][l, 0]) + params["bh"][l, 0])
            z = jax.nn.sigmoid(hp(xt, params["wi"][l, 1]) + params["bi"][l, 1]
                               + hp(h, params["wh"][l, 1]) + params["bh"][l, 1])
            n = jnp.tanh(hp(xt, params["wi"][l, 2]) + params["bi"][l, 2]
                         + r * (hp(h, params["wh"][l, 2]) + params["bh"][l, 2]))
            h = (1.0 - z) * n + z * h
            outs.append(h)
        x = jnp.stack(outs, axis=1)
    hid = jnp.maximum(hp(x, params["w1"]) + params["b1"], 0.0)
    return hp(hid, params["w2"]) + params["b2"]


if __name__ == "__main__":
    key = jax.random.PRNGKey(0)
    k_tok, k_par = jax.random.split(key)

    B, T = 2, 8
    tokens = jax.random.randint(k_tok, (B, T), 0, VOCAB_SIZE, dtype=jnp.int32)
    params = init_params(k_par)
    kparams = pack_params(params)

    out = recurrent_net_forward(tokens, kparams, vocab_size=VOCAB_SIZE)
    out = jax.block_until_ready(out)
    assert out.shape == (B, T, VOCAB_SIZE), out.shape

    ref = ref_forward(tokens, params)
    max_err = float(jnp.max(jnp.abs(out - ref)))
    if not bool(jnp.allclose(out, ref, atol=5e-3, rtol=5e-3)):
        raise AssertionError(f"kernel/reference mismatch, max abs err = {max_err}")

    print("KERNEL_OK")
</pallas_src>

<mosaic_0001>
module attributes {stable_mosaic.version = 11 : i64} {
  func.func @_gru_mlp_kernel(%arg0: i32, %arg1: memref<16x128xf32, #tpu.memory_space<vmem>>, %arg2: memref<3x128x384xf32, #tpu.memory_space<vmem>>, %arg3: memref<3x128x384xf32, #tpu.memory_space<vmem>>, %arg4: memref<3x1x384xf32, #tpu.memory_space<vmem>>, %arg5: memref<3x1x128xf32, #tpu.memory_space<vmem>>, %arg6: memref<128x128xf32, #tpu.memory_space<vmem>>, %arg7: memref<1x128xf32, #tpu.memory_space<vmem>>, %arg8: memref<128x128xf32, #tpu.memory_space<vmem>>, %arg9: memref<1x128xf32, #tpu.memory_space<vmem>>, %arg10: memref<16x128xf32, #tpu.memory_space<vmem>>) attributes {dimension_semantics = [#tpu.dimension_semantics<arbitrary>], iteration_bounds = array<i64: 1>, scalar_prefetch = 0 : i64, scratch_operands = 0 : i64, tpu.core_type = #tpu.core_type<tc>, window_params = [{pipeline_mode = #tpu.pipeline_mode<synchronous>, transform_indices = @transform_0, window_bounds = array<i64: 16, 128>}, {pipeline_mode = #tpu.pipeline_mode<synchronous>, transform_indices = @transform_1, window_bounds = array<i64: 3, 128, 384>}, {pipeline_mode = #tpu.pipeline_mode<synchronous>, transform_indices = @transform_2, window_bounds = array<i64: 3, 128, 384>}, {pipeline_mode = #tpu.pipeline_mode<synchronous>, transform_indices = @transform_3, window_bounds = array<i64: 3, 1, 384>}, {pipeline_mode = #tpu.pipeline_mode<synchronous>, transform_indices = @transform_4, window_bounds = array<i64: 3, 1, 128>}, {pipeline_mode = #tpu.pipeline_mode<synchronous>, transform_indices = @transform_5, window_bounds = array<i64: 128, 128>}, {pipeline_mode = #tpu.pipeline_mode<synchronous>, transform_indices = @transform_6, window_bounds = array<i64: 1, 128>}, {pipeline_mode = #tpu.pipeline_mode<synchronous>, transform_indices = @transform_7, window_bounds = array<i64: 128, 128>}, {pipeline_mode = #tpu.pipeline_mode<synchronous>, transform_indices = @transform_8, window_bounds = array<i64: 1, 128>}, {pipeline_mode = #tpu.pipeline_mode<synchronous>, transform_indices = @transform_9, window_bounds = array<i64: 16, 128>}]} {
    %c0 = arith.constant 0 : index
    %c0_0 = arith.constant 0 : index
    %c0_1 = arith.constant 0 : index
    %0 = vector.load %arg2[%c0, %c0_0, %c0_1] : memref<3x128x384xf32, #tpu.memory_space<vmem>>, vector<1x128x384xf32>
    %1 = vector.shape_cast %0 : vector<1x128x384xf32> to vector<128x384xf32>
    %c1 = arith.constant 1 : index
    %c0_2 = arith.constant 0 : index
    %c0_3 = arith.constant 0 : index
    %2 = vector.load %arg2[%c1, %c0_2, %c0_3] : memref<3x128x384xf32, #tpu.memory_space<vmem>>, vector<1x128x384xf32>
    %3 = vector.shape_cast %2 : vector<1x128x384xf32> to vector<128x384xf32>
    %c2 = arith.constant 2 : index
    %c0_4 = arith.constant 0 : index
    %c0_5 = arith.constant 0 : index
    %4 = vector.load %arg2[%c2, %c0_4, %c0_5] : memref<3x128x384xf32, #tpu.memory_space<vmem>>, vector<1x128x384xf32>
    %5 = vector.shape_cast %4 : vector<1x128x384xf32> to vector<128x384xf32>
    %c0_6 = arith.constant 0 : index
    %c0_7 = arith.constant 0 : index
    %c0_8 = arith.constant 0 : index
    %6 = vector.load %arg3[%c0_6, %c0_7, %c0_8] : memref<3x128x384xf32, #tpu.memory_space<vmem>>, vector<1x128x384xf32>
    %7 = vector.shape_cast %6 : vector<1x128x384xf32> to vector<128x384xf32>
    %c1_9 = arith.constant 1 : index
    %c0_10 = arith.constant 0 : index
    %c0_11 = arith.constant 0 : index
    %8 = vector.load %arg3[%c1_9, %c0_10, %c0_11] : memref<3x128x384xf32, #tpu.memory_space<vmem>>, vector<1x128x384xf32>
    %9 = vector.shape_cast %8 : vector<1x128x384xf32> to vector<128x384xf32>
    %c2_12 = arith.constant 2 : index
    %c0_13 = arith.constant 0 : index
    %c0_14 = arith.constant 0 : index
    %10 = vector.load %arg3[%c2_12, %c0_13, %c0_14] : memref<3x128x384xf32, #tpu.memory_space<vmem>>, vector<1x128x384xf32>
    %11 = vector.shape_cast %10 : vector<1x128x384xf32> to vector<128x384xf32>
    %c0_15 = arith.constant 0 : index
    %c0_16 = arith.constant 0 : index
    %c0_17 = arith.constant 0 : index
    %12 = vector.load %arg4[%c0_15, %c0_16, %c0_17] : memref<3x1x384xf32, #tpu.memory_space<vmem>>, vector<1x1x384xf32>
    %13 = vector.shape_cast %12 : vector<1x1x384xf32> to vector<1x384xf32>
    %c1_18 = arith.constant 1 : index
    %c0_19 = arith.constant 0 : index
    %c0_20 = arith.constant 0 : index
    %14 = vector.load %arg4[%c1_18, %c0_19, %c0_20] : memref<3x1x384xf32, #tpu.memory_space<vmem>>, vector<1x1x384xf32>
    %15 = vector.shape_cast %14 : vector<1x1x384xf32> to vector<1x384xf32>
    %c2_21 = arith.constant 2 : index
    %c0_22 = arith.constant 0 : index
    %c0_23 = arith.constant 0 : index
    %16 = vector.load %arg4[%c2_21, %c0_22, %c0_23] : memref<3x1x384xf32, #tpu.memory_space<vmem>>, vector<1x1x384xf32>
    %17 = vector.shape_cast %16 : vector<1x1x384xf32> to vector<1x384xf32>
    %c0_24 = arith.constant 0 : index
    %c0_25 = arith.constant 0 : index
    %c0_26 = arith.constant 0 : index
    %18 = vector.load %arg5[%c0_24, %c0_25, %c0_26] : memref<3x1x128xf32, #tpu.memory_space<vmem>>, vector<1x1x128xf32>
    %19 = vector.shape_cast %18 : vector<1x1x128xf32> to vector<1x128xf32>
    %c1_27 = arith.constant 1 : index
    %c0_28 = arith.constant 0 : index
    %c0_29 = arith.constant 0 : index
    %20 = vector.load %arg5[%c1_27, %c0_28, %c0_29] : memref<3x1x128xf32, #tpu.memory_space<vmem>>, vector<1x1x128xf32>
    %21 = vector.shape_cast %20 : vector<1x1x128xf32> to vector<1x128xf32>
    %c2_30 = arith.constant 2 : index
    %c0_31 = arith.constant 0 : index
    %c0_32 = arith.constant 0 : index
    %22 = vector.load %arg5[%c2_30, %c0_31, %c0_32] : memref<3x1x128xf32, #tpu.memory_space<vmem>>, vector<1x1x128xf32>
    %23 = vector.shape_cast %22 : vector<1x1x128xf32> to vector<1x128xf32>
    %c0_33 = arith.constant 0 : index
    %c0_34 = arith.constant 0 : index
    %24 = vector.load %arg1[%c0_33, %c0_34] : memref<16x128xf32, #tpu.memory_space<vmem>>, vector<16x128xf32>
    %cst = arith.constant dense<0.000000e+00> : vector<16x384xf32>
    %25 = tpu.matmul %24, %1, %cst {dimension_numbers = #tpu.dot_dimension_numbers<[1], [0], [0], [1], [0, 0, 1, 1], [], []>} : vector<16x128xf32>, vector<128x384xf32>, vector<16x384xf32> -> vector<16x384xf32>
    %26 = vector.broadcast %13 : vector<1x384xf32> to vector<16x384xf32>
    %27 = arith.addf %25, %26 : vector<16x384xf32>
    %28 = vector.extract_strided_slice %27 {offsets = [0, 0], sizes = [2, 384], strides = [1, 1]} : vector<16x384xf32> to vector<2x384xf32>
    %29 = vector.extract_strided_slice %28 {offsets = [0, 0], sizes = [2, 256], strides = [1, 1]} : vector<2x384xf32> to vector<2x256xf32>
    %30 = arith.negf %29 : vector<2x256xf32>
    %31 = math.exp %30 : vector<2x256xf32>
    %cst_35 = arith.constant 1.000000e+00 : f32
    %32 = vector.broadcast %cst_35 : f32 to vector<2x256xf32>
    %33 = arith.addf %32, %31 : vector<2x256xf32>
    %34 = arith.divf %32, %33 : vector<2x256xf32>
    %35 = vector.extract_strided_slice %34 {offsets = [0, 0], sizes = [2, 128], strides = [1, 1]} : vector<2x256xf32> to vector<2x128xf32>
    %36 = vector.extract_strided_slice %34 {offsets = [0, 128], sizes = [2, 128], strides = [1, 1]} : vector<2x256xf32> to vector<2x128xf32>
    %37 = vector.extract_strided_slice %28 {offsets = [0, 256], sizes = [2, 128], strides = [1, 1]} : vector<2x384xf32> to vector<2x128xf32>
    %38 = vector.broadcast %19 : vector<1x128xf32> to vector<2x128xf32>
    %39 = arith.mulf %35, %38 : vector<2x128xf32>
    %40 = arith.addf %37, %39 : vector<2x128xf32>
    %41 = math.tanh %40 : vector<2x128xf32>
    %cst_36 = arith.constant 1.000000e+00 : f32
    %42 = vector.broadcast %cst_36 : f32 to vector<2x128xf32>
    %43 = arith.subf %42, %36 : vector<2x128xf32>
    %44 = arith.mulf %43, %41 : vector<2x128xf32>
    %45 = vector.extract_strided_slice %27 {offsets = [2, 0], sizes = [2, 384], strides = [1, 1]} : vector<16x384xf32> to vector<2x384xf32>
    %cst_37 = arith.constant dense<0.000000e+00> : vector<2x384xf32>
    %46 = tpu.matmul %44, %7, %cst_37 {dimension_numbers = #tpu.dot_dimension_numbers<[1], [0], [0], [1], [0, 0, 1, 1], [], []>} : vector<2x128xf32>, vector<128x384xf32>, vector<2x384xf32> -> vector<2x384xf32>
    %47 = vector.extract_strided_slice %45 {offsets = [0, 0], sizes = [2, 256], strides = [1, 1]} : vector<2x384xf32> to vector<2x256xf32>
    %48 = vector.extract_strided_slice %46 {offsets = [0, 0], sizes = [2, 256], strides = [1, 1]} : vector<2x384xf32> to vector<2x256xf32>
    %49 = arith.addf %47, %48 : vector<2x256xf32>
    %50 = arith.negf %49 : vector<2x256xf32>
    %51 = math.exp %50 : vector<2x256xf32>
    %cst_38 = arith.constant 1.000000e+00 : f32
    %52 = vector.broadcast %cst_38 : f32 to vector<2x256xf32>
    %53 = arith.addf %52, %51 : vector<2x256xf32>
    %54 = arith.divf %52, %53 : vector<2x256xf32>
    %55 = vector.extract_strided_slice %54 {offsets = [0, 0], sizes = [2, 128], strides = [1, 1]} : vector<2x256xf32> to vector<2x128xf32>
    %56 = vector.extract_strided_slice %54 {offsets = [0, 128], sizes = [2, 128], strides = [1, 1]} : vector<2x256xf32> to vector<2x128xf32>
    %57 = vector.extract_strided_slice %45 {offsets = [0, 256], sizes = [2, 128], strides = [1, 1]} : vector<2x384xf32> to vector<2x128xf32>
    %58 = vector.extract_strided_slice %46 {offsets = [0, 256], sizes = [2, 128], strides = [1, 1]} : vector<2x384xf32> to vector<2x128xf32>
    %59 = vector.broadcast %19 : vector<1x128xf32> to vector<2x128xf32>
    %60 = arith.addf %58, %59 : vector<2x128xf32>
    %61 = arith.mulf %55, %60 : vector<2x128xf32>
    %62 = arith.addf %57, %61 : vector<2x128xf32>
    %63 = math.tanh %62 : vector<2x128xf32>
    %cst_39 = arith.constant 1.000000e+00 : f32
    %64 = vector.broadcast %cst_39 : f32 to vector<2x128xf32>
    %65 = arith.subf %64, %56 : vector<2x128xf32>
    %66 = arith.mulf %65, %63 : vector<2x128xf32>
    %67 = arith.mulf %56, %44 : vector<2x128xf32>
    %68 = arith.addf %66, %67 : vector<2x128xf32>
    %cst_40 = arith.constant dense<0.000000e+00> : vector<2x384xf32>
    %69 = tpu.matmul %44, %3, %cst_40 {dimension_numbers = #tpu.dot_dimension_numbers<[1], [0], [0], [1], [0, 0, 1, 1], [], []>} : vector<2x128xf32>, vector<128x384xf32>, vector<2x384xf32> -> vector<2x384xf32>
    %70 = vector.broadcast %15 : vector<1x384xf32> to vector<2x384xf32>
    %71 = arith.addf %69, %70 : vector<2x384xf32>
    %72 = vector.extract_strided_slice %71 {offsets = [0, 0], sizes = [2, 256], strides = [1, 1]} : vector<2x384xf32> to vector<2x256xf32>
    %73 = arith.negf %72 : vector<2x256xf32>
    %74 = math.exp %73 : vector<2x256xf32>
    %cst_41 = arith.constant 1.000000e+00 : f32
    %75 = vector.broadcast %cst_41 : f32 to vector<2x256xf32>
    %76 = arith.addf %75, %74 : vector<2x256xf32>
    %77 = arith.divf %75, %76 : vector<2x256xf32>
    %78 = vector.extract_strided_slice %77 {offsets = [0, 0], sizes = [2, 128], strides = [1, 1]} : vector<2x256xf32> to vector<2x128xf32>
    %79 = vector.extract_strided_slice %77 {offsets = [0, 128], sizes = [2, 128], strides = [1, 1]} : vector<2x256xf32> to vector<2x128xf32>
    %80 = vector.extract_strided_slice %71 {offsets = [0, 256], sizes = [2, 128], strides = [1, 1]} : vector<2x384xf32> to vector<2x128xf32>
    %81 = vector.broadcast %21 : vector<1x128xf32> to vector<2x128xf32>
    %82 = arith.mulf %78, %81 : vector<2x128xf32>
    %83 = arith.addf %80, %82 : vector<2x128xf32>
    %84 = math.tanh %83 : vector<2x128xf32>
    %cst_42 = arith.constant 1.000000e+00 : f32
    %85 = vector.broadcast %cst_42 : f32 to vector<2x128xf32>
    %86 = arith.subf %85, %79 : vector<2x128xf32>
    %87 = arith.mulf %86, %84 : vector<2x128xf32>
    %88 = vector.extract_strided_slice %27 {offsets = [4, 0], sizes = [2, 384], strides = [1, 1]} : vector<16x384xf32> to vector<2x384xf32>
    %cst_43 = arith.constant dense<0.000000e+00> : vector<2x384xf32>
    %89 = tpu.matmul %68, %7, %cst_43 {dimension_numbers = #tpu.dot_dimension_numbers<[1], [0], [0], [1], [0, 0, 1, 1], [], []>} : vector<2x128xf32>, vector<128x384xf32>, vector<2x384xf32> -> vector<2x384xf32>
    %90 = vector.extract_strided_slice %88 {offsets = [0, 0], sizes = [2, 256], strides = [1, 1]} : vector<2x384xf32> to vector<2x256xf32>
    %91 = vector.extract_strided_slice %89 {offsets = [0, 0], sizes = [2, 256], strides = [1, 1]} : vector<2x384xf32> to vector<2x256xf32>
    %92 = arith.addf %90, %91 : vector<2x256xf32>
    %93 = arith.negf %92 : vector<2x256xf32>
    %94 = math.exp %93 : vector<2x256xf32>
    %cst_44 = arith.constant 1.000000e+00 : f32
    %95 = vector.broadcast %cst_44 : f32 to vector<2x256xf32>
    %96 = arith.addf %95, %94 : vector<2x256xf32>
    %97 = arith.divf %95, %96 : vector<2x256xf32>
    %98 = vector.extract_strided_slice %97 {offsets = [0, 0], sizes = [2, 128], strides = [1, 1]} : vector<2x256xf32> to vector<2x128xf32>
    %99 = vector.extract_strided_slice %97 {offsets = [0, 128], sizes = [2, 128], strides = [1, 1]} : vector<2x256xf32> to vector<2x128xf32>
    %100 = vector.extract_strided_slice %88 {offsets = [0, 256], sizes = [2, 128], strides = [1, 1]} : vector<2x384xf32> to vector<2x128xf32>
    %101 = vector.extract_strided_slice %89 {offsets = [0, 256], sizes = [2, 128], strides = [1, 1]} : vector<2x384xf32> to vector<2x128xf32>
    %102 = vector.broadcast %19 : vector<1x128xf32> to vector<2x128xf32>
    %103 = arith.addf %101, %102 : vector<2x128xf32>
    %104 = arith.mulf %98, %103 : vector<2x128xf32>
    %105 = arith.addf %100, %104 : vector<2x128xf32>
    %106 = math.tanh %105 : vector<2x128xf32>
    %cst_45 = arith.constant 1.000000e+00 : f32
    %107 = vector.broadcast %cst_45 : f32 to vector<2x128xf32>
    %108 = arith.subf %107, %99 : vector<2x128xf32>
    %109 = arith.mulf %108, %106 : vector<2x128xf32>
    %110 = arith.mulf %99, %68 : vector<2x128xf32>
    %111 = arith.addf %109, %110 : vector<2x128xf32>
    %cst_46 = arith.constant dense<0.000000e+00> : vector<2x384xf32>
    %112 = tpu.matmul %68, %3, %cst_46 {dimension_numbers = #tpu.dot_dimension_numbers<[1], [0], [0], [1], [0, 0, 1, 1], [], []>} : vector<2x128xf32>, vector<128x384xf32>, vector<2x384xf32> -> vector<2x384xf32>
    %113 = vector.broadcast %15 : vector<1x384xf32> to vector<2x384xf32>
    %114 = arith.addf %112, %113 : vector<2x384xf32>
    %cst_47 = arith.constant dense<0.000000e+00> : vector<2x384xf32>
    %115 = tpu.matmul %87, %9, %cst_47 {dimension_numbers = #tpu.dot_dimension_numbers<[1], [0], [0], [1], [0, 0, 1, 1], [], []>} : vector<2x128xf32>, vector<128x384xf32>, vector<2x384xf32> -> vector<2x384xf32>
    %116 = vector.extract_strided_slice %114 {offsets = [0, 0], sizes = [2, 256], strides = [1, 1]} : vector<2x384xf32> to vector<2x256xf32>
    %117 = vector.extract_strided_slice %115 {offsets = [0, 0], sizes = [2, 256], strides = [1, 1]} : vector<2x384xf32> to vector<2x256xf32>
    %118 = arith.addf %116, %117 : vector<2x256xf32>
    %119 = arith.negf %118 : vector<2x256xf32>
    %120 = math.exp %119 : vector<2x256xf32>
    %cst_48 = arith.constant 1.000000e+00 : f32
    %121 = vector.broadcast %cst_48 : f32 to vector<2x256xf32>
    %122 = arith.addf %121, %120 : vector<2x256xf32>
    %123 = arith.divf %121, %122 : vector<2x256xf32>
    %124 = vector.extract_strided_slice %123 {offsets = [0, 0], sizes = [2, 128], strides = [1, 1]} : vector<2x256xf32> to vector<2x128xf32>
    %125 = vector.extract_strided_slice %123 {offsets = [0, 128], sizes = [2, 128], strides = [1, 1]} : vector<2x256xf32> to vector<2x128xf32>
    %126 = vector.extract_strided_slice %114 {offsets = [0, 256], sizes = [2, 128], strides = [1, 1]} : vector<2x384xf32> to vector<2x128xf32>
    %127 = vector.extract_strided_slice %115 {offsets = [0, 256], sizes = [2, 128], strides = [1, 1]} : vector<2x384xf32> to vector<2x128xf32>
    %128 = vector.broadcast %21 : vector<1x128xf32> to vector<2x128xf32>
    %129 = arith.addf %127, %128 : vector<2x128xf32>
    %130 = arith.mulf %124, %129 : vector<2x128xf32>
    %131 = arith.addf %126, %130 : vector<2x128xf32>
    %132 = math.tanh %131 : vector<2x128xf32>
    %cst_49 = arith.constant 1.000000e+00 : f32
    %133 = vector.broadcast %cst_49 : f32 to vector<2x128xf32>
    %134 = arith.subf %133, %125 : vector<2x128xf32>
    %135 = arith.mulf %134, %132 : vector<2x128xf32>
    %136 = arith.mulf %125, %87 : vector<2x128xf32>
    %137 = arith.addf %135, %136 : vector<2x128xf32>
    %cst_50 = arith.constant dense<0.000000e+00> : vector<2x384xf32>
    %138 = tpu.matmul %87, %5, %cst_50 {dimension_numbers = #tpu.dot_dimension_numbers<[1], [0], [0], [1], [0, 0, 1, 1], [], []>} : vector<2x128xf32>, vector<128x384xf32>, vector<2x384xf32> -> vector<2x384xf32>
    %139 = vector.broadcast %17 : vector<1x384xf32> to vector<2x384xf32>
    %140 = arith.addf %138, %139 : vector<2x384xf32>
    %141 = vector.extract_strided_slice %140 {offsets = [0, 0], sizes = [2, 256], strides = [1, 1]} : vector<2x384xf32> to vector<2x256xf32>
    %142 = arith.negf %141 : vector<2x256xf32>
    %143 = math.exp %142 : vector<2x256xf32>
    %cst_51 = arith.constant 1.000000e+00 : f32
    %144 = vector.broadcast %cst_51 : f32 to vector<2x256xf32>
    %145 = arith.addf %144, %143 : vector<2x256xf32>
    %146 = arith.divf %144, %145 : vector<2x256xf32>
    %147 = vector.extract_strided_slice %146 {offsets = [0, 0], sizes = [2, 128], strides = [1, 1]} : vector<2x256xf32> to vector<2x128xf32>
    %148 = vector.extract_strided_slice %146 {offsets = [0, 128], sizes = [2, 128], strides = [1, 1]} : vector<2x256xf32> to vector<2x128xf32>
    %149 = vector.extract_strided_slice %140 {offsets = [0, 256], sizes = [2, 128], strides = [1, 1]} : vector<2x384xf32> to vector<2x128xf32>
    %150 = vector.broadcast %23 : vector<1x128xf32> to vector<2x128xf32>
    %151 = arith.mulf %147, %150 : vector<2x128xf32>
    %152 = arith.addf %149, %151 : vector<2x128xf32>
    %153 = math.tanh %152 : vector<2x128xf32>
    %cst_52 = arith.constant 1.000000e+00 : f32
    %154 = vector.broadcast %cst_52 : f32 to vector<2x128xf32>
    %155 = arith.subf %154, %148 : vector<2x128xf32>
    %156 = arith.mulf %155, %153 : vector<2x128xf32>
    %157 = vector.extract_strided_slice %27 {offsets = [6, 0], sizes = [2, 384], strides = [1, 1]} : vector<16x384xf32> to vector<2x384xf32>
    %cst_53 = arith.constant dense<0.000000e+00> : vector<2x384xf32>
    %158 = tpu.matmul %111, %7, %cst_53 {dimension_numbers = #tpu.dot_dimension_numbers<[1], [0], [0], [1], [0, 0, 1, 1], [], []>} : vector<2x128xf32>, vector<128x384xf32>, vector<2x384xf32> -> vector<2x384xf32>
    %159 = vector.extract_strided_slice %157 {offsets = [0, 0], sizes = [2, 256], strides = [1, 1]} : vector<2x384xf32> to vector<2x256xf32>
    %160 = vector.extract_strided_slice %158 {offsets = [0, 0], sizes = [2, 256], strides = [1, 1]} : vector<2x384xf32> to vector<2x256xf32>
    %161 = arith.addf %159, %160 : vector<2x256xf32>
    %162 = arith.negf %161 : vector<2x256xf32>
    %163 = math.exp %162 : vector<2x256xf32>
    %cst_54 = arith.constant 1.000000e+00 : f32
    %164 = vector.broadcast %cst_54 : f32 to vector<2x256xf32>
    %165 = arith.addf %164, %163 : vector<2x256xf32>
    %166 = arith.divf %164, %165 : vector<2x256xf32>
    %167 = vector.extract_strided_slice %166 {offsets = [0, 0], sizes = [2, 128], strides = [1, 1]} : vector<2x256xf32> to vector<2x128xf32>
    %168 = vector.extract_strided_slice %166 {offsets = [0, 128], sizes = [2, 128], strides = [1, 1]} : vector<2x256xf32> to vector<2x128xf32>
    %169 = vector.extract_strided_slice %157 {offsets = [0, 256], sizes = [2, 128], strides = [1, 1]} : vector<2x384xf32> to vector<2x128xf32>
    %170 = vector.extract_strided_slice %158 {offsets = [0, 256], sizes = [2, 128], strides = [1, 1]} : vector<2x384xf32> to vector<2x128xf32>
    %171 = vector.broadcast %19 : vector<1x128xf32> to vector<2x128xf32>
    %172 = arith.addf %170, %171 : vector<2x128xf32>
    %173 = arith.mulf %167, %172 : vector<2x128xf32>
    %174 = arith.addf %169, %173 : vector<2x128xf32>
    %175 = math.tanh %174 : vector<2x128xf32>
    %cst_55 = arith.constant 1.000000e+00 : f32
    %176 = vector.broadcast %cst_55 : f32 to vector<2x128xf32>
    %177 = arith.subf %176, %168 : vector<2x128xf32>
    %178 = arith.mulf %177, %175 : vector<2x128xf32>
    %179 = arith.mulf %168, %111 : vector<2x128xf32>
    %180 = arith.addf %178, %179 : vector<2x128xf32>
    %cst_56 = arith.constant dense<0.000000e+00> : vector<2x384xf32>
    %181 = tpu.matmul %111, %3, %cst_56 {dimension_numbers = #tpu.dot_dimension_numbers<[1], [0], [0], [1], [0, 0, 1, 1], [], []>} : vector<2x128xf32>, vector<128x384xf32>, vector<2x384xf32> -> vector<2x384xf32>
    %182 = vector.broadcast %15 : vector<1x384xf32> to vector<2x384xf32>
    %183 = arith.addf %181, %182 : vector<2x384xf32>
    %cst_57 = arith.constant dense<0.000000e+00> : vector<2x384xf32>
    %184 = tpu.matmul %137, %9, %cst_57 {dimension_numbers = #tpu.dot_dimension_numbers<[1], [0], [0], [1], [0, 0, 1, 1], [], []>} : vector<2x128xf32>, vector<128x384xf32>, vector<2x384xf32> -> vector<2x384xf32>
    %185 = vector.extract_strided_slice %183 {offsets = [0, 0], sizes = [2, 256], strides = [1, 1]} : vector<2x384xf32> to vector<2x256xf32>
    %186 = vector.extract_strided_slice %184 {offsets = [0, 0], sizes = [2, 256], strides = [1, 1]} : vector<2x384xf32> to vector<2x256xf32>
    %187 = arith.addf %185, %186 : vector<2x256xf32>
    %188 = arith.negf %187 : vector<2x256xf32>
    %189 = math.exp %188 : vector<2x256xf32>
    %cst_58 = arith.constant 1.000000e+00 : f32
    %190 = vector.broadcast %cst_58 : f32 to vector<2x256xf32>
    %191 = arith.addf %190, %189 : vector<2x256xf32>
    %192 = arith.divf %190, %191 : vector<2x256xf32>
    %193 = vector.extract_strided_slice %192 {offsets = [0, 0], sizes = [2, 128], strides = [1, 1]} : vector<2x256xf32> to vector<2x128xf32>
    %194 = vector.extract_strided_slice %192 {offsets = [0, 128], sizes = [2, 128], strides = [1, 1]} : vector<2x256xf32> to vector<2x128xf32>
    %195 = vector.extract_strided_slice %183 {offsets = [0, 256], sizes = [2, 128], strides = [1, 1]} : vector<2x384xf32> to vector<2x128xf32>
    %196 = vector.extract_strided_slice %184 {offsets = [0, 256], sizes = [2, 128], strides = [1, 1]} : vector<2x384xf32> to vector<2x128xf32>
    %197 = vector.broadcast %21 : vector<1x128xf32> to vector<2x128xf32>
    %198 = arith.addf %196, %197 : vector<2x128xf32>
    %199 = arith.mulf %193, %198 : vector<2x128xf32>
    %200 = arith.addf %195, %199 : vector<2x128xf32>
    %201 = math.tanh %200 : vector<2x128xf32>
    %cst_59 = arith.constant 1.000000e+00 : f32
    %202 = vector.broadcast %cst_59 : f32 to vector<2x128xf32>
    %203 = arith.subf %202, %194 : vector<2x128xf32>
    %204 = arith.mulf %203, %201 : vector<2x128xf32>
    %205 = arith.mulf %194, %137 : vector<2x128xf32>
    %206 = arith.addf %204, %205 : vector<2x128xf32>
    %cst_60 = arith.constant dense<0.000000e+00> : vector<2x384xf32>
    %207 = tpu.matmul %137, %5, %cst_60 {dimension_numbers = #tpu.dot_dimension_numbers<[1], [0], [0], [1], [0, 0, 1, 1], [], []>} : vector<2x128xf32>, vector<128x384xf32>, vector<2x384xf32> -> vector<2x384xf32>
    %208 = vector.broadcast %17 : vector<1x384xf32> to vector<2x384xf32>
    %209 = arith.addf %207, %208 : vector<2x384xf32>
    %cst_61 = arith.constant dense<0.000000e+00> : vector<2x384xf32>
    %210 = tpu.matmul %156, %11, %cst_61 {dimension_numbers = #tpu.dot_dimension_numbers<[1], [0], [0], [1], [0, 0, 1, 1], [], []>} : vector<2x128xf32>, vector<128x384xf32>, vector<2x384xf32> -> vector<2x384xf32>
    %211 = vector.extract_strided_slice %209 {offsets = [0, 0], sizes = [2, 256], strides = [1, 1]} : vector<2x384xf32> to vector<2x256xf32>
    %212 = vector.extract_strided_slice %210 {offsets = [0, 0], sizes = [2, 256], strides = [1, 1]} : vector<2x384xf32> to vector<2x256xf32>
    %213 = arith.addf %211, %212 : vector<2x256xf32>
    %214 = arith.negf %213 : vector<2x256xf32>
    %215 = math.exp %214 : vector<2x256xf32>
    %cst_62 = arith.constant 1.000000e+00 : f32
    %216 = vector.broadcast %cst_62 : f32 to vector<2x256xf32>
    %217 = arith.addf %216, %215 : vector<2x256xf32>
    %218 = arith.divf %216, %217 : vector<2x256xf32>
    %219 = vector.extract_strided_slice %218 {offsets = [0, 0], sizes = [2, 128], strides = [1, 1]} : vector<2x256xf32> to vector<2x128xf32>
    %220 = vector.extract_strided_slice %218 {offsets = [0, 128], sizes = [2, 128], strides = [1, 1]} : vector<2x256xf32> to vector<2x128xf32>
    %221 = vector.extract_strided_slice %209 {offsets = [0, 256], sizes = [2, 128], strides = [1, 1]} : vector<2x384xf32> to vector<2x128xf32>
    %222 = vector.extract_strided_slice %210 {offsets = [0, 256], sizes = [2, 128], strides = [1, 1]} : vector<2x384xf32> to vector<2x128xf32>
    %223 = vector.broadcast %23 : vector<1x128xf32> to vector<2x128xf32>
    %224 = arith.addf %222, %223 : vector<2x128xf32>
    %225 = arith.mulf %219, %224 : vector<2x128xf32>
    %226 = arith.addf %221, %225 : vector<2x128xf32>
    %227 = math.tanh %226 : vector<2x128xf32>
    %cst_63 = arith.constant 1.000000e+00 : f32
    %228 = vector.broadcast %cst_63 : f32 to vector<2x128xf32>
    %229 = arith.subf %228, %220 : vector<2x128xf32>
    %230 = arith.mulf %229, %227 : vector<2x128xf32>
    %231 = arith.mulf %220, %156 : vector<2x128xf32>
    %232 = arith.addf %230, %231 : vector<2x128xf32>
    %233 = vector.extract_strided_slice %27 {offsets = [8, 0], sizes = [2, 384], strides = [1, 1]} : vector<16x384xf32> to vector<2x384xf32>
    %cst_64 = arith.constant dense<0.000000e+00> : vector<2x384xf32>
    %234 = tpu.matmul %180, %7, %cst_64 {dimension_numbers = #tpu.dot_dimension_numbers<[1], [0], [0], [1], [0, 0, 1, 1], [], []>} : vector<2x128xf32>, vector<128x384xf32>, vector<2x384xf32> -> vector<2x384xf32>
    %235 = vector.extract_strided_slice %233 {offsets = [0, 0], sizes = [2, 256], strides = [1, 1]} : vector<2x384xf32> to vector<2x256xf32>
    %236 = vector.extract_strided_slice %234 {offsets = [0, 0], sizes = [2, 256], strides = [1, 1]} : vector<2x384xf32> to vector<2x256xf32>
    %237 = arith.addf %235, %236 : vector<2x256xf32>
    %238 = arith.negf %237 : vector<2x256xf32>
    %239 = math.exp %238 : vector<2x256xf32>
    %cst_65 = arith.constant 1.000000e+00 : f32
    %240 = vector.broadcast %cst_65 : f32 to vector<2x256xf32>
    %241 = arith.addf %240, %239 : vector<2x256xf32>
    %242 = arith.divf %240, %241 : vector<2x256xf32>
    %243 = vector.extract_strided_slice %242 {offsets = [0, 0], sizes = [2, 128], strides = [1, 1]} : vector<2x256xf32> to vector<2x128xf32>
    %244 = vector.extract_strided_slice %242 {offsets = [0, 128], sizes = [2, 128], strides = [1, 1]} : vector<2x256xf32> to vector<2x128xf32>
    %245 = vector.extract_strided_slice %233 {offsets = [0, 256], sizes = [2, 128], strides = [1, 1]} : vector<2x384xf32> to vector<2x128xf32>
    %246 = vector.extract_strided_slice %234 {offsets = [0, 256], sizes = [2, 128], strides = [1, 1]} : vector<2x384xf32> to vector<2x128xf32>
    %247 = vector.broadcast %19 : vector<1x128xf32> to vector<2x128xf32>
    %248 = arith.addf %246, %247 : vector<2x128xf32>
    %249 = arith.mulf %243, %248 : vector<2x128xf32>
    %250 = arith.addf %245, %249 : vector<2x128xf32>
    %251 = math.tanh %250 : vector<2x128xf32>
    %cst_66 = arith.constant 1.000000e+00 : f32
    %252 = vector.broadcast %cst_66 : f32 to vector<2x128xf32>
    %253 = arith.subf %252, %244 : vector<2x128xf32>
    %254 = arith.mulf %253, %251 : vector<2x128xf32>
    %255 = arith.mulf %244, %180 : vector<2x128xf32>
    %256 = arith.addf %254, %255 : vector<2x128xf32>
    %cst_67 = arith.constant dense<0.000000e+00> : vector<2x384xf32>
    %257 = tpu.matmul %180, %3, %cst_67 {dimension_numbers = #tpu.dot_dimension_numbers<[1], [0], [0], [1], [0, 0, 1, 1], [], []>} : vector<2x128xf32>, vector<128x384xf32>, vector<2x384xf32> -> vector<2x384xf32>
    %258 = vector.broadcast %15 : vector<1x384xf32> to vector<2x384xf32>
    %259 = arith.addf %257, %258 : vector<2x384xf32>
    %cst_68 = arith.constant dense<0.000000e+00> : vector<2x384xf32>
    %260 = tpu.matmul %206, %9, %cst_68 {dimension_numbers = #tpu.dot_dimension_numbers<[1], [0], [0], [1], [0, 0, 1, 1], [], []>} : vector<2x128xf32>, vector<128x384xf32>, vector<2x384xf32> -> vector<2x384xf32>
    %261 = vector.extract_strided_slice %259 {offsets = [0, 0], sizes = [2, 256], strides = [1, 1]} : vector<2x384xf32> to vector<2x256xf32>
    %262 = vector.extract_strided_slice %260 {offsets = [0, 0], sizes = [2, 256], strides = [1, 1]} : vector<2x384xf32> to vector<2x256xf32>
    %263 = arith.addf %261, %262 : vector<2x256xf32>
    %264 = arith.negf %263 : vector<2x256xf32>
    %265 = math.exp %264 : vector<2x256xf32>
    %cst_69 = arith.constant 1.000000e+00 : f32
    %266 = vector.broadcast %cst_69 : f32 to vector<2x256xf32>
    %267 = arith.addf %266, %265 : vector<2x256xf32>
    %268 = arith.divf %266, %267 : vector<2x256xf32>
    %269 = vector.extract_strided_slice %268 {offsets = [0, 0], sizes = [2, 128], strides = [1, 1]} : vector<2x256xf32> to vector<2x128xf32>
    %270 = vector.extract_strided_slice %268 {offsets = [0, 128], sizes = [2, 128], strides = [1, 1]} : vector<2x256xf32> to vector<2x128xf32>
    %271 = vector.extract_strided_slice %259 {offsets = [0, 256], sizes = [2, 128], strides = [1, 1]} : vector<2x384xf32> to vector<2x128xf32>
    %272 = vector.extract_strided_slice %260 {offsets = [0, 256], sizes = [2, 128], strides = [1, 1]} : vector<2x384xf32> to vector<2x128xf32>
    %273 = vector.broadcast %21 : vector<1x128xf32> to vector<2x128xf32>
    %274 = arith.addf %272, %273 : vector<2x128xf32>
    %275 = arith.mulf %269, %274 : vector<2x128xf32>
    %276 = arith.addf %271, %275 : vector<2x128xf32>
    %277 = math.tanh %276 : vector<2x128xf32>
    %cst_70 = arith.constant 1.000000e+00 : f32
    %278 = vector.broadcast %cst_70 : f32 to vector<2x128xf32>
    %279 = arith.subf %278, %270 : vector<2x128xf32>
    %280 = arith.mulf %279, %277 : vector<2x128xf32>
    %281 = arith.mulf %270, %206 : vector<2x128xf32>
    %282 = arith.addf %280, %281 : vector<2x128xf32>
    %cst_71 = arith.constant dense<0.000000e+00> : vector<2x384xf32>
    %283 = tpu.matmul %206, %5, %cst_71 {dimension_numbers = #tpu.dot_dimension_numbers<[1], [0], [0], [1], [0, 0, 1, 1], [], []>} : vector<2x128xf32>, vector<128x384xf32>, vector<2x384xf32> -> vector<2x384xf32>
    %284 = vector.broadcast %17 : vector<1x384xf32> to vector<2x384xf32>
    %285 = arith.addf %283, %284 : vector<2x384xf32>
    %cst_72 = arith.constant dense<0.000000e+00> : vector<2x384xf32>
    %286 = tpu.matmul %232, %11, %cst_72 {dimension_numbers = #tpu.dot_dimension_numbers<[1], [0], [0], [1], [0, 0, 1, 1], [], []>} : vector<2x128xf32>, vector<128x384xf32>, vector<2x384xf32> -> vector<2x384xf32>
    %287 = vector.extract_strided_slice %285 {offsets = [0, 0], sizes = [2, 256], strides = [1, 1]} : vector<2x384xf32> to vector<2x256xf32>
    %288 = vector.extract_strided_slice %286 {offsets = [0, 0], sizes = [2, 256], strides = [1, 1]} : vector<2x384xf32> to vector<2x256xf32>
    %289 = arith.addf %287, %288 : vector<2x256xf32>
    %290 = arith.negf %289 : vector<2x256xf32>
    %291 = math.exp %290 : vector<2x256xf32>
    %cst_73 = arith.constant 1.000000e+00 : f32
    %292 = vector.broadcast %cst_73 : f32 to vector<2x256xf32>
    %293 = arith.addf %292, %291 : vector<2x256xf32>
    %294 = arith.divf %292, %293 : vector<2x256xf32>
    %295 = vector.extract_strided_slice %294 {offsets = [0, 0], sizes = [2, 128], strides = [1, 1]} : vector<2x256xf32> to vector<2x128xf32>
    %296 = vector.extract_strided_slice %294 {offsets = [0, 128], sizes = [2, 128], strides = [1, 1]} : vector<2x256xf32> to vector<2x128xf32>
    %297 = vector.extract_strided_slice %285 {offsets = [0, 256], sizes = [2, 128], strides = [1, 1]} : vector<2x384xf32> to vector<2x128xf32>
    %298 = vector.extract_strided_slice %286 {offsets = [0, 256], sizes = [2, 128], strides = [1, 1]} : vector<2x384xf32> to vector<2x128xf32>
    %299 = vector.broadcast %23 : vector<1x128xf32> to vector<2x128xf32>
    %300 = arith.addf %298, %299 : vector<2x128xf32>
    %301 = arith.mulf %295, %300 : vector<2x128xf32>
    %302 = arith.addf %297, %301 : vector<2x128xf32>
    %303 = math.tanh %302 : vector<2x128xf32>
    %cst_74 = arith.constant 1.000000e+00 : f32
    %304 = vector.broadcast %cst_74 : f32 to vector<2x128xf32>
    %305 = arith.subf %304, %296 : vector<2x128xf32>
    %306 = arith.mulf %305, %303 : vector<2x128xf32>
    %307 = arith.mulf %296, %232 : vector<2x128xf32>
    %308 = arith.addf %306, %307 : vector<2x128xf32>
    %309 = vector.extract_strided_slice %27 {offsets = [10, 0], sizes = [2, 384], strides = [1, 1]} : vector<16x384xf32> to vector<2x384xf32>
    %cst_75 = arith.constant dense<0.000000e+00> : vector<2x384xf32>
    %310 = tpu.matmul %256, %7, %cst_75 {dimension_numbers = #tpu.dot_dimension_numbers<[1], [0], [0], [1], [0, 0, 1, 1], [], []>} : vector<2x128xf32>, vector<128x384xf32>, vector<2x384xf32> -> vector<2x384xf32>
    %311 = vector.extract_strided_slice %309 {offsets = [0, 0], sizes = [2, 256], strides = [1, 1]} : vector<2x384xf32> to vector<2x256xf32>
    %312 = vector.extract_strided_slice %310 {offsets = [0, 0], sizes = [2, 256], strides = [1, 1]} : vector<2x384xf32> to vector<2x256xf32>
    %313 = arith.addf %311, %312 : vector<2x256xf32>
    %314 = arith.negf %313 : vector<2x256xf32>
    %315 = math.exp %314 : vector<2x256xf32>
    %cst_76 = arith.constant 1.000000e+00 : f32
    %316 = vector.broadcast %cst_76 : f32 to vector<2x256xf32>
    %317 = arith.addf %316, %315 : vector<2x256xf32>
    %318 = arith.divf %316, %317 : vector<2x256xf32>
    %319 = vector.extract_strided_slice %318 {offsets = [0, 0], sizes = [2, 128], strides = [1, 1]} : vector<2x256xf32> to vector<2x128xf32>
    %320 = vector.extract_strided_slice %318 {offsets = [0, 128], sizes = [2, 128], strides = [1, 1]} : vector<2x256xf32> to vector<2x128xf32>
    %321 = vector.extract_strided_slice %309 {offsets = [0, 256], sizes = [2, 128], strides = [1, 1]} : vector<2x384xf32> to vector<2x128xf32>
    %322 = vector.extract_strided_slice %310 {offsets = [0, 256], sizes = [2, 128], strides = [1, 1]} : vector<2x384xf32> to vector<2x128xf32>
    %323 = vector.broadcast %19 : vector<1x128xf32> to vector<2x128xf32>
    %324 = arith.addf %322, %323 : vector<2x128xf32>
    %325 = arith.mulf %319, %324 : vector<2x128xf32>
    %326 = arith.addf %321, %325 : vector<2x128xf32>
    %327 = math.tanh %326 : vector<2x128xf32>
    %cst_77 = arith.constant 1.000000e+00 : f32
    %328 = vector.broadcast %cst_77 : f32 to vector<2x128xf32>
    %329 = arith.subf %328, %320 : vector<2x128xf32>
    %330 = arith.mulf %329, %327 : vector<2x128xf32>
    %331 = arith.mulf %320, %256 : vector<2x128xf32>
    %332 = arith.addf %330, %331 : vector<2x128xf32>
    %cst_78 = arith.constant dense<0.000000e+00> : vector<2x384xf32>
    %333 = tpu.matmul %256, %3, %cst_78 {dimension_numbers = #tpu.dot_dimension_numbers<[1], [0], [0], [1], [0, 0, 1, 1], [], []>} : vector<2x128xf32>, vector<128x384xf32>, vector<2x384xf32> -> vector<2x384xf32>
    %334 = vector.broadcast %15 : vector<1x384xf32> to vector<2x384xf32>
    %335 = arith.addf %333, %334 : vector<2x384xf32>
    %cst_79 = arith.constant dense<0.000000e+00> : vector<2x384xf32>
    %336 = tpu.matmul %282, %9, %cst_79 {dimension_numbers = #tpu.dot_dimension_numbers<[1], [0], [0], [1], [0, 0, 1, 1], [], []>} : vector<2x128xf32>, vector<128x384xf32>, vector<2x384xf32> -> vector<2x384xf32>
    %337 = vector.extract_strided_slice %335 {offsets = [0, 0], sizes = [2, 256], strides = [1, 1]} : vector<2x384xf32> to vector<2x256xf32>
    %338 = vector.extract_strided_slice %336 {offsets = [0, 0], sizes = [2, 256], strides = [1, 1]} : vector<2x384xf32> to vector<2x256xf32>
    %339 = arith.addf %337, %338 : vector<2x256xf32>
    %340 = arith.negf %339 : vector<2x256xf32>
    %341 = math.exp %340 : vector<2x256xf32>
    %cst_80 = arith.constant 1.000000e+00 : f32
    %342 = vector.broadcast %cst_80 : f32 to vector<2x256xf32>
    %343 = arith.addf %342, %341 : vector<2x256xf32>
    %344 = arith.divf %342, %343 : vector<2x256xf32>
    %345 = vector.extract_strided_slice %344 {offsets = [0, 0], sizes = [2, 128], strides = [1, 1]} : vector<2x256xf32> to vector<2x128xf32>
    %346 = vector.extract_strided_slice %344 {offsets = [0, 128], sizes = [2, 128], strides = [1, 1]} : vector<2x256xf32> to vector<2x128xf32>
    %347 = vector.extract_strided_slice %335 {offsets = [0, 256], sizes = [2, 128], strides = [1, 1]} : vector<2x384xf32> to vector<2x128xf32>
    %348 = vector.extract_strided_slice %336 {offsets = [0, 256], sizes = [2, 128], strides = [1, 1]} : vector<2x384xf32> to vector<2x128xf32>
    %349 = vector.broadcast %21 : vector<1x128xf32> to vector<2x128xf32>
    %350 = arith.addf %348, %349 : vector<2x128xf32>
    %351 = arith.mulf %345, %350 : vector<2x128xf32>
    %352 = arith.addf %347, %351 : vector<2x128xf32>
    %353 = math.tanh %352 : vector<2x128xf32>
    %cst_81 = arith.constant 1.000000e+00 : f32
    %354 = vector.broadcast %cst_81 : f32 to vector<2x128xf32>
    %355 = arith.subf %354, %346 : vector<2x128xf32>
    %356 = arith.mulf %355, %353 : vector<2x128xf32>
    %357 = arith.mulf %346, %282 : vector<2x128xf32>
    %358 = arith.addf %356, %357 : vector<2x128xf32>
    %cst_82 = arith.constant dense<0.000000e+00> : vector<2x384xf32>
    %359 = tpu.matmul %282, %5, %cst_82 {dimension_numbers = #tpu.dot_dimension_numbers<[1], [0], [0], [1], [0, 0, 1, 1], [], []>} : vector<2x128xf32>, vector<128x384xf32>, vector<2x384xf32> -> vector<2x384xf32>
    %360 = vector.broadcast %17 : vector<1x384xf32> to vector<2x384xf32>
    %361 = arith.addf %359, %360 : vector<2x384xf32>
    %cst_83 = arith.constant dense<0.000000e+00> : vector<2x384xf32>
    %362 = tpu.matmul %308, %11, %cst_83 {dimension_numbers = #tpu.dot_dimension_numbers<[1], [0], [0], [1], [0, 0, 1, 1], [], []>} : vector<2x128xf32>, vector<128x384xf32>, vector<2x384xf32> -> vector<2x384xf32>
    %363 = vector.extract_strided_slice %361 {offsets = [0, 0], sizes = [2, 256], strides = [1, 1]} : vector<2x384xf32> to vector<2x256xf32>
    %364 = vector.extract_strided_slice %362 {offsets = [0, 0], sizes = [2, 256], strides = [1, 1]} : vector<2x384xf32> to vector<2x256xf32>
    %365 = arith.addf %363, %364 : vector<2x256xf32>
    %366 = arith.negf %365 : vector<2x256xf32>
    %367 = math.exp %366 : vector<2x256xf32>
    %cst_84 = arith.constant 1.000000e+00 : f32
    %368 = vector.broadcast %cst_84 : f32 to vector<2x256xf32>
    %369 = arith.addf %368, %367 : vector<2x256xf32>
    %370 = arith.divf %368, %369 : vector<2x256xf32>
    %371 = vector.extract_strided_slice %370 {offsets = [0, 0], sizes = [2, 128], strides = [1, 1]} : vector<2x256xf32> to vector<2x128xf32>
    %372 = vector.extract_strided_slice %370 {offsets = [0, 128], sizes = [2, 128], strides = [1, 1]} : vector<2x256xf32> to vector<2x128xf32>
    %373 = vector.extract_strided_slice %361 {offsets = [0, 256], sizes = [2, 128], strides = [1, 1]} : vector<2x384xf32> to vector<2x128xf32>
    %374 = vector.extract_strided_slice %362 {offsets = [0, 256], sizes = [2, 128], strides = [1, 1]} : vector<2x384xf32> to vector<2x128xf32>
    %375 = vector.broadcast %23 : vector<1x128xf32> to vector<2x128xf32>
    %376 = arith.addf %374, %375 : vector<2x128xf32>
    %377 = arith.mulf %371, %376 : vector<2x128xf32>
    %378 = arith.addf %373, %377 : vector<2x128xf32>
    %379 = math.tanh %378 : vector<2x128xf32>
    %cst_85 = arith.constant 1.000000e+00 : f32
    %380 = vector.broadcast %cst_85 : f32 to vector<2x128xf32>
    %381 = arith.subf %380, %372 : vector<2x128xf32>
    %382 = arith.mulf %381, %379 : vector<2x128xf32>
    %383 = arith.mulf %372, %308 : vector<2x128xf32>
    %384 = arith.addf %382, %383 : vector<2x128xf32>
    %385 = vector.extract_strided_slice %27 {offsets = [12, 0], sizes = [2, 384], strides = [1, 1]} : vector<16x384xf32> to vector<2x384xf32>
    %cst_86 = arith.constant dense<0.000000e+00> : vector<2x384xf32>
    %386 = tpu.matmul %332, %7, %cst_86 {dimension_numbers = #tpu.dot_dimension_numbers<[1], [0], [0], [1], [0, 0, 1, 1], [], []>} : vector<2x128xf32>, vector<128x384xf32>, vector<2x384xf32> -> vector<2x384xf32>
    %387 = vector.extract_strided_slice %385 {offsets = [0, 0], sizes = [2, 256], strides = [1, 1]} : vector<2x384xf32> to vector<2x256xf32>
    %388 = vector.extract_strided_slice %386 {offsets = [0, 0], sizes = [2, 256], strides = [1, 1]} : vector<2x384xf32> to vector<2x256xf32>
    %389 = arith.addf %387, %388 : vector<2x256xf32>
    %390 = arith.negf %389 : vector<2x256xf32>
    %391 = math.exp %390 : vector<2x256xf32>
    %cst_87 = arith.constant 1.000000e+00 : f32
    %392 = vector.broadcast %cst_87 : f32 to vector<2x256xf32>
    %393 = arith.addf %392, %391 : vector<2x256xf32>
    %394 = arith.divf %392, %393 : vector<2x256xf32>
    %395 = vector.extract_strided_slice %394 {offsets = [0, 0], sizes = [2, 128], strides = [1, 1]} : vector<2x256xf32> to vector<2x128xf32>
    %396 = vector.extract_strided_slice %394 {offsets = [0, 128], sizes = [2, 128], strides = [1, 1]} : vector<2x256xf32> to vector<2x128xf32>
    %397 = vector.extract_strided_slice %385 {offsets = [0, 256], sizes = [2, 128], strides = [1, 1]} : vector<2x384xf32> to vector<2x128xf32>
    %398 = vector.extract_strided_slice %386 {offsets = [0, 256], sizes = [2, 128], strides = [1, 1]} : vector<2x384xf32> to vector<2x128xf32>
    %399 = vector.broadcast %19 : vector<1x128xf32> to vector<2x128xf32>
    %400 = arith.addf %398, %399 : vector<2x128xf32>
    %401 = arith.mulf %395, %400 : vector<2x128xf32>
    %402 = arith.addf %397, %401 : vector<2x128xf32>
    %403 = math.tanh %402 : vector<2x128xf32>
    %cst_88 = arith.constant 1.000000e+00 : f32
    %404 = vector.broadcast %cst_88 : f32 to vector<2x128xf32>
    %405 = arith.subf %404, %396 : vector<2x128xf32>
    %406 = arith.mulf %405, %403 : vector<2x128xf32>
    %407 = arith.mulf %396, %332 : vector<2x128xf32>
    %408 = arith.addf %406, %407 : vector<2x128xf32>
    %cst_89 = arith.constant dense<0.000000e+00> : vector<2x384xf32>
    %409 = tpu.matmul %332, %3, %cst_89 {dimension_numbers = #tpu.dot_dimension_numbers<[1], [0], [0], [1], [0, 0, 1, 1], [], []>} : vector<2x128xf32>, vector<128x384xf32>, vector<2x384xf32> -> vector<2x384xf32>
    %410 = vector.broadcast %15 : vector<1x384xf32> to vector<2x384xf32>
    %411 = arith.addf %409, %410 : vector<2x384xf32>
    %cst_90 = arith.constant dense<0.000000e+00> : vector<2x384xf32>
    %412 = tpu.matmul %358, %9, %cst_90 {dimension_numbers = #tpu.dot_dimension_numbers<[1], [0], [0], [1], [0, 0, 1, 1], [], []>} : vector<2x128xf32>, vector<128x384xf32>, vector<2x384xf32> -> vector<2x384xf32>
    %413 = vector.extract_strided_slice %411 {offsets = [0, 0], sizes = [2, 256], strides = [1, 1]} : vector<2x384xf32> to vector<2x256xf32>
    %414 = vector.extract_strided_slice %412 {offsets = [0, 0], sizes = [2, 256], strides = [1, 1]} : vector<2x384xf32> to vector<2x256xf32>
    %415 = arith.addf %413, %414 : vector<2x256xf32>
    %416 = arith.negf %415 : vector<2x256xf32>
    %417 = math.exp %416 : vector<2x256xf32>
    %cst_91 = arith.constant 1.000000e+00 : f32
    %418 = vector.broadcast %cst_91 : f32 to vector<2x256xf32>
    %419 = arith.addf %418, %417 : vector<2x256xf32>
    %420 = arith.divf %418, %419 : vector<2x256xf32>
    %421 = vector.extract_strided_slice %420 {offsets = [0, 0], sizes = [2, 128], strides = [1, 1]} : vector<2x256xf32> to vector<2x128xf32>
    %422 = vector.extract_strided_slice %420 {offsets = [0, 128], sizes = [2, 128], strides = [1, 1]} : vector<2x256xf32> to vector<2x128xf32>
    %423 = vector.extract_strided_slice %411 {offsets = [0, 256], sizes = [2, 128], strides = [1, 1]} : vector<2x384xf32> to vector<2x128xf32>
    %424 = vector.extract_strided_slice %412 {offsets = [0, 256], sizes = [2, 128], strides = [1, 1]} : vector<2x384xf32> to vector<2x128xf32>
    %425 = vector.broadcast %21 : vector<1x128xf32> to vector<2x128xf32>
    %426 = arith.addf %424, %425 : vector<2x128xf32>
    %427 = arith.mulf %421, %426 : vector<2x128xf32>
    %428 = arith.addf %423, %427 : vector<2x128xf32>
    %429 = math.tanh %428 : vector<2x128xf32>
    %cst_92 = arith.constant 1.000000e+00 : f32
    %430 = vector.broadcast %cst_92 : f32 to vector<2x128xf32>
    %431 = arith.subf %430, %422 : vector<2x128xf32>
    %432 = arith.mulf %431, %429 : vector<2x128xf32>
    %433 = arith.mulf %422, %358 : vector<2x128xf32>
    %434 = arith.addf %432, %433 : vector<2x128xf32>
    %cst_93 = arith.constant dense<0.000000e+00> : vector<2x384xf32>
    %435 = tpu.matmul %358, %5, %cst_93 {dimension_numbers = #tpu.dot_dimension_numbers<[1], [0], [0], [1], [0, 0, 1, 1], [], []>} : vector<2x128xf32>, vector<128x384xf32>, vector<2x384xf32> -> vector<2x384xf32>
    %436 = vector.broadcast %17 : vector<1x384xf32> to vector<2x384xf32>
    %437 = arith.addf %435, %436 : vector<2x384xf32>
    %cst_94 = arith.constant dense<0.000000e+00> : vector<2x384xf32>
    %438 = tpu.matmul %384, %11, %cst_94 {dimension_numbers = #tpu.dot_dimension_numbers<[1], [0], [0], [1], [0, 0, 1, 1], [], []>} : vector<2x128xf32>, vector<128x384xf32>, vector<2x384xf32> -> vector<2x384xf32>
    %439 = vector.extract_strided_slice %437 {offsets = [0, 0], sizes = [2, 256], strides = [1, 1]} : vector<2x384xf32> to vector<2x256xf32>
    %440 = vector.extract_strided_slice %438 {offsets = [0, 0], sizes = [2, 256], strides = [1, 1]} : vector<2x384xf32> to vector<2x256xf32>
    %441 = arith.addf %439, %440 : vector<2x256xf32>
    %442 = arith.negf %441 : vector<2x256xf32>
    %443 = math.exp %442 : vector<2x256xf32>
    %cst_95 = arith.constant 1.000000e+00 : f32
    %444 = vector.broadcast %cst_95 : f32 to vector<2x256xf32>
    %445 = arith.addf %444, %443 : vector<2x256xf32>
    %446 = arith.divf %444, %445 : vector<2x256xf32>
    %447 = vector.extract_strided_slice %446 {offsets = [0, 0], sizes = [2, 128], strides = [1, 1]} : vector<2x256xf32> to vector<2x128xf32>
    %448 = vector.extract_strided_slice %446 {offsets = [0, 128], sizes = [2, 128], strides = [1, 1]} : vector<2x256xf32> to vector<2x128xf32>
    %449 = vector.extract_strided_slice %437 {offsets = [0, 256], sizes = [2, 128], strides = [1, 1]} : vector<2x384xf32> to vector<2x128xf32>
    %450 = vector.extract_strided_slice %438 {offsets = [0, 256], sizes = [2, 128], strides = [1, 1]} : vector<2x384xf32> to vector<2x128xf32>
    %451 = vector.broadcast %23 : vector<1x128xf32> to vector<2x128xf32>
    %452 = arith.addf %450, %451 : vector<2x128xf32>
    %453 = arith.mulf %447, %452 : vector<2x128xf32>
    %454 = arith.addf %449, %453 : vector<2x128xf32>
    %455 = math.tanh %454 : vector<2x128xf32>
    %cst_96 = arith.constant 1.000000e+00 : f32
    %456 = vector.broadcast %cst_96 : f32 to vector<2x128xf32>
    %457 = arith.subf %456, %448 : vector<2x128xf32>
    %458 = arith.mulf %457, %455 : vector<2x128xf32>
    %459 = arith.mulf %448, %384 : vector<2x128xf32>
    %460 = arith.addf %458, %459 : vector<2x128xf32>
    %461 = vector.extract_strided_slice %27 {offsets = [14, 0], sizes = [2, 384], strides = [1, 1]} : vector<16x384xf32> to vector<2x384xf32>
    %cst_97 = arith.constant dense<0.000000e+00> : vector<2x384xf32>
    %462 = tpu.matmul %408, %7, %cst_97 {dimension_numbers = #tpu.dot_dimension_numbers<[1], [0], [0], [1], [0, 0, 1, 1], [], []>} : vector<2x128xf32>, vector<128x384xf32>, vector<2x384xf32> -> vector<2x384xf32>
    %463 = vector.extract_strided_slice %461 {offsets = [0, 0], sizes = [2, 256], strides = [1, 1]} : vector<2x384xf32> to vector<2x256xf32>
    %464 = vector.extract_strided_slice %462 {offsets = [0, 0], sizes = [2, 256], strides = [1, 1]} : vector<2x384xf32> to vector<2x256xf32>
    %465 = arith.addf %463, %464 : vector<2x256xf32>
    %466 = arith.negf %465 : vector<2x256xf32>
    %467 = math.exp %466 : vector<2x256xf32>
    %cst_98 = arith.constant 1.000000e+00 : f32
    %468 = vector.broadcast %cst_98 : f32 to vector<2x256xf32>
    %469 = arith.addf %468, %467 : vector<2x256xf32>
    %470 = arith.divf %468, %469 : vector<2x256xf32>
    %471 = vector.extract_strided_slice %470 {offsets = [0, 0], sizes = [2, 128], strides = [1, 1]} : vector<2x256xf32> to vector<2x128xf32>
    %472 = vector.extract_strided_slice %470 {offsets = [0, 128], sizes = [2, 128], strides = [1, 1]} : vector<2x256xf32> to vector<2x128xf32>
    %473 = vector.extract_strided_slice %461 {offsets = [0, 256], sizes = [2, 128], strides = [1, 1]} : vector<2x384xf32> to vector<2x128xf32>
    %474 = vector.extract_strided_slice %462 {offsets = [0, 256], sizes = [2, 128], strides = [1, 1]} : vector<2x384xf32> to vector<2x128xf32>
    %475 = vector.broadcast %19 : vector<1x128xf32> to vector<2x128xf32>
    %476 = arith.addf %474, %475 : vector<2x128xf32>
    %477 = arith.mulf %471, %476 : vector<2x128xf32>
    %478 = arith.addf %473, %477 : vector<2x128xf32>
    %479 = math.tanh %478 : vector<2x128xf32>
    %cst_99 = arith.constant 1.000000e+00 : f32
    %480 = vector.broadcast %cst_99 : f32 to vector<2x128xf32>
    %481 = arith.subf %480, %472 : vector<2x128xf32>
    %482 = arith.mulf %481, %479 : vector<2x128xf32>
    %483 = arith.mulf %472, %408 : vector<2x128xf32>
    %484 = arith.addf %482, %483 : vector<2x128xf32>
    %cst_100 = arith.constant dense<0.000000e+00> : vector<2x384xf32>
    %485 = tpu.matmul %408, %3, %cst_100 {dimension_numbers = #tpu.dot_dimension_numbers<[1], [0], [0], [1], [0, 0, 1, 1], [], []>} : vector<2x128xf32>, vector<128x384xf32>, vector<2x384xf32> -> vector<2x384xf32>
    %486 = vector.broadcast %15 : vector<1x384xf32> to vector<2x384xf32>
    %487 = arith.addf %485, %486 : vector<2x384xf32>
    %cst_101 = arith.constant dense<0.000000e+00> : vector<2x384xf32>
    %488 = tpu.matmul %434, %9, %cst_101 {dimension_numbers = #tpu.dot_dimension_numbers<[1], [0], [0], [1], [0, 0, 1, 1], [], []>} : vector<2x128xf32>, vector<128x384xf32>, vector<2x384xf32> -> vector<2x384xf32>
    %489 = vector.extract_strided_slice %487 {offsets = [0, 0], sizes = [2, 256], strides = [1, 1]} : vector<2x384xf32> to vector<2x256xf32>
    %490 = vector.extract_strided_slice %488 {offsets = [0, 0], sizes = [2, 256], strides = [1, 1]} : vector<2x384xf32> to vector<2x256xf32>
    %491 = arith.addf %489, %490 : vector<2x256xf32>
    %492 = arith.negf %491 : vector<2x256xf32>
    %493 = math.exp %492 : vector<2x256xf32>
    %cst_102 = arith.constant 1.000000e+00 : f32
    %494 = vector.broadcast %cst_102 : f32 to vector<2x256xf32>
    %495 = arith.addf %494, %493 : vector<2x256xf32>
    %496 = arith.divf %494, %495 : vector<2x256xf32>
    %497 = vector.extract_strided_slice %496 {offsets = [0, 0], sizes = [2, 128], strides = [1, 1]} : vector<2x256xf32> to vector<2x128xf32>
    %498 = vector.extract_strided_slice %496 {offsets = [0, 128], sizes = [2, 128], strides = [1, 1]} : vector<2x256xf32> to vector<2x128xf32>
    %499 = vector.extract_strided_slice %487 {offsets = [0, 256], sizes = [2, 128], strides = [1, 1]} : vector<2x384xf32> to vector<2x128xf32>
    %500 = vector.extract_strided_slice %488 {offsets = [0, 256], sizes = [2, 128], strides = [1, 1]} : vector<2x384xf32> to vector<2x128xf32>
    %501 = vector.broadcast %21 : vector<1x128xf32> to vector<2x128xf32>
    %502 = arith.addf %500, %501 : vector<2x128xf32>
    %503 = arith.mulf %497, %502 : vector<2x128xf32>
    %504 = arith.addf %499, %503 : vector<2x128xf32>
    %505 = math.tanh %504 : vector<2x128xf32>
    %cst_103 = arith.constant 1.000000e+00 : f32
    %506 = vector.broadcast %cst_103 : f32 to vector<2x128xf32>
    %507 = arith.subf %506, %498 : vector<2x128xf32>
    %508 = arith.mulf %507, %505 : vector<2x128xf32>
    %509 = arith.mulf %498, %434 : vector<2x128xf32>
    %510 = arith.addf %508, %509 : vector<2x128xf32>
    %cst_104 = arith.constant dense<0.000000e+00> : vector<2x384xf32>
    %511 = tpu.matmul %434, %5, %cst_104 {dimension_numbers = #tpu.dot_dimension_numbers<[1], [0], [0], [1], [0, 0, 1, 1], [], []>} : vector<2x128xf32>, vector<128x384xf32>, vector<2x384xf32> -> vector<2x384xf32>
    %512 = vector.broadcast %17 : vector<1x384xf32> to vector<2x384xf32>
    %513 = arith.addf %511, %512 : vector<2x384xf32>
    %cst_105 = arith.constant dense<0.000000e+00> : vector<2x384xf32>
    %514 = tpu.matmul %460, %11, %cst_105 {dimension_numbers = #tpu.dot_dimension_numbers<[1], [0], [0], [1], [0, 0, 1, 1], [], []>} : vector<2x128xf32>, vector<128x384xf32>, vector<2x384xf32> -> vector<2x384xf32>
    %515 = vector.extract_strided_slice %513 {offsets = [0, 0], sizes = [2, 256], strides = [1, 1]} : vector<2x384xf32> to vector<2x256xf32>
    %516 = vector.extract_strided_slice %514 {offsets = [0, 0], sizes = [2, 256], strides = [1, 1]} : vector<2x384xf32> to vector<2x256xf32>
    %517 = arith.addf %515, %516 : vector<2x256xf32>
    %518 = arith.negf %517 : vector<2x256xf32>
    %519 = math.exp %518 : vector<2x256xf32>
    %cst_106 = arith.constant 1.000000e+00 : f32
    %520 = vector.broadcast %cst_106 : f32 to vector<2x256xf32>
    %521 = arith.addf %520, %519 : vector<2x256xf32>
    %522 = arith.divf %520, %521 : vector<2x256xf32>
    %523 = vector.extract_strided_slice %522 {offsets = [0, 0], sizes = [2, 128], strides = [1, 1]} : vector<2x256xf32> to vector<2x128xf32>
    %524 = vector.extract_strided_slice %522 {offsets = [0, 128], sizes = [2, 128], strides = [1, 1]} : vector<2x256xf32> to vector<2x128xf32>
    %525 = vector.extract_strided_slice %513 {offsets = [0, 256], sizes = [2, 128], strides = [1, 1]} : vector<2x384xf32> to vector<2x128xf32>
    %526 = vector.extract_strided_slice %514 {offsets = [0, 256], sizes = [2, 128], strides = [1, 1]} : vector<2x384xf32> to vector<2x128xf32>
    %527 = vector.broadcast %23 : vector<1x128xf32> to vector<2x128xf32>
    %528 = arith.addf %526, %527 : vector<2x128xf32>
    %529 = arith.mulf %523, %528 : vector<2x128xf32>
    %530 = arith.addf %525, %529 : vector<2x128xf32>
    %531 = math.tanh %530 : vector<2x128xf32>
    %cst_107 = arith.constant 1.000000e+00 : f32
    %532 = vector.broadcast %cst_107 : f32 to vector<2x128xf32>
    %533 = arith.subf %532, %524 : vector<2x128xf32>
    %534 = arith.mulf %533, %531 : vector<2x128xf32>
    %535 = arith.mulf %524, %460 : vector<2x128xf32>
    %536 = arith.addf %534, %535 : vector<2x128xf32>
    %cst_108 = arith.constant dense<0.000000e+00> : vector<2x384xf32>
    %537 = tpu.matmul %484, %3, %cst_108 {dimension_numbers = #tpu.dot_dimension_numbers<[1], [0], [0], [1], [0, 0, 1, 1], [], []>} : vector<2x128xf32>, vector<128x384xf32>, vector<2x384xf32> -> vector<2x384xf32>
    %538 = vector.broadcast %15 : vector<1x384xf32> to vector<2x384xf32>
    %539 = arith.addf %537, %538 : vector<2x384xf32>
    %cst_109 = arith.constant dense<0.000000e+00> : vector<2x384xf32>
    %540 = tpu.matmul %510, %9, %cst_109 {dimension_numbers = #tpu.dot_dimension_numbers<[1], [0], [0], [1], [0, 0, 1, 1], [], []>} : vector<2x128xf32>, vector<128x384xf32>, vector<2x384xf32> -> vector<2x384xf32>
    %541 = vector.extract_strided_slice %539 {offsets = [0, 0], sizes = [2, 256], strides = [1, 1]} : vector<2x384xf32> to vector<2x256xf32>
    %542 = vector.extract_strided_slice %540 {offsets = [0, 0], sizes = [2, 256], strides = [1, 1]} : vector<2x384xf32> to vector<2x256xf32>
    %543 = arith.addf %541, %542 : vector<2x256xf32>
    %544 = arith.negf %543 : vector<2x256xf32>
    %545 = math.exp %544 : vector<2x256xf32>
    %cst_110 = arith.constant 1.000000e+00 : f32
    %546 = vector.broadcast %cst_110 : f32 to vector<2x256xf32>
    %547 = arith.addf %546, %545 : vector<2x256xf32>
    %548 = arith.divf %546, %547 : vector<2x256xf32>
    %549 = vector.extract_strided_slice %548 {offsets = [0, 0], sizes = [2, 128], strides = [1, 1]} : vector<2x256xf32> to vector<2x128xf32>
    %550 = vector.extract_strided_slice %548 {offsets = [0, 128], sizes = [2, 128], strides = [1, 1]} : vector<2x256xf32> to vector<2x128xf32>
    %551 = vector.extract_strided_slice %539 {offsets = [0, 256], sizes = [2, 128], strides = [1, 1]} : vector<2x384xf32> to vector<2x128xf32>
    %552 = vector.extract_strided_slice %540 {offsets = [0, 256], sizes = [2, 128], strides = [1, 1]} : vector<2x384xf32> to vector<2x128xf32>
    %553 = vector.broadcast %21 : vector<1x128xf32> to vector<2x128xf32>
    %554 = arith.addf %552, %553 : vector<2x128xf32>
    %555 = arith.mulf %549, %554 : vector<2x128xf32>
    %556 = arith.addf %551, %555 : vector<2x128xf32>
    %557 = math.tanh %556 : vector<2x128xf32>
    %cst_111 = arith.constant 1.000000e+00 : f32
    %558 = vector.broadcast %cst_111 : f32 to vector<2x128xf32>
    %559 = arith.subf %558, %550 : vector<2x128xf32>
    %560 = arith.mulf %559, %557 : vector<2x128xf32>
    %561 = arith.mulf %550, %510 : vector<2x128xf32>
    %562 = arith.addf %560, %561 : vector<2x128xf32>
    %cst_112 = arith.constant dense<0.000000e+00> : vector<2x384xf32>
    %563 = tpu.matmul %510, %5, %cst_112 {dimension_numbers = #tpu.dot_dimension_numbers<[1], [0], [0], [1], [0, 0, 1, 1], [], []>} : vector<2x128xf32>, vector<128x384xf32>, vector<2x384xf32> -> vector<2x384xf32>
    %564 = vector.broadcast %17 : vector<1x384xf32> to vector<2x384xf32>
    %565 = arith.addf %563, %564 : vector<2x384xf32>
    %cst_113 = arith.constant dense<0.000000e+00> : vector<2x384xf32>
    %566 = tpu.matmul %536, %11, %cst_113 {dimension_numbers = #tpu.dot_dimension_numbers<[1], [0], [0], [1], [0, 0, 1, 1], [], []>} : vector<2x128xf32>, vector<128x384xf32>, vector<2x384xf32> -> vector<2x384xf32>
    %567 = vector.extract_strided_slice %565 {offsets = [0, 0], sizes = [2, 256], strides = [1, 1]} : vector<2x384xf32> to vector<2x256xf32>
    %568 = vector.extract_strided_slice %566 {offsets = [0, 0], sizes = [2, 256], strides = [1, 1]} : vector<2x384xf32> to vector<2x256xf32>
    %569 = arith.addf %567, %568 : vector<2x256xf32>
    %570 = arith.negf %569 : vector<2x256xf32>
    %571 = math.exp %570 : vector<2x256xf32>
    %cst_114 = arith.constant 1.000000e+00 : f32
    %572 = vector.broadcast %cst_114 : f32 to vector<2x256xf32>
    %573 = arith.addf %572, %571 : vector<2x256xf32>
    %574 = arith.divf %572, %573 : vector<2x256xf32>
    %575 = vector.extract_strided_slice %574 {offsets = [0, 0], sizes = [2, 128], strides = [1, 1]} : vector<2x256xf32> to vector<2x128xf32>
    %576 = vector.extract_strided_slice %574 {offsets = [0, 128], sizes = [2, 128], strides = [1, 1]} : vector<2x256xf32> to vector<2x128xf32>
    %577 = vector.extract_strided_slice %565 {offsets = [0, 256], sizes = [2, 128], strides = [1, 1]} : vector<2x384xf32> to vector<2x128xf32>
    %578 = vector.extract_strided_slice %566 {offsets = [0, 256], sizes = [2, 128], strides = [1, 1]} : vector<2x384xf32> to vector<2x128xf32>
    %579 = vector.broadcast %23 : vector<1x128xf32> to vector<2x128xf32>
    %580 = arith.addf %578, %579 : vector<2x128xf32>
    %581 = arith.mulf %575, %580 : vector<2x128xf32>
    %582 = arith.addf %577, %581 : vector<2x128xf32>
    %583 = math.tanh %582 : vector<2x128xf32>
    %cst_115 = arith.constant 1.000000e+00 : f32
    %584 = vector.broadcast %cst_115 : f32 to vector<2x128xf32>
    %585 = arith.subf %584, %576 : vector<2x128xf32>
    %586 = arith.mulf %585, %583 : vector<2x128xf32>
    %587 = arith.mulf %576, %536 : vector<2x128xf32>
    %588 = arith.addf %586, %587 : vector<2x128xf32>
    %cst_116 = arith.constant dense<0.000000e+00> : vector<2x384xf32>
    %589 = tpu.matmul %562, %5, %cst_116 {dimension_numbers = #tpu.dot_dimension_numbers<[1], [0], [0], [1], [0, 0, 1, 1], [], []>} : vector<2x128xf32>, vector<128x384xf32>, vector<2x384xf32> -> vector<2x384xf32>
    %590 = vector.broadcast %17 : vector<1x384xf32> to vector<2x384xf32>
    %591 = arith.addf %589, %590 : vector<2x384xf32>
    %cst_117 = arith.constant dense<0.000000e+00> : vector<2x384xf32>
    %592 = tpu.matmul %588, %11, %cst_117 {dimension_numbers = #tpu.dot_dimension_numbers<[1], [0], [0], [1], [0, 0, 1, 1], [], []>} : vector<2x128xf32>, vector<128x384xf32>, vector<2x384xf32> -> vector<2x384xf32>
    %593 = vector.extract_strided_slice %591 {offsets = [0, 0], sizes = [2, 256], strides = [1, 1]} : vector<2x384xf32> to vector<2x256xf32>
    %594 = vector.extract_strided_slice %592 {offsets = [0, 0], sizes = [2, 256], strides = [1, 1]} : vector<2x384xf32> to vector<2x256xf32>
    %595 = arith.addf %593, %594 : vector<2x256xf32>
    %596 = arith.negf %595 : vector<2x256xf32>
    %597 = math.exp %596 : vector<2x256xf32>
    %cst_118 = arith.constant 1.000000e+00 : f32
    %598 = vector.broadcast %cst_118 : f32 to vector<2x256xf32>
    %599 = arith.addf %598, %597 : vector<2x256xf32>
    %600 = arith.divf %598, %599 : vector<2x256xf32>
    %601 = vector.extract_strided_slice %600 {offsets = [0, 0], sizes = [2, 128], strides = [1, 1]} : vector<2x256xf32> to vector<2x128xf32>
    %602 = vector.extract_strided_slice %600 {offsets = [0, 128], sizes = [2, 128], strides = [1, 1]} : vector<2x256xf32> to vector<2x128xf32>
    %603 = vector.extract_strided_slice %591 {offsets = [0, 256], sizes = [2, 128], strides = [1, 1]} : vector<2x384xf32> to vector<2x128xf32>
    %604 = vector.extract_strided_slice %592 {offsets = [0, 256], sizes = [2, 128], strides = [1, 1]} : vector<2x384xf32> to vector<2x128xf32>
    %605 = vector.broadcast %23 : vector<1x128xf32> to vector<2x128xf32>
    %606 = arith.addf %604, %605 : vector<2x128xf32>
    %607 = arith.mulf %601, %606 : vector<2x128xf32>
    %608 = arith.addf %603, %607 : vector<2x128xf32>
    %609 = math.tanh %608 : vector<2x128xf32>
    %cst_119 = arith.constant 1.000000e+00 : f32
    %610 = vector.broadcast %cst_119 : f32 to vector<2x128xf32>
    %611 = arith.subf %610, %602 : vector<2x128xf32>
    %612 = arith.mulf %611, %609 : vector<2x128xf32>
    %613 = arith.mulf %602, %588 : vector<2x128xf32>
    %614 = arith.addf %612, %613 : vector<2x128xf32>
    %615 = vector.shape_cast %156 : vector<2x128xf32> to vector<2x1x128xf32>
    %616 = vector.shape_cast %232 : vector<2x128xf32> to vector<2x1x128xf32>
    %617 = vector.shape_cast %308 : vector<2x128xf32> to vector<2x1x128xf32>
    %618 = vector.shape_cast %384 : vector<2x128xf32> to vector<2x1x128xf32>
    %619 = vector.shape_cast %460 : vector<2x128xf32> to vector<2x1x128xf32>
    %620 = vector.shape_cast %536 : vector<2x128xf32> to vector<2x1x128xf32>
    %621 = vector.shape_cast %588 : vector<2x128xf32> to vector<2x1x128xf32>
    %622 = vector.shape_cast %614 : vector<2x128xf32> to vector<2x1x128xf32>
    %623 = tpu.concatenate %615, %616, %617, %618, %619, %620, %621, %622 in 1 : vector<2x1x128xf32>, vector<2x1x128xf32>, vector<2x1x128xf32>, vector<2x1x128xf32>, vector<2x1x128xf32>, vector<2x1x128xf32>, vector<2x1x128xf32>, vector<2x1x128xf32> -> vector<2x8x128xf32>
    %624 = vector.shape_cast %623 : vector<2x8x128xf32> to vector<16x128xf32>
    %c0_120 = arith.constant 0 : index
    %c0_121 = arith.constant 0 : index
    %625 = vector.load %arg6[%c0_120, %c0_121] : memref<128x128xf32, #tpu.memory_space<vmem>>, vector<128x128xf32>
    %cst_122 = arith.constant dense<0.000000e+00> : vector<16x128xf32>
    %626 = tpu.matmul %624, %625, %cst_122 {dimension_numbers = #tpu.dot_dimension_numbers<[1], [0], [0], [1], [0, 0, 1, 1], [], []>} : vector<16x128xf32>, vector<128x128xf32>, vector<16x128xf32> -> vector<16x128xf32>
    %c0_123 = arith.constant 0 : index
    %c0_124 = arith.constant 0 : index
    %627 = vector.load %arg7[%c0_123, %c0_124] : memref<1x128xf32, #tpu.memory_space<vmem>>, vector<1x128xf32>
    %628 = vector.broadcast %627 : vector<1x128xf32> to vector<16x128xf32>
    %629 = arith.addf %626, %628 : vector<16x128xf32>
    %cst_125 = arith.constant 0.000000e+00 : f32
    %630 = vector.broadcast %cst_125 : f32 to vector<16x128xf32>
    %631 = arith.maximumf %629, %630 : vector<16x128xf32>
    %c0_126 = arith.constant 0 : index
    %c0_127 = arith.constant 0 : index
    %632 = vector.load %arg8[%c0_126, %c0_127] : memref<128x128xf32, #tpu.memory_space<vmem>>, vector<128x128xf32>
    %cst_128 = arith.constant dense<0.000000e+00> : vector<16x128xf32>
    %633 = tpu.matmul %631, %632, %cst_128 {dimension_numbers = #tpu.dot_dimension_numbers<[1], [0], [0], [1], [0, 0, 1, 1], [], []>} : vector<16x128xf32>, vector<128x128xf32>, vector<16x128xf32> -> vector<16x128xf32>
    %c0_129 = arith.constant 0 : index
    %c0_130 = arith.constant 0 : index
    %634 = vector.load %arg9[%c0_129, %c0_130] : memref<1x128xf32, #tpu.memory_space<vmem>>, vector<1x128xf32>
    %635 = vector.broadcast %634 : vector<1x128xf32> to vector<16x128xf32>
    %636 = arith.addf %633, %635 : vector<16x128xf32>
    %c0_131 = arith.constant 0 : index
    %c0_132 = arith.constant 0 : index
    %637 = vector.load %arg10[%c0_131, %c0_132] : memref<16x128xf32, #tpu.memory_space<vmem>>, vector<16x128xf32>
    tpu.vector_store %arg10[%c0_131, %c0_132], %636 {strides = array<i32>} : memref<16x128xf32, #tpu.memory_space<vmem>>, vector<16x128xf32>,
    return
  }
  func.func @transform_0(%arg0: i32) -> (i32, i32) {
    %c0_i32 = arith.constant 0 : i32
    %c0_i32_0 = arith.constant 0 : i32
    %c0_i32_1 = arith.constant 0 : i32
    return %c0_i32, %c0_i32_0 : i32, i32
  }
  func.func @transform_1(%arg0: i32) -> (i32, i32, i32) {
    %c0_i32 = arith.constant 0 : i32
    %c0_i32_0 = arith.constant 0 : i32
    %c0_i32_1 = arith.constant 0 : i32
    %c0_i32_2 = arith.constant 0 : i32
    return %c0_i32, %c0_i32_0, %c0_i32_1 : i32, i32, i32
  }
  func.func @transform_2(%arg0: i32) -> (i32, i32, i32) {
    %c0_i32 = arith.constant 0 : i32
    %c0_i32_0 = arith.constant 0 : i32
    %c0_i32_1 = arith.constant 0 : i32
    %c0_i32_2 = arith.constant 0 : i32
    return %c0_i32, %c0_i32_0, %c0_i32_1 : i32, i32, i32
  }
  func.func @transform_3(%arg0: i32) -> (i32, i32, i32) {
    %c0_i32 = arith.constant 0 : i32
    %c0_i32_0 = arith.constant 0 : i32
    %c0_i32_1 = arith.constant 0 : i32
    %c0_i32_2 = arith.constant 0 : i32
    return %c0_i32, %c0_i32_0, %c0_i32_1 : i32, i32, i32
  }
  func.func @transform_4(%arg0: i32) -> (i32, i32, i32) {
    %c0_i32 = arith.constant 0 : i32
    %c0_i32_0 = arith.constant 0 : i32
    %c0_i32_1 = arith.constant 0 : i32
    %c0_i32_2 = arith.constant 0 : i32
    return %c0_i32, %c0_i32_0, %c0_i32_1 : i32, i32, i32
  }
  func.func @transform_5(%arg0: i32) -> (i32, i32) {
    %c0_i32 = arith.constant 0 : i32
    %c0_i32_0 = arith.constant 0 : i32
    %c0_i32_1 = arith.constant 0 : i32
    return %c0_i32, %c0_i32_0 : i32, i32
  }
  func.func @transform_6(%arg0: i32) -> (i32, i32) {
    %c0_i32 = arith.constant 0 : i32
    %c0_i32_0 = arith.constant 0 : i32
    %c0_i32_1 = arith.constant 0 : i32
    return %c0_i32, %c0_i32_0 : i32, i32
  }
  func.func @transform_7(%arg0: i32) -> (i32, i32) {
    %c0_i32 = arith.constant 0 : i32
    %c0_i32_0 = arith.constant 0 : i32
    %c0_i32_1 = arith.constant 0 : i32
    return %c0_i32, %c0_i32_0 : i32, i32
  }
  func.func @transform_8(%arg0: i32) -> (i32, i32) {
    %c0_i32 = arith.constant 0 : i32
    %c0_i32_0 = arith.constant 0 : i32
    %c0_i32_1 = arith.constant 0 : i32
    return %c0_i32, %c0_i32_0 : i32, i32
  }
  func.func @transform_9(%arg0: i32) -> (i32, i32) {
    %c0_i32 = arith.constant 0 : i32
    %c0_i32_0 = arith.constant 0 : i32
    %c0_i32_1 = arith.constant 0 : i32
    return %c0_i32, %c0_i32_0 : i32, i32
  }
}

</mosaic_0001>

<llo_original>
// kernel: recurrent_net_forward.1
$region0: #{recurrent_net_forward.1}
  #allocation0 [shape = 'u32[]', space=smem, size = 0x4, offset = 0x4, fixed_abs, tag = 'smem constant byte address 0x4 - core index']
  #allocation1 [shape = 'u32[144,128]{1,0:T(1,128)}', space=vmem, size = 0x12000, scoped, tag = 'internal scratch']
  %s0 = inlined_call_operand.vmem [shape: f32[16,128], index: 0, kind: input, shape index: {}]
  %s1 = inlined_call_operand.hbm [shape: f32[3,128,384], index: 1, kind: input, shape index: {}]
  %s2 = inlined_call_operand.hbm [shape: f32[3,128,384], index: 2, kind: input, shape index: {}]
  %s3 = inlined_call_operand.vmem [shape: f32[3,1,384], index: 3, kind: input, shape index: {}]
  %s4 = inlined_call_operand.vmem [shape: f32[3,1,128], index: 4, kind: input, shape index: {}]
  %s5 = inlined_call_operand.vmem [shape: f32[128,128], index: 5, kind: input, shape index: {}]
  %s6 = inlined_call_operand.vmem [shape: f32[1,128], index: 6, kind: input, shape index: {}]
  %s7 = inlined_call_operand.hbm [shape: f32[128,128], index: 7, kind: input, shape index: {}]
  %s8 = inlined_call_operand.vmem [shape: f32[1,128], index: 8, kind: input, shape index: {}]
  %s9 = inlined_call_operand.hbm [shape: f32[16,128], index: 9, kind: output, shape index: {}]
  %s10 = sld [smem:[#allocation0]]
  $region58: #{recurrent_net_forward.1} parent=0
    _
  %s12 = ssub.s32 1, %s10
  %s13 = scalar_select 0, %s12, %s10
  $region1: #{recurrent_net_forward.1} parent=0
    #allocation2 [shape = 'u8[589824]{0}', space=vmem, size = 0x90000, scoped, tag = 'input window, operand 1, single buffered']
    #allocation3 [shape = 's32[1]{0}', space=sflag, size = 0x4, scoped, tag = 'scoped memory for recurrent_net_forward.1']
    #allocation4 [shape = 's32[1]{0}', space=sflag, size = 0x4, scoped, tag = 'scoped memory for recurrent_net_forward.1']
    #allocation5 [shape = 'u8[589824]{0}', space=vmem, size = 0x90000, scoped, tag = 'input window, operand 2, single buffered']
    #allocation6 [shape = 's32[1]{0}', space=sflag, size = 0x4, scoped, tag = 'scoped memory for recurrent_net_forward.1']
    #allocation7 [shape = 'u8[65536]{0}', space=vmem, size = 0x10000, scoped, tag = 'input window, operand 7, single buffered']
    #allocation8 [shape = 'u8[8192]{0}', space=vmem, size = 0x2000, scoped, tag = 'output window, operand 0, single buffered']
    %14 = vsyncpa [#allocation3], 0
    %15 = vsyncpa [#allocation6], 0
    %16 = vsyncpa [#allocation4], 0
    // Predicated region
    $region2: #{recurrent_net_forward.1} parent=1 // pred_check
      _
    $region3: #{recurrent_net_forward.1} parent=1 // pred_check_branch
      %18 = sbr.rel (0) target = $region5
    $region4: #{recurrent_net_forward.1} parent=1 // pred_region
      _
    $region5: #{recurrent_net_forward.1} parent=1 // pred_fallthru
      _
    // Predicated region
    $region6: #{recurrent_net_forward.1} parent=1 // pred_check
      _
    $region7: #{recurrent_net_forward.1} parent=1 // pred_check_branch
      %20 = sbr.rel (0) target = $region9
    $region8: #{recurrent_net_forward.1} parent=1 // pred_region
      %s22 = ssub.s32 18432, 18432
      %23 = vsyncadd [#allocation3], %s22
      %s24 = sshll.u32 [#allocation2], 4
      %s25 = int_to_ptr.vmem [resolvable:$true] %s24
      %30 = dma.hbm_to_vmem [thread:$0]  %s1, 18432, %s25, [#allocation3], 384, 384, 24
    $region9: #{recurrent_net_forward.1} parent=1 // pred_fallthru
      _
    // Predicated region
    $region10: #{recurrent_net_forward.1} parent=1 // pred_check
      _
    $region11: #{recurrent_net_forward.1} parent=1 // pred_check_branch
      %32 = sbr.rel (0) target = $region13
    $region12: #{recurrent_net_forward.1} parent=1 // pred_region
      %s34 = ssub.s32 18432, 18432
      %35 = vsyncadd [#allocation6], %s34
      %s36 = sshll.u32 [#allocation5], 4
      %s37 = int_to_ptr.vmem [resolvable:$true] %s36
      %42 = dma.hbm_to_vmem [thread:$0]  %s2, 18432, %s37, [#allocation6], 384, 384, 24
    $region13: #{recurrent_net_forward.1} parent=1 // pred_fallthru
      _
    // Predicated region
    $region14: #{recurrent_net_forward.1} parent=1 // pred_check
      _
    $region15: #{recurrent_net_forward.1} parent=1 // pred_check_branch
      %44 = sbr.rel (0) target = $region17
    $region16: #{recurrent_net_forward.1} parent=1 // pred_region
      _
    $region17: #{recurrent_net_forward.1} parent=1 // pred_fallthru
      _
    // Predicated region
    $region18: #{recurrent_net_forward.1} parent=1 // pred_check
      _
    $region19: #{recurrent_net_forward.1} parent=1 // pred_check_branch
      %46 = sbr.rel (0) target = $region21
    $region20: #{recurrent_net_forward.1} parent=1 // pred_region
      _
    $region21: #{recurrent_net_forward.1} parent=1 // pred_fallthru
      _
    // Predicated region
    $region22: #{recurrent_net_forward.1} parent=1 // pred_check
      _
    $region23: #{recurrent_net_forward.1} parent=1 // pred_check_branch
      %48 = sbr.rel (0) target = $region25
    $region24: #{recurrent_net_forward.1} parent=1 // pred_region
      _
    $region25: #{recurrent_net_forward.1} parent=1 // pred_fallthru
      _
    // Predicated region
    $region26: #{recurrent_net_forward.1} parent=1 // pred_check
      _
    $region27: #{recurrent_net_forward.1} parent=1 // pred_check_branch
      %50 = sbr.rel (0) target = $region29
    $region28: #{recurrent_net_forward.1} parent=1 // pred_region
      _
    $region29: #{recurrent_net_forward.1} parent=1 // pred_fallthru
      _
    // Predicated region
    $region30: #{recurrent_net_forward.1} parent=1 // pred_check
      _
    $region31: #{recurrent_net_forward.1} parent=1 // pred_check_branch
      %52 = sbr.rel (0) target = $region33
    $region32: #{recurrent_net_forward.1} parent=1 // pred_region
      %s54 = ssub.s32 2048, 2048
      %55 = vsyncadd [#allocation6], %s54
      %s56 = sshll.u32 [#allocation7], 4
      %s57 = int_to_ptr.vmem [resolvable:$true] %s56
      %62 = dma.hbm_to_vmem [thread:$0]  %s7, 2048, %s57, [#allocation6], 128, 128, 8
    $region33: #{recurrent_net_forward.1} parent=1 // pred_fallthru
      _
    // Predicated region
    $region34: #{recurrent_net_forward.1} parent=1 // pred_check
      _
    $region35: #{recurrent_net_forward.1} parent=1 // pred_check_branch
      %64 = sbr.rel (0) target = $region37
    $region36: #{recurrent_net_forward.1} parent=1 // pred_region
      _
    $region37: #{recurrent_net_forward.1} parent=1 // pred_fallthru
      _
    // Predicated region
    $region38: #{recurrent_net_forward.1} parent=1 // pred_check
      _
    $region39: #{recurrent_net_forward.1} parent=1 // pred_check_branch
      %66 = sbr.rel (0) target = $region41
    $region40: #{recurrent_net_forward.1} parent=1 // pred_region
      %67 = dma.done [#allocation3], 18432
    $region41: #{recurrent_net_forward.1} parent=1 // pred_fallthru
      _
    // Predicated region
    $region42: #{recurrent_net_forward.1} parent=1 // pred_check
      _
    $region43: #{recurrent_net_forward.1} parent=1 // pred_check_branch
      %69 = sbr.rel (0) target = $region45
    $region44: #{recurrent_net_forward.1} parent=1 // pred_region
      %70 = dma.done [#allocation6], 18432
    $region45: #{recurrent_net_forward.1} parent=1 // pred_fallthru
      _
    // Predicated region
    $region46: #{recurrent_net_forward.1} parent=1 // pred_check
      _
    $region47: #{recurrent_net_forward.1} parent=1 // pred_check_branch
      %72 = sbr.rel (0) target = $region49
    $region48: #{recurrent_net_forward.1} parent=1 // pred_region
      %73 = dma.done [#allocation6], 2048
    $region49: #{recurrent_net_forward.1} parent=1 // pred_fallthru
      _
    %v74 = vld [vmem:[#allocation2] sm:$0xff]
    %v75 = vld [vmem:[#allocation2 + $0x8] sm:$0xff]
    %v76 = vld [vmem:[#allocation2 + $0x10] sm:$0xff]
    %v77 = vld [vmem:[#allocation2 + $0x18] sm:$0xff]
    %v78 = vld [vmem:[#allocation2 + $0x20] sm:$0xff]
    %v79 = vld [vmem:[#allocation2 + $0x28] sm:$0xff]
    %v80 = vld [vmem:[#allocation2 + $0x30] sm:$0xff]
    %v81 = vld [vmem:[#allocation2 + $0x38] sm:$0xff]
    %v82 = vld [vmem:[#allocation2 + $0x40] sm:$0xff]
    %v83 = vld [vmem:[#allocation2 + $0x48] sm:$0xff]
    %v84 = vld [vmem:[#allocation2 + $0x50] sm:$0xff]
    %v85 = vld [vmem:[#allocation2 + $0x58] sm:$0xff]
    %v86 = vld [vmem:[#allocation2 + $0x60] sm:$0xff]
    %v87 = vld [vmem:[#allocation2 + $0x68] sm:$0xff]
    %v88 = vld [vmem:[#allocation2 + $0x70] sm:$0xff]
    %v89 = vld [vmem:[#allocation2 + $0x78] sm:$0xff]
    %v90 = vld [vmem:[#allocation2 + $0x80] sm:$0xff]
    %v91 = vld [vmem:[#allocation2 + $0x88] sm:$0xff]
    %v92 = vld [vmem:[#allocation2 + $0x90] sm:$0xff]
    %v93 = vld [vmem:[#allocation2 + $0x98] sm:$0xff]
    %v94 = vld [vmem:[#allocation2 + $0xa0] sm:$0xff]
    %v95 = vld [vmem:[#allocation2 + $0xa8] sm:$0xff]
    %v96 = vld [vmem:[#allocation2 + $0xb0] sm:$0xff]
    %v97 = vld [vmem:[#allocation2 + $0xb8] sm:$0xff]
    %v98 = vld [vmem:[#allocation2 + $0xc0] sm:$0xff]
    %v99 = vld [vmem:[#allocation2 + $0xc8] sm:$0xff]
    %v100 = vld [vmem:[#allocation2 + $0xd0] sm:$0xff]
    %v101 = vld [vmem:[#allocation2 + $0xd8] sm:$0xff]
    %v102 = vld [vmem:[#allocation2 + $0xe0] sm:$0xff]
    %v103 = vld [vmem:[#allocation2 + $0xe8] sm:$0xff]
    %v104 = vld [vmem:[#allocation2 + $0xf0] sm:$0xff]
    %v105 = vld [vmem:[#allocation2 + $0xf8] sm:$0xff]
    %v106 = vld [vmem:[#allocation2 + $0x100] sm:$0xff]
    %v107 = vld [vmem:[#allocation2 + $0x108] sm:$0xff]
    %v108 = vld [vmem:[#allocation2 + $0x110] sm:$0xff]
    %v109 = vld [vmem:[#allocation2 + $0x118] sm:$0xff]
    %v110 = vld [vmem:[#allocation2 + $0x120] sm:$0xff]
    %v111 = vld [vmem:[#allocation2 + $0x128] sm:$0xff]
    %v112 = vld [vmem:[#allocation2 + $0x130] sm:$0xff]
    %v113 = vld [vmem:[#allocation2 + $0x138] sm:$0xff]
    %v114 = vld [vmem:[#allocation2 + $0x140] sm:$0xff]
    %v115 = vld [vmem:[#allocation2 + $0x148] sm:$0xff]
    %v116 = vld [vmem:[#allocation2 + $0x150] sm:$0xff]
    %v117 = vld [vmem:[#allocation2 + $0x158] sm:$0xff]
    %v118 = vld [vmem:[#allocation2 + $0x160] sm:$0xff]
    %v119 = vld [vmem:[#allocation2 + $0x168] sm:$0xff]
    %v120 = vld [vmem:[#allocation2 + $0x170] sm:$0xff]
    %v121 = vld [vmem:[#allocation2 + $0x178] sm:$0xff]
    %s122 = scalar_lea.vmem [#allocation2], 384
    %v123 = vld [vmem:[%s122] sm:$0xff]
    %v124 = vld [vmem:[%s122 + $0x8] sm:$0xff]
    %v125 = vld [vmem:[%s122 + $0x10] sm:$0xff]
    %v126 = vld [vmem:[%s122 + $0x18] sm:$0xff]
    %v127 = vld [vmem:[%s122 + $0x20] sm:$0xff]
    %v128 = vld [vmem:[%s122 + $0x28] sm:$0xff]
    %v129 = vld [vmem:[%s122 + $0x30] sm:$0xff]
    %v130 = vld [vmem:[%s122 + $0x38] sm:$0xff]
    %v131 = vld [vmem:[%s122 + $0x40] sm:$0xff]
    %v132 = vld [vmem:[%s122 + $0x48] sm:$0xff]
    %v133 = vld [vmem:[%s122 + $0x50] sm:$0xff]
    %v134 = vld [vmem:[%s122 + $0x58] sm:$0xff]
    %v135 = vld [vmem:[%s122 + $0x60] sm:$0xff]
    %v136 = vld [vmem:[%s122 + $0x68] sm:$0xff]
    %v137 = vld [vmem:[%s122 + $0x70] sm:$0xff]
    %v138 = vld [vmem:[%s122 + $0x78] sm:$0xff]
    %v139 = vld [vmem:[%s122 + $0x80] sm:$0xff]
    %v140 = vld [vmem:[%s122 + $0x88] sm:$0xff]
    %v141 = vld [vmem:[%s122 + $0x90] sm:$0xff]
    %v142 = vld [vmem:[%s122 + $0x98] sm:$0xff]
    %v143 = vld [vmem:[%s122 + $0xa0] sm:$0xff]
    %v144 = vld [vmem:[%s122 + $0xa8] sm:$0xff]
    %v145 = vld [vmem:[%s122 + $0xb0] sm:$0xff]
    %v146 = vld [vmem:[%s122 + $0xb8] sm:$0xff]
    %v147 = vld [vmem:[%s122 + $0xc0] sm:$0xff]
    %v148 = vld [vmem:[%s122 + $0xc8] sm:$0xff]
    %v149 = vld [vmem:[%s122 + $0xd0] sm:$0xff]
    %v150 = vld [vmem:[%s122 + $0xd8] sm:$0xff]
    %v151 = vld [vmem:[%s122 + $0xe0] sm:$0xff]
    %v152 = vld [vmem:[%s122 + $0xe8] sm:$0xff]
    %v153 = vld [vmem:[%s122 + $0xf0] sm:$0xff]
    %v154 = vld [vmem:[%s122 + $0xf8] sm:$0xff]
    %v155 = vld [vmem:[%s122 + $0x100] sm:$0xff]
    %v156 = vld [vmem:[%s122 + $0x108] sm:$0xff]
    %v157 = vld [vmem:[%s122 + $0x110] sm:$0xff]
    %v158 = vld [vmem:[%s122 + $0x118] sm:$0xff]
    %v159 = vld [vmem:[%s122 + $0x120] sm:$0xff]
    %v160 = vld [vmem:[%s122 + $0x128] sm:$0xff]
    %v161 = vld [vmem:[%s122 + $0x130] sm:$0xff]
    %v162 = vld [vmem:[%s122 + $0x138] sm:$0xff]
    %v163 = vld [vmem:[%s122 + $0x140] sm:$0xff]
    %v164 = vld [vmem:[%s122 + $0x148] sm:$0xff]
    %v165 = vld [vmem:[%s122 + $0x150] sm:$0xff]
    %v166 = vld [vmem:[%s122 + $0x158] sm:$0xff]
    %v167 = vld [vmem:[%s122 + $0x160] sm:$0xff]
    %v168 = vld [vmem:[%s122 + $0x168] sm:$0xff]
    %v169 = vld [vmem:[%s122 + $0x170] sm:$0xff]
    %v170 = vld [vmem:[%s122 + $0x178] sm:$0xff]
    %s171 = scalar_lea.vmem [#allocation2], 768
    %v172 = vld [vmem:[%s171] sm:$0xff]
    %v173 = vld [vmem:[%s171 + $0x8] sm:$0xff]
    %v174 = vld [vmem:[%s171 + $0x10] sm:$0xff]
    %v175 = vld [vmem:[%s171 + $0x18] sm:$0xff]
    %v176 = vld [vmem:[%s171 + $0x20] sm:$0xff]
    %v177 = vld [vmem:[%s171 + $0x28] sm:$0xff]
    %v178 = vld [vmem:[%s171 + $0x30] sm:$0xff]
    %v179 = vld [vmem:[%s171 + $0x38] sm:$0xff]
    %v180 = vld [vmem:[%s171 + $0x40] sm:$0xff]
    %v181 = vld [vmem:[%s171 + $0x48] sm:$0xff]
    %v182 = vld [vmem:[%s171 + $0x50] sm:$0xff]
    %v183 = vld [vmem:[%s171 + $0x58] sm:$0xff]
    %v184 = vld [vmem:[%s171 + $0x60] sm:$0xff]
    %v185 = vld [vmem:[%s171 + $0x68] sm:$0xff]
    %v186 = vld [vmem:[%s171 + $0x70] sm:$0xff]
    %v187 = vld [vmem:[%s171 + $0x78] sm:$0xff]
    %v188 = vld [vmem:[%s171 + $0x80] sm:$0xff]
    %v189 = vld [vmem:[%s171 + $0x88] sm:$0xff]
    %v190 = vld [vmem:[%s171 + $0x90] sm:$0xff]
    %v191 = vld [vmem:[%s171 + $0x98] sm:$0xff]
    %v192 = vld [vmem:[%s171 + $0xa0] sm:$0xff]
    %v193 = vld [vmem:[%s171 + $0xa8] sm:$0xff]
    %v194 = vld [vmem:[%s171 + $0xb0] sm:$0xff]
    %v195 = vld [vmem:[%s171 + $0xb8] sm:$0xff]
    %v196 = vld [vmem:[%s171 + $0xc0] sm:$0xff]
    %v197 = vld [vmem:[%s171 + $0xc8] sm:$0xff]
    %v198 = vld [vmem:[%s171 + $0xd0] sm:$0xff]
    %v199 = vld [vmem:[%s171 + $0xd8] sm:$0xff]
    %v200 = vld [vmem:[%s171 + $0xe0] sm:$0xff]
    %v201 = vld [vmem:[%s171 + $0xe8] sm:$0xff]
    %v202 = vld [vmem:[%s171 + $0xf0] sm:$0xff]
    %v203 = vld [vmem:[%s171 + $0xf8] sm:$0xff]
    %v204 = vld [vmem:[%s171 + $0x100] sm:$0xff]
    %v205 = vld [vmem:[%s171 + $0x108] sm:$0xff]
    %v206 = vld [vmem:[%s171 + $0x110] sm:$0xff]
    %v207 = vld [vmem:[%s171 + $0x118] sm:$0xff]
    %v208 = vld [vmem:[%s171 + $0x120] sm:$0xff]
    %v209 = vld [vmem:[%s171 + $0x128] sm:$0xff]
    %v210 = vld [vmem:[%s171 + $0x130] sm:$0xff]
    %v211 = vld [vmem:[%s171 + $0x138] sm:$0xff]
    %v212 = vld [vmem:[%s171 + $0x140] sm:$0xff]
    %v213 = vld [vmem:[%s171 + $0x148] sm:$0xff]
    %v214 = vld [vmem:[%s171 + $0x150] sm:$0xff]
    %v215 = vld [vmem:[%s171 + $0x158] sm:$0xff]
    %v216 = vld [vmem:[%s171 + $0x160] sm:$0xff]
    %v217 = vld [vmem:[%s171 + $0x168] sm:$0xff]
    %v218 = vld [vmem:[%s171 + $0x170] sm:$0xff]
    %v219 = vld [vmem:[%s171 + $0x178] sm:$0xff]
    %v220 = vld [vmem:[#allocation5] sm:$0xff]
    %v221 = vld [vmem:[#allocation5 + $0x8] sm:$0xff]
    %v222 = vld [vmem:[#allocation5 + $0x10] sm:$0xff]
    %v223 = vld [vmem:[#allocation5 + $0x18] sm:$0xff]
    %v224 = vld [vmem:[#allocation5 + $0x20] sm:$0xff]
    %v225 = vld [vmem:[#allocation5 + $0x28] sm:$0xff]
    %v226 = vld [vmem:[#allocation5 + $0x30] sm:$0xff]
    %v227 = vld [vmem:[#allocation5 + $0x38] sm:$0xff]
    %v228 = vld [vmem:[#allocation5 + $0x40] sm:$0xff]
    %v229 = vld [vmem:[#allocation5 + $0x48] sm:$0xff]
    %v230 = vld [vmem:[#allocation5 + $0x50] sm:$0xff]
    %v231 = vld [vmem:[#allocation5 + $0x58] sm:$0xff]
    %v232 = vld [vmem:[#allocation5 + $0x60] sm:$0xff]
    %v233 = vld [vmem:[#allocation5 + $0x68] sm:$0xff]
    %v234 = vld [vmem:[#allocation5 + $0x70] sm:$0xff]
    %v235 = vld [vmem:[#allocation5 + $0x78] sm:$0xff]
    %v236 = vld [vmem:[#allocation5 + $0x80] sm:$0xff]
    %v237 = vld [vmem:[#allocation5 + $0x88] sm:$0xff]
    %v238 = vld [vmem:[#allocation5 + $0x90] sm:$0xff]
    %v239 = vld [vmem:[#allocation5 + $0x98] sm:$0xff]
    %v240 = vld [vmem:[#allocation5 + $0xa0] sm:$0xff]
    %v241 = vld [vmem:[#allocation5 + $0xa8] sm:$0xff]
    %v242 = vld [vmem:[#allocation5 + $0xb0] sm:$0xff]
    %v243 = vld [vmem:[#allocation5 + $0xb8] sm:$0xff]
    %v244 = vld [vmem:[#allocation5 + $0xc0] sm:$0xff]
    %v245 = vld [vmem:[#allocation5 + $0xc8] sm:$0xff]
    %v246 = vld [vmem:[#allocation5 + $0xd0] sm:$0xff]
    %v247 = vld [vmem:[#allocation5 + $0xd8] sm:$0xff]
    %v248 = vld [vmem:[#allocation5 + $0xe0] sm:$0xff]
    %v249 = vld [vmem:[#allocation5 + $0xe8] sm:$0xff]
    %v250 = vld [vmem:[#allocation5 + $0xf0] sm:$0xff]
    %v251 = vld [vmem:[#allocation5 + $0xf8] sm:$0xff]
    %v252 = vld [vmem:[#allocation5 + $0x100] sm:$0xff]
    %v253 = vld [vmem:[#allocation5 + $0x108] sm:$0xff]
    %v254 = vld [vmem:[#allocation5 + $0x110] sm:$0xff]
    %v255 = vld [vmem:[#allocation5 + $0x118] sm:$0xff]
    %v256 = vld [vmem:[#allocation5 + $0x120] sm:$0xff]
    %v257 = vld [vmem:[#allocation5 + $0x128] sm:$0xff]
    %v258 = vld [vmem:[#allocation5 + $0x130] sm:$0xff]
    %v259 = vld [vmem:[#allocation5 + $0x138] sm:$0xff]
    %v260 = vld [vmem:[#allocation5 + $0x140] sm:$0xff]
    %v261 = vld [vmem:[#allocation5 + $0x148] sm:$0xff]
    %v262 = vld [vmem:[#allocation5 + $0x150] sm:$0xff]
    %v263 = vld [vmem:[#allocation5 + $0x158] sm:$0xff]
    %v264 = vld [vmem:[#allocation5 + $0x160] sm:$0xff]
    %v265 = vld [vmem:[#allocation5 + $0x168] sm:$0xff]
    %v266 = vld [vmem:[#allocation5 + $0x170] sm:$0xff]
    %v267 = vld [vmem:[#allocation5 + $0x178] sm:$0xff]
    %s268 = scalar_lea.vmem [#allocation5], 384
    %v269 = vld [vmem:[%s268] sm:$0xff]
    %v270 = vld [vmem:[%s268 + $0x8] sm:$0xff]
    %v271 = vld [vmem:[%s268 + $0x10] sm:$0xff]
    %v272 = vld [vmem:[%s268 + $0x18] sm:$0xff]
    %v273 = vld [vmem:[%s268 + $0x20] sm:$0xff]
    %v274 = vld [vmem:[%s268 + $0x28] sm:$0xff]
    %v275 = vld [vmem:[%s268 + $0x30] sm:$0xff]
    %v276 = vld [vmem:[%s268 + $0x38] sm:$0xff]
    %v277 = vld [vmem:[%s268 + $0x40] sm:$0xff]
    %v278 = vld [vmem:[%s268 + $0x48] sm:$0xff]
    %v279 = vld [vmem:[%s268 + $0x50] sm:$0xff]
    %v280 = vld [vmem:[%s268 + $0x58] sm:$0xff]
    %v281 = vld [vmem:[%s268 + $0x60] sm:$0xff]
    %v282 = vld [vmem:[%s268 + $0x68] sm:$0xff]
    %v283 = vld [vmem:[%s268 + $0x70] sm:$0xff]
    %v284 = vld [vmem:[%s268 + $0x78] sm:$0xff]
    %v285 = vld [vmem:[%s268 + $0x80] sm:$0xff]
    %v286 = vld [vmem:[%s268 + $0x88] sm:$0xff]
    %v287 = vld [vmem:[%s268 + $0x90] sm:$0xff]
    %v288 = vld [vmem:[%s268 + $0x98] sm:$0xff]
    %v289 = vld [vmem:[%s268 + $0xa0] sm:$0xff]
    %v290 = vld [vmem:[%s268 + $0xa8] sm:$0xff]
    %v291 = vld [vmem:[%s268 + $0xb0] sm:$0xff]
    %v292 = vld [vmem:[%s268 + $0xb8] sm:$0xff]
    %v293 = vld [vmem:[%s268 + $0xc0] sm:$0xff]
    %v294 = vld [vmem:[%s268 + $0xc8] sm:$0xff]
    %v295 = vld [vmem:[%s268 + $0xd0] sm:$0xff]
    %v296 = vld [vmem:[%s268 + $0xd8] sm:$0xff]
    %v297 = vld [vmem:[%s268 + $0xe0] sm:$0xff]
    %v298 = vld [vmem:[%s268 + $0xe8] sm:$0xff]
    %v299 = vld [vmem:[%s268 + $0xf0] sm:$0xff]
    %v300 = vld [vmem:[%s268 + $0xf8] sm:$0xff]
    %v301 = vld [vmem:[%s268 + $0x100] sm:$0xff]
    %v302 = vld [vmem:[%s268 + $0x108] sm:$0xff]
    %v303 = vld [vmem:[%s268 + $0x110] sm:$0xff]
    %v304 = vld [vmem:[%s268 + $0x118] sm:$0xff]
    %v305 = vld [vmem:[%s268 + $0x120] sm:$0xff]
    %v306 = vld [vmem:[%s268 + $0x128] sm:$0xff]
    %v307 = vld [vmem:[%s268 + $0x130] sm:$0xff]
    %v308 = vld [vmem:[%s268 + $0x138] sm:$0xff]
    %v309 = vld [vmem:[%s268 + $0x140] sm:$0xff]
    %v310 = vld [vmem:[%s268 + $0x148] sm:$0xff]
    %v311 = vld [vmem:[%s268 + $0x150] sm:$0xff]
    %v312 = vld [vmem:[%s268 + $0x158] sm:$0xff]
    %v313 = vld [vmem:[%s268 + $0x160] sm:$0xff]
    %v314 = vld [vmem:[%s268 + $0x168] sm:$0xff]
    %v315 = vld [vmem:[%s268 + $0x170] sm:$0xff]
    %v316 = vld [vmem:[%s268 + $0x178] sm:$0xff]
    %s317 = scalar_lea.vmem [#allocation5], 768
    %v318 = vld [vmem:[%s317] sm:$0xff]
    %v319 = vld [vmem:[%s317 + $0x8] sm:$0xff]
    %v320 = vld [vmem:[%s317 + $0x10] sm:$0xff]
    %v321 = vld [vmem:[%s317 + $0x18] sm:$0xff]
    %v322 = vld [vmem:[%s317 + $0x20] sm:$0xff]
    %v323 = vld [vmem:[%s317 + $0x28] sm:$0xff]
    %v324 = vld [vmem:[%s317 + $0x30] sm:$0xff]
    %v325 = vld [vmem:[%s317 + $0x38] sm:$0xff]
    %v326 = vld [vmem:[%s317 + $0x40] sm:$0xff]
    %v327 = vld [vmem:[%s317 + $0x48] sm:$0xff]
    %v328 = vld [vmem:[%s317 + $0x50] sm:$0xff]
    %v329 = vld [vmem:[%s317 + $0x58] sm:$0xff]
    %v330 = vld [vmem:[%s317 + $0x60] sm:$0xff]
    %v331 = vld [vmem:[%s317 + $0x68] sm:$0xff]
    %v332 = vld [vmem:[%s317 + $0x70] sm:$0xff]
    %v333 = vld [vmem:[%s317 + $0x78] sm:$0xff]
    %v334 = vld [vmem:[%s317 + $0x80] sm:$0xff]
    %v335 = vld [vmem:[%s317 + $0x88] sm:$0xff]
    %v336 = vld [vmem:[%s317 + $0x90] sm:$0xff]
    %v337 = vld [vmem:[%s317 + $0x98] sm:$0xff]
    %v338 = vld [vmem:[%s317 + $0xa0] sm:$0xff]
    %v339 = vld [vmem:[%s317 + $0xa8] sm:$0xff]
    %v340 = vld [vmem:[%s317 + $0xb0] sm:$0xff]
    %v341 = vld [vmem:[%s317 + $0xb8] sm:$0xff]
    %v342 = vld [vmem:[%s317 + $0xc0] sm:$0xff]
    %v343 = vld [vmem:[%s317 + $0xc8] sm:$0xff]
    %v344 = vld [vmem:[%s317 + $0xd0] sm:$0xff]
    %v345 = vld [vmem:[%s317 + $0xd8] sm:$0xff]
    %v346 = vld [vmem:[%s317 + $0xe0] sm:$0xff]
    %v347 = vld [vmem:[%s317 + $0xe8] sm:$0xff]
    %v348 = vld [vmem:[%s317 + $0xf0] sm:$0xff]
    %v349 = vld [vmem:[%s317 + $0xf8] sm:$0xff]
    %v350 = vld [vmem:[%s317 + $0x100] sm:$0xff]
    %v351 = vld [vmem:[%s317 + $0x108] sm:$0xff]
    %v352 = vld [vmem:[%s317 + $0x110] sm:$0xff]
    %v353 = vld [vmem:[%s317 + $0x118] sm:$0xff]
    %v354 = vld [vmem:[%s317 + $0x120] sm:$0xff]
    %v355 = vld [vmem:[%s317 + $0x128] sm:$0xff]
    %v356 = vld [vmem:[%s317 + $0x130] sm:$0xff]
    %v357 = vld [vmem:[%s317 + $0x138] sm:$0xff]
    %v358 = vld [vmem:[%s317 + $0x140] sm:$0xff]
    %v359 = vld [vmem:[%s317 + $0x148] sm:$0xff]
    %v360 = vld [vmem:[%s317 + $0x150] sm:$0xff]
    %v361 = vld [vmem:[%s317 + $0x158] sm:$0xff]
    %v362 = vld [vmem:[%s317 + $0x160] sm:$0xff]
    %v363 = vld [vmem:[%s317 + $0x168] sm:$0xff]
    %v364 = vld [vmem:[%s317 + $0x170] sm:$0xff]
    %v365 = vld [vmem:[%s317 + $0x178] sm:$0xff]
    %v366 = vld [vmem:[%s3] sm:$0x7]
    %s367 = scalar_lea.vmem %s3, 3
    %v368 = vld [vmem:[%s367] sm:$0x7]
    %s369 = scalar_lea.vmem %s3, 6
    %v370 = vld [vmem:[%s369] sm:$0x7]
    %v371 = vld [vmem:[%s4] sm:$0x1]
    %s372 = scalar_lea.vmem %s4, 1
    %v373 = vld [vmem:[%s372] sm:$0x1]
    %s374 = scalar_lea.vmem %s4, 2
    %v375 = vld [vmem:[%s374] sm:$0x1]
    %v376 = vld [vmem:[%s0] sm:$0xff]
    %v377 = vld [vmem:[%s0 + $0x8] sm:$0xff]
    %v379 = vlaneseq
    %v380 = vshrl.u32 %v379, 7
    %v381 = vsub.s32 0, %v380
    %v382 = vrot.slane %v366, %v381
    %v383 = vlaneseq
    %v384 = vshrl.u32 %v383, 7
    %v385 = vsub.s32 1, %v384
    %v386 = vrot.slane %v366, %v385
    %v387 = vlaneseq
    %v388 = vshrl.u32 %v387, 7
    %v389 = vsub.s32 2, %v388
    %v390 = vrot.slane %v366, %v389
    %394 = vmatprep.subr.mxu0 %v75
    %395 = vmatpush1.msra.mxu0 %v74
    %396 = vmatprep.subr.mxu0 %v78
    %397 = vmatpush1.msra.mxu0 %v77
    %398 = vmatprep.subr.mxu0 %v81
    %399 = vmatpush1.msra.mxu0 %v80
    %400 = vmatprep.subr.mxu0 %v84
    %401 = vmatpush1.msra.mxu0 %v83
    %402 = vmatprep.subr.mxu0 %v87
    %403 = vmatpush1.msra.mxu0 %v86
    %404 = vmatprep.subr.mxu0 %v90
    %405 = vmatpush1.msra.mxu0 %v89
    %406 = vmatprep.subr.mxu0 %v93
    %407 = vmatpush1.msra.mxu0 %v92
    %408 = vmatprep.subr.mxu0 %v96
    %409 = vmatpush1.msra.mxu0 %v95
    %410 = vmatprep.subr.mxu0 %v99
    %411 = vmatpush1.msra.mxu0 %v98
    %412 = vmatprep.subr.mxu0 %v102
    %413 = vmatpush1.msra.mxu0 %v101
    %414 = vmatprep.subr.mxu0 %v105
    %415 = vmatpush1.msra.mxu0 %v104
    %416 = vmatprep.subr.mxu0 %v108
    %417 = vmatpush1.msra.mxu0 %v107
    %418 = vmatprep.subr.mxu0 %v111
    %419 = vmatpush1.msra.mxu0 %v110
    %420 = vmatprep.subr.mxu0 %v114
    %421 = vmatpush1.msra.mxu0 %v113
    %422 = vmatprep.subr.mxu0 %v117
    %423 = vmatpush1.msra.mxu0 %v116
    %424 = vmatprep.subr.mxu0 %v120
    %425 = vmatpush1.msra.mxu0 %v119
    %426 = vmatprep.subr.mxu0 0.0
    %427 = vmatpush1.msra.mxu0 0.0
    %428 = vmatprep.subr.mxu0 0.0
    %429 = vmatpush1.msra.mxu0 0.0
    %430 = vmatprep.subr.mxu0 0.0
    %431 = vmatpush1.msra.mxu0 0.0
    %432 = vmatprep.subr.mxu0 0.0
    %433 = vmatpush1.msra.mxu0 0.0
    %434 = vmatprep.subr.mxu0 0.0
    %435 = vmatpush1.msra.mxu0 0.0
    %436 = vmatprep.subr.mxu0 0.0
    %437 = vmatpush1.msra.mxu0 0.0
    %438 = vmatprep.subr.mxu0 0.0
    %439 = vmatpush1.msra.mxu0 0.0
    %440 = vmatprep.subr.mxu0 0.0
    %441 = vmatpush1.msra.mxu0 0.0
    %442 = vmatprep.subr.mxu0 0.0
    %443 = vmatpush1.msra.mxu0 0.0
    %444 = vmatprep.subr.mxu0 0.0
    %445 = vmatpush1.msra.mxu0 0.0
    %446 = vmatprep.subr.mxu0 0.0
    %447 = vmatpush1.msra.mxu0 0.0
    %448 = vmatprep.subr.mxu0 0.0
    %449 = vmatpush1.msra.mxu0 0.0
    %450 = vmatprep.subr.mxu0 0.0
    %451 = vmatpush1.msra.mxu0 0.0
    %452 = vmatprep.subr.mxu0 0.0
    %453 = vmatpush1.msra.mxu0 0.0
    %454 = vmatprep.subr.mxu0 0.0
    %455 = vmatpush1.msra.mxu0 0.0
    %456 = vmatprep.subr.mxu0 0.0
    %457 = vmatpush1.msra.mxu0 0.0
    %458 = vmatprep.mubr.f32.mxu0 0.0
    %459 = vmatmul.mubr.f32.gmra.mrb[0].mxu0 %v376
    %v460 = vpop.f32.mrb[0].mxu0
    %v461 = vadd.f32 %v382, %v460
    %v462 = vpop.f32.mrb[0].mxu0
    %v463 = vadd.f32 %v386, %v462
    %464 = vmatprep.mubr.f32.mxu0 0.0
    %465 = vmatmul.mubr.f32.gmra.mrb[0].mxu0 %v377
    %v466 = vpop.f32.mrb[0].mxu0
    %v467 = vadd.f32 %v382, %v466
    %v468 = vpop.f32.mrb[0].mxu0
    %v469 = vadd.f32 %v386, %v468
    %470 = vdwg.mxu0
    %471 = vmatprep.subr.mxu0 0.0
    %472 = vmatpush1.msra.mxu0 %v76
    %473 = vmatprep.subr.mxu0 0.0
    %474 = vmatpush1.msra.mxu0 %v79
    %475 = vmatprep.subr.mxu0 0.0
    %476 = vmatpush1.msra.mxu0 %v82
    %477 = vmatprep.subr.mxu0 0.0
    %478 = vmatpush1.msra.mxu0 %v85
    %479 = vmatprep.subr.mxu0 0.0
    %480 = vmatpush1.msra.mxu0 %v88
    %481 = vmatprep.subr.mxu0 0.0
    %482 = vmatpush1.msra.mxu0 %v91
    %483 = vmatprep.subr.mxu0 0.0
    %484 = vmatpush1.msra.mxu0 %v94
    %485 = vmatprep.subr.mxu0 0.0
    %486 = vmatpush1.msra.mxu0 %v97
    %487 = vmatprep.subr.mxu0 0.0
    %488 = vmatpush1.msra.mxu0 %v100
    %489 = vmatprep.subr.mxu0 0.0
    %490 = vmatpush1.msra.mxu0 %v103
    %491 = vmatprep.subr.mxu0 0.0
    %492 = vmatpush1.msra.mxu0 %v106
    %493 = vmatprep.subr.mxu0 0.0
    %494 = vmatpush1.msra.mxu0 %v109
    %495 = vmatprep.subr.mxu0 0.0
    %496 = vmatpush1.msra.mxu0 %v112
    %497 = vmatprep.subr.mxu0 0.0
    %498 = vmatpush1.msra.mxu0 %v115
    %499 = vmatprep.subr.mxu0 0.0
    %500 = vmatpush1.msra.mxu0 %v118
    %501 = vmatprep.subr.mxu0 0.0
    %502 = vmatpush1.msra.mxu0 %v121
    %503 = vmatprep.subr.mxu0 0.0
    %504 = vmatpush1.msra.mxu0 0.0
    %505 = vmatprep.subr.mxu0 0.0
    %506 = vmatpush1.msra.mxu0 0.0
    %507 = vmatprep.subr.mxu0 0.0
    %508 = vmatpush1.msra.mxu0 0.0
    %509 = vmatprep.subr.mxu0 0.0
    %510 = vmatpush1.msra.mxu0 0.0
    %511 = vmatprep.subr.mxu0 0.0
    %512 = vmatpush1.msra.mxu0 0.0
    %513 = vmatprep.subr.mxu0 0.0
    %514 = vmatpush1.msra.mxu0 0.0
    %515 = vmatprep.subr.mxu0 0.0
    %516 = vmatpush1.msra.mxu0 0.0
    %517 = vmatprep.subr.mxu0 0.0
    %518 = vmatpush1.msra.mxu0 0.0
    %519 = vmatprep.subr.mxu0 0.0
    %520 = vmatpush1.msra.mxu0 0.0
    %521 = vmatprep.subr.mxu0 0.0
    %522 = vmatpush1.msra.mxu0 0.0
    %523 = vmatprep.subr.mxu0 0.0
    %524 = vmatpush1.msra.mxu0 0.0
    %525 = vmatprep.subr.mxu0 0.0
    %526 = vmatpush1.msra.mxu0 0.0
    %527 = vmatprep.subr.mxu0 0.0
    %528 = vmatpush1.msra.mxu0 0.0
    %529 = vmatprep.subr.mxu0 0.0
    %530 = vmatpush1.msra.mxu0 0.0
    %531 = vmatprep.subr.mxu0 0.0
    %532 = vmatpush1.msra.mxu0 0.0
    %533 = vmatprep.subr.mxu0 0.0
    %534 = vmatpush1.msra.mxu0 0.0
    %535 = vmatprep.mubr.f32.mxu0 0.0
    %536 = vmatmul.mubr.f32.gmra.mrb[0].mxu0 %v376
    %v537 = vpop.f32.mrb[0].mxu0
    %v538 = vadd.f32 %v390, %v537
    %v539 = vpop.f32.mrb[0].mxu0
    %540 = vmatprep.mubr.f32.mxu0 0.0
    %541 = vmatmul.mubr.f32.gmra.mrb[0].mxu0 %v377
    %v542 = vpop.f32.mrb[0].mxu0
    %v543 = vadd.f32 %v390, %v542
    %v544 = vpop.f32.mrb[0].mxu0
    %545 = vdwg.mxu0
    %v546 = vxor.u32 %v461, 2147483648
    %v547 = vxor.u32 %v463, 2147483648
    %v548 = vmul.f32 %v546, 1.442695
    %v549 = vpow.pop %v548
    %v550 = vmul.f32 %v547, 1.442695
    %v551 = vpow.pop %v550
    %v552 = vadd.f32 %v549, 1.0
    %v553 = vadd.f32 %v551, 1.0
    %v554 = vrcp.pop %v552
    %v555 = vmul.f32 1.0, %v554
    %v556 = vrcp.pop %v553
    %v557 = vmul.f32 1.0, %v556
    %v559 = vlaneseq
    %v560 = vshrl.u32 %v559, 7
    %v561 = vsub.s32 0, %v560
    %v562 = vrot.slane %v371, %v561
    %v564 = vmul.f32 %v555, %v562
    %v565 = vadd.f32 %v538, %v564
    %v566 = vtanh.pop %v565
    %v567 = vsub.f32 1.0, %v557
    %v568 = vmul.f32 %v567, %v566
    %569 = vmatprep.subr.mxu0 %v221
    %570 = vmatpush1.msra.mxu0 %v220
    %571 = vmatprep.subr.mxu0 %v224
    %572 = vmatpush1.msra.mxu0 %v223
    %573 = vmatprep.subr.mxu0 %v227
    %574 = vmatpush1.msra.mxu0 %v226
    %575 = vmatprep.subr.mxu0 %v230
    %576 = vmatpush1.msra.mxu0 %v229
    %577 = vmatprep.subr.mxu0 %v233
    %578 = vmatpush1.msra.mxu0 %v232
    %579 = vmatprep.subr.mxu0 %v236
    %580 = vmatpush1.msra.mxu0 %v235
    %581 = vmatprep.subr.mxu0 %v239
    %582 = vmatpush1.msra.mxu0 %v238
    %583 = vmatprep.subr.mxu0 %v242
    %584 = vmatpush1.msra.mxu0 %v241
    %585 = vmatprep.subr.mxu0 %v245
    %586 = vmatpush1.msra.mxu0 %v244
    %587 = vmatprep.subr.mxu0 %v248
    %588 = vmatpush1.msra.mxu0 %v247
    %589 = vmatprep.subr.mxu0 %v251
    %590 = vmatpush1.msra.mxu0 %v250
    %591 = vmatprep.subr.mxu0 %v254
    %592 = vmatpush1.msra.mxu0 %v253
    %593 = vmatprep.subr.mxu0 %v257
    %594 = vmatpush1.msra.mxu0 %v256
    %595 = vmatprep.subr.mxu0 %v260
    %596 = vmatpush1.msra.mxu0 %v259
    %597 = vmatprep.subr.mxu0 %v263
    %598 = vmatpush1.msra.mxu0 %v262
    %599 = vmatprep.subr.mxu0 %v266
    %600 = vmatpush1.msra.mxu0 %v265
    %601 = vmatprep.subr.mxu0 0.0
    %602 = vmatpush1.msra.mxu0 0.0
    %603 = vmatprep.subr.mxu0 0.0
    %604 = vmatpush1.msra.mxu0 0.0
    %605 = vmatprep.subr.mxu0 0.0
    %606 = vmatpush1.msra.mxu0 0.0
    %607 = vmatprep.subr.mxu0 0.0
    %608 = vmatpush1.msra.mxu0 0.0
    %609 = vmatprep.subr.mxu0 0.0
    %610 = vmatpush1.msra.mxu0 0.0
    %611 = vmatprep.subr.mxu0 0.0
    %612 = vmatpush1.msra.mxu0 0.0
    %613 = vmatprep.subr.mxu0 0.0
    %614 = vmatpush1.msra.mxu0 0.0
    %615 = vmatprep.subr.mxu0 0.0
    %616 = vmatpush1.msra.mxu0 0.0
    %617 = vmatprep.subr.mxu0 0.0
    %618 = vmatpush1.msra.mxu0 0.0
    %619 = vmatprep.subr.mxu0 0.0
    %620 = vmatpush1.msra.mxu0 0.0
    %621 = vmatprep.subr.mxu0 0.0
    %622 = vmatpush1.msra.mxu0 0.0
    %623 = vmatprep.subr.mxu0 0.0
    %624 = vmatpush1.msra.mxu0 0.0
    %625 = vmatprep.subr.mxu0 0.0
    %626 = vmatpush1.msra.mxu0 0.0
    %627 = vmatprep.subr.mxu0 0.0
    %628 = vmatpush1.msra.mxu0 0.0
    %629 = vmatprep.subr.mxu0 0.0
    %630 = vmatpush1.msra.mxu0 0.0
    %631 = vmatprep.subr.mxu0 0.0
    %632 = vmatpush1.msra.mxu0 0.0
    %633 = vmatprep.mubr.f32.mxu0 0.0
    %634 = vmatmul.mubr.f32.gmra.mrb[0].mxu0 %v568
    %v635 = vpop.f32.mrb[0].mxu0
    %v636 = vadd.f32 0.0, %v635
    %v637 = vpop.f32.mrb[0].mxu0
    %v638 = vadd.f32 0.0, %v637
    %639 = vdwg.mxu0
    %640 = vmatprep.subr.mxu0 0.0
    %641 = vmatpush1.msra.mxu0 %v222
    %642 = vmatprep.subr.mxu0 0.0
    %643 = vmatpush1.msra.mxu0 %v225
    %644 = vmatprep.subr.mxu0 0.0
    %645 = vmatpush1.msra.mxu0 %v228
    %646 = vmatprep.subr.mxu0 0.0
    %647 = vmatpush1.msra.mxu0 %v231
    %648 = vmatprep.subr.mxu0 0.0
    %649 = vmatpush1.msra.mxu0 %v234
    %650 = vmatprep.subr.mxu0 0.0
    %651 = vmatpush1.msra.mxu0 %v237
    %652 = vmatprep.subr.mxu0 0.0
    %653 = vmatpush1.msra.mxu0 %v240
    %654 = vmatprep.subr.mxu0 0.0
    %655 = vmatpush1.msra.mxu0 %v243
    %656 = vmatprep.subr.mxu0 0.0
    %657 = vmatpush1.msra.mxu0 %v246
    %658 = vmatprep.subr.mxu0 0.0
    %659 = vmatpush1.msra.mxu0 %v249
    %660 = vmatprep.subr.mxu0 0.0
    %661 = vmatpush1.msra.mxu0 %v252
    %662 = vmatprep.subr.mxu0 0.0
    %663 = vmatpush1.msra.mxu0 %v255
    %664 = vmatprep.subr.mxu0 0.0
    %665 = vmatpush1.msra.mxu0 %v258
    %666 = vmatprep.subr.mxu0 0.0
    %667 = vmatpush1.msra.mxu0 %v261
    %668 = vmatprep.subr.mxu0 0.0
    %669 = vmatpush1.msra.mxu0 %v264
    %670 = vmatprep.subr.mxu0 0.0
    %671 = vmatpush1.msra.mxu0 %v267
    %672 = vmatprep.subr.mxu0 0.0
    %673 = vmatpush1.msra.mxu0 0.0
    %674 = vmatprep.subr.mxu0 0.0
    %675 = vmatpush1.msra.mxu0 0.0
    %676 = vmatprep.subr.mxu0 0.0
    %677 = vmatpush1.msra.mxu0 0.0
    %678 = vmatprep.subr.mxu0 0.0
    %679 = vmatpush1.msra.mxu0 0.0
    %680 = vmatprep.subr.mxu0 0.0
    %681 = vmatpush1.msra.mxu0 0.0
    %682 = vmatprep.subr.mxu0 0.0
    %683 = vmatpush1.msra.mxu0 0.0
    %684 = vmatprep.subr.mxu0 0.0
    %685 = vmatpush1.msra.mxu0 0.0
    %686 = vmatprep.subr.mxu0 0.0
    %687 = vmatpush1.msra.mxu0 0.0
    %688 = vmatprep.subr.mxu0 0.0
    %689 = vmatpush1.msra.mxu0 0.0
    %690 = vmatprep.subr.mxu0 0.0
    %691 = vmatpush1.msra.mxu0 0.0
    %692 = vmatprep.subr.mxu0 0.0
    %693 = vmatpush1.msra.mxu0 0.0
    %694 = vmatprep.subr.mxu0 0.0
    %695 = vmatpush1.msra.mxu0 0.0
    %696 = vmatprep.subr.mxu0 0.0
    %697 = vmatpush1.msra.mxu0 0.0
    %698 = vmatprep.subr.mxu0 0.0
    %699 = vmatpush1.msra.mxu0 0.0
    %700 = vmatprep.subr.mxu0 0.0
    %701 = vmatpush1.msra.mxu0 0.0
    %702 = vmatprep.subr.mxu0 0.0
    %703 = vmatpush1.msra.mxu0 0.0
    %704 = vmatprep.mubr.f32.mxu0 0.0
    %705 = vmatmul.mubr.f32.gmra.mrb[0].mxu0 %v568
    %v706 = vpop.f32.mrb[0].mxu0
    %v707 = vadd.f32 0.0, %v706
    %v708 = vpop.f32.mrb[0].mxu0
    %709 = vdwg.mxu0
    %v712 = vrot.slane %v636, 6
    %v713 = vrot.slane %v638, 6
    %v716 = vadd.f32 %v461, %v712
    %v717 = vadd.f32 %v463, %v713
    %v718 = vxor.u32 %v716, 2147483648
    %v719 = vxor.u32 %v717, 2147483648
    %v720 = vmul.f32 %v718, 1.442695
    %v721 = vpow.pop %v720
    %v722 = vmul.f32 %v719, 1.442695
    %v723 = vpow.pop %v722
    %v724 = vadd.f32 %v721, 1.0
    %v725 = vadd.f32 %v723, 1.0
    %v726 = vrcp.pop %v724
    %v727 = vmul.f32 1.0, %v726
    %v728 = vrcp.pop %v725
    %v729 = vmul.f32 1.0, %v728
    %v730 = vadd.f32 %v707, %v562
    %v732 = vrot.slane %v730, 6
    %v734 = vmul.f32 %v727, %v732
    %v735 = vadd.f32 %v538, %v734
    %v736 = vtanh.pop %v735
    %v737 = vsub.f32 1.0, %v729
    %v738 = vmul.f32 %v737, %v736
    %v740 = vrot.slane %v568, 6
    %v742 = vmul.f32 %v729, %v740
    %v743 = vadd.f32 %v738, %v742
    %v745 = vlaneseq
    %v746 = vshrl.u32 %v745, 7
    %v747 = vsub.s32 0, %v746
    %v748 = vrot.slane %v368, %v747
    %v749 = vlaneseq
    %v750 = vshrl.u32 %v749, 7
    %v751 = vsub.s32 1, %v750
    %v752 = vrot.slane %v368, %v751
    %v753 = vlaneseq
    %v754 = vshrl.u32 %v753, 7
    %v755 = vsub.s32 2, %v754
    %v756 = vrot.slane %v368, %v755
    %760 = vmatprep.subr.mxu0 %v124
    %761 = vmatpush1.msra.mxu0 %v123
    %762 = vmatprep.subr.mxu0 %v127
    %763 = vmatpush1.msra.mxu0 %v126
    %764 = vmatprep.subr.mxu0 %v130
    %765 = vmatpush1.msra.mxu0 %v129
    %766 = vmatprep.subr.mxu0 %v133
    %767 = vmatpush1.msra.mxu0 %v132
    %768 = vmatprep.subr.mxu0 %v136
    %769 = vmatpush1.msra.mxu0 %v135
    %770 = vmatprep.subr.mxu0 %v139
    %771 = vmatpush1.msra.mxu0 %v138
    %772 = vmatprep.subr.mxu0 %v142
    %773 = vmatpush1.msra.mxu0 %v141
    %774 = vmatprep.subr.mxu0 %v145
    %775 = vmatpush1.msra.mxu0 %v144
    %776 = vmatprep.subr.mxu0 %v148
    %777 = vmatpush1.msra.mxu0 %v147
    %778 = vmatprep.subr.mxu0 %v151
    %779 = vmatpush1.msra.mxu0 %v150
    %780 = vmatprep.subr.mxu0 %v154
    %781 = vmatpush1.msra.mxu0 %v153
    %782 = vmatprep.subr.mxu0 %v157
    %783 = vmatpush1.msra.mxu0 %v156
    %784 = vmatprep.subr.mxu0 %v160
    %785 = vmatpush1.msra.mxu0 %v159
    %786 = vmatprep.subr.mxu0 %v163
    %787 = vmatpush1.msra.mxu0 %v162
    %788 = vmatprep.subr.mxu0 %v166
    %789 = vmatpush1.msra.mxu0 %v165
    %790 = vmatprep.subr.mxu0 %v169
    %791 = vmatpush1.msra.mxu0 %v168
    %792 = vmatprep.subr.mxu0 0.0
    %793 = vmatpush1.msra.mxu0 0.0
    %794 = vmatprep.subr.mxu0 0.0
    %795 = vmatpush1.msra.mxu0 0.0
    %796 = vmatprep.subr.mxu0 0.0
    %797 = vmatpush1.msra.mxu0 0.0
    %798 = vmatprep.subr.mxu0 0.0
    %799 = vmatpush1.msra.mxu0 0.0
    %800 = vmatprep.subr.mxu0 0.0
    %801 = vmatpush1.msra.mxu0 0.0
    %802 = vmatprep.subr.mxu0 0.0
    %803 = vmatpush1.msra.mxu0 0.0
    %804 = vmatprep.subr.mxu0 0.0
    %805 = vmatpush1.msra.mxu0 0.0
    %806 = vmatprep.subr.mxu0 0.0
    %807 = vmatpush1.msra.mxu0 0.0
    %808 = vmatprep.subr.mxu0 0.0
    %809 = vmatpush1.msra.mxu0 0.0
    %810 = vmatprep.subr.mxu0 0.0
    %811 = vmatpush1.msra.mxu0 0.0
    %812 = vmatprep.subr.mxu0 0.0
    %813 = vmatpush1.msra.mxu0 0.0
    %814 = vmatprep.subr.mxu0 0.0
    %815 = vmatpush1.msra.mxu0 0.0
    %816 = vmatprep.subr.mxu0 0.0
    %817 = vmatpush1.msra.mxu0 0.0
    %818 = vmatprep.subr.mxu0 0.0
    %819 = vmatpush1.msra.mxu0 0.0
    %820 = vmatprep.subr.mxu0 0.0
    %821 = vmatpush1.msra.mxu0 0.0
    %822 = vmatprep.subr.mxu0 0.0
    %823 = vmatpush1.msra.mxu0 0.0
    %824 = vmatprep.mubr.f32.mxu0 0.0
    %825 = vmatmul.mubr.f32.gmra.mrb[0].mxu0 %v568
    %v826 = vpop.f32.mrb[0].mxu0
    %v827 = vadd.f32 %v748, %v826
    %v828 = vpop.f32.mrb[0].mxu0
    %v829 = vadd.f32 %v752, %v828
    %830 = vdwg.mxu0
    %831 = vmatprep.subr.mxu0 0.0
    %832 = vmatpush1.msra.mxu0 %v125
    %833 = vmatprep.subr.mxu0 0.0
    %834 = vmatpush1.msra.mxu0 %v128
    %835 = vmatprep.subr.mxu0 0.0
    %836 = vmatpush1.msra.mxu0 %v131
    %837 = vmatprep.subr.mxu0 0.0
    %838 = vmatpush1.msra.mxu0 %v134
    %839 = vmatprep.subr.mxu0 0.0
    %840 = vmatpush1.msra.mxu0 %v137
    %841 = vmatprep.subr.mxu0 0.0
    %842 = vmatpush1.msra.mxu0 %v140
    %843 = vmatprep.subr.mxu0 0.0
    %844 = vmatpush1.msra.mxu0 %v143
    %845 = vmatprep.subr.mxu0 0.0
    %846 = vmatpush1.msra.mxu0 %v146
    %847 = vmatprep.subr.mxu0 0.0
    %848 = vmatpush1.msra.mxu0 %v149
    %849 = vmatprep.subr.mxu0 0.0
    %850 = vmatpush1.msra.mxu0 %v152
    %851 = vmatprep.subr.mxu0 0.0
    %852 = vmatpush1.msra.mxu0 %v155
    %853 = vmatprep.subr.mxu0 0.0
    %854 = vmatpush1.msra.mxu0 %v158
    %855 = vmatprep.subr.mxu0 0.0
    %856 = vmatpush1.msra.mxu0 %v161
    %857 = vmatprep.subr.mxu0 0.0
    %858 = vmatpush1.msra.mxu0 %v164
    %859 = vmatprep.subr.mxu0 0.0
    %860 = vmatpush1.msra.mxu0 %v167
    %861 = vmatprep.subr.mxu0 0.0
    %862 = vmatpush1.msra.mxu0 %v170
    %863 = vmatprep.subr.mxu0 0.0
    %864 = vmatpush1.msra.mxu0 0.0
    %865 = vmatprep.subr.mxu0 0.0
    %866 = vmatpush1.msra.mxu0 0.0
    %867 = vmatprep.subr.mxu0 0.0
    %868 = vmatpush1.msra.mxu0 0.0
    %869 = vmatprep.subr.mxu0 0.0
    %870 = vmatpush1.msra.mxu0 0.0
    %871 = vmatprep.subr.mxu0 0.0
    %872 = vmatpush1.msra.mxu0 0.0
    %873 = vmatprep.subr.mxu0 0.0
    %874 = vmatpush1.msra.mxu0 0.0
    %875 = vmatprep.subr.mxu0 0.0
    %876 = vmatpush1.msra.mxu0 0.0
    %877 = vmatprep.subr.mxu0 0.0
    %878 = vmatpush1.msra.mxu0 0.0
    %879 = vmatprep.subr.mxu0 0.0
    %880 = vmatpush1.msra.mxu0 0.0
    %881 = vmatprep.subr.mxu0 0.0
    %882 = vmatpush1.msra.mxu0 0.0
    %883 = vmatprep.subr.mxu0 0.0
    %884 = vmatpush1.msra.mxu0 0.0
    %885 = vmatprep.subr.mxu0 0.0
    %886 = vmatpush1.msra.mxu0 0.0
    %887 = vmatprep.subr.mxu0 0.0
    %888 = vmatpush1.msra.mxu0 0.0
    %889 = vmatprep.subr.mxu0 0.0
    %890 = vmatpush1.msra.mxu0 0.0
    %891 = vmatprep.subr.mxu0 0.0
    %892 = vmatpush1.msra.mxu0 0.0
    %893 = vmatprep.subr.mxu0 0.0
    %894 = vmatpush1.msra.mxu0 0.0
    %895 = vmatprep.mubr.f32.mxu0 0.0
    %896 = vmatmul.mubr.f32.gmra.mrb[0].mxu0 %v568
    %v897 = vpop.f32.mrb[0].mxu0
    %v898 = vadd.f32 %v756, %v897
    %v899 = vpop.f32.mrb[0].mxu0
    %900 = vdwg.mxu0
    %v901 = vxor.u32 %v827, 2147483648
    %v902 = vxor.u32 %v829, 2147483648
    %v903 = vmul.f32 %v901, 1.442695
    %v904 = vpow.pop %v903
    %v905 = vmul.f32 %v902, 1.442695
    %v906 = vpow.pop %v905
    %v907 = vadd.f32 %v904, 1.0
    %v908 = vadd.f32 %v906, 1.0
    %v909 = vrcp.pop %v907
    %v910 = vmul.f32 1.0, %v909
    %v911 = vrcp.pop %v908
    %v912 = vmul.f32 1.0, %v911
    %v914 = vlaneseq
    %v915 = vshrl.u32 %v914, 7
    %v916 = vsub.s32 0, %v915
    %v917 = vrot.slane %v373, %v916
    %v919 = vmul.f32 %v910, %v917
    %v920 = vadd.f32 %v898, %v919
    %v921 = vtanh.pop %v920
    %v922 = vsub.f32 1.0, %v912
    %v923 = vmul.f32 %v922, %v921
    %v925 = vrot.slane %v743, 2
    %927 = vmatprep.subr.mxu0 %v221
    %928 = vmatpush1.msra.mxu0 %v220
    %929 = vmatprep.subr.mxu0 %v224
    %930 = vmatpush1.msra.mxu0 %v223
    %931 = vmatprep.subr.mxu0 %v227
    %932 = vmatpush1.msra.mxu0 %v226
    %933 = vmatprep.subr.mxu0 %v230
    %934 = vmatpush1.msra.mxu0 %v229
    %935 = vmatprep.subr.mxu0 %v233
    %936 = vmatpush1.msra.mxu0 %v232
    %937 = vmatprep.subr.mxu0 %v236
    %938 = vmatpush1.msra.mxu0 %v235
    %939 = vmatprep.subr.mxu0 %v239
    %940 = vmatpush1.msra.mxu0 %v238
    %941 = vmatprep.subr.mxu0 %v242
    %942 = vmatpush1.msra.mxu0 %v241
    %943 = vmatprep.subr.mxu0 %v245
    %944 = vmatpush1.msra.mxu0 %v244
    %945 = vmatprep.subr.mxu0 %v248
    %946 = vmatpush1.msra.mxu0 %v247
    %947 = vmatprep.subr.mxu0 %v251
    %948 = vmatpush1.msra.mxu0 %v250
    %949 = vmatprep.subr.mxu0 %v254
    %950 = vmatpush1.msra.mxu0 %v253
    %951 = vmatprep.subr.mxu0 %v257
    %952 = vmatpush1.msra.mxu0 %v256
    %953 = vmatprep.subr.mxu0 %v260
    %954 = vmatpush1.msra.mxu0 %v259
    %955 = vmatprep.subr.mxu0 %v263
    %956 = vmatpush1.msra.mxu0 %v262
    %957 = vmatprep.subr.mxu0 %v266
    %958 = vmatpush1.msra.mxu0 %v265
    %959 = vmatprep.subr.mxu0 0.0
    %960 = vmatpush1.msra.mxu0 0.0
    %961 = vmatprep.subr.mxu0 0.0
    %962 = vmatpush1.msra.mxu0 0.0
    %963 = vmatprep.subr.mxu0 0.0
    %964 = vmatpush1.msra.mxu0 0.0
    %965 = vmatprep.subr.mxu0 0.0
    %966 = vmatpush1.msra.mxu0 0.0
    %967 = vmatprep.subr.mxu0 0.0
    %968 = vmatpush1.msra.mxu0 0.0
    %969 = vmatprep.subr.mxu0 0.0
    %970 = vmatpush1.msra.mxu0 0.0
    %971 = vmatprep.subr.mxu0 0.0
    %972 = vmatpush1.msra.mxu0 0.0
    %973 = vmatprep.subr.mxu0 0.0
    %974 = vmatpush1.msra.mxu0 0.0
    %975 = vmatprep.subr.mxu0 0.0
    %976 = vmatpush1.msra.mxu0 0.0
    %977 = vmatprep.subr.mxu0 0.0
    %978 = vmatpush1.msra.mxu0 0.0
    %979 = vmatprep.subr.mxu0 0.0
    %980 = vmatpush1.msra.mxu0 0.0
    %981 = vmatprep.subr.mxu0 0.0
    %982 = vmatpush1.msra.mxu0 0.0
    %983 = vmatprep.subr.mxu0 0.0
    %984 = vmatpush1.msra.mxu0 0.0
    %985 = vmatprep.subr.mxu0 0.0
    %986 = vmatpush1.msra.mxu0 0.0
    %987 = vmatprep.subr.mxu0 0.0
    %988 = vmatpush1.msra.mxu0 0.0
    %989 = vmatprep.subr.mxu0 0.0
    %990 = vmatpush1.msra.mxu0 0.0
    %991 = vmatprep.mubr.f32.mxu0 0.0
    %992 = vmatmul.mubr.f32.gmra.mrb[0].mxu0 %v925
    %v993 = vpop.f32.mrb[0].mxu0
    %v994 = vadd.f32 0.0, %v993
    %v995 = vpop.f32.mrb[0].mxu0
    %v996 = vadd.f32 0.0, %v995
    %997 = vdwg.mxu0
    %998 = vmatprep.subr.mxu0 0.0
    %999 = vmatpush1.msra.mxu0 %v222
    %1000 = vmatprep.subr.mxu0 0.0
    %1001 = vmatpush1.msra.mxu0 %v225
    %1002 = vmatprep.subr.mxu0 0.0
    %1003 = vmatpush1.msra.mxu0 %v228
    %1004 = vmatprep.subr.mxu0 0.0
    %1005 = vmatpush1.msra.mxu0 %v231
    %1006 = vmatprep.subr.mxu0 0.0
    %1007 = vmatpush1.msra.mxu0 %v234
    %1008 = vmatprep.subr.mxu0 0.0
    %1009 = vmatpush1.msra.mxu0 %v237
    %1010 = vmatprep.subr.mxu0 0.0
    %1011 = vmatpush1.msra.mxu0 %v240
    %1012 = vmatprep.subr.mxu0 0.0
    %1013 = vmatpush1.msra.mxu0 %v243
    %1014 = vmatprep.subr.mxu0 0.0
    %1015 = vmatpush1.msra.mxu0 %v246
    %1016 = vmatprep.subr.mxu0 0.0
    %1017 = vmatpush1.msra.mxu0 %v249
    %1018 = vmatprep.subr.mxu0 0.0
    %1019 = vmatpush1.msra.mxu0 %v252
    %1020 = vmatprep.subr.mxu0 0.0
    %1021 = vmatpush1.msra.mxu0 %v255
    %1022 = vmatprep.subr.mxu0 0.0
    %1023 = vmatpush1.msra.mxu0 %v258
    %1024 = vmatprep.subr.mxu0 0.0
    %1025 = vmatpush1.msra.mxu0 %v261
    %1026 = vmatprep.subr.mxu0 0.0
    %1027 = vmatpush1.msra.mxu0 %v264
    %1028 = vmatprep.subr.mxu0 0.0
    %1029 = vmatpush1.msra.mxu0 %v267
    %1030 = vmatprep.subr.mxu0 0.0
    %1031 = vmatpush1.msra.mxu0 0.0
    %1032 = vmatprep.subr.mxu0 0.0
    %1033 = vmatpush1.msra.mxu0 0.0
    %1034 = vmatprep.subr.mxu0 0.0
    %1035 = vmatpush1.msra.mxu0 0.0
    %1036 = vmatprep.subr.mxu0 0.0
    %1037 = vmatpush1.msra.mxu0 0.0
    %1038 = vmatprep.subr.mxu0 0.0
    %1039 = vmatpush1.msra.mxu0 0.0
    %1040 = vmatprep.subr.mxu0 0.0
    %1041 = vmatpush1.msra.mxu0 0.0
    %1042 = vmatprep.subr.mxu0 0.0
    %1043 = vmatpush1.msra.mxu0 0.0
    %1044 = vmatprep.subr.mxu0 0.0
    %1045 = vmatpush1.msra.mxu0 0.0
    %1046 = vmatprep.subr.mxu0 0.0
    %1047 = vmatpush1.msra.mxu0 0.0
    %1048 = vmatprep.subr.mxu0 0.0
    %1049 = vmatpush1.msra.mxu0 0.0
    %1050 = vmatprep.subr.mxu0 0.0
    %1051 = vmatpush1.msra.mxu0 0.0
    %1052 = vmatprep.subr.mxu0 0.0
    %1053 = vmatpush1.msra.mxu0 0.0
    %1054 = vmatprep.subr.mxu0 0.0
    %1055 = vmatpush1.msra.mxu0 0.0
    %1056 = vmatprep.subr.mxu0 0.0
    %1057 = vmatpush1.msra.mxu0 0.0
    %1058 = vmatprep.subr.mxu0 0.0
    %1059 = vmatpush1.msra.mxu0 0.0
    %1060 = vmatprep.subr.mxu0 0.0
    %1061 = vmatpush1.msra.mxu0 0.0
    %1062 = vmatprep.mubr.f32.mxu0 0.0
    %1063 = vmatmul.mubr.f32.gmra.mrb[0].mxu0 %v925
    %v1064 = vpop.f32.mrb[0].mxu0
    %v1065 = vadd.f32 0.0, %v1064
    %v1066 = vpop.f32.mrb[0].mxu0
    %1067 = vdwg.mxu0
    %v1070 = vrot.slane %v994, 4
    %v1071 = vrot.slane %v996, 4
    %v1074 = vadd.f32 %v461, %v1070
    %v1075 = vadd.f32 %v463, %v1071
    %v1076 = vxor.u32 %v1074, 2147483648
    %v1077 = vxor.u32 %v1075, 2147483648
    %v1078 = vmul.f32 %v1076, 1.442695
    %v1079 = vpow.pop %v1078
    %v1080 = vmul.f32 %v1077, 1.442695
    %v1081 = vpow.pop %v1080
    %v1082 = vadd.f32 %v1079, 1.0
    %v1083 = vadd.f32 %v1081, 1.0
    %v1084 = vrcp.pop %v1082
    %v1085 = vmul.f32 1.0, %v1084
    %v1086 = vrcp.pop %v1083
    %v1087 = vmul.f32 1.0, %v1086
    %v1088 = vadd.f32 %v1065, %v562
    %v1090 = vrot.slane %v1088, 4
    %v1092 = vmul.f32 %v1085, %v1090
    %v1093 = vadd.f32 %v538, %v1092
    %v1094 = vtanh.pop %v1093
    %v1095 = vsub.f32 1.0, %v1087
    %v1096 = vmul.f32 %v1095, %v1094
    %v1097 = vrot.slane %v743, 6
    %v1099 = vmul.f32 %v1087, %v1097
    %v1100 = vadd.f32 %v1096, %v1099
    %1101 = vmatprep.subr.mxu0 %v124
    %1102 = vmatpush1.msra.mxu0 %v123
    %1103 = vmatprep.subr.mxu0 %v127
    %1104 = vmatpush1.msra.mxu0 %v126
    %1105 = vmatprep.subr.mxu0 %v130
    %1106 = vmatpush1.msra.mxu0 %v129
    %1107 = vmatprep.subr.mxu0 %v133
    %1108 = vmatpush1.msra.mxu0 %v132
    %1109 = vmatprep.subr.mxu0 %v136
    %1110 = vmatpush1.msra.mxu0 %v135
    %1111 = vmatprep.subr.mxu0 %v139
    %1112 = vmatpush1.msra.mxu0 %v138
    %1113 = vmatprep.subr.mxu0 %v142
    %1114 = vmatpush1.msra.mxu0 %v141
    %1115 = vmatprep.subr.mxu0 %v145
    %1116 = vmatpush1.msra.mxu0 %v144
    %1117 = vmatprep.subr.mxu0 %v148
    %1118 = vmatpush1.msra.mxu0 %v147
    %1119 = vmatprep.subr.mxu0 %v151
    %1120 = vmatpush1.msra.mxu0 %v150
    %1121 = vmatprep.subr.mxu0 %v154
    %1122 = vmatpush1.msra.mxu0 %v153
    %1123 = vmatprep.subr.mxu0 %v157
    %1124 = vmatpush1.msra.mxu0 %v156
    %1125 = vmatprep.subr.mxu0 %v160
    %1126 = vmatpush1.msra.mxu0 %v159
    %1127 = vmatprep.subr.mxu0 %v163
    %1128 = vmatpush1.msra.mxu0 %v162
    %1129 = vmatprep.subr.mxu0 %v166
    %1130 = vmatpush1.msra.mxu0 %v165
    %1131 = vmatprep.subr.mxu0 %v169
    %1132 = vmatpush1.msra.mxu0 %v168
    %1133 = vmatprep.subr.mxu0 0.0
    %1134 = vmatpush1.msra.mxu0 0.0
    %1135 = vmatprep.subr.mxu0 0.0
    %1136 = vmatpush1.msra.mxu0 0.0
    %1137 = vmatprep.subr.mxu0 0.0
    %1138 = vmatpush1.msra.mxu0 0.0
    %1139 = vmatprep.subr.mxu0 0.0
    %1140 = vmatpush1.msra.mxu0 0.0
    %1141 = vmatprep.subr.mxu0 0.0
    %1142 = vmatpush1.msra.mxu0 0.0
    %1143 = vmatprep.subr.mxu0 0.0
    %1144 = vmatpush1.msra.mxu0 0.0
    %1145 = vmatprep.subr.mxu0 0.0
    %1146 = vmatpush1.msra.mxu0 0.0
    %1147 = vmatprep.subr.mxu0 0.0
    %1148 = vmatpush1.msra.mxu0 0.0
    %1149 = vmatprep.subr.mxu0 0.0
    %1150 = vmatpush1.msra.mxu0 0.0
    %1151 = vmatprep.subr.mxu0 0.0
    %1152 = vmatpush1.msra.mxu0 0.0
    %1153 = vmatprep.subr.mxu0 0.0
    %1154 = vmatpush1.msra.mxu0 0.0
    %1155 = vmatprep.subr.mxu0 0.0
    %1156 = vmatpush1.msra.mxu0 0.0
    %1157 = vmatprep.subr.mxu0 0.0
    %1158 = vmatpush1.msra.mxu0 0.0
    %1159 = vmatprep.subr.mxu0 0.0
    %1160 = vmatpush1.msra.mxu0 0.0
    %1161 = vmatprep.subr.mxu0 0.0
    %1162 = vmatpush1.msra.mxu0 0.0
    %1163 = vmatprep.subr.mxu0 0.0
    %1164 = vmatpush1.msra.mxu0 0.0
    %1165 = vmatprep.mubr.f32.mxu0 0.0
    %1166 = vmatmul.mubr.f32.gmra.mrb[0].mxu0 %v925
    %v1167 = vpop.f32.mrb[0].mxu0
    %v1168 = vadd.f32 %v748, %v1167
    %v1169 = vpop.f32.mrb[0].mxu0
    %v1170 = vadd.f32 %v752, %v1169
    %1171 = vdwg.mxu0
    %1172 = vmatprep.subr.mxu0 0.0
    %1173 = vmatpush1.msra.mxu0 %v125
    %1174 = vmatprep.subr.mxu0 0.0
    %1175 = vmatpush1.msra.mxu0 %v128
    %1176 = vmatprep.subr.mxu0 0.0
    %1177 = vmatpush1.msra.mxu0 %v131
    %1178 = vmatprep.subr.mxu0 0.0
    %1179 = vmatpush1.msra.mxu0 %v134
    %1180 = vmatprep.subr.mxu0 0.0
    %1181 = vmatpush1.msra.mxu0 %v137
    %1182 = vmatprep.subr.mxu0 0.0
    %1183 = vmatpush1.msra.mxu0 %v140
    %1184 = vmatprep.subr.mxu0 0.0
    %1185 = vmatpush1.msra.mxu0 %v143
    %1186 = vmatprep.subr.mxu0 0.0
    %1187 = vmatpush1.msra.mxu0 %v146
    %1188 = vmatprep.subr.mxu0 0.0
    %1189 = vmatpush1.msra.mxu0 %v149
    %1190 = vmatprep.subr.mxu0 0.0
    %1191 = vmatpush1.msra.mxu0 %v152
    %1192 = vmatprep.subr.mxu0 0.0
    %1193 = vmatpush1.msra.mxu0 %v155
    %1194 = vmatprep.subr.mxu0 0.0
    %1195 = vmatpush1.msra.mxu0 %v158
    %1196 = vmatprep.subr.mxu0 0.0
    %1197 = vmatpush1.msra.mxu0 %v161
    %1198 = vmatprep.subr.mxu0 0.0
    %1199 = vmatpush1.msra.mxu0 %v164
    %1200 = vmatprep.subr.mxu0 0.0
    %1201 = vmatpush1.msra.mxu0 %v167
    %1202 = vmatprep.subr.mxu0 0.0
    %1203 = vmatpush1.msra.mxu0 %v170
    %1204 = vmatprep.subr.mxu0 0.0
    %1205 = vmatpush1.msra.mxu0 0.0
    %1206 = vmatprep.subr.mxu0 0.0
    %1207 = vmatpush1.msra.mxu0 0.0
    %1208 = vmatprep.subr.mxu0 0.0
    %1209 = vmatpush1.msra.mxu0 0.0
    %1210 = vmatprep.subr.mxu0 0.0
    %1211 = vmatpush1.msra.mxu0 0.0
    %1212 = vmatprep.subr.mxu0 0.0
    %1213 = vmatpush1.msra.mxu0 0.0
    %1214 = vmatprep.subr.mxu0 0.0
    %1215 = vmatpush1.msra.mxu0 0.0
    %1216 = vmatprep.subr.mxu0 0.0
    %1217 = vmatpush1.msra.mxu0 0.0
    %1218 = vmatprep.subr.mxu0 0.0
    %1219 = vmatpush1.msra.mxu0 0.0
    %1220 = vmatprep.subr.mxu0 0.0
    %1221 = vmatpush1.msra.mxu0 0.0
    %1222 = vmatprep.subr.mxu0 0.0
    %1223 = vmatpush1.msra.mxu0 0.0
    %1224 = vmatprep.subr.mxu0 0.0
    %1225 = vmatpush1.msra.mxu0 0.0
    %1226 = vmatprep.subr.mxu0 0.0
    %1227 = vmatpush1.msra.mxu0 0.0
    %1228 = vmatprep.subr.mxu0 0.0
    %1229 = vmatpush1.msra.mxu0 0.0
    %1230 = vmatprep.subr.mxu0 0.0
    %1231 = vmatpush1.msra.mxu0 0.0
    %1232 = vmatprep.subr.mxu0 0.0
    %1233 = vmatpush1.msra.mxu0 0.0
    %1234 = vmatprep.subr.mxu0 0.0
    %1235 = vmatpush1.msra.mxu0 0.0
    %1236 = vmatprep.mubr.f32.mxu0 0.0
    %1237 = vmatmul.mubr.f32.gmra.mrb[0].mxu0 %v925
    %v1238 = vpop.f32.mrb[0].mxu0
    %v1239 = vadd.f32 %v756, %v1238
    %v1240 = vpop.f32.mrb[0].mxu0
    %1241 = vdwg.mxu0
    %1242 = vmatprep.subr.mxu0 %v270
    %1243 = vmatpush1.msra.mxu0 %v269
    %1244 = vmatprep.subr.mxu0 %v273
    %1245 = vmatpush1.msra.mxu0 %v272
    %1246 = vmatprep.subr.mxu0 %v276
    %1247 = vmatpush1.msra.mxu0 %v275
    %1248 = vmatprep.subr.mxu0 %v279
    %1249 = vmatpush1.msra.mxu0 %v278
    %1250 = vmatprep.subr.mxu0 %v282
    %1251 = vmatpush1.msra.mxu0 %v281
    %1252 = vmatprep.subr.mxu0 %v285
    %1253 = vmatpush1.msra.mxu0 %v284
    %1254 = vmatprep.subr.mxu0 %v288
    %1255 = vmatpush1.msra.mxu0 %v287
    %1256 = vmatprep.subr.mxu0 %v291
    %1257 = vmatpush1.msra.mxu0 %v290
    %1258 = vmatprep.subr.mxu0 %v294
    %1259 = vmatpush1.msra.mxu0 %v293
    %1260 = vmatprep.subr.mxu0 %v297
    %1261 = vmatpush1.msra.mxu0 %v296
    %1262 = vmatprep.subr.mxu0 %v300
    %1263 = vmatpush1.msra.mxu0 %v299
    %1264 = vmatprep.subr.mxu0 %v303
    %1265 = vmatpush1.msra.mxu0 %v302
    %1266 = vmatprep.subr.mxu0 %v306
    %1267 = vmatpush1.msra.mxu0 %v305
    %1268 = vmatprep.subr.mxu0 %v309
    %1269 = vmatpush1.msra.mxu0 %v308
    %1270 = vmatprep.subr.mxu0 %v312
    %1271 = vmatpush1.msra.mxu0 %v311
    %1272 = vmatprep.subr.mxu0 %v315
    %1273 = vmatpush1.msra.mxu0 %v314
    %1274 = vmatprep.subr.mxu0 0.0
    %1275 = vmatpush1.msra.mxu0 0.0
    %1276 = vmatprep.subr.mxu0 0.0
    %1277 = vmatpush1.msra.mxu0 0.0
    %1278 = vmatprep.subr.mxu0 0.0
    %1279 = vmatpush1.msra.mxu0 0.0
    %1280 = vmatprep.subr.mxu0 0.0
    %1281 = vmatpush1.msra.mxu0 0.0
    %1282 = vmatprep.subr.mxu0 0.0
    %1283 = vmatpush1.msra.mxu0 0.0
    %1284 = vmatprep.subr.mxu0 0.0
    %1285 = vmatpush1.msra.mxu0 0.0
    %1286 = vmatprep.subr.mxu0 0.0
    %1287 = vmatpush1.msra.mxu0 0.0
    %1288 = vmatprep.subr.mxu0 0.0
    %1289 = vmatpush1.msra.mxu0 0.0
    %1290 = vmatprep.subr.mxu0 0.0
    %1291 = vmatpush1.msra.mxu0 0.0
    %1292 = vmatprep.subr.mxu0 0.0
    %1293 = vmatpush1.msra.mxu0 0.0
    %1294 = vmatprep.subr.mxu0 0.0
    %1295 = vmatpush1.msra.mxu0 0.0
    %1296 = vmatprep.subr.mxu0 0.0
    %1297 = vmatpush1.msra.mxu0 0.0
    %1298 = vmatprep.subr.mxu0 0.0
    %1299 = vmatpush1.msra.mxu0 0.0
    %1300 = vmatprep.subr.mxu0 0.0
    %1301 = vmatpush1.msra.mxu0 0.0
    %1302 = vmatprep.subr.mxu0 0.0
    %1303 = vmatpush1.msra.mxu0 0.0
    %1304 = vmatprep.subr.mxu0 0.0
    %1305 = vmatpush1.msra.mxu0 0.0
    %1306 = vmatprep.mubr.f32.mxu0 0.0
    %1307 = vmatmul.mubr.f32.gmra.mrb[0].mxu0 %v923
    %v1308 = vpop.f32.mrb[0].mxu0
    %v1309 = vadd.f32 0.0, %v1308
    %v1310 = vpop.f32.mrb[0].mxu0
    %v1311 = vadd.f32 0.0, %v1310
    %1312 = vdwg.mxu0
    %1313 = vmatprep.subr.mxu0 0.0
    %1314 = vmatpush1.msra.mxu0 %v271
    %1315 = vmatprep.subr.mxu0 0.0
    %1316 = vmatpush1.msra.mxu0 %v274
    %1317 = vmatprep.subr.mxu0 0.0
    %1318 = vmatpush1.msra.mxu0 %v277
    %1319 = vmatprep.subr.mxu0 0.0
    %1320 = vmatpush1.msra.mxu0 %v280
    %1321 = vmatprep.subr.mxu0 0.0
    %1322 = vmatpush1.msra.mxu0 %v283
    %1323 = vmatprep.subr.mxu0 0.0
    %1324 = vmatpush1.msra.mxu0 %v286
    %1325 = vmatprep.subr.mxu0 0.0
    %1326 = vmatpush1.msra.mxu0 %v289
    %1327 = vmatprep.subr.mxu0 0.0
    %1328 = vmatpush1.msra.mxu0 %v292
    %1329 = vmatprep.subr.mxu0 0.0
    %1330 = vmatpush1.msra.mxu0 %v295
    %1331 = vmatprep.subr.mxu0 0.0
    %1332 = vmatpush1.msra.mxu0 %v298
    %1333 = vmatprep.subr.mxu0 0.0
    %1334 = vmatpush1.msra.mxu0 %v301
    %1335 = vmatprep.subr.mxu0 0.0
    %1336 = vmatpush1.msra.mxu0 %v304
    %1337 = vmatprep.subr.mxu0 0.0
    %1338 = vmatpush1.msra.mxu0 %v307
    %1339 = vmatprep.subr.mxu0 0.0
    %1340 = vmatpush1.msra.mxu0 %v310
    %1341 = vmatprep.subr.mxu0 0.0
    %1342 = vmatpush1.msra.mxu0 %v313
    %1343 = vmatprep.subr.mxu0 0.0
    %1344 = vmatpush1.msra.mxu0 %v316
    %1345 = vmatprep.subr.mxu0 0.0
    %1346 = vmatpush1.msra.mxu0 0.0
    %1347 = vmatprep.subr.mxu0 0.0
    %1348 = vmatpush1.msra.mxu0 0.0
    %1349 = vmatprep.subr.mxu0 0.0
    %1350 = vmatpush1.msra.mxu0 0.0
    %1351 = vmatprep.subr.mxu0 0.0
    %1352 = vmatpush1.msra.mxu0 0.0
    %1353 = vmatprep.subr.mxu0 0.0
    %1354 = vmatpush1.msra.mxu0 0.0
    %1355 = vmatprep.subr.mxu0 0.0
    %1356 = vmatpush1.msra.mxu0 0.0
    %1357 = vmatprep.subr.mxu0 0.0
    %1358 = vmatpush1.msra.mxu0 0.0
    %1359 = vmatprep.subr.mxu0 0.0
    %1360 = vmatpush1.msra.mxu0 0.0
    %1361 = vmatprep.subr.mxu0 0.0
    %1362 = vmatpush1.msra.mxu0 0.0
    %1363 = vmatprep.subr.mxu0 0.0
    %1364 = vmatpush1.msra.mxu0 0.0
    %1365 = vmatprep.subr.mxu0 0.0
    %1366 = vmatpush1.msra.mxu0 0.0
    %1367 = vmatprep.subr.mxu0 0.0
    %1368 = vmatpush1.msra.mxu0 0.0
    %1369 = vmatprep.subr.mxu0 0.0
    %1370 = vmatpush1.msra.mxu0 0.0
    %1371 = vmatprep.subr.mxu0 0.0
    %1372 = vmatpush1.msra.mxu0 0.0
    %1373 = vmatprep.subr.mxu0 0.0
    %1374 = vmatpush1.msra.mxu0 0.0
    %1375 = vmatprep.subr.mxu0 0.0
    %1376 = vmatpush1.msra.mxu0 0.0
    %1377 = vmatprep.mubr.f32.mxu0 0.0
    %1378 = vmatmul.mubr.f32.gmra.mrb[0].mxu0 %v923
    %v1379 = vpop.f32.mrb[0].mxu0
    %v1380 = vadd.f32 0.0, %v1379
    %v1381 = vpop.f32.mrb[0].mxu0
    %1382 = vdwg.mxu0
    %v1383 = vadd.f32 %v1168, %v1309
    %v1384 = vadd.f32 %v1170, %v1311
    %v1385 = vxor.u32 %v1383, 2147483648
    %v1386 = vxor.u32 %v1384, 2147483648
    %v1387 = vmul.f32 %v1385, 1.442695
    %v1388 = vpow.pop %v1387
    %v1389 = vmul.f32 %v1386, 1.442695
    %v1390 = vpow.pop %v1389
    %v1391 = vadd.f32 %v1388, 1.0
    %v1392 = vadd.f32 %v1390, 1.0
    %v1393 = vrcp.pop %v1391
    %v1394 = vmul.f32 1.0, %v1393
    %v1395 = vrcp.pop %v1392
    %v1396 = vmul.f32 1.0, %v1395
    %v1397 = vadd.f32 %v1380, %v917
    %v1398 = vmul.f32 %v1394, %v1397
    %v1399 = vadd.f32 %v1239, %v1398
    %v1400 = vtanh.pop %v1399
    %v1401 = vsub.f32 1.0, %v1396
    %v1402 = vmul.f32 %v1401, %v1400
    %v1403 = vmul.f32 %v1396, %v923
    %v1404 = vadd.f32 %v1402, %v1403
    %v1406 = vlaneseq
    %v1407 = vshrl.u32 %v1406, 7
    %v1408 = vsub.s32 0, %v1407
    %v1409 = vrot.slane %v370, %v1408
    %v1410 = vlaneseq
    %v1411 = vshrl.u32 %v1410, 7
    %v1412 = vsub.s32 1, %v1411
    %v1413 = vrot.slane %v370, %v1412
    %v1414 = vlaneseq
    %v1415 = vshrl.u32 %v1414, 7
    %v1416 = vsub.s32 2, %v1415
    %v1417 = vrot.slane %v370, %v1416
    %1421 = vmatprep.subr.mxu0 %v173
    %1422 = vmatpush1.msra.mxu0 %v172
    %1423 = vmatprep.subr.mxu0 %v176
    %1424 = vmatpush1.msra.mxu0 %v175
    %1425 = vmatprep.subr.mxu0 %v179
    %1426 = vmatpush1.msra.mxu0 %v178
    %1427 = vmatprep.subr.mxu0 %v182
    %1428 = vmatpush1.msra.mxu0 %v181
    %1429 = vmatprep.subr.mxu0 %v185
    %1430 = vmatpush1.msra.mxu0 %v184
    %1431 = vmatprep.subr.mxu0 %v188
    %1432 = vmatpush1.msra.mxu0 %v187
    %1433 = vmatprep.subr.mxu0 %v191
    %1434 = vmatpush1.msra.mxu0 %v190
    %1435 = vmatprep.subr.mxu0 %v194
    %1436 = vmatpush1.msra.mxu0 %v193
    %1437 = vmatprep.subr.mxu0 %v197
    %1438 = vmatpush1.msra.mxu0 %v196
    %1439 = vmatprep.subr.mxu0 %v200
    %1440 = vmatpush1.msra.mxu0 %v199
    %1441 = vmatprep.subr.mxu0 %v203
    %1442 = vmatpush1.msra.mxu0 %v202
    %1443 = vmatprep.subr.mxu0 %v206
    %1444 = vmatpush1.msra.mxu0 %v205
    %1445 = vmatprep.subr.mxu0 %v209
    %1446 = vmatpush1.msra.mxu0 %v208
    %1447 = vmatprep.subr.mxu0 %v212
    %1448 = vmatpush1.msra.mxu0 %v211
    %1449 = vmatprep.subr.mxu0 %v215
    %1450 = vmatpush1.msra.mxu0 %v214
    %1451 = vmatprep.subr.mxu0 %v218
    %1452 = vmatpush1.msra.mxu0 %v217
    %1453 = vmatprep.subr.mxu0 0.0
    %1454 = vmatpush1.msra.mxu0 0.0
    %1455 = vmatprep.subr.mxu0 0.0
    %1456 = vmatpush1.msra.mxu0 0.0
    %1457 = vmatprep.subr.mxu0 0.0
    %1458 = vmatpush1.msra.mxu0 0.0
    %1459 = vmatprep.subr.mxu0 0.0
    %1460 = vmatpush1.msra.mxu0 0.0
    %1461 = vmatprep.subr.mxu0 0.0
    %1462 = vmatpush1.msra.mxu0 0.0
    %1463 = vmatprep.subr.mxu0 0.0
    %1464 = vmatpush1.msra.mxu0 0.0
    %1465 = vmatprep.subr.mxu0 0.0
    %1466 = vmatpush1.msra.mxu0 0.0
    %1467 = vmatprep.subr.mxu0 0.0
    %1468 = vmatpush1.msra.mxu0 0.0
    %1469 = vmatprep.subr.mxu0 0.0
    %1470 = vmatpush1.msra.mxu0 0.0
    %1471 = vmatprep.subr.mxu0 0.0
    %1472 = vmatpush1.msra.mxu0 0.0
    %1473 = vmatprep.subr.mxu0 0.0
    %1474 = vmatpush1.msra.mxu0 0.0
    %1475 = vmatprep.subr.mxu0 0.0
    %1476 = vmatpush1.msra.mxu0 0.0
    %1477 = vmatprep.subr.mxu0 0.0
    %1478 = vmatpush1.msra.mxu0 0.0
    %1479 = vmatprep.subr.mxu0 0.0
    %1480 = vmatpush1.msra.mxu0 0.0
    %1481 = vmatprep.subr.mxu0 0.0
    %1482 = vmatpush1.msra.mxu0 0.0
    %1483 = vmatprep.subr.mxu0 0.0
    %1484 = vmatpush1.msra.mxu0 0.0
    %1485 = vmatprep.mubr.f32.mxu0 0.0
    %1486 = vmatmul.mubr.f32.gmra.mrb[0].mxu0 %v923
    %v1487 = vpop.f32.mrb[0].mxu0
    %v1488 = vadd.f32 %v1409, %v1487
    %v1489 = vpop.f32.mrb[0].mxu0
    %v1490 = vadd.f32 %v1413, %v1489
    %1491 = vdwg.mxu0
    %1492 = vmatprep.subr.mxu0 0.0
    %1493 = vmatpush1.msra.mxu0 %v174
    %1494 = vmatprep.subr.mxu0 0.0
    %1495 = vmatpush1.msra.mxu0 %v177
    %1496 = vmatprep.subr.mxu0 0.0
    %1497 = vmatpush1.msra.mxu0 %v180
    %1498 = vmatprep.subr.mxu0 0.0
    %1499 = vmatpush1.msra.mxu0 %v183
    %1500 = vmatprep.subr.mxu0 0.0
    %1501 = vmatpush1.msra.mxu0 %v186
    %1502 = vmatprep.subr.mxu0 0.0
    %1503 = vmatpush1.msra.mxu0 %v189
    %1504 = vmatprep.subr.mxu0 0.0
    %1505 = vmatpush1.msra.mxu0 %v192
    %1506 = vmatprep.subr.mxu0 0.0
    %1507 = vmatpush1.msra.mxu0 %v195
    %1508 = vmatprep.subr.mxu0 0.0
    %1509 = vmatpush1.msra.mxu0 %v198
    %1510 = vmatprep.subr.mxu0 0.0
    %1511 = vmatpush1.msra.mxu0 %v201
    %1512 = vmatprep.subr.mxu0 0.0
    %1513 = vmatpush1.msra.mxu0 %v204
    %1514 = vmatprep.subr.mxu0 0.0
    %1515 = vmatpush1.msra.mxu0 %v207
    %1516 = vmatprep.subr.mxu0 0.0
    %1517 = vmatpush1.msra.mxu0 %v210
    %1518 = vmatprep.subr.mxu0 0.0
    %1519 = vmatpush1.msra.mxu0 %v213
    %1520 = vmatprep.subr.mxu0 0.0
    %1521 = vmatpush1.msra.mxu0 %v216
    %1522 = vmatprep.subr.mxu0 0.0
    %1523 = vmatpush1.msra.mxu0 %v219
    %1524 = vmatprep.subr.mxu0 0.0
    %1525 = vmatpush1.msra.mxu0 0.0
    %1526 = vmatprep.subr.mxu0 0.0
    %1527 = vmatpush1.msra.mxu0 0.0
    %1528 = vmatprep.subr.mxu0 0.0
    %1529 = vmatpush1.msra.mxu0 0.0
    %1530 = vmatprep.subr.mxu0 0.0
    %1531 = vmatpush1.msra.mxu0 0.0
    %1532 = vmatprep.subr.mxu0 0.0
    %1533 = vmatpush1.msra.mxu0 0.0
    %1534 = vmatprep.subr.mxu0 0.0
    %1535 = vmatpush1.msra.mxu0 0.0
    %1536 = vmatprep.subr.mxu0 0.0
    %1537 = vmatpush1.msra.mxu0 0.0
    %1538 = vmatprep.subr.mxu0 0.0
    %1539 = vmatpush1.msra.mxu0 0.0
    %1540 = vmatprep.subr.mxu0 0.0
    %1541 = vmatpush1.msra.mxu0 0.0
    %1542 = vmatprep.subr.mxu0 0.0
    %1543 = vmatpush1.msra.mxu0 0.0
    %1544 = vmatprep.subr.mxu0 0.0
    %1545 = vmatpush1.msra.mxu0 0.0
    %1546 = vmatprep.subr.mxu0 0.0
    %1547 = vmatpush1.msra.mxu0 0.0
    %1548 = vmatprep.subr.mxu0 0.0
    %1549 = vmatpush1.msra.mxu0 0.0
    %1550 = vmatprep.subr.mxu0 0.0
    %1551 = vmatpush1.msra.mxu0 0.0
    %1552 = vmatprep.subr.mxu0 0.0
    %1553 = vmatpush1.msra.mxu0 0.0
    %1554 = vmatprep.subr.mxu0 0.0
    %1555 = vmatpush1.msra.mxu0 0.0
    %1556 = vmatprep.mubr.f32.mxu0 0.0
    %1557 = vmatmul.mubr.f32.gmra.mrb[0].mxu0 %v923
    %v1558 = vpop.f32.mrb[0].mxu0
    %v1559 = vadd.f32 %v1417, %v1558
    %v1560 = vpop.f32.mrb[0].mxu0
    %1561 = vdwg.mxu0
    %v1562 = vxor.u32 %v1488, 2147483648
    %v1563 = vxor.u32 %v1490, 2147483648
    %v1564 = vmul.f32 %v1562, 1.442695
    %v1565 = vpow.pop %v1564
    %v1566 = vmul.f32 %v1563, 1.442695
    %v1567 = vpow.pop %v1566
    %v1568 = vadd.f32 %v1565, 1.0
    %v1569 = vadd.f32 %v1567, 1.0
    %v1570 = vrcp.pop %v1568
    %v1571 = vmul.f32 1.0, %v1570
    %v1572 = vrcp.pop %v1569
    %v1573 = vmul.f32 1.0, %v1572
    %v1575 = vlaneseq
    %v1576 = vshrl.u32 %v1575, 7
    %v1577 = vsub.s32 0, %v1576
    %v1578 = vrot.slane %v375, %v1577
    %v1580 = vmul.f32 %v1571, %v1578
    %v1581 = vadd.f32 %v1559, %v1580
    %v1582 = vtanh.pop %v1581
    %v1583 = vsub.f32 1.0, %v1573
    %v1584 = vmul.f32 %v1583, %v1582
    %v1586 = vrot.slane %v1100, 4
    %1588 = vmatprep.subr.mxu0 %v221
    %1589 = vmatpush1.msra.mxu0 %v220
    %1590 = vmatprep.subr.mxu0 %v224
    %1591 = vmatpush1.msra.mxu0 %v223
    %1592 = vmatprep.subr.mxu0 %v227
    %1593 = vmatpush1.msra.mxu0 %v226
    %1594 = vmatprep.subr.mxu0 %v230
    %1595 = vmatpush1.msra.mxu0 %v229
    %1596 = vmatprep.subr.mxu0 %v233
    %1597 = vmatpush1.msra.mxu0 %v232
    %1598 = vmatprep.subr.mxu0 %v236
    %1599 = vmatpush1.msra.mxu0 %v235
    %1600 = vmatprep.subr.mxu0 %v239
    %1601 = vmatpush1.msra.mxu0 %v238
    %1602 = vmatprep.subr.mxu0 %v242
    %1603 = vmatpush1.msra.mxu0 %v241
    %1604 = vmatprep.subr.mxu0 %v245
    %1605 = vmatpush1.msra.mxu0 %v244
    %1606 = vmatprep.subr.mxu0 %v248
    %1607 = vmatpush1.msra.mxu0 %v247
    %1608 = vmatprep.subr.mxu0 %v251
    %1609 = vmatpush1.msra.mxu0 %v250
    %1610 = vmatprep.subr.mxu0 %v254
    %1611 = vmatpush1.msra.mxu0 %v253
    %1612 = vmatprep.subr.mxu0 %v257
    %1613 = vmatpush1.msra.mxu0 %v256
    %1614 = vmatprep.subr.mxu0 %v260
    %1615 = vmatpush1.msra.mxu0 %v259
    %1616 = vmatprep.subr.mxu0 %v263
    %1617 = vmatpush1.msra.mxu0 %v262
    %1618 = vmatprep.subr.mxu0 %v266
    %1619 = vmatpush1.msra.mxu0 %v265
    %1620 = vmatprep.subr.mxu0 0.0
    %1621 = vmatpush1.msra.mxu0 0.0
    %1622 = vmatprep.subr.mxu0 0.0
    %1623 = vmatpush1.msra.mxu0 0.0
    %1624 = vmatprep.subr.mxu0 0.0
    %1625 = vmatpush1.msra.mxu0 0.0
    %1626 = vmatprep.subr.mxu0 0.0
    %1627 = vmatpush1.msra.mxu0 0.0
    %1628 = vmatprep.subr.mxu0 0.0
    %1629 = vmatpush1.msra.mxu0 0.0
    %1630 = vmatprep.subr.mxu0 0.0
    %1631 = vmatpush1.msra.mxu0 0.0
    %1632 = vmatprep.subr.mxu0 0.0
    %1633 = vmatpush1.msra.mxu0 0.0
    %1634 = vmatprep.subr.mxu0 0.0
    %1635 = vmatpush1.msra.mxu0 0.0
    %1636 = vmatprep.subr.mxu0 0.0
    %1637 = vmatpush1.msra.mxu0 0.0
    %1638 = vmatprep.subr.mxu0 0.0
    %1639 = vmatpush1.msra.mxu0 0.0
    %1640 = vmatprep.subr.mxu0 0.0
    %1641 = vmatpush1.msra.mxu0 0.0
    %1642 = vmatprep.subr.mxu0 0.0
    %1643 = vmatpush1.msra.mxu0 0.0
    %1644 = vmatprep.subr.mxu0 0.0
    %1645 = vmatpush1.msra.mxu0 0.0
    %1646 = vmatprep.subr.mxu0 0.0
    %1647 = vmatpush1.msra.mxu0 0.0
    %1648 = vmatprep.subr.mxu0 0.0
    %1649 = vmatpush1.msra.mxu0 0.0
    %1650 = vmatprep.subr.mxu0 0.0
    %1651 = vmatpush1.msra.mxu0 0.0
    %1652 = vmatprep.mubr.f32.mxu0 0.0
    %1653 = vmatmul.mubr.f32.gmra.mrb[0].mxu0 %v1586
    %v1654 = vpop.f32.mrb[0].mxu0
    %v1655 = vadd.f32 0.0, %v1654
    %v1656 = vpop.f32.mrb[0].mxu0
    %v1657 = vadd.f32 0.0, %v1656
    %1658 = vdwg.mxu0
    %1659 = vmatprep.subr.mxu0 0.0
    %1660 = vmatpush1.msra.mxu0 %v222
    %1661 = vmatprep.subr.mxu0 0.0
    %1662 = vmatpush1.msra.mxu0 %v225
    %1663 = vmatprep.subr.mxu0 0.0
    %1664 = vmatpush1.msra.mxu0 %v228
    %1665 = vmatprep.subr.mxu0 0.0
    %1666 = vmatpush1.msra.mxu0 %v231
    %1667 = vmatprep.subr.mxu0 0.0
    %1668 = vmatpush1.msra.mxu0 %v234
    %1669 = vmatprep.subr.mxu0 0.0
    %1670 = vmatpush1.msra.mxu0 %v237
    %1671 = vmatprep.subr.mxu0 0.0
    %1672 = vmatpush1.msra.mxu0 %v240
    %1673 = vmatprep.subr.mxu0 0.0
    %1674 = vmatpush1.msra.mxu0 %v243
    %1675 = vmatprep.subr.mxu0 0.0
    %1676 = vmatpush1.msra.mxu0 %v246
    %1677 = vmatprep.subr.mxu0 0.0
    %1678 = vmatpush1.msra.mxu0 %v249
    %1679 = vmatprep.subr.mxu0 0.0
    %1680 = vmatpush1.msra.mxu0 %v252
    %1681 = vmatprep.subr.mxu0 0.0
    %1682 = vmatpush1.msra.mxu0 %v255
    %1683 = vmatprep.subr.mxu0 0.0
    %1684 = vmatpush1.msra.mxu0 %v258
    %1685 = vmatprep.subr.mxu0 0.0
    %1686 = vmatpush1.msra.mxu0 %v261
    %1687 = vmatprep.subr.mxu0 0.0
    %1688 = vmatpush1.msra.mxu0 %v264
    %1689 = vmatprep.subr.mxu0 0.0
    %1690 = vmatpush1.msra.mxu0 %v267
    %1691 = vmatprep.subr.mxu0 0.0
    %1692 = vmatpush1.msra.mxu0 0.0
    %1693 = vmatprep.subr.mxu0 0.0
    %1694 = vmatpush1.msra.mxu0 0.0
    %1695 = vmatprep.subr.mxu0 0.0
    %1696 = vmatpush1.msra.mxu0 0.0
    %1697 = vmatprep.subr.mxu0 0.0
    %1698 = vmatpush1.msra.mxu0 0.0
    %1699 = vmatprep.subr.mxu0 0.0
    %1700 = vmatpush1.msra.mxu0 0.0
    %1701 = vmatprep.subr.mxu0 0.0
    %1702 = vmatpush1.msra.mxu0 0.0
    %1703 = vmatprep.subr.mxu0 0.0
    %1704 = vmatpush1.msra.mxu0 0.0
    %1705 = vmatprep.subr.mxu0 0.0
    %1706 = vmatpush1.msra.mxu0 0.0
    %1707 = vmatprep.subr.mxu0 0.0
    %1708 = vmatpush1.msra.mxu0 0.0
    %1709 = vmatprep.subr.mxu0 0.0
    %1710 = vmatpush1.msra.mxu0 0.0
    %1711 = vmatprep.subr.mxu0 0.0
    %1712 = vmatpush1.msra.mxu0 0.0
    %1713 = vmatprep.subr.mxu0 0.0
    %1714 = vmatpush1.msra.mxu0 0.0
    %1715 = vmatprep.subr.mxu0 0.0
    %1716 = vmatpush1.msra.mxu0 0.0
    %1717 = vmatprep.subr.mxu0 0.0
    %1718 = vmatpush1.msra.mxu0 0.0
    %1719 = vmatprep.subr.mxu0 0.0
    %1720 = vmatpush1.msra.mxu0 0.0
    %1721 = vmatprep.subr.mxu0 0.0
    %1722 = vmatpush1.msra.mxu0 0.0
    %1723 = vmatprep.mubr.f32.mxu0 0.0
    %1724 = vmatmul.mubr.f32.gmra.mrb[0].mxu0 %v1586
    %v1725 = vpop.f32.mrb[0].mxu0
    %v1726 = vadd.f32 0.0, %v1725
    %v1727 = vpop.f32.mrb[0].mxu0
    %1728 = vdwg.mxu0
    %v1731 = vrot.slane %v1655, 2
    %v1732 = vrot.slane %v1657, 2
    %v1735 = vadd.f32 %v461, %v1731
    %v1736 = vadd.f32 %v463, %v1732
    %v1737 = vxor.u32 %v1735, 2147483648
    %v1738 = vxor.u32 %v1736, 2147483648
    %v1739 = vmul.f32 %v1737, 1.442695
    %v1740 = vpow.pop %v1739
    %v1741 = vmul.f32 %v1738, 1.442695
    %v1742 = vpow.pop %v1741
    %v1743 = vadd.f32 %v1740, 1.0
    %v1744 = vadd.f32 %v1742, 1.0
    %v1745 = vrcp.pop %v1743
    %v1746 = vmul.f32 1.0, %v1745
    %v1747 = vrcp.pop %v1744
    %v1748 = vmul.f32 1.0, %v1747
    %v1749 = vadd.f32 %v1726, %v562
    %v1751 = vrot.slane %v1749, 2
    %v1753 = vmul.f32 %v1746, %v1751
    %v1754 = vadd.f32 %v538, %v1753
    %v1755 = vtanh.pop %v1754
    %v1756 = vsub.f32 1.0, %v1748
    %v1757 = vmul.f32 %v1756, %v1755
    %v1758 = vrot.slane %v1100, 6
    %v1760 = vmul.f32 %v1748, %v1758
    %v1761 = vadd.f32 %v1757, %v1760
    %1762 = vmatprep.subr.mxu0 %v124
    %1763 = vmatpush1.msra.mxu0 %v123
    %1764 = vmatprep.subr.mxu0 %v127
    %1765 = vmatpush1.msra.mxu0 %v126
    %1766 = vmatprep.subr.mxu0 %v130
    %1767 = vmatpush1.msra.mxu0 %v129
    %1768 = vmatprep.subr.mxu0 %v133
    %1769 = vmatpush1.msra.mxu0 %v132
    %1770 = vmatprep.subr.mxu0 %v136
    %1771 = vmatpush1.msra.mxu0 %v135
    %1772 = vmatprep.subr.mxu0 %v139
    %1773 = vmatpush1.msra.mxu0 %v138
    %1774 = vmatprep.subr.mxu0 %v142
    %1775 = vmatpush1.msra.mxu0 %v141
    %1776 = vmatprep.subr.mxu0 %v145
    %1777 = vmatpush1.msra.mxu0 %v144
    %1778 = vmatprep.subr.mxu0 %v148
    %1779 = vmatpush1.msra.mxu0 %v147
    %1780 = vmatprep.subr.mxu0 %v151
    %1781 = vmatpush1.msra.mxu0 %v150
    %1782 = vmatprep.subr.mxu0 %v154
    %1783 = vmatpush1.msra.mxu0 %v153
    %1784 = vmatprep.subr.mxu0 %v157
    %1785 = vmatpush1.msra.mxu0 %v156
    %1786 = vmatprep.subr.mxu0 %v160
    %1787 = vmatpush1.msra.mxu0 %v159
    %1788 = vmatprep.subr.mxu0 %v163
    %1789 = vmatpush1.msra.mxu0 %v162
    %1790 = vmatprep.subr.mxu0 %v166
    %1791 = vmatpush1.msra.mxu0 %v165
    %1792 = vmatprep.subr.mxu0 %v169
    %1793 = vmatpush1.msra.mxu0 %v168
    %1794 = vmatprep.subr.mxu0 0.0
    %1795 = vmatpush1.msra.mxu0 0.0
    %1796 = vmatprep.subr.mxu0 0.0
    %1797 = vmatpush1.msra.mxu0 0.0
    %1798 = vmatprep.subr.mxu0 0.0
    %1799 = vmatpush1.msra.mxu0 0.0
    %1800 = vmatprep.subr.mxu0 0.0
    %1801 = vmatpush1.msra.mxu0 0.0
    %1802 = vmatprep.subr.mxu0 0.0
    %1803 = vmatpush1.msra.mxu0 0.0
    %1804 = vmatprep.subr.mxu0 0.0
    %1805 = vmatpush1.msra.mxu0 0.0
    %1806 = vmatprep.subr.mxu0 0.0
    %1807 = vmatpush1.msra.mxu0 0.0
    %1808 = vmatprep.subr.mxu0 0.0
    %1809 = vmatpush1.msra.mxu0 0.0
    %1810 = vmatprep.subr.mxu0 0.0
    %1811 = vmatpush1.msra.mxu0 0.0
    %1812 = vmatprep.subr.mxu0 0.0
    %1813 = vmatpush1.msra.mxu0 0.0
    %1814 = vmatprep.subr.mxu0 0.0
    %1815 = vmatpush1.msra.mxu0 0.0
    %1816 = vmatprep.subr.mxu0 0.0
    %1817 = vmatpush1.msra.mxu0 0.0
    %1818 = vmatprep.subr.mxu0 0.0
    %1819 = vmatpush1.msra.mxu0 0.0
    %1820 = vmatprep.subr.mxu0 0.0
    %1821 = vmatpush1.msra.mxu0 0.0
    %1822 = vmatprep.subr.mxu0 0.0
    %1823 = vmatpush1.msra.mxu0 0.0
    %1824 = vmatprep.subr.mxu0 0.0
    %1825 = vmatpush1.msra.mxu0 0.0
    %1826 = vmatprep.mubr.f32.mxu0 0.0
    %1827 = vmatmul.mubr.f32.gmra.mrb[0].mxu0 %v1586
    %v1828 = vpop.f32.mrb[0].mxu0
    %v1829 = vadd.f32 %v748, %v1828
    %v1830 = vpop.f32.mrb[0].mxu0
    %v1831 = vadd.f32 %v752, %v1830
    %1832 = vdwg.mxu0
    %1833 = vmatprep.subr.mxu0 0.0
    %1834 = vmatpush1.msra.mxu0 %v125
    %1835 = vmatprep.subr.mxu0 0.0
    %1836 = vmatpush1.msra.mxu0 %v128
    %1837 = vmatprep.subr.mxu0 0.0
    %1838 = vmatpush1.msra.mxu0 %v131
    %1839 = vmatprep.subr.mxu0 0.0
    %1840 = vmatpush1.msra.mxu0 %v134
    %1841 = vmatprep.subr.mxu0 0.0
    %1842 = vmatpush1.msra.mxu0 %v137
    %1843 = vmatprep.subr.mxu0 0.0
    %1844 = vmatpush1.msra.mxu0 %v140
    %1845 = vmatprep.subr.mxu0 0.0
    %1846 = vmatpush1.msra.mxu0 %v143
    %1847 = vmatprep.subr.mxu0 0.0
    %1848 = vmatpush1.msra.mxu0 %v146
    %1849 = vmatprep.subr.mxu0 0.0
    %1850 = vmatpush1.msra.mxu0 %v149
    %1851 = vmatprep.subr.mxu0 0.0
    %1852 = vmatpush1.msra.mxu0 %v152
    %1853 = vmatprep.subr.mxu0 0.0
    %1854 = vmatpush1.msra.mxu0 %v155
    %1855 = vmatprep.subr.mxu0 0.0
    %1856 = vmatpush1.msra.mxu0 %v158
    %1857 = vmatprep.subr.mxu0 0.0
    %1858 = vmatpush1.msra.mxu0 %v161
    %1859 = vmatprep.subr.mxu0 0.0
    %1860 = vmatpush1.msra.mxu0 %v164
    %1861 = vmatprep.subr.mxu0 0.0
    %1862 = vmatpush1.msra.mxu0 %v167
    %1863 = vmatprep.subr.mxu0 0.0
    %1864 = vmatpush1.msra.mxu0 %v170
    %1865 = vmatprep.subr.mxu0 0.0
    %1866 = vmatpush1.msra.mxu0 0.0
    %1867 = vmatprep.subr.mxu0 0.0
    %1868 = vmatpush1.msra.mxu0 0.0
    %1869 = vmatprep.subr.mxu0 0.0
    %1870 = vmatpush1.msra.mxu0 0.0
    %1871 = vmatprep.subr.mxu0 0.0
    %1872 = vmatpush1.msra.mxu0 0.0
    %1873 = vmatprep.subr.mxu0 0.0
    %1874 = vmatpush1.msra.mxu0 0.0
    %1875 = vmatprep.subr.mxu0 0.0
    %1876 = vmatpush1.msra.mxu0 0.0
    %1877 = vmatprep.subr.mxu0 0.0
    %1878 = vmatpush1.msra.mxu0 0.0
    %1879 = vmatprep.subr.mxu0 0.0
    %1880 = vmatpush1.msra.mxu0 0.0
    %1881 = vmatprep.subr.mxu0 0.0
    %1882 = vmatpush1.msra.mxu0 0.0
    %1883 = vmatprep.subr.mxu0 0.0
    %1884 = vmatpush1.msra.mxu0 0.0
    %1885 = vmatprep.subr.mxu0 0.0
    %1886 = vmatpush1.msra.mxu0 0.0
    %1887 = vmatprep.subr.mxu0 0.0
    %1888 = vmatpush1.msra.mxu0 0.0
    %1889 = vmatprep.subr.mxu0 0.0
    %1890 = vmatpush1.msra.mxu0 0.0
    %1891 = vmatprep.subr.mxu0 0.0
    %1892 = vmatpush1.msra.mxu0 0.0
    %1893 = vmatprep.subr.mxu0 0.0
    %1894 = vmatpush1.msra.mxu0 0.0
    %1895 = vmatprep.subr.mxu0 0.0
    %1896 = vmatpush1.msra.mxu0 0.0
    %1897 = vmatprep.mubr.f32.mxu0 0.0
    %1898 = vmatmul.mubr.f32.gmra.mrb[0].mxu0 %v1586
    %v1899 = vpop.f32.mrb[0].mxu0
    %v1900 = vadd.f32 %v756, %v1899
    %v1901 = vpop.f32.mrb[0].mxu0
    %1902 = vdwg.mxu0
    %1903 = vmatprep.subr.mxu0 %v270
    %1904 = vmatpush1.msra.mxu0 %v269
    %1905 = vmatprep.subr.mxu0 %v273
    %1906 = vmatpush1.msra.mxu0 %v272
    %1907 = vmatprep.subr.mxu0 %v276
    %1908 = vmatpush1.msra.mxu0 %v275
    %1909 = vmatprep.subr.mxu0 %v279
    %1910 = vmatpush1.msra.mxu0 %v278
    %1911 = vmatprep.subr.mxu0 %v282
    %1912 = vmatpush1.msra.mxu0 %v281
    %1913 = vmatprep.subr.mxu0 %v285
    %1914 = vmatpush1.msra.mxu0 %v284
    %1915 = vmatprep.subr.mxu0 %v288
    %1916 = vmatpush1.msra.mxu0 %v287
    %1917 = vmatprep.subr.mxu0 %v291
    %1918 = vmatpush1.msra.mxu0 %v290
    %1919 = vmatprep.subr.mxu0 %v294
    %1920 = vmatpush1.msra.mxu0 %v293
    %1921 = vmatprep.subr.mxu0 %v297
    %1922 = vmatpush1.msra.mxu0 %v296
    %1923 = vmatprep.subr.mxu0 %v300
    %1924 = vmatpush1.msra.mxu0 %v299
    %1925 = vmatprep.subr.mxu0 %v303
    %1926 = vmatpush1.msra.mxu0 %v302
    %1927 = vmatprep.subr.mxu0 %v306
    %1928 = vmatpush1.msra.mxu0 %v305
    %1929 = vmatprep.subr.mxu0 %v309
    %1930 = vmatpush1.msra.mxu0 %v308
    %1931 = vmatprep.subr.mxu0 %v312
    %1932 = vmatpush1.msra.mxu0 %v311
    %1933 = vmatprep.subr.mxu0 %v315
    %1934 = vmatpush1.msra.mxu0 %v314
    %1935 = vmatprep.subr.mxu0 0.0
    %1936 = vmatpush1.msra.mxu0 0.0
    %1937 = vmatprep.subr.mxu0 0.0
    %1938 = vmatpush1.msra.mxu0 0.0
    %1939 = vmatprep.subr.mxu0 0.0
    %1940 = vmatpush1.msra.mxu0 0.0
    %1941 = vmatprep.subr.mxu0 0.0
    %1942 = vmatpush1.msra.mxu0 0.0
    %1943 = vmatprep.subr.mxu0 0.0
    %1944 = vmatpush1.msra.mxu0 0.0
    %1945 = vmatprep.subr.mxu0 0.0
    %1946 = vmatpush1.msra.mxu0 0.0
    %1947 = vmatprep.subr.mxu0 0.0
    %1948 = vmatpush1.msra.mxu0 0.0
    %1949 = vmatprep.subr.mxu0 0.0
    %1950 = vmatpush1.msra.mxu0 0.0
    %1951 = vmatprep.subr.mxu0 0.0
    %1952 = vmatpush1.msra.mxu0 0.0
    %1953 = vmatprep.subr.mxu0 0.0
    %1954 = vmatpush1.msra.mxu0 0.0
    %1955 = vmatprep.subr.mxu0 0.0
    %1956 = vmatpush1.msra.mxu0 0.0
    %1957 = vmatprep.subr.mxu0 0.0
    %1958 = vmatpush1.msra.mxu0 0.0
    %1959 = vmatprep.subr.mxu0 0.0
    %1960 = vmatpush1.msra.mxu0 0.0
    %1961 = vmatprep.subr.mxu0 0.0
    %1962 = vmatpush1.msra.mxu0 0.0
    %1963 = vmatprep.subr.mxu0 0.0
    %1964 = vmatpush1.msra.mxu0 0.0
    %1965 = vmatprep.subr.mxu0 0.0
    %1966 = vmatpush1.msra.mxu0 0.0
    %1967 = vmatprep.mubr.f32.mxu0 0.0
    %1968 = vmatmul.mubr.f32.gmra.mrb[0].mxu0 %v1404
    %v1969 = vpop.f32.mrb[0].mxu0
    %v1970 = vadd.f32 0.0, %v1969
    %v1971 = vpop.f32.mrb[0].mxu0
    %v1972 = vadd.f32 0.0, %v1971
    %1973 = vdwg.mxu0
    %1974 = vmatprep.subr.mxu0 0.0
    %1975 = vmatpush1.msra.mxu0 %v271
    %1976 = vmatprep.subr.mxu0 0.0
    %1977 = vmatpush1.msra.mxu0 %v274
    %1978 = vmatprep.subr.mxu0 0.0
    %1979 = vmatpush1.msra.mxu0 %v277
    %1980 = vmatprep.subr.mxu0 0.0
    %1981 = vmatpush1.msra.mxu0 %v280
    %1982 = vmatprep.subr.mxu0 0.0
    %1983 = vmatpush1.msra.mxu0 %v283
    %1984 = vmatprep.subr.mxu0 0.0
    %1985 = vmatpush1.msra.mxu0 %v286
    %1986 = vmatprep.subr.mxu0 0.0
    %1987 = vmatpush1.msra.mxu0 %v289
    %1988 = vmatprep.subr.mxu0 0.0
    %1989 = vmatpush1.msra.mxu0 %v292
    %1990 = vmatprep.subr.mxu0 0.0
    %1991 = vmatpush1.msra.mxu0 %v295
    %1992 = vmatprep.subr.mxu0 0.0
    %1993 = vmatpush1.msra.mxu0 %v298
    %1994 = vmatprep.subr.mxu0 0.0
    %1995 = vmatpush1.msra.mxu0 %v301
    %1996 = vmatprep.subr.mxu0 0.0
    %1997 = vmatpush1.msra.mxu0 %v304
    %1998 = vmatprep.subr.mxu0 0.0
    %1999 = vmatpush1.msra.mxu0 %v307
    %2000 = vmatprep.subr.mxu0 0.0
    %2001 = vmatpush1.msra.mxu0 %v310
    %2002 = vmatprep.subr.mxu0 0.0
    %2003 = vmatpush1.msra.mxu0 %v313
    %2004 = vmatprep.subr.mxu0 0.0
    %2005 = vmatpush1.msra.mxu0 %v316
    %2006 = vmatprep.subr.mxu0 0.0
    %2007 = vmatpush1.msra.mxu0 0.0
    %2008 = vmatprep.subr.mxu0 0.0
    %2009 = vmatpush1.msra.mxu0 0.0
    %2010 = vmatprep.subr.mxu0 0.0
    %2011 = vmatpush1.msra.mxu0 0.0
    %2012 = vmatprep.subr.mxu0 0.0
    %2013 = vmatpush1.msra.mxu0 0.0
    %2014 = vmatprep.subr.mxu0 0.0
    %2015 = vmatpush1.msra.mxu0 0.0
    %2016 = vmatprep.subr.mxu0 0.0
    %2017 = vmatpush1.msra.mxu0 0.0
    %2018 = vmatprep.subr.mxu0 0.0
    %2019 = vmatpush1.msra.mxu0 0.0
    %2020 = vmatprep.subr.mxu0 0.0
    %2021 = vmatpush1.msra.mxu0 0.0
    %2022 = vmatprep.subr.mxu0 0.0
    %2023 = vmatpush1.msra.mxu0 0.0
    %2024 = vmatprep.subr.mxu0 0.0
    %2025 = vmatpush1.msra.mxu0 0.0
    %2026 = vmatprep.subr.mxu0 0.0
    %2027 = vmatpush1.msra.mxu0 0.0
    %2028 = vmatprep.subr.mxu0 0.0
    %2029 = vmatpush1.msra.mxu0 0.0
    %2030 = vmatprep.subr.mxu0 0.0
    %2031 = vmatpush1.msra.mxu0 0.0
    %2032 = vmatprep.subr.mxu0 0.0
    %2033 = vmatpush1.msra.mxu0 0.0
    %2034 = vmatprep.subr.mxu0 0.0
    %2035 = vmatpush1.msra.mxu0 0.0
    %2036 = vmatprep.subr.mxu0 0.0
    %2037 = vmatpush1.msra.mxu0 0.0
    %2038 = vmatprep.mubr.f32.mxu0 0.0
    %2039 = vmatmul.mubr.f32.gmra.mrb[0].mxu0 %v1404
    %v2040 = vpop.f32.mrb[0].mxu0
    %v2041 = vadd.f32 0.0, %v2040
    %v2042 = vpop.f32.mrb[0].mxu0
    %2043 = vdwg.mxu0
    %v2044 = vadd.f32 %v1829, %v1970
    %v2045 = vadd.f32 %v1831, %v1972
    %v2046 = vxor.u32 %v2044, 2147483648
    %v2047 = vxor.u32 %v2045, 2147483648
    %v2048 = vmul.f32 %v2046, 1.442695
    %v2049 = vpow.pop %v2048
    %v2050 = vmul.f32 %v2047, 1.442695
    %v2051 = vpow.pop %v2050
    %v2052 = vadd.f32 %v2049, 1.0
    %v2053 = vadd.f32 %v2051, 1.0
    %v2054 = vrcp.pop %v2052
    %v2055 = vmul.f32 1.0, %v2054
    %v2056 = vrcp.pop %v2053
    %v2057 = vmul.f32 1.0, %v2056
    %v2058 = vadd.f32 %v2041, %v917
    %v2059 = vmul.f32 %v2055, %v2058
    %v2060 = vadd.f32 %v1900, %v2059
    %v2061 = vtanh.pop %v2060
    %v2062 = vsub.f32 1.0, %v2057
    %v2063 = vmul.f32 %v2062, %v2061
    %v2064 = vmul.f32 %v2057, %v1404
    %v2065 = vadd.f32 %v2063, %v2064
    %2066 = vmatprep.subr.mxu0 %v173
    %2067 = vmatpush1.msra.mxu0 %v172
    %2068 = vmatprep.subr.mxu0 %v176
    %2069 = vmatpush1.msra.mxu0 %v175
    %2070 = vmatprep.subr.mxu0 %v179
    %2071 = vmatpush1.msra.mxu0 %v178
    %2072 = vmatprep.subr.mxu0 %v182
    %2073 = vmatpush1.msra.mxu0 %v181
    %2074 = vmatprep.subr.mxu0 %v185
    %2075 = vmatpush1.msra.mxu0 %v184
    %2076 = vmatprep.subr.mxu0 %v188
    %2077 = vmatpush1.msra.mxu0 %v187
    %2078 = vmatprep.subr.mxu0 %v191
    %2079 = vmatpush1.msra.mxu0 %v190
    %2080 = vmatprep.subr.mxu0 %v194
    %2081 = vmatpush1.msra.mxu0 %v193
    %2082 = vmatprep.subr.mxu0 %v197
    %2083 = vmatpush1.msra.mxu0 %v196
    %2084 = vmatprep.subr.mxu0 %v200
    %2085 = vmatpush1.msra.mxu0 %v199
    %2086 = vmatprep.subr.mxu0 %v203
    %2087 = vmatpush1.msra.mxu0 %v202
    %2088 = vmatprep.subr.mxu0 %v206
    %2089 = vmatpush1.msra.mxu0 %v205
    %2090 = vmatprep.subr.mxu0 %v209
    %2091 = vmatpush1.msra.mxu0 %v208
    %2092 = vmatprep.subr.mxu0 %v212
    %2093 = vmatpush1.msra.mxu0 %v211
    %2094 = vmatprep.subr.mxu0 %v215
    %2095 = vmatpush1.msra.mxu0 %v214
    %2096 = vmatprep.subr.mxu0 %v218
    %2097 = vmatpush1.msra.mxu0 %v217
    %2098 = vmatprep.subr.mxu0 0.0
    %2099 = vmatpush1.msra.mxu0 0.0
    %2100 = vmatprep.subr.mxu0 0.0
    %2101 = vmatpush1.msra.mxu0 0.0
    %2102 = vmatprep.subr.mxu0 0.0
    %2103 = vmatpush1.msra.mxu0 0.0
    %2104 = vmatprep.subr.mxu0 0.0
    %2105 = vmatpush1.msra.mxu0 0.0
    %2106 = vmatprep.subr.mxu0 0.0
    %2107 = vmatpush1.msra.mxu0 0.0
    %2108 = vmatprep.subr.mxu0 0.0
    %2109 = vmatpush1.msra.mxu0 0.0
    %2110 = vmatprep.subr.mxu0 0.0
    %2111 = vmatpush1.msra.mxu0 0.0
    %2112 = vmatprep.subr.mxu0 0.0
    %2113 = vmatpush1.msra.mxu0 0.0
    %2114 = vmatprep.subr.mxu0 0.0
    %2115 = vmatpush1.msra.mxu0 0.0
    %2116 = vmatprep.subr.mxu0 0.0
    %2117 = vmatpush1.msra.mxu0 0.0
    %2118 = vmatprep.subr.mxu0 0.0
    %2119 = vmatpush1.msra.mxu0 0.0
    %2120 = vmatprep.subr.mxu0 0.0
    %2121 = vmatpush1.msra.mxu0 0.0
    %2122 = vmatprep.subr.mxu0 0.0
    %2123 = vmatpush1.msra.mxu0 0.0
    %2124 = vmatprep.subr.mxu0 0.0
    %2125 = vmatpush1.msra.mxu0 0.0
    %2126 = vmatprep.subr.mxu0 0.0
    %2127 = vmatpush1.msra.mxu0 0.0
    %2128 = vmatprep.subr.mxu0 0.0
    %2129 = vmatpush1.msra.mxu0 0.0
    %2130 = vmatprep.mubr.f32.mxu0 0.0
    %2131 = vmatmul.mubr.f32.gmra.mrb[0].mxu0 %v1404
    %v2132 = vpop.f32.mrb[0].mxu0
    %v2133 = vadd.f32 %v1409, %v2132
    %v2134 = vpop.f32.mrb[0].mxu0
    %v2135 = vadd.f32 %v1413, %v2134
    %2136 = vdwg.mxu0
    %2137 = vmatprep.subr.mxu0 0.0
    %2138 = vmatpush1.msra.mxu0 %v174
    %2139 = vmatprep.subr.mxu0 0.0
    %2140 = vmatpush1.msra.mxu0 %v177
    %2141 = vmatprep.subr.mxu0 0.0
    %2142 = vmatpush1.msra.mxu0 %v180
    %2143 = vmatprep.subr.mxu0 0.0
    %2144 = vmatpush1.msra.mxu0 %v183
    %2145 = vmatprep.subr.mxu0 0.0
    %2146 = vmatpush1.msra.mxu0 %v186
    %2147 = vmatprep.subr.mxu0 0.0
    %2148 = vmatpush1.msra.mxu0 %v189
    %2149 = vmatprep.subr.mxu0 0.0
    %2150 = vmatpush1.msra.mxu0 %v192
    %2151 = vmatprep.subr.mxu0 0.0
    %2152 = vmatpush1.msra.mxu0 %v195
    %2153 = vmatprep.subr.mxu0 0.0
    %2154 = vmatpush1.msra.mxu0 %v198
    %2155 = vmatprep.subr.mxu0 0.0
    %2156 = vmatpush1.msra.mxu0 %v201
    %2157 = vmatprep.subr.mxu0 0.0
    %2158 = vmatpush1.msra.mxu0 %v204
    %2159 = vmatprep.subr.mxu0 0.0
    %2160 = vmatpush1.msra.mxu0 %v207
    %2161 = vmatprep.subr.mxu0 0.0
    %2162 = vmatpush1.msra.mxu0 %v210
    %2163 = vmatprep.subr.mxu0 0.0
    %2164 = vmatpush1.msra.mxu0 %v213
    %2165 = vmatprep.subr.mxu0 0.0
    %2166 = vmatpush1.msra.mxu0 %v216
    %2167 = vmatprep.subr.mxu0 0.0
    %2168 = vmatpush1.msra.mxu0 %v219
    %2169 = vmatprep.subr.mxu0 0.0
    %2170 = vmatpush1.msra.mxu0 0.0
    %2171 = vmatprep.subr.mxu0 0.0
    %2172 = vmatpush1.msra.mxu0 0.0
    %2173 = vmatprep.subr.mxu0 0.0
    %2174 = vmatpush1.msra.mxu0 0.0
    %2175 = vmatprep.subr.mxu0 0.0
    %2176 = vmatpush1.msra.mxu0 0.0
    %2177 = vmatprep.subr.mxu0 0.0
    %2178 = vmatpush1.msra.mxu0 0.0
    %2179 = vmatprep.subr.mxu0 0.0
    %2180 = vmatpush1.msra.mxu0 0.0
    %2181 = vmatprep.subr.mxu0 0.0
    %2182 = vmatpush1.msra.mxu0 0.0
    %2183 = vmatprep.subr.mxu0 0.0
    %2184 = vmatpush1.msra.mxu0 0.0
    %2185 = vmatprep.subr.mxu0 0.0
    %2186 = vmatpush1.msra.mxu0 0.0
    %2187 = vmatprep.subr.mxu0 0.0
    %2188 = vmatpush1.msra.mxu0 0.0
    %2189 = vmatprep.subr.mxu0 0.0
    %2190 = vmatpush1.msra.mxu0 0.0
    %2191 = vmatprep.subr.mxu0 0.0
    %2192 = vmatpush1.msra.mxu0 0.0
    %2193 = vmatprep.subr.mxu0 0.0
    %2194 = vmatpush1.msra.mxu0 0.0
    %2195 = vmatprep.subr.mxu0 0.0
    %2196 = vmatpush1.msra.mxu0 0.0
    %2197 = vmatprep.subr.mxu0 0.0
    %2198 = vmatpush1.msra.mxu0 0.0
    %2199 = vmatprep.subr.mxu0 0.0
    %2200 = vmatpush1.msra.mxu0 0.0
    %2201 = vmatprep.mubr.f32.mxu0 0.0
    %2202 = vmatmul.mubr.f32.gmra.mrb[0].mxu0 %v1404
    %v2203 = vpop.f32.mrb[0].mxu0
    %v2204 = vadd.f32 %v1417, %v2203
    %v2205 = vpop.f32.mrb[0].mxu0
    %2206 = vdwg.mxu0
    %2207 = vmatprep.subr.mxu0 %v319
    %2208 = vmatpush1.msra.mxu0 %v318
    %2209 = vmatprep.subr.mxu0 %v322
    %2210 = vmatpush1.msra.mxu0 %v321
    %2211 = vmatprep.subr.mxu0 %v325
    %2212 = vmatpush1.msra.mxu0 %v324
    %2213 = vmatprep.subr.mxu0 %v328
    %2214 = vmatpush1.msra.mxu0 %v327
    %2215 = vmatprep.subr.mxu0 %v331
    %2216 = vmatpush1.msra.mxu0 %v330
    %2217 = vmatprep.subr.mxu0 %v334
    %2218 = vmatpush1.msra.mxu0 %v333
    %2219 = vmatprep.subr.mxu0 %v337
    %2220 = vmatpush1.msra.mxu0 %v336
    %2221 = vmatprep.subr.mxu0 %v340
    %2222 = vmatpush1.msra.mxu0 %v339
    %2223 = vmatprep.subr.mxu0 %v343
    %2224 = vmatpush1.msra.mxu0 %v342
    %2225 = vmatprep.subr.mxu0 %v346
    %2226 = vmatpush1.msra.mxu0 %v345
    %2227 = vmatprep.subr.mxu0 %v349
    %2228 = vmatpush1.msra.mxu0 %v348
    %2229 = vmatprep.subr.mxu0 %v352
    %2230 = vmatpush1.msra.mxu0 %v351
    %2231 = vmatprep.subr.mxu0 %v355
    %2232 = vmatpush1.msra.mxu0 %v354
    %2233 = vmatprep.subr.mxu0 %v358
    %2234 = vmatpush1.msra.mxu0 %v357
    %2235 = vmatprep.subr.mxu0 %v361
    %2236 = vmatpush1.msra.mxu0 %v360
    %2237 = vmatprep.subr.mxu0 %v364
    %2238 = vmatpush1.msra.mxu0 %v363
    %2239 = vmatprep.subr.mxu0 0.0
    %2240 = vmatpush1.msra.mxu0 0.0
    %2241 = vmatprep.subr.mxu0 0.0
    %2242 = vmatpush1.msra.mxu0 0.0
    %2243 = vmatprep.subr.mxu0 0.0
    %2244 = vmatpush1.msra.mxu0 0.0
    %2245 = vmatprep.subr.mxu0 0.0
    %2246 = vmatpush1.msra.mxu0 0.0
    %2247 = vmatprep.subr.mxu0 0.0
    %2248 = vmatpush1.msra.mxu0 0.0
    %2249 = vmatprep.subr.mxu0 0.0
    %2250 = vmatpush1.msra.mxu0 0.0
    %2251 = vmatprep.subr.mxu0 0.0
    %2252 = vmatpush1.msra.mxu0 0.0
    %2253 = vmatprep.subr.mxu0 0.0
    %2254 = vmatpush1.msra.mxu0 0.0
    %2255 = vmatprep.subr.mxu0 0.0
    %2256 = vmatpush1.msra.mxu0 0.0
    %2257 = vmatprep.subr.mxu0 0.0
    %2258 = vmatpush1.msra.mxu0 0.0
    %2259 = vmatprep.subr.mxu0 0.0
    %2260 = vmatpush1.msra.mxu0 0.0
    %2261 = vmatprep.subr.mxu0 0.0
    %2262 = vmatpush1.msra.mxu0 0.0
    %2263 = vmatprep.subr.mxu0 0.0
    %2264 = vmatpush1.msra.mxu0 0.0
    %2265 = vmatprep.subr.mxu0 0.0
    %2266 = vmatpush1.msra.mxu0 0.0
    %2267 = vmatprep.subr.mxu0 0.0
    %2268 = vmatpush1.msra.mxu0 0.0
    %2269 = vmatprep.subr.mxu0 0.0
    %2270 = vmatpush1.msra.mxu0 0.0
    %2271 = vmatprep.mubr.f32.mxu0 0.0
    %2272 = vmatmul.mubr.f32.gmra.mrb[0].mxu0 %v1584
    %v2273 = vpop.f32.mrb[0].mxu0
    %v2274 = vadd.f32 0.0, %v2273
    %v2275 = vpop.f32.mrb[0].mxu0
    %v2276 = vadd.f32 0.0, %v2275
    %2277 = vdwg.mxu0
    %2278 = vmatprep.subr.mxu0 0.0
    %2279 = vmatpush1.msra.mxu0 %v320
    %2280 = vmatprep.subr.mxu0 0.0
    %2281 = vmatpush1.msra.mxu0 %v323
    %2282 = vmatprep.subr.mxu0 0.0
    %2283 = vmatpush1.msra.mxu0 %v326
    %2284 = vmatprep.subr.mxu0 0.0
    %2285 = vmatpush1.msra.mxu0 %v329
    %2286 = vmatprep.subr.mxu0 0.0
    %2287 = vmatpush1.msra.mxu0 %v332
    %2288 = vmatprep.subr.mxu0 0.0
    %2289 = vmatpush1.msra.mxu0 %v335
    %2290 = vmatprep.subr.mxu0 0.0
    %2291 = vmatpush1.msra.mxu0 %v338
    %2292 = vmatprep.subr.mxu0 0.0
    %2293 = vmatpush1.msra.mxu0 %v341
    %2294 = vmatprep.subr.mxu0 0.0
    %2295 = vmatpush1.msra.mxu0 %v344
    %2296 = vmatprep.subr.mxu0 0.0
    %2297 = vmatpush1.msra.mxu0 %v347
    %2298 = vmatprep.subr.mxu0 0.0
    %2299 = vmatpush1.msra.mxu0 %v350
    %2300 = vmatprep.subr.mxu0 0.0
    %2301 = vmatpush1.msra.mxu0 %v353
    %2302 = vmatprep.subr.mxu0 0.0
    %2303 = vmatpush1.msra.mxu0 %v356
    %2304 = vmatprep.subr.mxu0 0.0
    %2305 = vmatpush1.msra.mxu0 %v359
    %2306 = vmatprep.subr.mxu0 0.0
    %2307 = vmatpush1.msra.mxu0 %v362
    %2308 = vmatprep.subr.mxu0 0.0
    %2309 = vmatpush1.msra.mxu0 %v365
    %2310 = vmatprep.subr.mxu0 0.0
    %2311 = vmatpush1.msra.mxu0 0.0
    %2312 = vmatprep.subr.mxu0 0.0
    %2313 = vmatpush1.msra.mxu0 0.0
    %2314 = vmatprep.subr.mxu0 0.0
    %2315 = vmatpush1.msra.mxu0 0.0
    %2316 = vmatprep.subr.mxu0 0.0
    %2317 = vmatpush1.msra.mxu0 0.0
    %2318 = vmatprep.subr.mxu0 0.0
    %2319 = vmatpush1.msra.mxu0 0.0
    %2320 = vmatprep.subr.mxu0 0.0
    %2321 = vmatpush1.msra.mxu0 0.0
    %2322 = vmatprep.subr.mxu0 0.0
    %2323 = vmatpush1.msra.mxu0 0.0
    %2324 = vmatprep.subr.mxu0 0.0
    %2325 = vmatpush1.msra.mxu0 0.0
    %2326 = vmatprep.subr.mxu0 0.0
    %2327 = vmatpush1.msra.mxu0 0.0
    %2328 = vmatprep.subr.mxu0 0.0
    %2329 = vmatpush1.msra.mxu0 0.0
    %2330 = vmatprep.subr.mxu0 0.0
    %2331 = vmatpush1.msra.mxu0 0.0
    %2332 = vmatprep.subr.mxu0 0.0
    %2333 = vmatpush1.msra.mxu0 0.0
    %2334 = vmatprep.subr.mxu0 0.0
    %2335 = vmatpush1.msra.mxu0 0.0
    %2336 = vmatprep.subr.mxu0 0.0
    %2337 = vmatpush1.msra.mxu0 0.0
    %2338 = vmatprep.subr.mxu0 0.0
    %2339 = vmatpush1.msra.mxu0 0.0
    %2340 = vmatprep.subr.mxu0 0.0
    %2341 = vmatpush1.msra.mxu0 0.0
    %2342 = vmatprep.mubr.f32.mxu0 0.0
    %2343 = vmatmul.mubr.f32.gmra.mrb[0].mxu0 %v1584
    %v2344 = vpop.f32.mrb[0].mxu0
    %v2345 = vadd.f32 0.0, %v2344
    %v2346 = vpop.f32.mrb[0].mxu0
    %2347 = vdwg.mxu0
    %v2348 = vadd.f32 %v2133, %v2274
    %v2349 = vadd.f32 %v2135, %v2276
    %v2350 = vxor.u32 %v2348, 2147483648
    %v2351 = vxor.u32 %v2349, 2147483648
    %v2352 = vmul.f32 %v2350, 1.442695
    %v2353 = vpow.pop %v2352
    %v2354 = vmul.f32 %v2351, 1.442695
    %v2355 = vpow.pop %v2354
    %v2356 = vadd.f32 %v2353, 1.0
    %v2357 = vadd.f32 %v2355, 1.0
    %v2358 = vrcp.pop %v2356
    %v2359 = vmul.f32 1.0, %v2358
    %v2360 = vrcp.pop %v2357
    %v2361 = vmul.f32 1.0, %v2360
    %v2362 = vadd.f32 %v2345, %v1578
    %v2363 = vmul.f32 %v2359, %v2362
    %v2364 = vadd.f32 %v2204, %v2363
    %v2365 = vtanh.pop %v2364
    %v2366 = vsub.f32 1.0, %v2361
    %v2367 = vmul.f32 %v2366, %v2365
    %v2368 = vmul.f32 %v2361, %v1584
    %v2369 = vadd.f32 %v2367, %v2368
    %v2371 = vrot.slane %v1761, 6
    %2373 = vmatprep.subr.mxu0 %v221
    %2374 = vmatpush1.msra.mxu0 %v220
    %2375 = vmatprep.subr.mxu0 %v224
    %2376 = vmatpush1.msra.mxu0 %v223
    %2377 = vmatprep.subr.mxu0 %v227
    %2378 = vmatpush1.msra.mxu0 %v226
    %2379 = vmatprep.subr.mxu0 %v230
    %2380 = vmatpush1.msra.mxu0 %v229
    %2381 = vmatprep.subr.mxu0 %v233
    %2382 = vmatpush1.msra.mxu0 %v232
    %2383 = vmatprep.subr.mxu0 %v236
    %2384 = vmatpush1.msra.mxu0 %v235
    %2385 = vmatprep.subr.mxu0 %v239
    %2386 = vmatpush1.msra.mxu0 %v238
    %2387 = vmatprep.subr.mxu0 %v242
    %2388 = vmatpush1.msra.mxu0 %v241
    %2389 = vmatprep.subr.mxu0 %v245
    %2390 = vmatpush1.msra.mxu0 %v244
    %2391 = vmatprep.subr.mxu0 %v248
    %2392 = vmatpush1.msra.mxu0 %v247
    %2393 = vmatprep.subr.mxu0 %v251
    %2394 = vmatpush1.msra.mxu0 %v250
    %2395 = vmatprep.subr.mxu0 %v254
    %2396 = vmatpush1.msra.mxu0 %v253
    %2397 = vmatprep.subr.mxu0 %v257
    %2398 = vmatpush1.msra.mxu0 %v256
    %2399 = vmatprep.subr.mxu0 %v260
    %2400 = vmatpush1.msra.mxu0 %v259
    %2401 = vmatprep.subr.mxu0 %v263
    %2402 = vmatpush1.msra.mxu0 %v262
    %2403 = vmatprep.subr.mxu0 %v266
    %2404 = vmatpush1.msra.mxu0 %v265
    %2405 = vmatprep.subr.mxu0 0.0
    %2406 = vmatpush1.msra.mxu0 0.0
    %2407 = vmatprep.subr.mxu0 0.0
    %2408 = vmatpush1.msra.mxu0 0.0
    %2409 = vmatprep.subr.mxu0 0.0
    %2410 = vmatpush1.msra.mxu0 0.0
    %2411 = vmatprep.subr.mxu0 0.0
    %2412 = vmatpush1.msra.mxu0 0.0
    %2413 = vmatprep.subr.mxu0 0.0
    %2414 = vmatpush1.msra.mxu0 0.0
    %2415 = vmatprep.subr.mxu0 0.0
    %2416 = vmatpush1.msra.mxu0 0.0
    %2417 = vmatprep.subr.mxu0 0.0
    %2418 = vmatpush1.msra.mxu0 0.0
    %2419 = vmatprep.subr.mxu0 0.0
    %2420 = vmatpush1.msra.mxu0 0.0
    %2421 = vmatprep.subr.mxu0 0.0
    %2422 = vmatpush1.msra.mxu0 0.0
    %2423 = vmatprep.subr.mxu0 0.0
    %2424 = vmatpush1.msra.mxu0 0.0
    %2425 = vmatprep.subr.mxu0 0.0
    %2426 = vmatpush1.msra.mxu0 0.0
    %2427 = vmatprep.subr.mxu0 0.0
    %2428 = vmatpush1.msra.mxu0 0.0
    %2429 = vmatprep.subr.mxu0 0.0
    %2430 = vmatpush1.msra.mxu0 0.0
    %2431 = vmatprep.subr.mxu0 0.0
    %2432 = vmatpush1.msra.mxu0 0.0
    %2433 = vmatprep.subr.mxu0 0.0
    %2434 = vmatpush1.msra.mxu0 0.0
    %2435 = vmatprep.subr.mxu0 0.0
    %2436 = vmatpush1.msra.mxu0 0.0
    %2437 = vmatprep.mubr.f32.mxu0 0.0
    %2438 = vmatmul.mubr.f32.gmra.mrb[0].mxu0 %v2371
    %v2439 = vpop.f32.mrb[0].mxu0
    %v2440 = vadd.f32 0.0, %v2439
    %v2441 = vpop.f32.mrb[0].mxu0
    %v2442 = vadd.f32 0.0, %v2441
    %2443 = vdwg.mxu0
    %2444 = vmatprep.subr.mxu0 0.0
    %2445 = vmatpush1.msra.mxu0 %v222
    %2446 = vmatprep.subr.mxu0 0.0
    %2447 = vmatpush1.msra.mxu0 %v225
    %2448 = vmatprep.subr.mxu0 0.0
    %2449 = vmatpush1.msra.mxu0 %v228
    %2450 = vmatprep.subr.mxu0 0.0
    %2451 = vmatpush1.msra.mxu0 %v231
    %2452 = vmatprep.subr.mxu0 0.0
    %2453 = vmatpush1.msra.mxu0 %v234
    %2454 = vmatprep.subr.mxu0 0.0
    %2455 = vmatpush1.msra.mxu0 %v237
    %2456 = vmatprep.subr.mxu0 0.0
    %2457 = vmatpush1.msra.mxu0 %v240
    %2458 = vmatprep.subr.mxu0 0.0
    %2459 = vmatpush1.msra.mxu0 %v243
    %2460 = vmatprep.subr.mxu0 0.0
    %2461 = vmatpush1.msra.mxu0 %v246
    %2462 = vmatprep.subr.mxu0 0.0
    %2463 = vmatpush1.msra.mxu0 %v249
    %2464 = vmatprep.subr.mxu0 0.0
    %2465 = vmatpush1.msra.mxu0 %v252
    %2466 = vmatprep.subr.mxu0 0.0
    %2467 = vmatpush1.msra.mxu0 %v255
    %2468 = vmatprep.subr.mxu0 0.0
    %2469 = vmatpush1.msra.mxu0 %v258
    %2470 = vmatprep.subr.mxu0 0.0
    %2471 = vmatpush1.msra.mxu0 %v261
    %2472 = vmatprep.subr.mxu0 0.0
    %2473 = vmatpush1.msra.mxu0 %v264
    %2474 = vmatprep.subr.mxu0 0.0
    %2475 = vmatpush1.msra.mxu0 %v267
    %2476 = vmatprep.subr.mxu0 0.0
    %2477 = vmatpush1.msra.mxu0 0.0
    %2478 = vmatprep.subr.mxu0 0.0
    %2479 = vmatpush1.msra.mxu0 0.0
    %2480 = vmatprep.subr.mxu0 0.0
    %2481 = vmatpush1.msra.mxu0 0.0
    %2482 = vmatprep.subr.mxu0 0.0
    %2483 = vmatpush1.msra.mxu0 0.0
    %2484 = vmatprep.subr.mxu0 0.0
    %2485 = vmatpush1.msra.mxu0 0.0
    %2486 = vmatprep.subr.mxu0 0.0
    %2487 = vmatpush1.msra.mxu0 0.0
    %2488 = vmatprep.subr.mxu0 0.0
    %2489 = vmatpush1.msra.mxu0 0.0
    %2490 = vmatprep.subr.mxu0 0.0
    %2491 = vmatpush1.msra.mxu0 0.0
    %2492 = vmatprep.subr.mxu0 0.0
    %2493 = vmatpush1.msra.mxu0 0.0
    %2494 = vmatprep.subr.mxu0 0.0
    %2495 = vmatpush1.msra.mxu0 0.0
    %2496 = vmatprep.subr.mxu0 0.0
    %2497 = vmatpush1.msra.mxu0 0.0
    %2498 = vmatprep.subr.mxu0 0.0
    %2499 = vmatpush1.msra.mxu0 0.0
    %2500 = vmatprep.subr.mxu0 0.0
    %2501 = vmatpush1.msra.mxu0 0.0
    %2502 = vmatprep.subr.mxu0 0.0
    %2503 = vmatpush1.msra.mxu0 0.0
    %2504 = vmatprep.subr.mxu0 0.0
    %2505 = vmatpush1.msra.mxu0 0.0
    %2506 = vmatprep.subr.mxu0 0.0
    %2507 = vmatpush1.msra.mxu0 0.0
    %2508 = vmatprep.mubr.f32.mxu0 0.0
    %2509 = vmatmul.mubr.f32.gmra.mrb[0].mxu0 %v2371
    %v2510 = vpop.f32.mrb[0].mxu0
    %v2511 = vadd.f32 0.0, %v2510
    %v2512 = vpop.f32.mrb[0].mxu0
    %2513 = vdwg.mxu0
    %v2514 = vadd.f32 %v467, %v2440
    %v2515 = vadd.f32 %v469, %v2442
    %v2516 = vxor.u32 %v2514, 2147483648
    %v2517 = vxor.u32 %v2515, 2147483648
    %v2518 = vmul.f32 %v2516, 1.442695
    %v2519 = vpow.pop %v2518
    %v2520 = vmul.f32 %v2517, 1.442695
    %v2521 = vpow.pop %v2520
    %v2522 = vadd.f32 %v2519, 1.0
    %v2523 = vadd.f32 %v2521, 1.0
    %v2524 = vrcp.pop %v2522
    %v2525 = vmul.f32 1.0, %v2524
    %v2526 = vrcp.pop %v2523
    %v2527 = vmul.f32 1.0, %v2526
    %v2528 = vadd.f32 %v2511, %v562
    %v2529 = vmul.f32 %v2525, %v2528
    %v2530 = vadd.f32 %v543, %v2529
    %v2531 = vtanh.pop %v2530
    %v2532 = vsub.f32 1.0, %v2527
    %v2533 = vmul.f32 %v2532, %v2531
    %v2534 = vmul.f32 %v2527, %v2371
    %v2535 = vadd.f32 %v2533, %v2534
    %2536 = vmatprep.subr.mxu0 %v124
    %2537 = vmatpush1.msra.mxu0 %v123
    %2538 = vmatprep.subr.mxu0 %v127
    %2539 = vmatpush1.msra.mxu0 %v126
    %2540 = vmatprep.subr.mxu0 %v130
    %2541 = vmatpush1.msra.mxu0 %v129
    %2542 = vmatprep.subr.mxu0 %v133
    %2543 = vmatpush1.msra.mxu0 %v132
    %2544 = vmatprep.subr.mxu0 %v136
    %2545 = vmatpush1.msra.mxu0 %v135
    %2546 = vmatprep.subr.mxu0 %v139
    %2547 = vmatpush1.msra.mxu0 %v138
    %2548 = vmatprep.subr.mxu0 %v142
    %2549 = vmatpush1.msra.mxu0 %v141
    %2550 = vmatprep.subr.mxu0 %v145
    %2551 = vmatpush1.msra.mxu0 %v144
    %2552 = vmatprep.subr.mxu0 %v148
    %2553 = vmatpush1.msra.mxu0 %v147
    %2554 = vmatprep.subr.mxu0 %v151
    %2555 = vmatpush1.msra.mxu0 %v150
    %2556 = vmatprep.subr.mxu0 %v154
    %2557 = vmatpush1.msra.mxu0 %v153
    %2558 = vmatprep.subr.mxu0 %v157
    %2559 = vmatpush1.msra.mxu0 %v156
    %2560 = vmatprep.subr.mxu0 %v160
    %2561 = vmatpush1.msra.mxu0 %v159
    %2562 = vmatprep.subr.mxu0 %v163
    %2563 = vmatpush1.msra.mxu0 %v162
    %2564 = vmatprep.subr.mxu0 %v166
    %2565 = vmatpush1.msra.mxu0 %v165
    %2566 = vmatprep.subr.mxu0 %v169
    %2567 = vmatpush1.msra.mxu0 %v168
    %2568 = vmatprep.subr.mxu0 0.0
    %2569 = vmatpush1.msra.mxu0 0.0
    %2570 = vmatprep.subr.mxu0 0.0
    %2571 = vmatpush1.msra.mxu0 0.0
    %2572 = vmatprep.subr.mxu0 0.0
    %2573 = vmatpush1.msra.mxu0 0.0
    %2574 = vmatprep.subr.mxu0 0.0
    %2575 = vmatpush1.msra.mxu0 0.0
    %2576 = vmatprep.subr.mxu0 0.0
    %2577 = vmatpush1.msra.mxu0 0.0
    %2578 = vmatprep.subr.mxu0 0.0
    %2579 = vmatpush1.msra.mxu0 0.0
    %2580 = vmatprep.subr.mxu0 0.0
    %2581 = vmatpush1.msra.mxu0 0.0
    %2582 = vmatprep.subr.mxu0 0.0
    %2583 = vmatpush1.msra.mxu0 0.0
    %2584 = vmatprep.subr.mxu0 0.0
    %2585 = vmatpush1.msra.mxu0 0.0
    %2586 = vmatprep.subr.mxu0 0.0
    %2587 = vmatpush1.msra.mxu0 0.0
    %2588 = vmatprep.subr.mxu0 0.0
    %2589 = vmatpush1.msra.mxu0 0.0
    %2590 = vmatprep.subr.mxu0 0.0
    %2591 = vmatpush1.msra.mxu0 0.0
    %2592 = vmatprep.subr.mxu0 0.0
    %2593 = vmatpush1.msra.mxu0 0.0
    %2594 = vmatprep.subr.mxu0 0.0
    %2595 = vmatpush1.msra.mxu0 0.0
    %2596 = vmatprep.subr.mxu0 0.0
    %2597 = vmatpush1.msra.mxu0 0.0
    %2598 = vmatprep.subr.mxu0 0.0
    %2599 = vmatpush1.msra.mxu0 0.0
    %2600 = vmatprep.mubr.f32.mxu0 0.0
    %2601 = vmatmul.mubr.f32.gmra.mrb[0].mxu0 %v2371
    %v2602 = vpop.f32.mrb[0].mxu0
    %v2603 = vadd.f32 %v748, %v2602
    %v2604 = vpop.f32.mrb[0].mxu0
    %v2605 = vadd.f32 %v752, %v2604
    %2606 = vdwg.mxu0
    %2607 = vmatprep.subr.mxu0 0.0
    %2608 = vmatpush1.msra.mxu0 %v125
    %2609 = vmatprep.subr.mxu0 0.0
    %2610 = vmatpush1.msra.mxu0 %v128
    %2611 = vmatprep.subr.mxu0 0.0
    %2612 = vmatpush1.msra.mxu0 %v131
    %2613 = vmatprep.subr.mxu0 0.0
    %2614 = vmatpush1.msra.mxu0 %v134
    %2615 = vmatprep.subr.mxu0 0.0
    %2616 = vmatpush1.msra.mxu0 %v137
    %2617 = vmatprep.subr.mxu0 0.0
    %2618 = vmatpush1.msra.mxu0 %v140
    %2619 = vmatprep.subr.mxu0 0.0
    %2620 = vmatpush1.msra.mxu0 %v143
    %2621 = vmatprep.subr.mxu0 0.0
    %2622 = vmatpush1.msra.mxu0 %v146
    %2623 = vmatprep.subr.mxu0 0.0
    %2624 = vmatpush1.msra.mxu0 %v149
    %2625 = vmatprep.subr.mxu0 0.0
    %2626 = vmatpush1.msra.mxu0 %v152
    %2627 = vmatprep.subr.mxu0 0.0
    %2628 = vmatpush1.msra.mxu0 %v155
    %2629 = vmatprep.subr.mxu0 0.0
    %2630 = vmatpush1.msra.mxu0 %v158
    %2631 = vmatprep.subr.mxu0 0.0
    %2632 = vmatpush1.msra.mxu0 %v161
    %2633 = vmatprep.subr.mxu0 0.0
    %2634 = vmatpush1.msra.mxu0 %v164
    %2635 = vmatprep.subr.mxu0 0.0
    %2636 = vmatpush1.msra.mxu0 %v167
    %2637 = vmatprep.subr.mxu0 0.0
    %2638 = vmatpush1.msra.mxu0 %v170
    %2639 = vmatprep.subr.mxu0 0.0
    %2640 = vmatpush1.msra.mxu0 0.0
    %2641 = vmatprep.subr.mxu0 0.0
    %2642 = vmatpush1.msra.mxu0 0.0
    %2643 = vmatprep.subr.mxu0 0.0
    %2644 = vmatpush1.msra.mxu0 0.0
    %2645 = vmatprep.subr.mxu0 0.0
    %2646 = vmatpush1.msra.mxu0 0.0
    %2647 = vmatprep.subr.mxu0 0.0
    %2648 = vmatpush1.msra.mxu0 0.0
    %2649 = vmatprep.subr.mxu0 0.0
    %2650 = vmatpush1.msra.mxu0 0.0
    %2651 = vmatprep.subr.mxu0 0.0
    %2652 = vmatpush1.msra.mxu0 0.0
    %2653 = vmatprep.subr.mxu0 0.0
    %2654 = vmatpush1.msra.mxu0 0.0
    %2655 = vmatprep.subr.mxu0 0.0
    %2656 = vmatpush1.msra.mxu0 0.0
    %2657 = vmatprep.subr.mxu0 0.0
    %2658 = vmatpush1.msra.mxu0 0.0
    %2659 = vmatprep.subr.mxu0 0.0
    %2660 = vmatpush1.msra.mxu0 0.0
    %2661 = vmatprep.subr.mxu0 0.0
    %2662 = vmatpush1.msra.mxu0 0.0
    %2663 = vmatprep.subr.mxu0 0.0
    %2664 = vmatpush1.msra.mxu0 0.0
    %2665 = vmatprep.subr.mxu0 0.0
    %2666 = vmatpush1.msra.mxu0 0.0
    %2667 = vmatprep.subr.mxu0 0.0
    %2668 = vmatpush1.msra.mxu0 0.0
    %2669 = vmatprep.subr.mxu0 0.0
    %2670 = vmatpush1.msra.mxu0 0.0
    %2671 = vmatprep.mubr.f32.mxu0 0.0
    %2672 = vmatmul.mubr.f32.gmra.mrb[0].mxu0 %v2371
    %v2673 = vpop.f32.mrb[0].mxu0
    %v2674 = vadd.f32 %v756, %v2673
    %v2675 = vpop.f32.mrb[0].mxu0
    %2676 = vdwg.mxu0
    %2677 = vmatprep.subr.mxu0 %v270
    %2678 = vmatpush1.msra.mxu0 %v269
    %2679 = vmatprep.subr.mxu0 %v273
    %2680 = vmatpush1.msra.mxu0 %v272
    %2681 = vmatprep.subr.mxu0 %v276
    %2682 = vmatpush1.msra.mxu0 %v275
    %2683 = vmatprep.subr.mxu0 %v279
    %2684 = vmatpush1.msra.mxu0 %v278
    %2685 = vmatprep.subr.mxu0 %v282
    %2686 = vmatpush1.msra.mxu0 %v281
    %2687 = vmatprep.subr.mxu0 %v285
    %2688 = vmatpush1.msra.mxu0 %v284
    %2689 = vmatprep.subr.mxu0 %v288
    %2690 = vmatpush1.msra.mxu0 %v287
    %2691 = vmatprep.subr.mxu0 %v291
    %2692 = vmatpush1.msra.mxu0 %v290
    %2693 = vmatprep.subr.mxu0 %v294
    %2694 = vmatpush1.msra.mxu0 %v293
    %2695 = vmatprep.subr.mxu0 %v297
    %2696 = vmatpush1.msra.mxu0 %v296
    %2697 = vmatprep.subr.mxu0 %v300
    %2698 = vmatpush1.msra.mxu0 %v299
    %2699 = vmatprep.subr.mxu0 %v303
    %2700 = vmatpush1.msra.mxu0 %v302
    %2701 = vmatprep.subr.mxu0 %v306
    %2702 = vmatpush1.msra.mxu0 %v305
    %2703 = vmatprep.subr.mxu0 %v309
    %2704 = vmatpush1.msra.mxu0 %v308
    %2705 = vmatprep.subr.mxu0 %v312
    %2706 = vmatpush1.msra.mxu0 %v311
    %2707 = vmatprep.subr.mxu0 %v315
    %2708 = vmatpush1.msra.mxu0 %v314
    %2709 = vmatprep.subr.mxu0 0.0
    %2710 = vmatpush1.msra.mxu0 0.0
    %2711 = vmatprep.subr.mxu0 0.0
    %2712 = vmatpush1.msra.mxu0 0.0
    %2713 = vmatprep.subr.mxu0 0.0
    %2714 = vmatpush1.msra.mxu0 0.0
    %2715 = vmatprep.subr.mxu0 0.0
    %2716 = vmatpush1.msra.mxu0 0.0
    %2717 = vmatprep.subr.mxu0 0.0
    %2718 = vmatpush1.msra.mxu0 0.0
    %2719 = vmatprep.subr.mxu0 0.0
    %2720 = vmatpush1.msra.mxu0 0.0
    %2721 = vmatprep.subr.mxu0 0.0
    %2722 = vmatpush1.msra.mxu0 0.0
    %2723 = vmatprep.subr.mxu0 0.0
    %2724 = vmatpush1.msra.mxu0 0.0
    %2725 = vmatprep.subr.mxu0 0.0
    %2726 = vmatpush1.msra.mxu0 0.0
    %2727 = vmatprep.subr.mxu0 0.0
    %2728 = vmatpush1.msra.mxu0 0.0
    %2729 = vmatprep.subr.mxu0 0.0
    %2730 = vmatpush1.msra.mxu0 0.0
    %2731 = vmatprep.subr.mxu0 0.0
    %2732 = vmatpush1.msra.mxu0 0.0
    %2733 = vmatprep.subr.mxu0 0.0
    %2734 = vmatpush1.msra.mxu0 0.0
    %2735 = vmatprep.subr.mxu0 0.0
    %2736 = vmatpush1.msra.mxu0 0.0
    %2737 = vmatprep.subr.mxu0 0.0
    %2738 = vmatpush1.msra.mxu0 0.0
    %2739 = vmatprep.subr.mxu0 0.0
    %2740 = vmatpush1.msra.mxu0 0.0
    %2741 = vmatprep.mubr.f32.mxu0 0.0
    %2742 = vmatmul.mubr.f32.gmra.mrb[0].mxu0 %v2065
    %v2743 = vpop.f32.mrb[0].mxu0
    %v2744 = vadd.f32 0.0, %v2743
    %v2745 = vpop.f32.mrb[0].mxu0
    %v2746 = vadd.f32 0.0, %v2745
    %2747 = vdwg.mxu0
    %2748 = vmatprep.subr.mxu0 0.0
    %2749 = vmatpush1.msra.mxu0 %v271
    %2750 = vmatprep.subr.mxu0 0.0
    %2751 = vmatpush1.msra.mxu0 %v274
    %2752 = vmatprep.subr.mxu0 0.0
    %2753 = vmatpush1.msra.mxu0 %v277
    %2754 = vmatprep.subr.mxu0 0.0
    %2755 = vmatpush1.msra.mxu0 %v280
    %2756 = vmatprep.subr.mxu0 0.0
    %2757 = vmatpush1.msra.mxu0 %v283
    %2758 = vmatprep.subr.mxu0 0.0
    %2759 = vmatpush1.msra.mxu0 %v286
    %2760 = vmatprep.subr.mxu0 0.0
    %2761 = vmatpush1.msra.mxu0 %v289
    %2762 = vmatprep.subr.mxu0 0.0
    %2763 = vmatpush1.msra.mxu0 %v292
    %2764 = vmatprep.subr.mxu0 0.0
    %2765 = vmatpush1.msra.mxu0 %v295
    %2766 = vmatprep.subr.mxu0 0.0
    %2767 = vmatpush1.msra.mxu0 %v298
    %2768 = vmatprep.subr.mxu0 0.0
    %2769 = vmatpush1.msra.mxu0 %v301
    %2770 = vmatprep.subr.mxu0 0.0
    %2771 = vmatpush1.msra.mxu0 %v304
    %2772 = vmatprep.subr.mxu0 0.0
    %2773 = vmatpush1.msra.mxu0 %v307
    %2774 = vmatprep.subr.mxu0 0.0
    %2775 = vmatpush1.msra.mxu0 %v310
    %2776 = vmatprep.subr.mxu0 0.0
    %2777 = vmatpush1.msra.mxu0 %v313
    %2778 = vmatprep.subr.mxu0 0.0
    %2779 = vmatpush1.msra.mxu0 %v316
    %2780 = vmatprep.subr.mxu0 0.0
    %2781 = vmatpush1.msra.mxu0 0.0
    %2782 = vmatprep.subr.mxu0 0.0
    %2783 = vmatpush1.msra.mxu0 0.0
    %2784 = vmatprep.subr.mxu0 0.0
    %2785 = vmatpush1.msra.mxu0 0.0
    %2786 = vmatprep.subr.mxu0 0.0
    %2787 = vmatpush1.msra.mxu0 0.0
    %2788 = vmatprep.subr.mxu0 0.0
    %2789 = vmatpush1.msra.mxu0 0.0
    %2790 = vmatprep.subr.mxu0 0.0
    %2791 = vmatpush1.msra.mxu0 0.0
    %2792 = vmatprep.subr.mxu0 0.0
    %2793 = vmatpush1.msra.mxu0 0.0
    %2794 = vmatprep.subr.mxu0 0.0
    %2795 = vmatpush1.msra.mxu0 0.0
    %2796 = vmatprep.subr.mxu0 0.0
    %2797 = vmatpush1.msra.mxu0 0.0
    %2798 = vmatprep.subr.mxu0 0.0
    %2799 = vmatpush1.msra.mxu0 0.0
    %2800 = vmatprep.subr.mxu0 0.0
    %2801 = vmatpush1.msra.mxu0 0.0
    %2802 = vmatprep.subr.mxu0 0.0
    %2803 = vmatpush1.msra.mxu0 0.0
    %2804 = vmatprep.subr.mxu0 0.0
    %2805 = vmatpush1.msra.mxu0 0.0
    %2806 = vmatprep.subr.mxu0 0.0
    %2807 = vmatpush1.msra.mxu0 0.0
    %2808 = vmatprep.subr.mxu0 0.0
    %2809 = vmatpush1.msra.mxu0 0.0
    %2810 = vmatprep.subr.mxu0 0.0
    %2811 = vmatpush1.msra.mxu0 0.0
    %2812 = vmatprep.mubr.f32.mxu0 0.0
    %2813 = vmatmul.mubr.f32.gmra.mrb[0].mxu0 %v2065
    %v2814 = vpop.f32.mrb[0].mxu0
    %v2815 = vadd.f32 0.0, %v2814
    %v2816 = vpop.f32.mrb[0].mxu0
    %2817 = vdwg.mxu0
    %v2818 = vadd.f32 %v2603, %v2744
    %v2819 = vadd.f32 %v2605, %v2746
    %v2820 = vxor.u32 %v2818, 2147483648
    %v2821 = vxor.u32 %v2819, 2147483648
    %v2822 = vmul.f32 %v2820, 1.442695
    %v2823 = vpow.pop %v2822
    %v2824 = vmul.f32 %v2821, 1.442695
    %v2825 = vpow.pop %v2824
    %v2826 = vadd.f32 %v2823, 1.0
    %v2827 = vadd.f32 %v2825, 1.0
    %v2828 = vrcp.pop %v2826
    %v2829 = vmul.f32 1.0, %v2828
    %v2830 = vrcp.pop %v2827
    %v2831 = vmul.f32 1.0, %v2830
    %v2832 = vadd.f32 %v2815, %v917
    %v2833 = vmul.f32 %v2829, %v2832
    %v2834 = vadd.f32 %v2674, %v2833
    %v2835 = vtanh.pop %v2834
    %v2836 = vsub.f32 1.0, %v2831
    %v2837 = vmul.f32 %v2836, %v2835
    %v2838 = vmul.f32 %v2831, %v2065
    %v2839 = vadd.f32 %v2837, %v2838
    %2840 = vmatprep.subr.mxu0 %v173
    %2841 = vmatpush1.msra.mxu0 %v172
    %2842 = vmatprep.subr.mxu0 %v176
    %2843 = vmatpush1.msra.mxu0 %v175
    %2844 = vmatprep.subr.mxu0 %v179
    %2845 = vmatpush1.msra.mxu0 %v178
    %2846 = vmatprep.subr.mxu0 %v182
    %2847 = vmatpush1.msra.mxu0 %v181
    %2848 = vmatprep.subr.mxu0 %v185
    %2849 = vmatpush1.msra.mxu0 %v184
    %2850 = vmatprep.subr.mxu0 %v188
    %2851 = vmatpush1.msra.mxu0 %v187
    %2852 = vmatprep.subr.mxu0 %v191
    %2853 = vmatpush1.msra.mxu0 %v190
    %2854 = vmatprep.subr.mxu0 %v194
    %2855 = vmatpush1.msra.mxu0 %v193
    %2856 = vmatprep.subr.mxu0 %v197
    %2857 = vmatpush1.msra.mxu0 %v196
    %2858 = vmatprep.subr.mxu0 %v200
    %2859 = vmatpush1.msra.mxu0 %v199
    %2860 = vmatprep.subr.mxu0 %v203
    %2861 = vmatpush1.msra.mxu0 %v202
    %2862 = vmatprep.subr.mxu0 %v206
    %2863 = vmatpush1.msra.mxu0 %v205
    %2864 = vmatprep.subr.mxu0 %v209
    %2865 = vmatpush1.msra.mxu0 %v208
    %2866 = vmatprep.subr.mxu0 %v212
    %2867 = vmatpush1.msra.mxu0 %v211
    %2868 = vmatprep.subr.mxu0 %v215
    %2869 = vmatpush1.msra.mxu0 %v214
    %2870 = vmatprep.subr.mxu0 %v218
    %2871 = vmatpush1.msra.mxu0 %v217
    %2872 = vmatprep.subr.mxu0 0.0
    %2873 = vmatpush1.msra.mxu0 0.0
    %2874 = vmatprep.subr.mxu0 0.0
    %2875 = vmatpush1.msra.mxu0 0.0
    %2876 = vmatprep.subr.mxu0 0.0
    %2877 = vmatpush1.msra.mxu0 0.0
    %2878 = vmatprep.subr.mxu0 0.0
    %2879 = vmatpush1.msra.mxu0 0.0
    %2880 = vmatprep.subr.mxu0 0.0
    %2881 = vmatpush1.msra.mxu0 0.0
    %2882 = vmatprep.subr.mxu0 0.0
    %2883 = vmatpush1.msra.mxu0 0.0
    %2884 = vmatprep.subr.mxu0 0.0
    %2885 = vmatpush1.msra.mxu0 0.0
    %2886 = vmatprep.subr.mxu0 0.0
    %2887 = vmatpush1.msra.mxu0 0.0
    %2888 = vmatprep.subr.mxu0 0.0
    %2889 = vmatpush1.msra.mxu0 0.0
    %2890 = vmatprep.subr.mxu0 0.0
    %2891 = vmatpush1.msra.mxu0 0.0
    %2892 = vmatprep.subr.mxu0 0.0
    %2893 = vmatpush1.msra.mxu0 0.0
    %2894 = vmatprep.subr.mxu0 0.0
    %2895 = vmatpush1.msra.mxu0 0.0
    %2896 = vmatprep.subr.mxu0 0.0
    %2897 = vmatpush1.msra.mxu0 0.0
    %2898 = vmatprep.subr.mxu0 0.0
    %2899 = vmatpush1.msra.mxu0 0.0
    %2900 = vmatprep.subr.mxu0 0.0
    %2901 = vmatpush1.msra.mxu0 0.0
    %2902 = vmatprep.subr.mxu0 0.0
    %2903 = vmatpush1.msra.mxu0 0.0
    %2904 = vmatprep.mubr.f32.mxu0 0.0
    %2905 = vmatmul.mubr.f32.gmra.mrb[0].mxu0 %v2065
    %v2906 = vpop.f32.mrb[0].mxu0
    %v2907 = vadd.f32 %v1409, %v2906
    %v2908 = vpop.f32.mrb[0].mxu0
    %v2909 = vadd.f32 %v1413, %v2908
    %2910 = vdwg.mxu0
    %2911 = vmatprep.subr.mxu0 0.0
    %2912 = vmatpush1.msra.mxu0 %v174
    %2913 = vmatprep.subr.mxu0 0.0
    %2914 = vmatpush1.msra.mxu0 %v177
    %2915 = vmatprep.subr.mxu0 0.0
    %2916 = vmatpush1.msra.mxu0 %v180
    %2917 = vmatprep.subr.mxu0 0.0
    %2918 = vmatpush1.msra.mxu0 %v183
    %2919 = vmatprep.subr.mxu0 0.0
    %2920 = vmatpush1.msra.mxu0 %v186
    %2921 = vmatprep.subr.mxu0 0.0
    %2922 = vmatpush1.msra.mxu0 %v189
    %2923 = vmatprep.subr.mxu0 0.0
    %2924 = vmatpush1.msra.mxu0 %v192
    %2925 = vmatprep.subr.mxu0 0.0
    %2926 = vmatpush1.msra.mxu0 %v195
    %2927 = vmatprep.subr.mxu0 0.0
    %2928 = vmatpush1.msra.mxu0 %v198
    %2929 = vmatprep.subr.mxu0 0.0
    %2930 = vmatpush1.msra.mxu0 %v201
    %2931 = vmatprep.subr.mxu0 0.0
    %2932 = vmatpush1.msra.mxu0 %v204
    %2933 = vmatprep.subr.mxu0 0.0
    %2934 = vmatpush1.msra.mxu0 %v207
    %2935 = vmatprep.subr.mxu0 0.0
    %2936 = vmatpush1.msra.mxu0 %v210
    %2937 = vmatprep.subr.mxu0 0.0
    %2938 = vmatpush1.msra.mxu0 %v213
    %2939 = vmatprep.subr.mxu0 0.0
    %2940 = vmatpush1.msra.mxu0 %v216
    %2941 = vmatprep.subr.mxu0 0.0
    %2942 = vmatpush1.msra.mxu0 %v219
    %2943 = vmatprep.subr.mxu0 0.0
    %2944 = vmatpush1.msra.mxu0 0.0
    %2945 = vmatprep.subr.mxu0 0.0
    %2946 = vmatpush1.msra.mxu0 0.0
    %2947 = vmatprep.subr.mxu0 0.0
    %2948 = vmatpush1.msra.mxu0 0.0
    %2949 = vmatprep.subr.mxu0 0.0
    %2950 = vmatpush1.msra.mxu0 0.0
    %2951 = vmatprep.subr.mxu0 0.0
    %2952 = vmatpush1.msra.mxu0 0.0
    %2953 = vmatprep.subr.mxu0 0.0
    %2954 = vmatpush1.msra.mxu0 0.0
    %2955 = vmatprep.subr.mxu0 0.0
    %2956 = vmatpush1.msra.mxu0 0.0
    %2957 = vmatprep.subr.mxu0 0.0
    %2958 = vmatpush1.msra.mxu0 0.0
    %2959 = vmatprep.subr.mxu0 0.0
    %2960 = vmatpush1.msra.mxu0 0.0
    %2961 = vmatprep.subr.mxu0 0.0
    %2962 = vmatpush1.msra.mxu0 0.0
    %2963 = vmatprep.subr.mxu0 0.0
    %2964 = vmatpush1.msra.mxu0 0.0
    %2965 = vmatprep.subr.mxu0 0.0
    %2966 = vmatpush1.msra.mxu0 0.0
    %2967 = vmatprep.subr.mxu0 0.0
    %2968 = vmatpush1.msra.mxu0 0.0
    %2969 = vmatprep.subr.mxu0 0.0
    %2970 = vmatpush1.msra.mxu0 0.0
    %2971 = vmatprep.subr.mxu0 0.0
    %2972 = vmatpush1.msra.mxu0 0.0
    %2973 = vmatprep.subr.mxu0 0.0
    %2974 = vmatpush1.msra.mxu0 0.0
    %2975 = vmatprep.mubr.f32.mxu0 0.0
    %2976 = vmatmul.mubr.f32.gmra.mrb[0].mxu0 %v2065
    %v2977 = vpop.f32.mrb[0].mxu0
    %v2978 = vadd.f32 %v1417, %v2977
    %v2979 = vpop.f32.mrb[0].mxu0
    %2980 = vdwg.mxu0
    %2981 = vmatprep.subr.mxu0 %v319
    %2982 = vmatpush1.msra.mxu0 %v318
    %2983 = vmatprep.subr.mxu0 %v322
    %2984 = vmatpush1.msra.mxu0 %v321
    %2985 = vmatprep.subr.mxu0 %v325
    %2986 = vmatpush1.msra.mxu0 %v324
    %2987 = vmatprep.subr.mxu0 %v328
    %2988 = vmatpush1.msra.mxu0 %v327
    %2989 = vmatprep.subr.mxu0 %v331
    %2990 = vmatpush1.msra.mxu0 %v330
    %2991 = vmatprep.subr.mxu0 %v334
    %2992 = vmatpush1.msra.mxu0 %v333
    %2993 = vmatprep.subr.mxu0 %v337
    %2994 = vmatpush1.msra.mxu0 %v336
    %2995 = vmatprep.subr.mxu0 %v340
    %2996 = vmatpush1.msra.mxu0 %v339
    %2997 = vmatprep.subr.mxu0 %v343
    %2998 = vmatpush1.msra.mxu0 %v342
    %2999 = vmatprep.subr.mxu0 %v346
    %3000 = vmatpush1.msra.mxu0 %v345
    %3001 = vmatprep.subr.mxu0 %v349
    %3002 = vmatpush1.msra.mxu0 %v348
    %3003 = vmatprep.subr.mxu0 %v352
    %3004 = vmatpush1.msra.mxu0 %v351
    %3005 = vmatprep.subr.mxu0 %v355
    %3006 = vmatpush1.msra.mxu0 %v354
    %3007 = vmatprep.subr.mxu0 %v358
    %3008 = vmatpush1.msra.mxu0 %v357
    %3009 = vmatprep.subr.mxu0 %v361
    %3010 = vmatpush1.msra.mxu0 %v360
    %3011 = vmatprep.subr.mxu0 %v364
    %3012 = vmatpush1.msra.mxu0 %v363
    %3013 = vmatprep.subr.mxu0 0.0
    %3014 = vmatpush1.msra.mxu0 0.0
    %3015 = vmatprep.subr.mxu0 0.0
    %3016 = vmatpush1.msra.mxu0 0.0
    %3017 = vmatprep.subr.mxu0 0.0
    %3018 = vmatpush1.msra.mxu0 0.0
    %3019 = vmatprep.subr.mxu0 0.0
    %3020 = vmatpush1.msra.mxu0 0.0
    %3021 = vmatprep.subr.mxu0 0.0
    %3022 = vmatpush1.msra.mxu0 0.0
    %3023 = vmatprep.subr.mxu0 0.0
    %3024 = vmatpush1.msra.mxu0 0.0
    %3025 = vmatprep.subr.mxu0 0.0
    %3026 = vmatpush1.msra.mxu0 0.0
    %3027 = vmatprep.subr.mxu0 0.0
    %3028 = vmatpush1.msra.mxu0 0.0
    %3029 = vmatprep.subr.mxu0 0.0
    %3030 = vmatpush1.msra.mxu0 0.0
    %3031 = vmatprep.subr.mxu0 0.0
    %3032 = vmatpush1.msra.mxu0 0.0
    %3033 = vmatprep.subr.mxu0 0.0
    %3034 = vmatpush1.msra.mxu0 0.0
    %3035 = vmatprep.subr.mxu0 0.0
    %3036 = vmatpush1.msra.mxu0 0.0
    %3037 = vmatprep.subr.mxu0 0.0
    %3038 = vmatpush1.msra.mxu0 0.0
    %3039 = vmatprep.subr.mxu0 0.0
    %3040 = vmatpush1.msra.mxu0 0.0
    %3041 = vmatprep.subr.mxu0 0.0
    %3042 = vmatpush1.msra.mxu0 0.0
    %3043 = vmatprep.subr.mxu0 0.0
    %3044 = vmatpush1.msra.mxu0 0.0
    %3045 = vmatprep.mubr.f32.mxu0 0.0
    %3046 = vmatmul.mubr.f32.gmra.mrb[0].mxu0 %v2369
    %v3047 = vpop.f32.mrb[0].mxu0
    %v3048 = vadd.f32 0.0, %v3047
    %v3049 = vpop.f32.mrb[0].mxu0
    %v3050 = vadd.f32 0.0, %v3049
    %3051 = vdwg.mxu0
    %3052 = vmatprep.subr.mxu0 0.0
    %3053 = vmatpush1.msra.mxu0 %v320
    %3054 = vmatprep.subr.mxu0 0.0
    %3055 = vmatpush1.msra.mxu0 %v323
    %3056 = vmatprep.subr.mxu0 0.0
    %3057 = vmatpush1.msra.mxu0 %v326
    %3058 = vmatprep.subr.mxu0 0.0
    %3059 = vmatpush1.msra.mxu0 %v329
    %3060 = vmatprep.subr.mxu0 0.0
    %3061 = vmatpush1.msra.mxu0 %v332
    %3062 = vmatprep.subr.mxu0 0.0
    %3063 = vmatpush1.msra.mxu0 %v335
    %3064 = vmatprep.subr.mxu0 0.0
    %3065 = vmatpush1.msra.mxu0 %v338
    %3066 = vmatprep.subr.mxu0 0.0
    %3067 = vmatpush1.msra.mxu0 %v341
    %3068 = vmatprep.subr.mxu0 0.0
    %3069 = vmatpush1.msra.mxu0 %v344
    %3070 = vmatprep.subr.mxu0 0.0
    %3071 = vmatpush1.msra.mxu0 %v347
    %3072 = vmatprep.subr.mxu0 0.0
    %3073 = vmatpush1.msra.mxu0 %v350
    %3074 = vmatprep.subr.mxu0 0.0
    %3075 = vmatpush1.msra.mxu0 %v353
    %3076 = vmatprep.subr.mxu0 0.0
    %3077 = vmatpush1.msra.mxu0 %v356
    %3078 = vmatprep.subr.mxu0 0.0
    %3079 = vmatpush1.msra.mxu0 %v359
    %3080 = vmatprep.subr.mxu0 0.0
    %3081 = vmatpush1.msra.mxu0 %v362
    %3082 = vmatprep.subr.mxu0 0.0
    %3083 = vmatpush1.msra.mxu0 %v365
    %3084 = vmatprep.subr.mxu0 0.0
    %3085 = vmatpush1.msra.mxu0 0.0
    %3086 = vmatprep.subr.mxu0 0.0
    %3087 = vmatpush1.msra.mxu0 0.0
    %3088 = vmatprep.subr.mxu0 0.0
    %3089 = vmatpush1.msra.mxu0 0.0
    %3090 = vmatprep.subr.mxu0 0.0
    %3091 = vmatpush1.msra.mxu0 0.0
    %3092 = vmatprep.subr.mxu0 0.0
    %3093 = vmatpush1.msra.mxu0 0.0
    %3094 = vmatprep.subr.mxu0 0.0
    %3095 = vmatpush1.msra.mxu0 0.0
    %3096 = vmatprep.subr.mxu0 0.0
    %3097 = vmatpush1.msra.mxu0 0.0
    %3098 = vmatprep.subr.mxu0 0.0
    %3099 = vmatpush1.msra.mxu0 0.0
    %3100 = vmatprep.subr.mxu0 0.0
    %3101 = vmatpush1.msra.mxu0 0.0
    %3102 = vmatprep.subr.mxu0 0.0
    %3103 = vmatpush1.msra.mxu0 0.0
    %3104 = vmatprep.subr.mxu0 0.0
    %3105 = vmatpush1.msra.mxu0 0.0
    %3106 = vmatprep.subr.mxu0 0.0
    %3107 = vmatpush1.msra.mxu0 0.0
    %3108 = vmatprep.subr.mxu0 0.0
    %3109 = vmatpush1.msra.mxu0 0.0
    %3110 = vmatprep.subr.mxu0 0.0
    %3111 = vmatpush1.msra.mxu0 0.0
    %3112 = vmatprep.subr.mxu0 0.0
    %3113 = vmatpush1.msra.mxu0 0.0
    %3114 = vmatprep.subr.mxu0 0.0
    %3115 = vmatpush1.msra.mxu0 0.0
    %3116 = vmatprep.mubr.f32.mxu0 0.0
    %3117 = vmatmul.mubr.f32.gmra.mrb[0].mxu0 %v2369
    %v3118 = vpop.f32.mrb[0].mxu0
    %v3119 = vadd.f32 0.0, %v3118
    %v3120 = vpop.f32.mrb[0].mxu0
    %3121 = vdwg.mxu0
    %v3122 = vadd.f32 %v2907, %v3048
    %v3123 = vadd.f32 %v2909, %v3050
    %v3124 = vxor.u32 %v3122, 2147483648
    %v3125 = vxor.u32 %v3123, 2147483648
    %v3126 = vmul.f32 %v3124, 1.442695
    %v3127 = vpow.pop %v3126
    %v3128 = vmul.f32 %v3125, 1.442695
    %v3129 = vpow.pop %v3128
    %v3130 = vadd.f32 %v3127, 1.0
    %v3131 = vadd.f32 %v3129, 1.0
    %v3132 = vrcp.pop %v3130
    %v3133 = vmul.f32 1.0, %v3132
    %v3134 = vrcp.pop %v3131
    %v3135 = vmul.f32 1.0, %v3134
    %v3136 = vadd.f32 %v3119, %v1578
    %v3137 = vmul.f32 %v3133, %v3136
    %v3138 = vadd.f32 %v2978, %v3137
    %v3139 = vtanh.pop %v3138
    %v3140 = vsub.f32 1.0, %v3135
    %v3141 = vmul.f32 %v3140, %v3139
    %v3142 = vmul.f32 %v3135, %v2369
    %v3143 = vadd.f32 %v3141, %v3142
    %3144 = vmatprep.subr.mxu0 %v221
    %3145 = vmatpush1.msra.mxu0 %v220
    %3146 = vmatprep.subr.mxu0 %v224
    %3147 = vmatpush1.msra.mxu0 %v223
    %3148 = vmatprep.subr.mxu0 %v227
    %3149 = vmatpush1.msra.mxu0 %v226
    %3150 = vmatprep.subr.mxu0 %v230
    %3151 = vmatpush1.msra.mxu0 %v229
    %3152 = vmatprep.subr.mxu0 %v233
    %3153 = vmatpush1.msra.mxu0 %v232
    %3154 = vmatprep.subr.mxu0 %v236
    %3155 = vmatpush1.msra.mxu0 %v235
    %3156 = vmatprep.subr.mxu0 %v239
    %3157 = vmatpush1.msra.mxu0 %v238
    %3158 = vmatprep.subr.mxu0 %v242
    %3159 = vmatpush1.msra.mxu0 %v241
    %3160 = vmatprep.subr.mxu0 %v245
    %3161 = vmatpush1.msra.mxu0 %v244
    %3162 = vmatprep.subr.mxu0 %v248
    %3163 = vmatpush1.msra.mxu0 %v247
    %3164 = vmatprep.subr.mxu0 %v251
    %3165 = vmatpush1.msra.mxu0 %v250
    %3166 = vmatprep.subr.mxu0 %v254
    %3167 = vmatpush1.msra.mxu0 %v253
    %3168 = vmatprep.subr.mxu0 %v257
    %3169 = vmatpush1.msra.mxu0 %v256
    %3170 = vmatprep.subr.mxu0 %v260
    %3171 = vmatpush1.msra.mxu0 %v259
    %3172 = vmatprep.subr.mxu0 %v263
    %3173 = vmatpush1.msra.mxu0 %v262
    %3174 = vmatprep.subr.mxu0 %v266
    %3175 = vmatpush1.msra.mxu0 %v265
    %3176 = vmatprep.subr.mxu0 0.0
    %3177 = vmatpush1.msra.mxu0 0.0
    %3178 = vmatprep.subr.mxu0 0.0
    %3179 = vmatpush1.msra.mxu0 0.0
    %3180 = vmatprep.subr.mxu0 0.0
    %3181 = vmatpush1.msra.mxu0 0.0
    %3182 = vmatprep.subr.mxu0 0.0
    %3183 = vmatpush1.msra.mxu0 0.0
    %3184 = vmatprep.subr.mxu0 0.0
    %3185 = vmatpush1.msra.mxu0 0.0
    %3186 = vmatprep.subr.mxu0 0.0
    %3187 = vmatpush1.msra.mxu0 0.0
    %3188 = vmatprep.subr.mxu0 0.0
    %3189 = vmatpush1.msra.mxu0 0.0
    %3190 = vmatprep.subr.mxu0 0.0
    %3191 = vmatpush1.msra.mxu0 0.0
    %3192 = vmatprep.subr.mxu0 0.0
    %3193 = vmatpush1.msra.mxu0 0.0
    %3194 = vmatprep.subr.mxu0 0.0
    %3195 = vmatpush1.msra.mxu0 0.0
    %3196 = vmatprep.subr.mxu0 0.0
    %3197 = vmatpush1.msra.mxu0 0.0
    %3198 = vmatprep.subr.mxu0 0.0
    %3199 = vmatpush1.msra.mxu0 0.0
    %3200 = vmatprep.subr.mxu0 0.0
    %3201 = vmatpush1.msra.mxu0 0.0
    %3202 = vmatprep.subr.mxu0 0.0
    %3203 = vmatpush1.msra.mxu0 0.0
    %3204 = vmatprep.subr.mxu0 0.0
    %3205 = vmatpush1.msra.mxu0 0.0
    %3206 = vmatprep.subr.mxu0 0.0
    %3207 = vmatpush1.msra.mxu0 0.0
    %3208 = vmatprep.mubr.f32.mxu0 0.0
    %3209 = vmatmul.mubr.f32.gmra.mrb[0].mxu0 %v2535
    %v3210 = vpop.f32.mrb[0].mxu0
    %v3211 = vadd.f32 0.0, %v3210
    %v3212 = vpop.f32.mrb[0].mxu0
    %v3213 = vadd.f32 0.0, %v3212
    %3214 = vdwg.mxu0
    %3215 = vmatprep.subr.mxu0 0.0
    %3216 = vmatpush1.msra.mxu0 %v222
    %3217 = vmatprep.subr.mxu0 0.0
    %3218 = vmatpush1.msra.mxu0 %v225
    %3219 = vmatprep.subr.mxu0 0.0
    %3220 = vmatpush1.msra.mxu0 %v228
    %3221 = vmatprep.subr.mxu0 0.0
    %3222 = vmatpush1.msra.mxu0 %v231
    %3223 = vmatprep.subr.mxu0 0.0
    %3224 = vmatpush1.msra.mxu0 %v234
    %3225 = vmatprep.subr.mxu0 0.0
    %3226 = vmatpush1.msra.mxu0 %v237
    %3227 = vmatprep.subr.mxu0 0.0
    %3228 = vmatpush1.msra.mxu0 %v240
    %3229 = vmatprep.subr.mxu0 0.0
    %3230 = vmatpush1.msra.mxu0 %v243
    %3231 = vmatprep.subr.mxu0 0.0
    %3232 = vmatpush1.msra.mxu0 %v246
    %3233 = vmatprep.subr.mxu0 0.0
    %3234 = vmatpush1.msra.mxu0 %v249
    %3235 = vmatprep.subr.mxu0 0.0
    %3236 = vmatpush1.msra.mxu0 %v252
    %3237 = vmatprep.subr.mxu0 0.0
    %3238 = vmatpush1.msra.mxu0 %v255
    %3239 = vmatprep.subr.mxu0 0.0
    %3240 = vmatpush1.msra.mxu0 %v258
    %3241 = vmatprep.subr.mxu0 0.0
    %3242 = vmatpush1.msra.mxu0 %v261
    %3243 = vmatprep.subr.mxu0 0.0
    %3244 = vmatpush1.msra.mxu0 %v264
    %3245 = vmatprep.subr.mxu0 0.0
    %3246 = vmatpush1.msra.mxu0 %v267
    %3247 = vmatprep.subr.mxu0 0.0
    %3248 = vmatpush1.msra.mxu0 0.0
    %3249 = vmatprep.subr.mxu0 0.0
    %3250 = vmatpush1.msra.mxu0 0.0
    %3251 = vmatprep.subr.mxu0 0.0
    %3252 = vmatpush1.msra.mxu0 0.0
    %3253 = vmatprep.subr.mxu0 0.0
    %3254 = vmatpush1.msra.mxu0 0.0
    %3255 = vmatprep.subr.mxu0 0.0
    %3256 = vmatpush1.msra.mxu0 0.0
    %3257 = vmatprep.subr.mxu0 0.0
    %3258 = vmatpush1.msra.mxu0 0.0
    %3259 = vmatprep.subr.mxu0 0.0
    %3260 = vmatpush1.msra.mxu0 0.0
    %3261 = vmatprep.subr.mxu0 0.0
    %3262 = vmatpush1.msra.mxu0 0.0
    %3263 = vmatprep.subr.mxu0 0.0
    %3264 = vmatpush1.msra.mxu0 0.0
    %3265 = vmatprep.subr.mxu0 0.0
    %3266 = vmatpush1.msra.mxu0 0.0
    %3267 = vmatprep.subr.mxu0 0.0
    %3268 = vmatpush1.msra.mxu0 0.0
    %3269 = vmatprep.subr.mxu0 0.0
    %3270 = vmatpush1.msra.mxu0 0.0
    %3271 = vmatprep.subr.mxu0 0.0
    %3272 = vmatpush1.msra.mxu0 0.0
    %3273 = vmatprep.subr.mxu0 0.0
    %3274 = vmatpush1.msra.mxu0 0.0
    %3275 = vmatprep.subr.mxu0 0.0
    %3276 = vmatpush1.msra.mxu0 0.0
    %3277 = vmatprep.subr.mxu0 0.0
    %3278 = vmatpush1.msra.mxu0 0.0
    %3279 = vmatprep.mubr.f32.mxu0 0.0
    %3280 = vmatmul.mubr.f32.gmra.mrb[0].mxu0 %v2535
    %v3281 = vpop.f32.mrb[0].mxu0
    %v3282 = vadd.f32 0.0, %v3281
    %v3283 = vpop.f32.mrb[0].mxu0
    %3284 = vdwg.mxu0
    %v3287 = vrot.slane %v3211, 6
    %v3288 = vrot.slane %v3213, 6
    %v3291 = vadd.f32 %v467, %v3287
    %v3292 = vadd.f32 %v469, %v3288
    %v3293 = vxor.u32 %v3291, 2147483648
    %v3294 = vxor.u32 %v3292, 2147483648
    %v3295 = vmul.f32 %v3293, 1.442695
    %v3296 = vpow.pop %v3295
    %v3297 = vmul.f32 %v3294, 1.442695
    %v3298 = vpow.pop %v3297
    %v3299 = vadd.f32 %v3296, 1.0
    %v3300 = vadd.f32 %v3298, 1.0
    %v3301 = vrcp.pop %v3299
    %v3302 = vmul.f32 1.0, %v3301
    %v3303 = vrcp.pop %v3300
    %v3304 = vmul.f32 1.0, %v3303
    %v3305 = vadd.f32 %v3282, %v562
    %v3307 = vrot.slane %v3305, 6
    %v3309 = vmul.f32 %v3302, %v3307
    %v3310 = vadd.f32 %v543, %v3309
    %v3311 = vtanh.pop %v3310
    %v3312 = vsub.f32 1.0, %v3304
    %v3313 = vmul.f32 %v3312, %v3311
    %v3315 = vrot.slane %v2535, 6
    %v3317 = vmul.f32 %v3304, %v3315
    %v3318 = vadd.f32 %v3313, %v3317
    %3319 = vmatprep.subr.mxu0 %v124
    %3320 = vmatpush1.msra.mxu0 %v123
    %3321 = vmatprep.subr.mxu0 %v127
    %3322 = vmatpush1.msra.mxu0 %v126
    %3323 = vmatprep.subr.mxu0 %v130
    %3324 = vmatpush1.msra.mxu0 %v129
    %3325 = vmatprep.subr.mxu0 %v133
    %3326 = vmatpush1.msra.mxu0 %v132
    %3327 = vmatprep.subr.mxu0 %v136
    %3328 = vmatpush1.msra.mxu0 %v135
    %3329 = vmatprep.subr.mxu0 %v139
    %3330 = vmatpush1.msra.mxu0 %v138
    %3331 = vmatprep.subr.mxu0 %v142
    %3332 = vmatpush1.msra.mxu0 %v141
    %3333 = vmatprep.subr.mxu0 %v145
    %3334 = vmatpush1.msra.mxu0 %v144
    %3335 = vmatprep.subr.mxu0 %v148
    %3336 = vmatpush1.msra.mxu0 %v147
    %3337 = vmatprep.subr.mxu0 %v151
    %3338 = vmatpush1.msra.mxu0 %v150
    %3339 = vmatprep.subr.mxu0 %v154
    %3340 = vmatpush1.msra.mxu0 %v153
    %3341 = vmatprep.subr.mxu0 %v157
    %3342 = vmatpush1.msra.mxu0 %v156
    %3343 = vmatprep.subr.mxu0 %v160
    %3344 = vmatpush1.msra.mxu0 %v159
    %3345 = vmatprep.subr.mxu0 %v163
    %3346 = vmatpush1.msra.mxu0 %v162
    %3347 = vmatprep.subr.mxu0 %v166
    %3348 = vmatpush1.msra.mxu0 %v165
    %3349 = vmatprep.subr.mxu0 %v169
    %3350 = vmatpush1.msra.mxu0 %v168
    %3351 = vmatprep.subr.mxu0 0.0
    %3352 = vmatpush1.msra.mxu0 0.0
    %3353 = vmatprep.subr.mxu0 0.0
    %3354 = vmatpush1.msra.mxu0 0.0
    %3355 = vmatprep.subr.mxu0 0.0
    %3356 = vmatpush1.msra.mxu0 0.0
    %3357 = vmatprep.subr.mxu0 0.0
    %3358 = vmatpush1.msra.mxu0 0.0
    %3359 = vmatprep.subr.mxu0 0.0
    %3360 = vmatpush1.msra.mxu0 0.0
    %3361 = vmatprep.subr.mxu0 0.0
    %3362 = vmatpush1.msra.mxu0 0.0
    %3363 = vmatprep.subr.mxu0 0.0
    %3364 = vmatpush1.msra.mxu0 0.0
    %3365 = vmatprep.subr.mxu0 0.0
    %3366 = vmatpush1.msra.mxu0 0.0
    %3367 = vmatprep.subr.mxu0 0.0
    %3368 = vmatpush1.msra.mxu0 0.0
    %3369 = vmatprep.subr.mxu0 0.0
    %3370 = vmatpush1.msra.mxu0 0.0
    %3371 = vmatprep.subr.mxu0 0.0
    %3372 = vmatpush1.msra.mxu0 0.0
    %3373 = vmatprep.subr.mxu0 0.0
    %3374 = vmatpush1.msra.mxu0 0.0
    %3375 = vmatprep.subr.mxu0 0.0
    %3376 = vmatpush1.msra.mxu0 0.0
    %3377 = vmatprep.subr.mxu0 0.0
    %3378 = vmatpush1.msra.mxu0 0.0
    %3379 = vmatprep.subr.mxu0 0.0
    %3380 = vmatpush1.msra.mxu0 0.0
    %3381 = vmatprep.subr.mxu0 0.0
    %3382 = vmatpush1.msra.mxu0 0.0
    %3383 = vmatprep.mubr.f32.mxu0 0.0
    %3384 = vmatmul.mubr.f32.gmra.mrb[0].mxu0 %v2535
    %v3385 = vpop.f32.mrb[0].mxu0
    %v3386 = vadd.f32 %v748, %v3385
    %v3387 = vpop.f32.mrb[0].mxu0
    %v3388 = vadd.f32 %v752, %v3387
    %3389 = vdwg.mxu0
    %3390 = vmatprep.subr.mxu0 0.0
    %3391 = vmatpush1.msra.mxu0 %v125
    %3392 = vmatprep.subr.mxu0 0.0
    %3393 = vmatpush1.msra.mxu0 %v128
    %3394 = vmatprep.subr.mxu0 0.0
    %3395 = vmatpush1.msra.mxu0 %v131
    %3396 = vmatprep.subr.mxu0 0.0
    %3397 = vmatpush1.msra.mxu0 %v134
    %3398 = vmatprep.subr.mxu0 0.0
    %3399 = vmatpush1.msra.mxu0 %v137
    %3400 = vmatprep.subr.mxu0 0.0
    %3401 = vmatpush1.msra.mxu0 %v140
    %3402 = vmatprep.subr.mxu0 0.0
    %3403 = vmatpush1.msra.mxu0 %v143
    %3404 = vmatprep.subr.mxu0 0.0
    %3405 = vmatpush1.msra.mxu0 %v146
    %3406 = vmatprep.subr.mxu0 0.0
    %3407 = vmatpush1.msra.mxu0 %v149
    %3408 = vmatprep.subr.mxu0 0.0
    %3409 = vmatpush1.msra.mxu0 %v152
    %3410 = vmatprep.subr.mxu0 0.0
    %3411 = vmatpush1.msra.mxu0 %v155
    %3412 = vmatprep.subr.mxu0 0.0
    %3413 = vmatpush1.msra.mxu0 %v158
    %3414 = vmatprep.subr.mxu0 0.0
    %3415 = vmatpush1.msra.mxu0 %v161
    %3416 = vmatprep.subr.mxu0 0.0
    %3417 = vmatpush1.msra.mxu0 %v164
    %3418 = vmatprep.subr.mxu0 0.0
    %3419 = vmatpush1.msra.mxu0 %v167
    %3420 = vmatprep.subr.mxu0 0.0
    %3421 = vmatpush1.msra.mxu0 %v170
    %3422 = vmatprep.subr.mxu0 0.0
    %3423 = vmatpush1.msra.mxu0 0.0
    %3424 = vmatprep.subr.mxu0 0.0
    %3425 = vmatpush1.msra.mxu0 0.0
    %3426 = vmatprep.subr.mxu0 0.0
    %3427 = vmatpush1.msra.mxu0 0.0
    %3428 = vmatprep.subr.mxu0 0.0
    %3429 = vmatpush1.msra.mxu0 0.0
    %3430 = vmatprep.subr.mxu0 0.0
    %3431 = vmatpush1.msra.mxu0 0.0
    %3432 = vmatprep.subr.mxu0 0.0
    %3433 = vmatpush1.msra.mxu0 0.0
    %3434 = vmatprep.subr.mxu0 0.0
    %3435 = vmatpush1.msra.mxu0 0.0
    %3436 = vmatprep.subr.mxu0 0.0
    %3437 = vmatpush1.msra.mxu0 0.0
    %3438 = vmatprep.subr.mxu0 0.0
    %3439 = vmatpush1.msra.mxu0 0.0
    %3440 = vmatprep.subr.mxu0 0.0
    %3441 = vmatpush1.msra.mxu0 0.0
    %3442 = vmatprep.subr.mxu0 0.0
    %3443 = vmatpush1.msra.mxu0 0.0
    %3444 = vmatprep.subr.mxu0 0.0
    %3445 = vmatpush1.msra.mxu0 0.0
    %3446 = vmatprep.subr.mxu0 0.0
    %3447 = vmatpush1.msra.mxu0 0.0
    %3448 = vmatprep.subr.mxu0 0.0
    %3449 = vmatpush1.msra.mxu0 0.0
    %3450 = vmatprep.subr.mxu0 0.0
    %3451 = vmatpush1.msra.mxu0 0.0
    %3452 = vmatprep.subr.mxu0 0.0
    %3453 = vmatpush1.msra.mxu0 0.0
    %3454 = vmatprep.mubr.f32.mxu0 0.0
    %3455 = vmatmul.mubr.f32.gmra.mrb[0].mxu0 %v2535
    %v3456 = vpop.f32.mrb[0].mxu0
    %v3457 = vadd.f32 %v756, %v3456
    %v3458 = vpop.f32.mrb[0].mxu0
    %3459 = vdwg.mxu0
    %3460 = vmatprep.subr.mxu0 %v270
    %3461 = vmatpush1.msra.mxu0 %v269
    %3462 = vmatprep.subr.mxu0 %v273
    %3463 = vmatpush1.msra.mxu0 %v272
    %3464 = vmatprep.subr.mxu0 %v276
    %3465 = vmatpush1.msra.mxu0 %v275
    %3466 = vmatprep.subr.mxu0 %v279
    %3467 = vmatpush1.msra.mxu0 %v278
    %3468 = vmatprep.subr.mxu0 %v282
    %3469 = vmatpush1.msra.mxu0 %v281
    %3470 = vmatprep.subr.mxu0 %v285
    %3471 = vmatpush1.msra.mxu0 %v284
    %3472 = vmatprep.subr.mxu0 %v288
    %3473 = vmatpush1.msra.mxu0 %v287
    %3474 = vmatprep.subr.mxu0 %v291
    %3475 = vmatpush1.msra.mxu0 %v290
    %3476 = vmatprep.subr.mxu0 %v294
    %3477 = vmatpush1.msra.mxu0 %v293
    %3478 = vmatprep.subr.mxu0 %v297
    %3479 = vmatpush1.msra.mxu0 %v296
    %3480 = vmatprep.subr.mxu0 %v300
    %3481 = vmatpush1.msra.mxu0 %v299
    %3482 = vmatprep.subr.mxu0 %v303
    %3483 = vmatpush1.msra.mxu0 %v302
    %3484 = vmatprep.subr.mxu0 %v306
    %3485 = vmatpush1.msra.mxu0 %v305
    %3486 = vmatprep.subr.mxu0 %v309
    %3487 = vmatpush1.msra.mxu0 %v308
    %3488 = vmatprep.subr.mxu0 %v312
    %3489 = vmatpush1.msra.mxu0 %v311
    %3490 = vmatprep.subr.mxu0 %v315
    %3491 = vmatpush1.msra.mxu0 %v314
    %3492 = vmatprep.subr.mxu0 0.0
    %3493 = vmatpush1.msra.mxu0 0.0
    %3494 = vmatprep.subr.mxu0 0.0
    %3495 = vmatpush1.msra.mxu0 0.0
    %3496 = vmatprep.subr.mxu0 0.0
    %3497 = vmatpush1.msra.mxu0 0.0
    %3498 = vmatprep.subr.mxu0 0.0
    %3499 = vmatpush1.msra.mxu0 0.0
    %3500 = vmatprep.subr.mxu0 0.0
    %3501 = vmatpush1.msra.mxu0 0.0
    %3502 = vmatprep.subr.mxu0 0.0
    %3503 = vmatpush1.msra.mxu0 0.0
    %3504 = vmatprep.subr.mxu0 0.0
    %3505 = vmatpush1.msra.mxu0 0.0
    %3506 = vmatprep.subr.mxu0 0.0
    %3507 = vmatpush1.msra.mxu0 0.0
    %3508 = vmatprep.subr.mxu0 0.0
    %3509 = vmatpush1.msra.mxu0 0.0
    %3510 = vmatprep.subr.mxu0 0.0
    %3511 = vmatpush1.msra.mxu0 0.0
    %3512 = vmatprep.subr.mxu0 0.0
    %3513 = vmatpush1.msra.mxu0 0.0
    %3514 = vmatprep.subr.mxu0 0.0
    %3515 = vmatpush1.msra.mxu0 0.0
    %3516 = vmatprep.subr.mxu0 0.0
    %3517 = vmatpush1.msra.mxu0 0.0
    %3518 = vmatprep.subr.mxu0 0.0
    %3519 = vmatpush1.msra.mxu0 0.0
    %3520 = vmatprep.subr.mxu0 0.0
    %3521 = vmatpush1.msra.mxu0 0.0
    %3522 = vmatprep.subr.mxu0 0.0
    %3523 = vmatpush1.msra.mxu0 0.0
    %3524 = vmatprep.mubr.f32.mxu0 0.0
    %3525 = vmatmul.mubr.f32.gmra.mrb[0].mxu0 %v2839
    %v3526 = vpop.f32.mrb[0].mxu0
    %v3527 = vadd.f32 0.0, %v3526
    %v3528 = vpop.f32.mrb[0].mxu0
    %v3529 = vadd.f32 0.0, %v3528
    %3530 = vdwg.mxu0
    %3531 = vmatprep.subr.mxu0 0.0
    %3532 = vmatpush1.msra.mxu0 %v271
    %3533 = vmatprep.subr.mxu0 0.0
    %3534 = vmatpush1.msra.mxu0 %v274
    %3535 = vmatprep.subr.mxu0 0.0
    %3536 = vmatpush1.msra.mxu0 %v277
    %3537 = vmatprep.subr.mxu0 0.0
    %3538 = vmatpush1.msra.mxu0 %v280
    %3539 = vmatprep.subr.mxu0 0.0
    %3540 = vmatpush1.msra.mxu0 %v283
    %3541 = vmatprep.subr.mxu0 0.0
    %3542 = vmatpush1.msra.mxu0 %v286
    %3543 = vmatprep.subr.mxu0 0.0
    %3544 = vmatpush1.msra.mxu0 %v289
    %3545 = vmatprep.subr.mxu0 0.0
    %3546 = vmatpush1.msra.mxu0 %v292
    %3547 = vmatprep.subr.mxu0 0.0
    %3548 = vmatpush1.msra.mxu0 %v295
    %3549 = vmatprep.subr.mxu0 0.0
    %3550 = vmatpush1.msra.mxu0 %v298
    %3551 = vmatprep.subr.mxu0 0.0
    %3552 = vmatpush1.msra.mxu0 %v301
    %3553 = vmatprep.subr.mxu0 0.0
    %3554 = vmatpush1.msra.mxu0 %v304
    %3555 = vmatprep.subr.mxu0 0.0
    %3556 = vmatpush1.msra.mxu0 %v307
    %3557 = vmatprep.subr.mxu0 0.0
    %3558 = vmatpush1.msra.mxu0 %v310
    %3559 = vmatprep.subr.mxu0 0.0
    %3560 = vmatpush1.msra.mxu0 %v313
    %3561 = vmatprep.subr.mxu0 0.0
    %3562 = vmatpush1.msra.mxu0 %v316
    %3563 = vmatprep.subr.mxu0 0.0
    %3564 = vmatpush1.msra.mxu0 0.0
    %3565 = vmatprep.subr.mxu0 0.0
    %3566 = vmatpush1.msra.mxu0 0.0
    %3567 = vmatprep.subr.mxu0 0.0
    %3568 = vmatpush1.msra.mxu0 0.0
    %3569 = vmatprep.subr.mxu0 0.0
    %3570 = vmatpush1.msra.mxu0 0.0
    %3571 = vmatprep.subr.mxu0 0.0
    %3572 = vmatpush1.msra.mxu0 0.0
    %3573 = vmatprep.subr.mxu0 0.0
    %3574 = vmatpush1.msra.mxu0 0.0
    %3575 = vmatprep.subr.mxu0 0.0
    %3576 = vmatpush1.msra.mxu0 0.0
    %3577 = vmatprep.subr.mxu0 0.0
    %3578 = vmatpush1.msra.mxu0 0.0
    %3579 = vmatprep.subr.mxu0 0.0
    %3580 = vmatpush1.msra.mxu0 0.0
    %3581 = vmatprep.subr.mxu0 0.0
    %3582 = vmatpush1.msra.mxu0 0.0
    %3583 = vmatprep.subr.mxu0 0.0
    %3584 = vmatpush1.msra.mxu0 0.0
    %3585 = vmatprep.subr.mxu0 0.0
    %3586 = vmatpush1.msra.mxu0 0.0
    %3587 = vmatprep.subr.mxu0 0.0
    %3588 = vmatpush1.msra.mxu0 0.0
    %3589 = vmatprep.subr.mxu0 0.0
    %3590 = vmatpush1.msra.mxu0 0.0
    %3591 = vmatprep.subr.mxu0 0.0
    %3592 = vmatpush1.msra.mxu0 0.0
    %3593 = vmatprep.subr.mxu0 0.0
    %3594 = vmatpush1.msra.mxu0 0.0
    %3595 = vmatprep.mubr.f32.mxu0 0.0
    %3596 = vmatmul.mubr.f32.gmra.mrb[0].mxu0 %v2839
    %v3597 = vpop.f32.mrb[0].mxu0
    %v3598 = vadd.f32 0.0, %v3597
    %v3599 = vpop.f32.mrb[0].mxu0
    %3600 = vdwg.mxu0
    %v3601 = vadd.f32 %v3386, %v3527
    %v3602 = vadd.f32 %v3388, %v3529
    %v3603 = vxor.u32 %v3601, 2147483648
    %v3604 = vxor.u32 %v3602, 2147483648
    %v3605 = vmul.f32 %v3603, 1.442695
    %v3606 = vpow.pop %v3605
    %v3607 = vmul.f32 %v3604, 1.442695
    %v3608 = vpow.pop %v3607
    %v3609 = vadd.f32 %v3606, 1.0
    %v3610 = vadd.f32 %v3608, 1.0
    %v3611 = vrcp.pop %v3609
    %v3612 = vmul.f32 1.0, %v3611
    %v3613 = vrcp.pop %v3610
    %v3614 = vmul.f32 1.0, %v3613
    %v3615 = vadd.f32 %v3598, %v917
    %v3616 = vmul.f32 %v3612, %v3615
    %v3617 = vadd.f32 %v3457, %v3616
    %v3618 = vtanh.pop %v3617
    %v3619 = vsub.f32 1.0, %v3614
    %v3620 = vmul.f32 %v3619, %v3618
    %v3621 = vmul.f32 %v3614, %v2839
    %v3622 = vadd.f32 %v3620, %v3621
    %3623 = vmatprep.subr.mxu0 %v173
    %3624 = vmatpush1.msra.mxu0 %v172
    %3625 = vmatprep.subr.mxu0 %v176
    %3626 = vmatpush1.msra.mxu0 %v175
    %3627 = vmatprep.subr.mxu0 %v179
    %3628 = vmatpush1.msra.mxu0 %v178
    %3629 = vmatprep.subr.mxu0 %v182
    %3630 = vmatpush1.msra.mxu0 %v181
    %3631 = vmatprep.subr.mxu0 %v185
    %3632 = vmatpush1.msra.mxu0 %v184
    %3633 = vmatprep.subr.mxu0 %v188
    %3634 = vmatpush1.msra.mxu0 %v187
    %3635 = vmatprep.subr.mxu0 %v191
    %3636 = vmatpush1.msra.mxu0 %v190
    %3637 = vmatprep.subr.mxu0 %v194
    %3638 = vmatpush1.msra.mxu0 %v193
    %3639 = vmatprep.subr.mxu0 %v197
    %3640 = vmatpush1.msra.mxu0 %v196
    %3641 = vmatprep.subr.mxu0 %v200
    %3642 = vmatpush1.msra.mxu0 %v199
    %3643 = vmatprep.subr.mxu0 %v203
    %3644 = vmatpush1.msra.mxu0 %v202
    %3645 = vmatprep.subr.mxu0 %v206
    %3646 = vmatpush1.msra.mxu0 %v205
    %3647 = vmatprep.subr.mxu0 %v209
    %3648 = vmatpush1.msra.mxu0 %v208
    %3649 = vmatprep.subr.mxu0 %v212
    %3650 = vmatpush1.msra.mxu0 %v211
    %3651 = vmatprep.subr.mxu0 %v215
    %3652 = vmatpush1.msra.mxu0 %v214
    %3653 = vmatprep.subr.mxu0 %v218
    %3654 = vmatpush1.msra.mxu0 %v217
    %3655 = vmatprep.subr.mxu0 0.0
    %3656 = vmatpush1.msra.mxu0 0.0
    %3657 = vmatprep.subr.mxu0 0.0
    %3658 = vmatpush1.msra.mxu0 0.0
    %3659 = vmatprep.subr.mxu0 0.0
    %3660 = vmatpush1.msra.mxu0 0.0
    %3661 = vmatprep.subr.mxu0 0.0
    %3662 = vmatpush1.msra.mxu0 0.0
    %3663 = vmatprep.subr.mxu0 0.0
    %3664 = vmatpush1.msra.mxu0 0.0
    %3665 = vmatprep.subr.mxu0 0.0
    %3666 = vmatpush1.msra.mxu0 0.0
    %3667 = vmatprep.subr.mxu0 0.0
    %3668 = vmatpush1.msra.mxu0 0.0
    %3669 = vmatprep.subr.mxu0 0.0
    %3670 = vmatpush1.msra.mxu0 0.0
    %3671 = vmatprep.subr.mxu0 0.0
    %3672 = vmatpush1.msra.mxu0 0.0
    %3673 = vmatprep.subr.mxu0 0.0
    %3674 = vmatpush1.msra.mxu0 0.0
    %3675 = vmatprep.subr.mxu0 0.0
    %3676 = vmatpush1.msra.mxu0 0.0
    %3677 = vmatprep.subr.mxu0 0.0
    %3678 = vmatpush1.msra.mxu0 0.0
    %3679 = vmatprep.subr.mxu0 0.0
    %3680 = vmatpush1.msra.mxu0 0.0
    %3681 = vmatprep.subr.mxu0 0.0
    %3682 = vmatpush1.msra.mxu0 0.0
    %3683 = vmatprep.subr.mxu0 0.0
    %3684 = vmatpush1.msra.mxu0 0.0
    %3685 = vmatprep.subr.mxu0 0.0
    %3686 = vmatpush1.msra.mxu0 0.0
    %3687 = vmatprep.mubr.f32.mxu0 0.0
    %3688 = vmatmul.mubr.f32.gmra.mrb[0].mxu0 %v2839
    %v3689 = vpop.f32.mrb[0].mxu0
    %v3690 = vadd.f32 %v1409, %v3689
    %v3691 = vpop.f32.mrb[0].mxu0
    %v3692 = vadd.f32 %v1413, %v3691
    %3693 = vdwg.mxu0
    %3694 = vmatprep.subr.mxu0 0.0
    %3695 = vmatpush1.msra.mxu0 %v174
    %3696 = vmatprep.subr.mxu0 0.0
    %3697 = vmatpush1.msra.mxu0 %v177
    %3698 = vmatprep.subr.mxu0 0.0
    %3699 = vmatpush1.msra.mxu0 %v180
    %3700 = vmatprep.subr.mxu0 0.0
    %3701 = vmatpush1.msra.mxu0 %v183
    %3702 = vmatprep.subr.mxu0 0.0
    %3703 = vmatpush1.msra.mxu0 %v186
    %3704 = vmatprep.subr.mxu0 0.0
    %3705 = vmatpush1.msra.mxu0 %v189
    %3706 = vmatprep.subr.mxu0 0.0
    %3707 = vmatpush1.msra.mxu0 %v192
    %3708 = vmatprep.subr.mxu0 0.0
    %3709 = vmatpush1.msra.mxu0 %v195
    %3710 = vmatprep.subr.mxu0 0.0
    %3711 = vmatpush1.msra.mxu0 %v198
    %3712 = vmatprep.subr.mxu0 0.0
    %3713 = vmatpush1.msra.mxu0 %v201
    %3714 = vmatprep.subr.mxu0 0.0
    %3715 = vmatpush1.msra.mxu0 %v204
    %3716 = vmatprep.subr.mxu0 0.0
    %3717 = vmatpush1.msra.mxu0 %v207
    %3718 = vmatprep.subr.mxu0 0.0
    %3719 = vmatpush1.msra.mxu0 %v210
    %3720 = vmatprep.subr.mxu0 0.0
    %3721 = vmatpush1.msra.mxu0 %v213
    %3722 = vmatprep.subr.mxu0 0.0
    %3723 = vmatpush1.msra.mxu0 %v216
    %3724 = vmatprep.subr.mxu0 0.0
    %3725 = vmatpush1.msra.mxu0 %v219
    %3726 = vmatprep.subr.mxu0 0.0
    %3727 = vmatpush1.msra.mxu0 0.0
    %3728 = vmatprep.subr.mxu0 0.0
    %3729 = vmatpush1.msra.mxu0 0.0
    %3730 = vmatprep.subr.mxu0 0.0
    %3731 = vmatpush1.msra.mxu0 0.0
    %3732 = vmatprep.subr.mxu0 0.0
    %3733 = vmatpush1.msra.mxu0 0.0
    %3734 = vmatprep.subr.mxu0 0.0
    %3735 = vmatpush1.msra.mxu0 0.0
    %3736 = vmatprep.subr.mxu0 0.0
    %3737 = vmatpush1.msra.mxu0 0.0
    %3738 = vmatprep.subr.mxu0 0.0
    %3739 = vmatpush1.msra.mxu0 0.0
    %3740 = vmatprep.subr.mxu0 0.0
    %3741 = vmatpush1.msra.mxu0 0.0
    %3742 = vmatprep.subr.mxu0 0.0
    %3743 = vmatpush1.msra.mxu0 0.0
    %3744 = vmatprep.subr.mxu0 0.0
    %3745 = vmatpush1.msra.mxu0 0.0
    %3746 = vmatprep.subr.mxu0 0.0
    %3747 = vmatpush1.msra.mxu0 0.0
    %3748 = vmatprep.subr.mxu0 0.0
    %3749 = vmatpush1.msra.mxu0 0.0
    %3750 = vmatprep.subr.mxu0 0.0
    %3751 = vmatpush1.msra.mxu0 0.0
    %3752 = vmatprep.subr.mxu0 0.0
    %3753 = vmatpush1.msra.mxu0 0.0
    %3754 = vmatprep.subr.mxu0 0.0
    %3755 = vmatpush1.msra.mxu0 0.0
    %3756 = vmatprep.subr.mxu0 0.0
    %3757 = vmatpush1.msra.mxu0 0.0
    %3758 = vmatprep.mubr.f32.mxu0 0.0
    %3759 = vmatmul.mubr.f32.gmra.mrb[0].mxu0 %v2839
    %v3760 = vpop.f32.mrb[0].mxu0
    %v3761 = vadd.f32 %v1417, %v3760
    %v3762 = vpop.f32.mrb[0].mxu0
    %3763 = vdwg.mxu0
    %3764 = vmatprep.subr.mxu0 %v319
    %3765 = vmatpush1.msra.mxu0 %v318
    %3766 = vmatprep.subr.mxu0 %v322
    %3767 = vmatpush1.msra.mxu0 %v321
    %3768 = vmatprep.subr.mxu0 %v325
    %3769 = vmatpush1.msra.mxu0 %v324
    %3770 = vmatprep.subr.mxu0 %v328
    %3771 = vmatpush1.msra.mxu0 %v327
    %3772 = vmatprep.subr.mxu0 %v331
    %3773 = vmatpush1.msra.mxu0 %v330
    %3774 = vmatprep.subr.mxu0 %v334
    %3775 = vmatpush1.msra.mxu0 %v333
    %3776 = vmatprep.subr.mxu0 %v337
    %3777 = vmatpush1.msra.mxu0 %v336
    %3778 = vmatprep.subr.mxu0 %v340
    %3779 = vmatpush1.msra.mxu0 %v339
    %3780 = vmatprep.subr.mxu0 %v343
    %3781 = vmatpush1.msra.mxu0 %v342
    %3782 = vmatprep.subr.mxu0 %v346
    %3783 = vmatpush1.msra.mxu0 %v345
    %3784 = vmatprep.subr.mxu0 %v349
    %3785 = vmatpush1.msra.mxu0 %v348
    %3786 = vmatprep.subr.mxu0 %v352
    %3787 = vmatpush1.msra.mxu0 %v351
    %3788 = vmatprep.subr.mxu0 %v355
    %3789 = vmatpush1.msra.mxu0 %v354
    %3790 = vmatprep.subr.mxu0 %v358
    %3791 = vmatpush1.msra.mxu0 %v357
    %3792 = vmatprep.subr.mxu0 %v361
    %3793 = vmatpush1.msra.mxu0 %v360
    %3794 = vmatprep.subr.mxu0 %v364
    %3795 = vmatpush1.msra.mxu0 %v363
    %3796 = vmatprep.subr.mxu0 0.0
    %3797 = vmatpush1.msra.mxu0 0.0
    %3798 = vmatprep.subr.mxu0 0.0
    %3799 = vmatpush1.msra.mxu0 0.0
    %3800 = vmatprep.subr.mxu0 0.0
    %3801 = vmatpush1.msra.mxu0 0.0
    %3802 = vmatprep.subr.mxu0 0.0
    %3803 = vmatpush1.msra.mxu0 0.0
    %3804 = vmatprep.subr.mxu0 0.0
    %3805 = vmatpush1.msra.mxu0 0.0
    %3806 = vmatprep.subr.mxu0 0.0
    %3807 = vmatpush1.msra.mxu0 0.0
    %3808 = vmatprep.subr.mxu0 0.0
    %3809 = vmatpush1.msra.mxu0 0.0
    %3810 = vmatprep.subr.mxu0 0.0
    %3811 = vmatpush1.msra.mxu0 0.0
    %3812 = vmatprep.subr.mxu0 0.0
    %3813 = vmatpush1.msra.mxu0 0.0
    %3814 = vmatprep.subr.mxu0 0.0
    %3815 = vmatpush1.msra.mxu0 0.0
    %3816 = vmatprep.subr.mxu0 0.0
    %3817 = vmatpush1.msra.mxu0 0.0
    %3818 = vmatprep.subr.mxu0 0.0
    %3819 = vmatpush1.msra.mxu0 0.0
    %3820 = vmatprep.subr.mxu0 0.0
    %3821 = vmatpush1.msra.mxu0 0.0
    %3822 = vmatprep.subr.mxu0 0.0
    %3823 = vmatpush1.msra.mxu0 0.0
    %3824 = vmatprep.subr.mxu0 0.0
    %3825 = vmatpush1.msra.mxu0 0.0
    %3826 = vmatprep.subr.mxu0 0.0
    %3827 = vmatpush1.msra.mxu0 0.0
    %3828 = vmatprep.mubr.f32.mxu0 0.0
    %3829 = vmatmul.mubr.f32.gmra.mrb[0].mxu0 %v3143
    %v3830 = vpop.f32.mrb[0].mxu0
    %v3831 = vadd.f32 0.0, %v3830
    %v3832 = vpop.f32.mrb[0].mxu0
    %v3833 = vadd.f32 0.0, %v3832
    %3834 = vdwg.mxu0
    %3835 = vmatprep.subr.mxu0 0.0
    %3836 = vmatpush1.msra.mxu0 %v320
    %3837 = vmatprep.subr.mxu0 0.0
    %3838 = vmatpush1.msra.mxu0 %v323
    %3839 = vmatprep.subr.mxu0 0.0
    %3840 = vmatpush1.msra.mxu0 %v326
    %3841 = vmatprep.subr.mxu0 0.0
    %3842 = vmatpush1.msra.mxu0 %v329
    %3843 = vmatprep.subr.mxu0 0.0
    %3844 = vmatpush1.msra.mxu0 %v332
    %3845 = vmatprep.subr.mxu0 0.0
    %3846 = vmatpush1.msra.mxu0 %v335
    %3847 = vmatprep.subr.mxu0 0.0
    %3848 = vmatpush1.msra.mxu0 %v338
    %3849 = vmatprep.subr.mxu0 0.0
    %3850 = vmatpush1.msra.mxu0 %v341
    %3851 = vmatprep.subr.mxu0 0.0
    %3852 = vmatpush1.msra.mxu0 %v344
    %3853 = vmatprep.subr.mxu0 0.0
    %3854 = vmatpush1.msra.mxu0 %v347
    %3855 = vmatprep.subr.mxu0 0.0
    %3856 = vmatpush1.msra.mxu0 %v350
    %3857 = vmatprep.subr.mxu0 0.0
    %3858 = vmatpush1.msra.mxu0 %v353
    %3859 = vmatprep.subr.mxu0 0.0
    %3860 = vmatpush1.msra.mxu0 %v356
    %3861 = vmatprep.subr.mxu0 0.0
    %3862 = vmatpush1.msra.mxu0 %v359
    %3863 = vmatprep.subr.mxu0 0.0
    %3864 = vmatpush1.msra.mxu0 %v362
    %3865 = vmatprep.subr.mxu0 0.0
    %3866 = vmatpush1.msra.mxu0 %v365
    %3867 = vmatprep.subr.mxu0 0.0
    %3868 = vmatpush1.msra.mxu0 0.0
    %3869 = vmatprep.subr.mxu0 0.0
    %3870 = vmatpush1.msra.mxu0 0.0
    %3871 = vmatprep.subr.mxu0 0.0
    %3872 = vmatpush1.msra.mxu0 0.0
    %3873 = vmatprep.subr.mxu0 0.0
    %3874 = vmatpush1.msra.mxu0 0.0
    %3875 = vmatprep.subr.mxu0 0.0
    %3876 = vmatpush1.msra.mxu0 0.0
    %3877 = vmatprep.subr.mxu0 0.0
    %3878 = vmatpush1.msra.mxu0 0.0
    %3879 = vmatprep.subr.mxu0 0.0
    %3880 = vmatpush1.msra.mxu0 0.0
    %3881 = vmatprep.subr.mxu0 0.0
    %3882 = vmatpush1.msra.mxu0 0.0
    %3883 = vmatprep.subr.mxu0 0.0
    %3884 = vmatpush1.msra.mxu0 0.0
    %3885 = vmatprep.subr.mxu0 0.0
    %3886 = vmatpush1.msra.mxu0 0.0
    %3887 = vmatprep.subr.mxu0 0.0
    %3888 = vmatpush1.msra.mxu0 0.0
    %3889 = vmatprep.subr.mxu0 0.0
    %3890 = vmatpush1.msra.mxu0 0.0
    %3891 = vmatprep.subr.mxu0 0.0
    %3892 = vmatpush1.msra.mxu0 0.0
    %3893 = vmatprep.subr.mxu0 0.0
    %3894 = vmatpush1.msra.mxu0 0.0
    %3895 = vmatprep.subr.mxu0 0.0
    %3896 = vmatpush1.msra.mxu0 0.0
    %3897 = vmatprep.subr.mxu0 0.0
    %3898 = vmatpush1.msra.mxu0 0.0
    %3899 = vmatprep.mubr.f32.mxu0 0.0
    %3900 = vmatmul.mubr.f32.gmra.mrb[0].mxu0 %v3143
    %v3901 = vpop.f32.mrb[0].mxu0
    %v3902 = vadd.f32 0.0, %v3901
    %v3903 = vpop.f32.mrb[0].mxu0
    %3904 = vdwg.mxu0
    %v3905 = vadd.f32 %v3690, %v3831
    %v3906 = vadd.f32 %v3692, %v3833
    %v3907 = vxor.u32 %v3905, 2147483648
    %v3908 = vxor.u32 %v3906, 2147483648
    %v3909 = vmul.f32 %v3907, 1.442695
    %v3910 = vpow.pop %v3909
    %v3911 = vmul.f32 %v3908, 1.442695
    %v3912 = vpow.pop %v3911
    %v3913 = vadd.f32 %v3910, 1.0
    %v3914 = vadd.f32 %v3912, 1.0
    %v3915 = vrcp.pop %v3913
    %v3916 = vmul.f32 1.0, %v3915
    %v3917 = vrcp.pop %v3914
    %v3918 = vmul.f32 1.0, %v3917
    %v3919 = vadd.f32 %v3902, %v1578
    %v3920 = vmul.f32 %v3916, %v3919
    %v3921 = vadd.f32 %v3761, %v3920
    %v3922 = vtanh.pop %v3921
    %v3923 = vsub.f32 1.0, %v3918
    %v3924 = vmul.f32 %v3923, %v3922
    %v3925 = vmul.f32 %v3918, %v3143
    %v3926 = vadd.f32 %v3924, %v3925
    %v3928 = vrot.slane %v3318, 2
    %3930 = vmatprep.subr.mxu0 %v221
    %3931 = vmatpush1.msra.mxu0 %v220
    %3932 = vmatprep.subr.mxu0 %v224
    %3933 = vmatpush1.msra.mxu0 %v223
    %3934 = vmatprep.subr.mxu0 %v227
    %3935 = vmatpush1.msra.mxu0 %v226
    %3936 = vmatprep.subr.mxu0 %v230
    %3937 = vmatpush1.msra.mxu0 %v229
    %3938 = vmatprep.subr.mxu0 %v233
    %3939 = vmatpush1.msra.mxu0 %v232
    %3940 = vmatprep.subr.mxu0 %v236
    %3941 = vmatpush1.msra.mxu0 %v235
    %3942 = vmatprep.subr.mxu0 %v239
    %3943 = vmatpush1.msra.mxu0 %v238
    %3944 = vmatprep.subr.mxu0 %v242
    %3945 = vmatpush1.msra.mxu0 %v241
    %3946 = vmatprep.subr.mxu0 %v245
    %3947 = vmatpush1.msra.mxu0 %v244
    %3948 = vmatprep.subr.mxu0 %v248
    %3949 = vmatpush1.msra.mxu0 %v247
    %3950 = vmatprep.subr.mxu0 %v251
    %3951 = vmatpush1.msra.mxu0 %v250
    %3952 = vmatprep.subr.mxu0 %v254
    %3953 = vmatpush1.msra.mxu0 %v253
    %3954 = vmatprep.subr.mxu0 %v257
    %3955 = vmatpush1.msra.mxu0 %v256
    %3956 = vmatprep.subr.mxu0 %v260
    %3957 = vmatpush1.msra.mxu0 %v259
    %3958 = vmatprep.subr.mxu0 %v263
    %3959 = vmatpush1.msra.mxu0 %v262
    %3960 = vmatprep.subr.mxu0 %v266
    %3961 = vmatpush1.msra.mxu0 %v265
    %3962 = vmatprep.subr.mxu0 0.0
    %3963 = vmatpush1.msra.mxu0 0.0
    %3964 = vmatprep.subr.mxu0 0.0
    %3965 = vmatpush1.msra.mxu0 0.0
    %3966 = vmatprep.subr.mxu0 0.0
    %3967 = vmatpush1.msra.mxu0 0.0
    %3968 = vmatprep.subr.mxu0 0.0
    %3969 = vmatpush1.msra.mxu0 0.0
    %3970 = vmatprep.subr.mxu0 0.0
    %3971 = vmatpush1.msra.mxu0 0.0
    %3972 = vmatprep.subr.mxu0 0.0
    %3973 = vmatpush1.msra.mxu0 0.0
    %3974 = vmatprep.subr.mxu0 0.0
    %3975 = vmatpush1.msra.mxu0 0.0
    %3976 = vmatprep.subr.mxu0 0.0
    %3977 = vmatpush1.msra.mxu0 0.0
    %3978 = vmatprep.subr.mxu0 0.0
    %3979 = vmatpush1.msra.mxu0 0.0
    %3980 = vmatprep.subr.mxu0 0.0
    %3981 = vmatpush1.msra.mxu0 0.0
    %3982 = vmatprep.subr.mxu0 0.0
    %3983 = vmatpush1.msra.mxu0 0.0
    %3984 = vmatprep.subr.mxu0 0.0
    %3985 = vmatpush1.msra.mxu0 0.0
    %3986 = vmatprep.subr.mxu0 0.0
    %3987 = vmatpush1.msra.mxu0 0.0
    %3988 = vmatprep.subr.mxu0 0.0
    %3989 = vmatpush1.msra.mxu0 0.0
    %3990 = vmatprep.subr.mxu0 0.0
    %3991 = vmatpush1.msra.mxu0 0.0
    %3992 = vmatprep.subr.mxu0 0.0
    %3993 = vmatpush1.msra.mxu0 0.0
    %3994 = vmatprep.mubr.f32.mxu0 0.0
    %3995 = vmatmul.mubr.f32.gmra.mrb[0].mxu0 %v3928
    %v3996 = vpop.f32.mrb[0].mxu0
    %v3997 = vadd.f32 0.0, %v3996
    %v3998 = vpop.f32.mrb[0].mxu0
    %v3999 = vadd.f32 0.0, %v3998
    %4000 = vdwg.mxu0
    %4001 = vmatprep.subr.mxu0 0.0
    %4002 = vmatpush1.msra.mxu0 %v222
    %4003 = vmatprep.subr.mxu0 0.0
    %4004 = vmatpush1.msra.mxu0 %v225
    %4005 = vmatprep.subr.mxu0 0.0
    %4006 = vmatpush1.msra.mxu0 %v228
    %4007 = vmatprep.subr.mxu0 0.0
    %4008 = vmatpush1.msra.mxu0 %v231
    %4009 = vmatprep.subr.mxu0 0.0
    %4010 = vmatpush1.msra.mxu0 %v234
    %4011 = vmatprep.subr.mxu0 0.0
    %4012 = vmatpush1.msra.mxu0 %v237
    %4013 = vmatprep.subr.mxu0 0.0
    %4014 = vmatpush1.msra.mxu0 %v240
    %4015 = vmatprep.subr.mxu0 0.0
    %4016 = vmatpush1.msra.mxu0 %v243
    %4017 = vmatprep.subr.mxu0 0.0
    %4018 = vmatpush1.msra.mxu0 %v246
    %4019 = vmatprep.subr.mxu0 0.0
    %4020 = vmatpush1.msra.mxu0 %v249
    %4021 = vmatprep.subr.mxu0 0.0
    %4022 = vmatpush1.msra.mxu0 %v252
    %4023 = vmatprep.subr.mxu0 0.0
    %4024 = vmatpush1.msra.mxu0 %v255
    %4025 = vmatprep.subr.mxu0 0.0
    %4026 = vmatpush1.msra.mxu0 %v258
    %4027 = vmatprep.subr.mxu0 0.0
    %4028 = vmatpush1.msra.mxu0 %v261
    %4029 = vmatprep.subr.mxu0 0.0
    %4030 = vmatpush1.msra.mxu0 %v264
    %4031 = vmatprep.subr.mxu0 0.0
    %4032 = vmatpush1.msra.mxu0 %v267
    %4033 = vmatprep.subr.mxu0 0.0
    %4034 = vmatpush1.msra.mxu0 0.0
    %4035 = vmatprep.subr.mxu0 0.0
    %4036 = vmatpush1.msra.mxu0 0.0
    %4037 = vmatprep.subr.mxu0 0.0
    %4038 = vmatpush1.msra.mxu0 0.0
    %4039 = vmatprep.subr.mxu0 0.0
    %4040 = vmatpush1.msra.mxu0 0.0
    %4041 = vmatprep.subr.mxu0 0.0
    %4042 = vmatpush1.msra.mxu0 0.0
    %4043 = vmatprep.subr.mxu0 0.0
    %4044 = vmatpush1.msra.mxu0 0.0
    %4045 = vmatprep.subr.mxu0 0.0
    %4046 = vmatpush1.msra.mxu0 0.0
    %4047 = vmatprep.subr.mxu0 0.0
    %4048 = vmatpush1.msra.mxu0 0.0
    %4049 = vmatprep.subr.mxu0 0.0
    %4050 = vmatpush1.msra.mxu0 0.0
    %4051 = vmatprep.subr.mxu0 0.0
    %4052 = vmatpush1.msra.mxu0 0.0
    %4053 = vmatprep.subr.mxu0 0.0
    %4054 = vmatpush1.msra.mxu0 0.0
    %4055 = vmatprep.subr.mxu0 0.0
    %4056 = vmatpush1.msra.mxu0 0.0
    %4057 = vmatprep.subr.mxu0 0.0
    %4058 = vmatpush1.msra.mxu0 0.0
    %4059 = vmatprep.subr.mxu0 0.0
    %4060 = vmatpush1.msra.mxu0 0.0
    %4061 = vmatprep.subr.mxu0 0.0
    %4062 = vmatpush1.msra.mxu0 0.0
    %4063 = vmatprep.subr.mxu0 0.0
    %4064 = vmatpush1.msra.mxu0 0.0
    %4065 = vmatprep.mubr.f32.mxu0 0.0
    %4066 = vmatmul.mubr.f32.gmra.mrb[0].mxu0 %v3928
    %v4067 = vpop.f32.mrb[0].mxu0
    %v4068 = vadd.f32 0.0, %v4067
    %v4069 = vpop.f32.mrb[0].mxu0
    %4070 = vdwg.mxu0
    %v4073 = vrot.slane %v3997, 4
    %v4074 = vrot.slane %v3999, 4
    %v4077 = vadd.f32 %v467, %v4073
    %v4078 = vadd.f32 %v469, %v4074
    %v4079 = vxor.u32 %v4077, 2147483648
    %v4080 = vxor.u32 %v4078, 2147483648
    %v4081 = vmul.f32 %v4079, 1.442695
    %v4082 = vpow.pop %v4081
    %v4083 = vmul.f32 %v4080, 1.442695
    %v4084 = vpow.pop %v4083
    %v4085 = vadd.f32 %v4082, 1.0
    %v4086 = vadd.f32 %v4084, 1.0
    %v4087 = vrcp.pop %v4085
    %v4088 = vmul.f32 1.0, %v4087
    %v4089 = vrcp.pop %v4086
    %v4090 = vmul.f32 1.0, %v4089
    %v4091 = vadd.f32 %v4068, %v562
    %v4093 = vrot.slane %v4091, 4
    %v4095 = vmul.f32 %v4088, %v4093
    %v4096 = vadd.f32 %v543, %v4095
    %v4097 = vtanh.pop %v4096
    %v4098 = vsub.f32 1.0, %v4090
    %v4099 = vmul.f32 %v4098, %v4097
    %v4100 = vrot.slane %v3318, 6
    %v4102 = vmul.f32 %v4090, %v4100
    %v4103 = vadd.f32 %v4099, %v4102
    %4104 = vmatprep.subr.mxu0 %v124
    %4105 = vmatpush1.msra.mxu0 %v123
    %4106 = vmatprep.subr.mxu0 %v127
    %4107 = vmatpush1.msra.mxu0 %v126
    %4108 = vmatprep.subr.mxu0 %v130
    %4109 = vmatpush1.msra.mxu0 %v129
    %4110 = vmatprep.subr.mxu0 %v133
    %4111 = vmatpush1.msra.mxu0 %v132
    %4112 = vmatprep.subr.mxu0 %v136
    %4113 = vmatpush1.msra.mxu0 %v135
    %4114 = vmatprep.subr.mxu0 %v139
    %4115 = vmatpush1.msra.mxu0 %v138
    %4116 = vmatprep.subr.mxu0 %v142
    %4117 = vmatpush1.msra.mxu0 %v141
    %4118 = vmatprep.subr.mxu0 %v145
    %4119 = vmatpush1.msra.mxu0 %v144
    %4120 = vmatprep.subr.mxu0 %v148
    %4121 = vmatpush1.msra.mxu0 %v147
    %4122 = vmatprep.subr.mxu0 %v151
    %4123 = vmatpush1.msra.mxu0 %v150
    %4124 = vmatprep.subr.mxu0 %v154
    %4125 = vmatpush1.msra.mxu0 %v153
    %4126 = vmatprep.subr.mxu0 %v157
    %4127 = vmatpush1.msra.mxu0 %v156
    %4128 = vmatprep.subr.mxu0 %v160
    %4129 = vmatpush1.msra.mxu0 %v159
    %4130 = vmatprep.subr.mxu0 %v163
    %4131 = vmatpush1.msra.mxu0 %v162
    %4132 = vmatprep.subr.mxu0 %v166
    %4133 = vmatpush1.msra.mxu0 %v165
    %4134 = vmatprep.subr.mxu0 %v169
    %4135 = vmatpush1.msra.mxu0 %v168
    %4136 = vmatprep.subr.mxu0 0.0
    %4137 = vmatpush1.msra.mxu0 0.0
    %4138 = vmatprep.subr.mxu0 0.0
    %4139 = vmatpush1.msra.mxu0 0.0
    %4140 = vmatprep.subr.mxu0 0.0
    %4141 = vmatpush1.msra.mxu0 0.0
    %4142 = vmatprep.subr.mxu0 0.0
    %4143 = vmatpush1.msra.mxu0 0.0
    %4144 = vmatprep.subr.mxu0 0.0
    %4145 = vmatpush1.msra.mxu0 0.0
    %4146 = vmatprep.subr.mxu0 0.0
    %4147 = vmatpush1.msra.mxu0 0.0
    %4148 = vmatprep.subr.mxu0 0.0
    %4149 = vmatpush1.msra.mxu0 0.0
    %4150 = vmatprep.subr.mxu0 0.0
    %4151 = vmatpush1.msra.mxu0 0.0
    %4152 = vmatprep.subr.mxu0 0.0
    %4153 = vmatpush1.msra.mxu0 0.0
    %4154 = vmatprep.subr.mxu0 0.0
    %4155 = vmatpush1.msra.mxu0 0.0
    %4156 = vmatprep.subr.mxu0 0.0
    %4157 = vmatpush1.msra.mxu0 0.0
    %4158 = vmatprep.subr.mxu0 0.0
    %4159 = vmatpush1.msra.mxu0 0.0
    %4160 = vmatprep.subr.mxu0 0.0
    %4161 = vmatpush1.msra.mxu0 0.0
    %4162 = vmatprep.subr.mxu0 0.0
    %4163 = vmatpush1.msra.mxu0 0.0
    %4164 = vmatprep.subr.mxu0 0.0
    %4165 = vmatpush1.msra.mxu0 0.0
    %4166 = vmatprep.subr.mxu0 0.0
    %4167 = vmatpush1.msra.mxu0 0.0
    %4168 = vmatprep.mubr.f32.mxu0 0.0
    %4169 = vmatmul.mubr.f32.gmra.mrb[0].mxu0 %v3928
    %v4170 = vpop.f32.mrb[0].mxu0
    %v4171 = vadd.f32 %v748, %v4170
    %v4172 = vpop.f32.mrb[0].mxu0
    %v4173 = vadd.f32 %v752, %v4172
    %4174 = vdwg.mxu0
    %4175 = vmatprep.subr.mxu0 0.0
    %4176 = vmatpush1.msra.mxu0 %v125
    %4177 = vmatprep.subr.mxu0 0.0
    %4178 = vmatpush1.msra.mxu0 %v128
    %4179 = vmatprep.subr.mxu0 0.0
    %4180 = vmatpush1.msra.mxu0 %v131
    %4181 = vmatprep.subr.mxu0 0.0
    %4182 = vmatpush1.msra.mxu0 %v134
    %4183 = vmatprep.subr.mxu0 0.0
    %4184 = vmatpush1.msra.mxu0 %v137
    %4185 = vmatprep.subr.mxu0 0.0
    %4186 = vmatpush1.msra.mxu0 %v140
    %4187 = vmatprep.subr.mxu0 0.0
    %4188 = vmatpush1.msra.mxu0 %v143
    %4189 = vmatprep.subr.mxu0 0.0
    %4190 = vmatpush1.msra.mxu0 %v146
    %4191 = vmatprep.subr.mxu0 0.0
    %4192 = vmatpush1.msra.mxu0 %v149
    %4193 = vmatprep.subr.mxu0 0.0
    %4194 = vmatpush1.msra.mxu0 %v152
    %4195 = vmatprep.subr.mxu0 0.0
    %4196 = vmatpush1.msra.mxu0 %v155
    %4197 = vmatprep.subr.mxu0 0.0
    %4198 = vmatpush1.msra.mxu0 %v158
    %4199 = vmatprep.subr.mxu0 0.0
    %4200 = vmatpush1.msra.mxu0 %v161
    %4201 = vmatprep.subr.mxu0 0.0
    %4202 = vmatpush1.msra.mxu0 %v164
    %4203 = vmatprep.subr.mxu0 0.0
    %4204 = vmatpush1.msra.mxu0 %v167
    %4205 = vmatprep.subr.mxu0 0.0
    %4206 = vmatpush1.msra.mxu0 %v170
    %4207 = vmatprep.subr.mxu0 0.0
    %4208 = vmatpush1.msra.mxu0 0.0
    %4209 = vmatprep.subr.mxu0 0.0
    %4210 = vmatpush1.msra.mxu0 0.0
    %4211 = vmatprep.subr.mxu0 0.0
    %4212 = vmatpush1.msra.mxu0 0.0
    %4213 = vmatprep.subr.mxu0 0.0
    %4214 = vmatpush1.msra.mxu0 0.0
    %4215 = vmatprep.subr.mxu0 0.0
    %4216 = vmatpush1.msra.mxu0 0.0
    %4217 = vmatprep.subr.mxu0 0.0
    %4218 = vmatpush1.msra.mxu0 0.0
    %4219 = vmatprep.subr.mxu0 0.0
    %4220 = vmatpush1.msra.mxu0 0.0
    %4221 = vmatprep.subr.mxu0 0.0
    %4222 = vmatpush1.msra.mxu0 0.0
    %4223 = vmatprep.subr.mxu0 0.0
    %4224 = vmatpush1.msra.mxu0 0.0
    %4225 = vmatprep.subr.mxu0 0.0
    %4226 = vmatpush1.msra.mxu0 0.0
    %4227 = vmatprep.subr.mxu0 0.0
    %4228 = vmatpush1.msra.mxu0 0.0
    %4229 = vmatprep.subr.mxu0 0.0
    %4230 = vmatpush1.msra.mxu0 0.0
    %4231 = vmatprep.subr.mxu0 0.0
    %4232 = vmatpush1.msra.mxu0 0.0
    %4233 = vmatprep.subr.mxu0 0.0
    %4234 = vmatpush1.msra.mxu0 0.0
    %4235 = vmatprep.subr.mxu0 0.0
    %4236 = vmatpush1.msra.mxu0 0.0
    %4237 = vmatprep.subr.mxu0 0.0
    %4238 = vmatpush1.msra.mxu0 0.0
    %4239 = vmatprep.mubr.f32.mxu0 0.0
    %4240 = vmatmul.mubr.f32.gmra.mrb[0].mxu0 %v3928
    %v4241 = vpop.f32.mrb[0].mxu0
    %v4242 = vadd.f32 %v756, %v4241
    %v4243 = vpop.f32.mrb[0].mxu0
    %4244 = vdwg.mxu0
    %4245 = vmatprep.subr.mxu0 %v270
    %4246 = vmatpush1.msra.mxu0 %v269
    %4247 = vmatprep.subr.mxu0 %v273
    %4248 = vmatpush1.msra.mxu0 %v272
    %4249 = vmatprep.subr.mxu0 %v276
    %4250 = vmatpush1.msra.mxu0 %v275
    %4251 = vmatprep.subr.mxu0 %v279
    %4252 = vmatpush1.msra.mxu0 %v278
    %4253 = vmatprep.subr.mxu0 %v282
    %4254 = vmatpush1.msra.mxu0 %v281
    %4255 = vmatprep.subr.mxu0 %v285
    %4256 = vmatpush1.msra.mxu0 %v284
    %4257 = vmatprep.subr.mxu0 %v288
    %4258 = vmatpush1.msra.mxu0 %v287
    %4259 = vmatprep.subr.mxu0 %v291
    %4260 = vmatpush1.msra.mxu0 %v290
    %4261 = vmatprep.subr.mxu0 %v294
    %4262 = vmatpush1.msra.mxu0 %v293
    %4263 = vmatprep.subr.mxu0 %v297
    %4264 = vmatpush1.msra.mxu0 %v296
    %4265 = vmatprep.subr.mxu0 %v300
    %4266 = vmatpush1.msra.mxu0 %v299
    %4267 = vmatprep.subr.mxu0 %v303
    %4268 = vmatpush1.msra.mxu0 %v302
    %4269 = vmatprep.subr.mxu0 %v306
    %4270 = vmatpush1.msra.mxu0 %v305
    %4271 = vmatprep.subr.mxu0 %v309
    %4272 = vmatpush1.msra.mxu0 %v308
    %4273 = vmatprep.subr.mxu0 %v312
    %4274 = vmatpush1.msra.mxu0 %v311
    %4275 = vmatprep.subr.mxu0 %v315
    %4276 = vmatpush1.msra.mxu0 %v314
    %4277 = vmatprep.subr.mxu0 0.0
    %4278 = vmatpush1.msra.mxu0 0.0
    %4279 = vmatprep.subr.mxu0 0.0
    %4280 = vmatpush1.msra.mxu0 0.0
    %4281 = vmatprep.subr.mxu0 0.0
    %4282 = vmatpush1.msra.mxu0 0.0
    %4283 = vmatprep.subr.mxu0 0.0
    %4284 = vmatpush1.msra.mxu0 0.0
    %4285 = vmatprep.subr.mxu0 0.0
    %4286 = vmatpush1.msra.mxu0 0.0
    %4287 = vmatprep.subr.mxu0 0.0
    %4288 = vmatpush1.msra.mxu0 0.0
    %4289 = vmatprep.subr.mxu0 0.0
    %4290 = vmatpush1.msra.mxu0 0.0
    %4291 = vmatprep.subr.mxu0 0.0
    %4292 = vmatpush1.msra.mxu0 0.0
    %4293 = vmatprep.subr.mxu0 0.0
    %4294 = vmatpush1.msra.mxu0 0.0
    %4295 = vmatprep.subr.mxu0 0.0
    %4296 = vmatpush1.msra.mxu0 0.0
    %4297 = vmatprep.subr.mxu0 0.0
    %4298 = vmatpush1.msra.mxu0 0.0
    %4299 = vmatprep.subr.mxu0 0.0
    %4300 = vmatpush1.msra.mxu0 0.0
    %4301 = vmatprep.subr.mxu0 0.0
    %4302 = vmatpush1.msra.mxu0 0.0
    %4303 = vmatprep.subr.mxu0 0.0
    %4304 = vmatpush1.msra.mxu0 0.0
    %4305 = vmatprep.subr.mxu0 0.0
    %4306 = vmatpush1.msra.mxu0 0.0
    %4307 = vmatprep.subr.mxu0 0.0
    %4308 = vmatpush1.msra.mxu0 0.0
    %4309 = vmatprep.mubr.f32.mxu0 0.0
    %4310 = vmatmul.mubr.f32.gmra.mrb[0].mxu0 %v3622
    %v4311 = vpop.f32.mrb[0].mxu0
    %v4312 = vadd.f32 0.0, %v4311
    %v4313 = vpop.f32.mrb[0].mxu0
    %v4314 = vadd.f32 0.0, %v4313
    %4315 = vdwg.mxu0
    %4316 = vmatprep.subr.mxu0 0.0
    %4317 = vmatpush1.msra.mxu0 %v271
    %4318 = vmatprep.subr.mxu0 0.0
    %4319 = vmatpush1.msra.mxu0 %v274
    %4320 = vmatprep.subr.mxu0 0.0
    %4321 = vmatpush1.msra.mxu0 %v277
    %4322 = vmatprep.subr.mxu0 0.0
    %4323 = vmatpush1.msra.mxu0 %v280
    %4324 = vmatprep.subr.mxu0 0.0
    %4325 = vmatpush1.msra.mxu0 %v283
    %4326 = vmatprep.subr.mxu0 0.0
    %4327 = vmatpush1.msra.mxu0 %v286
    %4328 = vmatprep.subr.mxu0 0.0
    %4329 = vmatpush1.msra.mxu0 %v289
    %4330 = vmatprep.subr.mxu0 0.0
    %4331 = vmatpush1.msra.mxu0 %v292
    %4332 = vmatprep.subr.mxu0 0.0
    %4333 = vmatpush1.msra.mxu0 %v295
    %4334 = vmatprep.subr.mxu0 0.0
    %4335 = vmatpush1.msra.mxu0 %v298
    %4336 = vmatprep.subr.mxu0 0.0
    %4337 = vmatpush1.msra.mxu0 %v301
    %4338 = vmatprep.subr.mxu0 0.0
    %4339 = vmatpush1.msra.mxu0 %v304
    %4340 = vmatprep.subr.mxu0 0.0
    %4341 = vmatpush1.msra.mxu0 %v307
    %4342 = vmatprep.subr.mxu0 0.0
    %4343 = vmatpush1.msra.mxu0 %v310
    %4344 = vmatprep.subr.mxu0 0.0
    %4345 = vmatpush1.msra.mxu0 %v313
    %4346 = vmatprep.subr.mxu0 0.0
    %4347 = vmatpush1.msra.mxu0 %v316
    %4348 = vmatprep.subr.mxu0 0.0
    %4349 = vmatpush1.msra.mxu0 0.0
    %4350 = vmatprep.subr.mxu0 0.0
    %4351 = vmatpush1.msra.mxu0 0.0
    %4352 = vmatprep.subr.mxu0 0.0
    %4353 = vmatpush1.msra.mxu0 0.0
    %4354 = vmatprep.subr.mxu0 0.0
    %4355 = vmatpush1.msra.mxu0 0.0
    %4356 = vmatprep.subr.mxu0 0.0
    %4357 = vmatpush1.msra.mxu0 0.0
    %4358 = vmatprep.subr.mxu0 0.0
    %4359 = vmatpush1.msra.mxu0 0.0
    %4360 = vmatprep.subr.mxu0 0.0
    %4361 = vmatpush1.msra.mxu0 0.0
    %4362 = vmatprep.subr.mxu0 0.0
    %4363 = vmatpush1.msra.mxu0 0.0
    %4364 = vmatprep.subr.mxu0 0.0
    %4365 = vmatpush1.msra.mxu0 0.0
    %4366 = vmatprep.subr.mxu0 0.0
    %4367 = vmatpush1.msra.mxu0 0.0
    %4368 = vmatprep.subr.mxu0 0.0
    %4369 = vmatpush1.msra.mxu0 0.0
    %4370 = vmatprep.subr.mxu0 0.0
    %4371 = vmatpush1.msra.mxu0 0.0
    %4372 = vmatprep.subr.mxu0 0.0
    %4373 = vmatpush1.msra.mxu0 0.0
    %4374 = vmatprep.subr.mxu0 0.0
    %4375 = vmatpush1.msra.mxu0 0.0
    %4376 = vmatprep.subr.mxu0 0.0
    %4377 = vmatpush1.msra.mxu0 0.0
    %4378 = vmatprep.subr.mxu0 0.0
    %4379 = vmatpush1.msra.mxu0 0.0
    %4380 = vmatprep.mubr.f32.mxu0 0.0
    %4381 = vmatmul.mubr.f32.gmra.mrb[0].mxu0 %v3622
    %v4382 = vpop.f32.mrb[0].mxu0
    %v4383 = vadd.f32 0.0, %v4382
    %v4384 = vpop.f32.mrb[0].mxu0
    %4385 = vdwg.mxu0
    %v4386 = vadd.f32 %v4171, %v4312
    %v4387 = vadd.f32 %v4173, %v4314
    %v4388 = vxor.u32 %v4386, 2147483648
    %v4389 = vxor.u32 %v4387, 2147483648
    %v4390 = vmul.f32 %v4388, 1.442695
    %v4391 = vpow.pop %v4390
    %v4392 = vmul.f32 %v4389, 1.442695
    %v4393 = vpow.pop %v4392
    %v4394 = vadd.f32 %v4391, 1.0
    %v4395 = vadd.f32 %v4393, 1.0
    %v4396 = vrcp.pop %v4394
    %v4397 = vmul.f32 1.0, %v4396
    %v4398 = vrcp.pop %v4395
    %v4399 = vmul.f32 1.0, %v4398
    %v4400 = vadd.f32 %v4383, %v917
    %v4401 = vmul.f32 %v4397, %v4400
    %v4402 = vadd.f32 %v4242, %v4401
    %v4403 = vtanh.pop %v4402
    %v4404 = vsub.f32 1.0, %v4399
    %v4405 = vmul.f32 %v4404, %v4403
    %v4406 = vmul.f32 %v4399, %v3622
    %v4407 = vadd.f32 %v4405, %v4406
    %4408 = vmatprep.subr.mxu0 %v173
    %4409 = vmatpush1.msra.mxu0 %v172
    %4410 = vmatprep.subr.mxu0 %v176
    %4411 = vmatpush1.msra.mxu0 %v175
    %4412 = vmatprep.subr.mxu0 %v179
    %4413 = vmatpush1.msra.mxu0 %v178
    %4414 = vmatprep.subr.mxu0 %v182
    %4415 = vmatpush1.msra.mxu0 %v181
    %4416 = vmatprep.subr.mxu0 %v185
    %4417 = vmatpush1.msra.mxu0 %v184
    %4418 = vmatprep.subr.mxu0 %v188
    %4419 = vmatpush1.msra.mxu0 %v187
    %4420 = vmatprep.subr.mxu0 %v191
    %4421 = vmatpush1.msra.mxu0 %v190
    %4422 = vmatprep.subr.mxu0 %v194
    %4423 = vmatpush1.msra.mxu0 %v193
    %4424 = vmatprep.subr.mxu0 %v197
    %4425 = vmatpush1.msra.mxu0 %v196
    %4426 = vmatprep.subr.mxu0 %v200
    %4427 = vmatpush1.msra.mxu0 %v199
    %4428 = vmatprep.subr.mxu0 %v203
    %4429 = vmatpush1.msra.mxu0 %v202
    %4430 = vmatprep.subr.mxu0 %v206
    %4431 = vmatpush1.msra.mxu0 %v205
    %4432 = vmatprep.subr.mxu0 %v209
    %4433 = vmatpush1.msra.mxu0 %v208
    %4434 = vmatprep.subr.mxu0 %v212
    %4435 = vmatpush1.msra.mxu0 %v211
    %4436 = vmatprep.subr.mxu0 %v215
    %4437 = vmatpush1.msra.mxu0 %v214
    %4438 = vmatprep.subr.mxu0 %v218
    %4439 = vmatpush1.msra.mxu0 %v217
    %4440 = vmatprep.subr.mxu0 0.0
    %4441 = vmatpush1.msra.mxu0 0.0
    %4442 = vmatprep.subr.mxu0 0.0
    %4443 = vmatpush1.msra.mxu0 0.0
    %4444 = vmatprep.subr.mxu0 0.0
    %4445 = vmatpush1.msra.mxu0 0.0
    %4446 = vmatprep.subr.mxu0 0.0
    %4447 = vmatpush1.msra.mxu0 0.0
    %4448 = vmatprep.subr.mxu0 0.0
    %4449 = vmatpush1.msra.mxu0 0.0
    %4450 = vmatprep.subr.mxu0 0.0
    %4451 = vmatpush1.msra.mxu0 0.0
    %4452 = vmatprep.subr.mxu0 0.0
    %4453 = vmatpush1.msra.mxu0 0.0
    %4454 = vmatprep.subr.mxu0 0.0
    %4455 = vmatpush1.msra.mxu0 0.0
    %4456 = vmatprep.subr.mxu0 0.0
    %4457 = vmatpush1.msra.mxu0 0.0
    %4458 = vmatprep.subr.mxu0 0.0
    %4459 = vmatpush1.msra.mxu0 0.0
    %4460 = vmatprep.subr.mxu0 0.0
    %4461 = vmatpush1.msra.mxu0 0.0
    %4462 = vmatprep.subr.mxu0 0.0
    %4463 = vmatpush1.msra.mxu0 0.0
    %4464 = vmatprep.subr.mxu0 0.0
    %4465 = vmatpush1.msra.mxu0 0.0
    %4466 = vmatprep.subr.mxu0 0.0
    %4467 = vmatpush1.msra.mxu0 0.0
    %4468 = vmatprep.subr.mxu0 0.0
    %4469 = vmatpush1.msra.mxu0 0.0
    %4470 = vmatprep.subr.mxu0 0.0
    %4471 = vmatpush1.msra.mxu0 0.0
    %4472 = vmatprep.mubr.f32.mxu0 0.0
    %4473 = vmatmul.mubr.f32.gmra.mrb[0].mxu0 %v3622
    %v4474 = vpop.f32.mrb[0].mxu0
    %v4475 = vadd.f32 %v1409, %v4474
    %v4476 = vpop.f32.mrb[0].mxu0
    %v4477 = vadd.f32 %v1413, %v4476
    %4478 = vdwg.mxu0
    %4479 = vmatprep.subr.mxu0 0.0
    %4480 = vmatpush1.msra.mxu0 %v174
    %4481 = vmatprep.subr.mxu0 0.0
    %4482 = vmatpush1.msra.mxu0 %v177
    %4483 = vmatprep.subr.mxu0 0.0
    %4484 = vmatpush1.msra.mxu0 %v180
    %4485 = vmatprep.subr.mxu0 0.0
    %4486 = vmatpush1.msra.mxu0 %v183
    %4487 = vmatprep.subr.mxu0 0.0
    %4488 = vmatpush1.msra.mxu0 %v186
    %4489 = vmatprep.subr.mxu0 0.0
    %4490 = vmatpush1.msra.mxu0 %v189
    %4491 = vmatprep.subr.mxu0 0.0
    %4492 = vmatpush1.msra.mxu0 %v192
    %4493 = vmatprep.subr.mxu0 0.0
    %4494 = vmatpush1.msra.mxu0 %v195
    %4495 = vmatprep.subr.mxu0 0.0
    %4496 = vmatpush1.msra.mxu0 %v198
    %4497 = vmatprep.subr.mxu0 0.0
    %4498 = vmatpush1.msra.mxu0 %v201
    %4499 = vmatprep.subr.mxu0 0.0
    %4500 = vmatpush1.msra.mxu0 %v204
    %4501 = vmatprep.subr.mxu0 0.0
    %4502 = vmatpush1.msra.mxu0 %v207
    %4503 = vmatprep.subr.mxu0 0.0
    %4504 = vmatpush1.msra.mxu0 %v210
    %4505 = vmatprep.subr.mxu0 0.0
    %4506 = vmatpush1.msra.mxu0 %v213
    %4507 = vmatprep.subr.mxu0 0.0
    %4508 = vmatpush1.msra.mxu0 %v216
    %4509 = vmatprep.subr.mxu0 0.0
    %4510 = vmatpush1.msra.mxu0 %v219
    %4511 = vmatprep.subr.mxu0 0.0
    %4512 = vmatpush1.msra.mxu0 0.0
    %4513 = vmatprep.subr.mxu0 0.0
    %4514 = vmatpush1.msra.mxu0 0.0
    %4515 = vmatprep.subr.mxu0 0.0
    %4516 = vmatpush1.msra.mxu0 0.0
    %4517 = vmatprep.subr.mxu0 0.0
    %4518 = vmatpush1.msra.mxu0 0.0
    %4519 = vmatprep.subr.mxu0 0.0
    %4520 = vmatpush1.msra.mxu0 0.0
    %4521 = vmatprep.subr.mxu0 0.0
    %4522 = vmatpush1.msra.mxu0 0.0
    %4523 = vmatprep.subr.mxu0 0.0
    %4524 = vmatpush1.msra.mxu0 0.0
    %4525 = vmatprep.subr.mxu0 0.0
    %4526 = vmatpush1.msra.mxu0 0.0
    %4527 = vmatprep.subr.mxu0 0.0
    %4528 = vmatpush1.msra.mxu0 0.0
    %4529 = vmatprep.subr.mxu0 0.0
    %4530 = vmatpush1.msra.mxu0 0.0
    %4531 = vmatprep.subr.mxu0 0.0
    %4532 = vmatpush1.msra.mxu0 0.0
    %4533 = vmatprep.subr.mxu0 0.0
    %4534 = vmatpush1.msra.mxu0 0.0
    %4535 = vmatprep.subr.mxu0 0.0
    %4536 = vmatpush1.msra.mxu0 0.0
    %4537 = vmatprep.subr.mxu0 0.0
    %4538 = vmatpush1.msra.mxu0 0.0
    %4539 = vmatprep.subr.mxu0 0.0
    %4540 = vmatpush1.msra.mxu0 0.0
    %4541 = vmatprep.subr.mxu0 0.0
    %4542 = vmatpush1.msra.mxu0 0.0
    %4543 = vmatprep.mubr.f32.mxu0 0.0
    %4544 = vmatmul.mubr.f32.gmra.mrb[0].mxu0 %v3622
    %v4545 = vpop.f32.mrb[0].mxu0
    %v4546 = vadd.f32 %v1417, %v4545
    %v4547 = vpop.f32.mrb[0].mxu0
    %4548 = vdwg.mxu0
    %4549 = vmatprep.subr.mxu0 %v319
    %4550 = vmatpush1.msra.mxu0 %v318
    %4551 = vmatprep.subr.mxu0 %v322
    %4552 = vmatpush1.msra.mxu0 %v321
    %4553 = vmatprep.subr.mxu0 %v325
    %4554 = vmatpush1.msra.mxu0 %v324
    %4555 = vmatprep.subr.mxu0 %v328
    %4556 = vmatpush1.msra.mxu0 %v327
    %4557 = vmatprep.subr.mxu0 %v331
    %4558 = vmatpush1.msra.mxu0 %v330
    %4559 = vmatprep.subr.mxu0 %v334
    %4560 = vmatpush1.msra.mxu0 %v333
    %4561 = vmatprep.subr.mxu0 %v337
    %4562 = vmatpush1.msra.mxu0 %v336
    %4563 = vmatprep.subr.mxu0 %v340
    %4564 = vmatpush1.msra.mxu0 %v339
    %4565 = vmatprep.subr.mxu0 %v343
    %4566 = vmatpush1.msra.mxu0 %v342
    %4567 = vmatprep.subr.mxu0 %v346
    %4568 = vmatpush1.msra.mxu0 %v345
    %4569 = vmatprep.subr.mxu0 %v349
    %4570 = vmatpush1.msra.mxu0 %v348
    %4571 = vmatprep.subr.mxu0 %v352
    %4572 = vmatpush1.msra.mxu0 %v351
    %4573 = vmatprep.subr.mxu0 %v355
    %4574 = vmatpush1.msra.mxu0 %v354
    %4575 = vmatprep.subr.mxu0 %v358
    %4576 = vmatpush1.msra.mxu0 %v357
    %4577 = vmatprep.subr.mxu0 %v361
    %4578 = vmatpush1.msra.mxu0 %v360
    %4579 = vmatprep.subr.mxu0 %v364
    %4580 = vmatpush1.msra.mxu0 %v363
    %4581 = vmatprep.subr.mxu0 0.0
    %4582 = vmatpush1.msra.mxu0 0.0
    %4583 = vmatprep.subr.mxu0 0.0
    %4584 = vmatpush1.msra.mxu0 0.0
    %4585 = vmatprep.subr.mxu0 0.0
    %4586 = vmatpush1.msra.mxu0 0.0
    %4587 = vmatprep.subr.mxu0 0.0
    %4588 = vmatpush1.msra.mxu0 0.0
    %4589 = vmatprep.subr.mxu0 0.0
    %4590 = vmatpush1.msra.mxu0 0.0
    %4591 = vmatprep.subr.mxu0 0.0
    %4592 = vmatpush1.msra.mxu0 0.0
    %4593 = vmatprep.subr.mxu0 0.0
    %4594 = vmatpush1.msra.mxu0 0.0
    %4595 = vmatprep.subr.mxu0 0.0
    %4596 = vmatpush1.msra.mxu0 0.0
    %4597 = vmatprep.subr.mxu0 0.0
    %4598 = vmatpush1.msra.mxu0 0.0
    %4599 = vmatprep.subr.mxu0 0.0
    %4600 = vmatpush1.msra.mxu0 0.0
    %4601 = vmatprep.subr.mxu0 0.0
    %4602 = vmatpush1.msra.mxu0 0.0
    %4603 = vmatprep.subr.mxu0 0.0
    %4604 = vmatpush1.msra.mxu0 0.0
    %4605 = vmatprep.subr.mxu0 0.0
    %4606 = vmatpush1.msra.mxu0 0.0
    %4607 = vmatprep.subr.mxu0 0.0
    %4608 = vmatpush1.msra.mxu0 0.0
    %4609 = vmatprep.subr.mxu0 0.0
    %4610 = vmatpush1.msra.mxu0 0.0
    %4611 = vmatprep.subr.mxu0 0.0
    %4612 = vmatpush1.msra.mxu0 0.0
    %4613 = vmatprep.mubr.f32.mxu0 0.0
    %4614 = vmatmul.mubr.f32.gmra.mrb[0].mxu0 %v3926
    %v4615 = vpop.f32.mrb[0].mxu0
    %v4616 = vadd.f32 0.0, %v4615
    %v4617 = vpop.f32.mrb[0].mxu0
    %v4618 = vadd.f32 0.0, %v4617
    %4619 = vdwg.mxu0
    %4620 = vmatprep.subr.mxu0 0.0
    %4621 = vmatpush1.msra.mxu0 %v320
    %4622 = vmatprep.subr.mxu0 0.0
    %4623 = vmatpush1.msra.mxu0 %v323
    %4624 = vmatprep.subr.mxu0 0.0
    %4625 = vmatpush1.msra.mxu0 %v326
    %4626 = vmatprep.subr.mxu0 0.0
    %4627 = vmatpush1.msra.mxu0 %v329
    %4628 = vmatprep.subr.mxu0 0.0
    %4629 = vmatpush1.msra.mxu0 %v332
    %4630 = vmatprep.subr.mxu0 0.0
    %4631 = vmatpush1.msra.mxu0 %v335
    %4632 = vmatprep.subr.mxu0 0.0
    %4633 = vmatpush1.msra.mxu0 %v338
    %4634 = vmatprep.subr.mxu0 0.0
    %4635 = vmatpush1.msra.mxu0 %v341
    %4636 = vmatprep.subr.mxu0 0.0
    %4637 = vmatpush1.msra.mxu0 %v344
    %4638 = vmatprep.subr.mxu0 0.0
    %4639 = vmatpush1.msra.mxu0 %v347
    %4640 = vmatprep.subr.mxu0 0.0
    %4641 = vmatpush1.msra.mxu0 %v350
    %4642 = vmatprep.subr.mxu0 0.0
    %4643 = vmatpush1.msra.mxu0 %v353
    %4644 = vmatprep.subr.mxu0 0.0
    %4645 = vmatpush1.msra.mxu0 %v356
    %4646 = vmatprep.subr.mxu0 0.0
    %4647 = vmatpush1.msra.mxu0 %v359
    %4648 = vmatprep.subr.mxu0 0.0
    %4649 = vmatpush1.msra.mxu0 %v362
    %4650 = vmatprep.subr.mxu0 0.0
    %4651 = vmatpush1.msra.mxu0 %v365
    %4652 = vmatprep.subr.mxu0 0.0
    %4653 = vmatpush1.msra.mxu0 0.0
    %4654 = vmatprep.subr.mxu0 0.0
    %4655 = vmatpush1.msra.mxu0 0.0
    %4656 = vmatprep.subr.mxu0 0.0
    %4657 = vmatpush1.msra.mxu0 0.0
    %4658 = vmatprep.subr.mxu0 0.0
    %4659 = vmatpush1.msra.mxu0 0.0
    %4660 = vmatprep.subr.mxu0 0.0
    %4661 = vmatpush1.msra.mxu0 0.0
    %4662 = vmatprep.subr.mxu0 0.0
    %4663 = vmatpush1.msra.mxu0 0.0
    %4664 = vmatprep.subr.mxu0 0.0
    %4665 = vmatpush1.msra.mxu0 0.0
    %4666 = vmatprep.subr.mxu0 0.0
    %4667 = vmatpush1.msra.mxu0 0.0
    %4668 = vmatprep.subr.mxu0 0.0
    %4669 = vmatpush1.msra.mxu0 0.0
    %4670 = vmatprep.subr.mxu0 0.0
    %4671 = vmatpush1.msra.mxu0 0.0
    %4672 = vmatprep.subr.mxu0 0.0
    %4673 = vmatpush1.msra.mxu0 0.0
    %4674 = vmatprep.subr.mxu0 0.0
    %4675 = vmatpush1.msra.mxu0 0.0
    %4676 = vmatprep.subr.mxu0 0.0
    %4677 = vmatpush1.msra.mxu0 0.0
    %4678 = vmatprep.subr.mxu0 0.0
    %4679 = vmatpush1.msra.mxu0 0.0
    %4680 = vmatprep.subr.mxu0 0.0
    %4681 = vmatpush1.msra.mxu0 0.0
    %4682 = vmatprep.subr.mxu0 0.0
    %4683 = vmatpush1.msra.mxu0 0.0
    %4684 = vmatprep.mubr.f32.mxu0 0.0
    %4685 = vmatmul.mubr.f32.gmra.mrb[0].mxu0 %v3926
    %v4686 = vpop.f32.mrb[0].mxu0
    %v4687 = vadd.f32 0.0, %v4686
    %v4688 = vpop.f32.mrb[0].mxu0
    %4689 = vdwg.mxu0
    %v4690 = vadd.f32 %v4475, %v4616
    %v4691 = vadd.f32 %v4477, %v4618
    %v4692 = vxor.u32 %v4690, 2147483648
    %v4693 = vxor.u32 %v4691, 2147483648
    %v4694 = vmul.f32 %v4692, 1.442695
    %v4695 = vpow.pop %v4694
    %v4696 = vmul.f32 %v4693, 1.442695
    %v4697 = vpow.pop %v4696
    %v4698 = vadd.f32 %v4695, 1.0
    %v4699 = vadd.f32 %v4697, 1.0
    %v4700 = vrcp.pop %v4698
    %v4701 = vmul.f32 1.0, %v4700
    %v4702 = vrcp.pop %v4699
    %v4703 = vmul.f32 1.0, %v4702
    %v4704 = vadd.f32 %v4687, %v1578
    %v4705 = vmul.f32 %v4701, %v4704
    %v4706 = vadd.f32 %v4546, %v4705
    %v4707 = vtanh.pop %v4706
    %v4708 = vsub.f32 1.0, %v4703
    %v4709 = vmul.f32 %v4708, %v4707
    %v4710 = vmul.f32 %v4703, %v3926
    %v4711 = vadd.f32 %v4709, %v4710
    %v4713 = vrot.slane %v4103, 4
    %4715 = vmatprep.subr.mxu0 %v221
    %4716 = vmatpush1.msra.mxu0 %v220
    %4717 = vmatprep.subr.mxu0 %v224
    %4718 = vmatpush1.msra.mxu0 %v223
    %4719 = vmatprep.subr.mxu0 %v227
    %4720 = vmatpush1.msra.mxu0 %v226
    %4721 = vmatprep.subr.mxu0 %v230
    %4722 = vmatpush1.msra.mxu0 %v229
    %4723 = vmatprep.subr.mxu0 %v233
    %4724 = vmatpush1.msra.mxu0 %v232
    %4725 = vmatprep.subr.mxu0 %v236
    %4726 = vmatpush1.msra.mxu0 %v235
    %4727 = vmatprep.subr.mxu0 %v239
    %4728 = vmatpush1.msra.mxu0 %v238
    %4729 = vmatprep.subr.mxu0 %v242
    %4730 = vmatpush1.msra.mxu0 %v241
    %4731 = vmatprep.subr.mxu0 %v245
    %4732 = vmatpush1.msra.mxu0 %v244
    %4733 = vmatprep.subr.mxu0 %v248
    %4734 = vmatpush1.msra.mxu0 %v247
    %4735 = vmatprep.subr.mxu0 %v251
    %4736 = vmatpush1.msra.mxu0 %v250
    %4737 = vmatprep.subr.mxu0 %v254
    %4738 = vmatpush1.msra.mxu0 %v253
    %4739 = vmatprep.subr.mxu0 %v257
    %4740 = vmatpush1.msra.mxu0 %v256
    %4741 = vmatprep.subr.mxu0 %v260
    %4742 = vmatpush1.msra.mxu0 %v259
    %4743 = vmatprep.subr.mxu0 %v263
    %4744 = vmatpush1.msra.mxu0 %v262
    %4745 = vmatprep.subr.mxu0 %v266
    %4746 = vmatpush1.msra.mxu0 %v265
    %4747 = vmatprep.subr.mxu0 0.0
    %4748 = vmatpush1.msra.mxu0 0.0
    %4749 = vmatprep.subr.mxu0 0.0
    %4750 = vmatpush1.msra.mxu0 0.0
    %4751 = vmatprep.subr.mxu0 0.0
    %4752 = vmatpush1.msra.mxu0 0.0
    %4753 = vmatprep.subr.mxu0 0.0
    %4754 = vmatpush1.msra.mxu0 0.0
    %4755 = vmatprep.subr.mxu0 0.0
    %4756 = vmatpush1.msra.mxu0 0.0
    %4757 = vmatprep.subr.mxu0 0.0
    %4758 = vmatpush1.msra.mxu0 0.0
    %4759 = vmatprep.subr.mxu0 0.0
    %4760 = vmatpush1.msra.mxu0 0.0
    %4761 = vmatprep.subr.mxu0 0.0
    %4762 = vmatpush1.msra.mxu0 0.0
    %4763 = vmatprep.subr.mxu0 0.0
    %4764 = vmatpush1.msra.mxu0 0.0
    %4765 = vmatprep.subr.mxu0 0.0
    %4766 = vmatpush1.msra.mxu0 0.0
    %4767 = vmatprep.subr.mxu0 0.0
    %4768 = vmatpush1.msra.mxu0 0.0
    %4769 = vmatprep.subr.mxu0 0.0
    %4770 = vmatpush1.msra.mxu0 0.0
    %4771 = vmatprep.subr.mxu0 0.0
    %4772 = vmatpush1.msra.mxu0 0.0
    %4773 = vmatprep.subr.mxu0 0.0
    %4774 = vmatpush1.msra.mxu0 0.0
    %4775 = vmatprep.subr.mxu0 0.0
    %4776 = vmatpush1.msra.mxu0 0.0
    %4777 = vmatprep.subr.mxu0 0.0
    %4778 = vmatpush1.msra.mxu0 0.0
    %4779 = vmatprep.mubr.f32.mxu0 0.0
    %4780 = vmatmul.mubr.f32.gmra.mrb[0].mxu0 %v4713
    %v4781 = vpop.f32.mrb[0].mxu0
    %v4782 = vadd.f32 0.0, %v4781
    %v4783 = vpop.f32.mrb[0].mxu0
    %v4784 = vadd.f32 0.0, %v4783
    %4785 = vdwg.mxu0
    %4786 = vmatprep.subr.mxu0 0.0
    %4787 = vmatpush1.msra.mxu0 %v222
    %4788 = vmatprep.subr.mxu0 0.0
    %4789 = vmatpush1.msra.mxu0 %v225
    %4790 = vmatprep.subr.mxu0 0.0
    %4791 = vmatpush1.msra.mxu0 %v228
    %4792 = vmatprep.subr.mxu0 0.0
    %4793 = vmatpush1.msra.mxu0 %v231
    %4794 = vmatprep.subr.mxu0 0.0
    %4795 = vmatpush1.msra.mxu0 %v234
    %4796 = vmatprep.subr.mxu0 0.0
    %4797 = vmatpush1.msra.mxu0 %v237
    %4798 = vmatprep.subr.mxu0 0.0
    %4799 = vmatpush1.msra.mxu0 %v240
    %4800 = vmatprep.subr.mxu0 0.0
    %4801 = vmatpush1.msra.mxu0 %v243
    %4802 = vmatprep.subr.mxu0 0.0
    %4803 = vmatpush1.msra.mxu0 %v246
    %4804 = vmatprep.subr.mxu0 0.0
    %4805 = vmatpush1.msra.mxu0 %v249
    %4806 = vmatprep.subr.mxu0 0.0
    %4807 = vmatpush1.msra.mxu0 %v252
    %4808 = vmatprep.subr.mxu0 0.0
    %4809 = vmatpush1.msra.mxu0 %v255
    %4810 = vmatprep.subr.mxu0 0.0
    %4811 = vmatpush1.msra.mxu0 %v258
    %4812 = vmatprep.subr.mxu0 0.0
    %4813 = vmatpush1.msra.mxu0 %v261
    %4814 = vmatprep.subr.mxu0 0.0
    %4815 = vmatpush1.msra.mxu0 %v264
    %4816 = vmatprep.subr.mxu0 0.0
    %4817 = vmatpush1.msra.mxu0 %v267
    %4818 = vmatprep.subr.mxu0 0.0
    %4819 = vmatpush1.msra.mxu0 0.0
    %4820 = vmatprep.subr.mxu0 0.0
    %4821 = vmatpush1.msra.mxu0 0.0
    %4822 = vmatprep.subr.mxu0 0.0
    %4823 = vmatpush1.msra.mxu0 0.0
    %4824 = vmatprep.subr.mxu0 0.0
    %4825 = vmatpush1.msra.mxu0 0.0
    %4826 = vmatprep.subr.mxu0 0.0
    %4827 = vmatpush1.msra.mxu0 0.0
    %4828 = vmatprep.subr.mxu0 0.0
    %4829 = vmatpush1.msra.mxu0 0.0
    %4830 = vmatprep.subr.mxu0 0.0
    %4831 = vmatpush1.msra.mxu0 0.0
    %4832 = vmatprep.subr.mxu0 0.0
    %4833 = vmatpush1.msra.mxu0 0.0
    %4834 = vmatprep.subr.mxu0 0.0
    %4835 = vmatpush1.msra.mxu0 0.0
    %4836 = vmatprep.subr.mxu0 0.0
    %4837 = vmatpush1.msra.mxu0 0.0
    %4838 = vmatprep.subr.mxu0 0.0
    %4839 = vmatpush1.msra.mxu0 0.0
    %4840 = vmatprep.subr.mxu0 0.0
    %4841 = vmatpush1.msra.mxu0 0.0
    %4842 = vmatprep.subr.mxu0 0.0
    %4843 = vmatpush1.msra.mxu0 0.0
    %4844 = vmatprep.subr.mxu0 0.0
    %4845 = vmatpush1.msra.mxu0 0.0
    %4846 = vmatprep.subr.mxu0 0.0
    %4847 = vmatpush1.msra.mxu0 0.0
    %4848 = vmatprep.subr.mxu0 0.0
    %4849 = vmatpush1.msra.mxu0 0.0
    %4850 = vmatprep.mubr.f32.mxu0 0.0
    %4851 = vmatmul.mubr.f32.gmra.mrb[0].mxu0 %v4713
    %v4852 = vpop.f32.mrb[0].mxu0
    %v4853 = vadd.f32 0.0, %v4852
    %v4854 = vpop.f32.mrb[0].mxu0
    %4855 = vdwg.mxu0
    %v4858 = vrot.slane %v4782, 2
    %v4859 = vrot.slane %v4784, 2
    %v4862 = vadd.f32 %v467, %v4858
    %v4863 = vadd.f32 %v469, %v4859
    %v4864 = vxor.u32 %v4862, 2147483648
    %v4865 = vxor.u32 %v4863, 2147483648
    %v4866 = vmul.f32 %v4864, 1.442695
    %v4867 = vpow.pop %v4866
    %v4868 = vmul.f32 %v4865, 1.442695
    %v4869 = vpow.pop %v4868
    %v4870 = vadd.f32 %v4867, 1.0
    %v4871 = vadd.f32 %v4869, 1.0
    %v4872 = vrcp.pop %v4870
    %v4873 = vmul.f32 1.0, %v4872
    %v4874 = vrcp.pop %v4871
    %v4875 = vmul.f32 1.0, %v4874
    %v4876 = vadd.f32 %v4853, %v562
    %v4878 = vrot.slane %v4876, 2
    %v4880 = vmul.f32 %v4873, %v4878
    %v4881 = vadd.f32 %v543, %v4880
    %v4882 = vtanh.pop %v4881
    %v4883 = vsub.f32 1.0, %v4875
    %v4884 = vmul.f32 %v4883, %v4882
    %v4885 = vrot.slane %v4103, 6
    %v4887 = vmul.f32 %v4875, %v4885
    %v4888 = vadd.f32 %v4884, %v4887
    %4889 = vmatprep.subr.mxu0 %v124
    %4890 = vmatpush1.msra.mxu0 %v123
    %4891 = vmatprep.subr.mxu0 %v127
    %4892 = vmatpush1.msra.mxu0 %v126
    %4893 = vmatprep.subr.mxu0 %v130
    %4894 = vmatpush1.msra.mxu0 %v129
    %4895 = vmatprep.subr.mxu0 %v133
    %4896 = vmatpush1.msra.mxu0 %v132
    %4897 = vmatprep.subr.mxu0 %v136
    %4898 = vmatpush1.msra.mxu0 %v135
    %4899 = vmatprep.subr.mxu0 %v139
    %4900 = vmatpush1.msra.mxu0 %v138
    %4901 = vmatprep.subr.mxu0 %v142
    %4902 = vmatpush1.msra.mxu0 %v141
    %4903 = vmatprep.subr.mxu0 %v145
    %4904 = vmatpush1.msra.mxu0 %v144
    %4905 = vmatprep.subr.mxu0 %v148
    %4906 = vmatpush1.msra.mxu0 %v147
    %4907 = vmatprep.subr.mxu0 %v151
    %4908 = vmatpush1.msra.mxu0 %v150
    %4909 = vmatprep.subr.mxu0 %v154
    %4910 = vmatpush1.msra.mxu0 %v153
    %4911 = vmatprep.subr.mxu0 %v157
    %4912 = vmatpush1.msra.mxu0 %v156
    %4913 = vmatprep.subr.mxu0 %v160
    %4914 = vmatpush1.msra.mxu0 %v159
    %4915 = vmatprep.subr.mxu0 %v163
    %4916 = vmatpush1.msra.mxu0 %v162
    %4917 = vmatprep.subr.mxu0 %v166
    %4918 = vmatpush1.msra.mxu0 %v165
    %4919 = vmatprep.subr.mxu0 %v169
    %4920 = vmatpush1.msra.mxu0 %v168
    %4921 = vmatprep.subr.mxu0 0.0
    %4922 = vmatpush1.msra.mxu0 0.0
    %4923 = vmatprep.subr.mxu0 0.0
    %4924 = vmatpush1.msra.mxu0 0.0
    %4925 = vmatprep.subr.mxu0 0.0
    %4926 = vmatpush1.msra.mxu0 0.0
    %4927 = vmatprep.subr.mxu0 0.0
    %4928 = vmatpush1.msra.mxu0 0.0
    %4929 = vmatprep.subr.mxu0 0.0
    %4930 = vmatpush1.msra.mxu0 0.0
    %4931 = vmatprep.subr.mxu0 0.0
    %4932 = vmatpush1.msra.mxu0 0.0
    %4933 = vmatprep.subr.mxu0 0.0
    %4934 = vmatpush1.msra.mxu0 0.0
    %4935 = vmatprep.subr.mxu0 0.0
    %4936 = vmatpush1.msra.mxu0 0.0
    %4937 = vmatprep.subr.mxu0 0.0
    %4938 = vmatpush1.msra.mxu0 0.0
    %4939 = vmatprep.subr.mxu0 0.0
    %4940 = vmatpush1.msra.mxu0 0.0
    %4941 = vmatprep.subr.mxu0 0.0
    %4942 = vmatpush1.msra.mxu0 0.0
    %4943 = vmatprep.subr.mxu0 0.0
    %4944 = vmatpush1.msra.mxu0 0.0
    %4945 = vmatprep.subr.mxu0 0.0
    %4946 = vmatpush1.msra.mxu0 0.0
    %4947 = vmatprep.subr.mxu0 0.0
    %4948 = vmatpush1.msra.mxu0 0.0
    %4949 = vmatprep.subr.mxu0 0.0
    %4950 = vmatpush1.msra.mxu0 0.0
    %4951 = vmatprep.subr.mxu0 0.0
    %4952 = vmatpush1.msra.mxu0 0.0
    %4953 = vmatprep.mubr.f32.mxu0 0.0
    %4954 = vmatmul.mubr.f32.gmra.mrb[0].mxu0 %v4713
    %v4955 = vpop.f32.mrb[0].mxu0
    %v4956 = vadd.f32 %v748, %v4955
    %v4957 = vpop.f32.mrb[0].mxu0
    %v4958 = vadd.f32 %v752, %v4957
    %4959 = vdwg.mxu0
    %4960 = vmatprep.subr.mxu0 0.0
    %4961 = vmatpush1.msra.mxu0 %v125
    %4962 = vmatprep.subr.mxu0 0.0
    %4963 = vmatpush1.msra.mxu0 %v128
    %4964 = vmatprep.subr.mxu0 0.0
    %4965 = vmatpush1.msra.mxu0 %v131
    %4966 = vmatprep.subr.mxu0 0.0
    %4967 = vmatpush1.msra.mxu0 %v134
    %4968 = vmatprep.subr.mxu0 0.0
    %4969 = vmatpush1.msra.mxu0 %v137
    %4970 = vmatprep.subr.mxu0 0.0
    %4971 = vmatpush1.msra.mxu0 %v140
    %4972 = vmatprep.subr.mxu0 0.0
    %4973 = vmatpush1.msra.mxu0 %v143
    %4974 = vmatprep.subr.mxu0 0.0
    %4975 = vmatpush1.msra.mxu0 %v146
    %4976 = vmatprep.subr.mxu0 0.0
    %4977 = vmatpush1.msra.mxu0 %v149
    %4978 = vmatprep.subr.mxu0 0.0
    %4979 = vmatpush1.msra.mxu0 %v152
    %4980 = vmatprep.subr.mxu0 0.0
    %4981 = vmatpush1.msra.mxu0 %v155
    %4982 = vmatprep.subr.mxu0 0.0
    %4983 = vmatpush1.msra.mxu0 %v158
    %4984 = vmatprep.subr.mxu0 0.0
    %4985 = vmatpush1.msra.mxu0 %v161
    %4986 = vmatprep.subr.mxu0 0.0
    %4987 = vmatpush1.msra.mxu0 %v164
    %4988 = vmatprep.subr.mxu0 0.0
    %4989 = vmatpush1.msra.mxu0 %v167
    %4990 = vmatprep.subr.mxu0 0.0
    %4991 = vmatpush1.msra.mxu0 %v170
    %4992 = vmatprep.subr.mxu0 0.0
    %4993 = vmatpush1.msra.mxu0 0.0
    %4994 = vmatprep.subr.mxu0 0.0
    %4995 = vmatpush1.msra.mxu0 0.0
    %4996 = vmatprep.subr.mxu0 0.0
    %4997 = vmatpush1.msra.mxu0 0.0
    %4998 = vmatprep.subr.mxu0 0.0
    %4999 = vmatpush1.msra.mxu0 0.0
    %5000 = vmatprep.subr.mxu0 0.0
    %5001 = vmatpush1.msra.mxu0 0.0
    %5002 = vmatprep.subr.mxu0 0.0
    %5003 = vmatpush1.msra.mxu0 0.0
    %5004 = vmatprep.subr.mxu0 0.0
    %5005 = vmatpush1.msra.mxu0 0.0
    %5006 = vmatprep.subr.mxu0 0.0
    %5007 = vmatpush1.msra.mxu0 0.0
    %5008 = vmatprep.subr.mxu0 0.0
    %5009 = vmatpush1.msra.mxu0 0.0
    %5010 = vmatprep.subr.mxu0 0.0
    %5011 = vmatpush1.msra.mxu0 0.0
    %5012 = vmatprep.subr.mxu0 0.0
    %5013 = vmatpush1.msra.mxu0 0.0
    %5014 = vmatprep.subr.mxu0 0.0
    %5015 = vmatpush1.msra.mxu0 0.0
    %5016 = vmatprep.subr.mxu0 0.0
    %5017 = vmatpush1.msra.mxu0 0.0
    %5018 = vmatprep.subr.mxu0 0.0
    %5019 = vmatpush1.msra.mxu0 0.0
    %5020 = vmatprep.subr.mxu0 0.0
    %5021 = vmatpush1.msra.mxu0 0.0
    %5022 = vmatprep.subr.mxu0 0.0
    %5023 = vmatpush1.msra.mxu0 0.0
    %5024 = vmatprep.mubr.f32.mxu0 0.0
    %5025 = vmatmul.mubr.f32.gmra.mrb[0].mxu0 %v4713
    %v5026 = vpop.f32.mrb[0].mxu0
    %v5027 = vadd.f32 %v756, %v5026
    %v5028 = vpop.f32.mrb[0].mxu0
    %5029 = vdwg.mxu0
    %5030 = vmatprep.subr.mxu0 %v270
    %5031 = vmatpush1.msra.mxu0 %v269
    %5032 = vmatprep.subr.mxu0 %v273
    %5033 = vmatpush1.msra.mxu0 %v272
    %5034 = vmatprep.subr.mxu0 %v276
    %5035 = vmatpush1.msra.mxu0 %v275
    %5036 = vmatprep.subr.mxu0 %v279
    %5037 = vmatpush1.msra.mxu0 %v278
    %5038 = vmatprep.subr.mxu0 %v282
    %5039 = vmatpush1.msra.mxu0 %v281
    %5040 = vmatprep.subr.mxu0 %v285
    %5041 = vmatpush1.msra.mxu0 %v284
    %5042 = vmatprep.subr.mxu0 %v288
    %5043 = vmatpush1.msra.mxu0 %v287
    %5044 = vmatprep.subr.mxu0 %v291
    %5045 = vmatpush1.msra.mxu0 %v290
    %5046 = vmatprep.subr.mxu0 %v294
    %5047 = vmatpush1.msra.mxu0 %v293
    %5048 = vmatprep.subr.mxu0 %v297
    %5049 = vmatpush1.msra.mxu0 %v296
    %5050 = vmatprep.subr.mxu0 %v300
    %5051 = vmatpush1.msra.mxu0 %v299
    %5052 = vmatprep.subr.mxu0 %v303
    %5053 = vmatpush1.msra.mxu0 %v302
    %5054 = vmatprep.subr.mxu0 %v306
    %5055 = vmatpush1.msra.mxu0 %v305
    %5056 = vmatprep.subr.mxu0 %v309
    %5057 = vmatpush1.msra.mxu0 %v308
    %5058 = vmatprep.subr.mxu0 %v312
    %5059 = vmatpush1.msra.mxu0 %v311
    %5060 = vmatprep.subr.mxu0 %v315
    %5061 = vmatpush1.msra.mxu0 %v314
    %5062 = vmatprep.subr.mxu0 0.0
    %5063 = vmatpush1.msra.mxu0 0.0
    %5064 = vmatprep.subr.mxu0 0.0
    %5065 = vmatpush1.msra.mxu0 0.0
    %5066 = vmatprep.subr.mxu0 0.0
    %5067 = vmatpush1.msra.mxu0 0.0
    %5068 = vmatprep.subr.mxu0 0.0
    %5069 = vmatpush1.msra.mxu0 0.0
    %5070 = vmatprep.subr.mxu0 0.0
    %5071 = vmatpush1.msra.mxu0 0.0
    %5072 = vmatprep.subr.mxu0 0.0
    %5073 = vmatpush1.msra.mxu0 0.0
    %5074 = vmatprep.subr.mxu0 0.0
    %5075 = vmatpush1.msra.mxu0 0.0
    %5076 = vmatprep.subr.mxu0 0.0
    %5077 = vmatpush1.msra.mxu0 0.0
    %5078 = vmatprep.subr.mxu0 0.0
    %5079 = vmatpush1.msra.mxu0 0.0
    %5080 = vmatprep.subr.mxu0 0.0
    %5081 = vmatpush1.msra.mxu0 0.0
    %5082 = vmatprep.subr.mxu0 0.0
    %5083 = vmatpush1.msra.mxu0 0.0
    %5084 = vmatprep.subr.mxu0 0.0
    %5085 = vmatpush1.msra.mxu0 0.0
    %5086 = vmatprep.subr.mxu0 0.0
    %5087 = vmatpush1.msra.mxu0 0.0
    %5088 = vmatprep.subr.mxu0 0.0
    %5089 = vmatpush1.msra.mxu0 0.0
    %5090 = vmatprep.subr.mxu0 0.0
    %5091 = vmatpush1.msra.mxu0 0.0
    %5092 = vmatprep.subr.mxu0 0.0
    %5093 = vmatpush1.msra.mxu0 0.0
    %5094 = vmatprep.mubr.f32.mxu0 0.0
    %5095 = vmatmul.mubr.f32.gmra.mrb[0].mxu0 %v4407
    %v5096 = vpop.f32.mrb[0].mxu0
    %v5097 = vadd.f32 0.0, %v5096
    %v5098 = vpop.f32.mrb[0].mxu0
    %v5099 = vadd.f32 0.0, %v5098
    %5100 = vdwg.mxu0
    %5101 = vmatprep.subr.mxu0 0.0
    %5102 = vmatpush1.msra.mxu0 %v271
    %5103 = vmatprep.subr.mxu0 0.0
    %5104 = vmatpush1.msra.mxu0 %v274
    %5105 = vmatprep.subr.mxu0 0.0
    %5106 = vmatpush1.msra.mxu0 %v277
    %5107 = vmatprep.subr.mxu0 0.0
    %5108 = vmatpush1.msra.mxu0 %v280
    %5109 = vmatprep.subr.mxu0 0.0
    %5110 = vmatpush1.msra.mxu0 %v283
    %5111 = vmatprep.subr.mxu0 0.0
    %5112 = vmatpush1.msra.mxu0 %v286
    %5113 = vmatprep.subr.mxu0 0.0
    %5114 = vmatpush1.msra.mxu0 %v289
    %5115 = vmatprep.subr.mxu0 0.0
    %5116 = vmatpush1.msra.mxu0 %v292
    %5117 = vmatprep.subr.mxu0 0.0
    %5118 = vmatpush1.msra.mxu0 %v295
    %5119 = vmatprep.subr.mxu0 0.0
    %5120 = vmatpush1.msra.mxu0 %v298
    %5121 = vmatprep.subr.mxu0 0.0
    %5122 = vmatpush1.msra.mxu0 %v301
    %5123 = vmatprep.subr.mxu0 0.0
    %5124 = vmatpush1.msra.mxu0 %v304
    %5125 = vmatprep.subr.mxu0 0.0
    %5126 = vmatpush1.msra.mxu0 %v307
    %5127 = vmatprep.subr.mxu0 0.0
    %5128 = vmatpush1.msra.mxu0 %v310
    %5129 = vmatprep.subr.mxu0 0.0
    %5130 = vmatpush1.msra.mxu0 %v313
    %5131 = vmatprep.subr.mxu0 0.0
    %5132 = vmatpush1.msra.mxu0 %v316
    %5133 = vmatprep.subr.mxu0 0.0
    %5134 = vmatpush1.msra.mxu0 0.0
    %5135 = vmatprep.subr.mxu0 0.0
    %5136 = vmatpush1.msra.mxu0 0.0
    %5137 = vmatprep.subr.mxu0 0.0
    %5138 = vmatpush1.msra.mxu0 0.0
    %5139 = vmatprep.subr.mxu0 0.0
    %5140 = vmatpush1.msra.mxu0 0.0
    %5141 = vmatprep.subr.mxu0 0.0
    %5142 = vmatpush1.msra.mxu0 0.0
    %5143 = vmatprep.subr.mxu0 0.0
    %5144 = vmatpush1.msra.mxu0 0.0
    %5145 = vmatprep.subr.mxu0 0.0
    %5146 = vmatpush1.msra.mxu0 0.0
    %5147 = vmatprep.subr.mxu0 0.0
    %5148 = vmatpush1.msra.mxu0 0.0
    %5149 = vmatprep.subr.mxu0 0.0
    %5150 = vmatpush1.msra.mxu0 0.0
    %5151 = vmatprep.subr.mxu0 0.0
    %5152 = vmatpush1.msra.mxu0 0.0
    %5153 = vmatprep.subr.mxu0 0.0
    %5154 = vmatpush1.msra.mxu0 0.0
    %5155 = vmatprep.subr.mxu0 0.0
    %5156 = vmatpush1.msra.mxu0 0.0
    %5157 = vmatprep.subr.mxu0 0.0
    %5158 = vmatpush1.msra.mxu0 0.0
    %5159 = vmatprep.subr.mxu0 0.0
    %5160 = vmatpush1.msra.mxu0 0.0
    %5161 = vmatprep.subr.mxu0 0.0
    %5162 = vmatpush1.msra.mxu0 0.0
    %5163 = vmatprep.subr.mxu0 0.0
    %5164 = vmatpush1.msra.mxu0 0.0
    %5165 = vmatprep.mubr.f32.mxu0 0.0
    %5166 = vmatmul.mubr.f32.gmra.mrb[0].mxu0 %v4407
    %v5167 = vpop.f32.mrb[0].mxu0
    %v5168 = vadd.f32 0.0, %v5167
    %v5169 = vpop.f32.mrb[0].mxu0
    %5170 = vdwg.mxu0
    %v5171 = vadd.f32 %v4956, %v5097
    %v5172 = vadd.f32 %v4958, %v5099
    %v5173 = vxor.u32 %v5171, 2147483648
    %v5174 = vxor.u32 %v5172, 2147483648
    %v5175 = vmul.f32 %v5173, 1.442695
    %v5176 = vpow.pop %v5175
    %v5177 = vmul.f32 %v5174, 1.442695
    %v5178 = vpow.pop %v5177
    %v5179 = vadd.f32 %v5176, 1.0
    %v5180 = vadd.f32 %v5178, 1.0
    %v5181 = vrcp.pop %v5179
    %v5182 = vmul.f32 1.0, %v5181
    %v5183 = vrcp.pop %v5180
    %v5184 = vmul.f32 1.0, %v5183
    %v5185 = vadd.f32 %v5168, %v917
    %v5186 = vmul.f32 %v5182, %v5185
    %v5187 = vadd.f32 %v5027, %v5186
    %v5188 = vtanh.pop %v5187
    %v5189 = vsub.f32 1.0, %v5184
    %v5190 = vmul.f32 %v5189, %v5188
    %v5191 = vmul.f32 %v5184, %v4407
    %v5192 = vadd.f32 %v5190, %v5191
    %5193 = vmatprep.subr.mxu0 %v173
    %5194 = vmatpush1.msra.mxu0 %v172
    %5195 = vmatprep.subr.mxu0 %v176
    %5196 = vmatpush1.msra.mxu0 %v175
    %5197 = vmatprep.subr.mxu0 %v179
    %5198 = vmatpush1.msra.mxu0 %v178
    %5199 = vmatprep.subr.mxu0 %v182
    %5200 = vmatpush1.msra.mxu0 %v181
    %5201 = vmatprep.subr.mxu0 %v185
    %5202 = vmatpush1.msra.mxu0 %v184
    %5203 = vmatprep.subr.mxu0 %v188
    %5204 = vmatpush1.msra.mxu0 %v187
    %5205 = vmatprep.subr.mxu0 %v191
    %5206 = vmatpush1.msra.mxu0 %v190
    %5207 = vmatprep.subr.mxu0 %v194
    %5208 = vmatpush1.msra.mxu0 %v193
    %5209 = vmatprep.subr.mxu0 %v197
    %5210 = vmatpush1.msra.mxu0 %v196
    %5211 = vmatprep.subr.mxu0 %v200
    %5212 = vmatpush1.msra.mxu0 %v199
    %5213 = vmatprep.subr.mxu0 %v203
    %5214 = vmatpush1.msra.mxu0 %v202
    %5215 = vmatprep.subr.mxu0 %v206
    %5216 = vmatpush1.msra.mxu0 %v205
    %5217 = vmatprep.subr.mxu0 %v209
    %5218 = vmatpush1.msra.mxu0 %v208
    %5219 = vmatprep.subr.mxu0 %v212
    %5220 = vmatpush1.msra.mxu0 %v211
    %5221 = vmatprep.subr.mxu0 %v215
    %5222 = vmatpush1.msra.mxu0 %v214
    %5223 = vmatprep.subr.mxu0 %v218
    %5224 = vmatpush1.msra.mxu0 %v217
    %5225 = vmatprep.subr.mxu0 0.0
    %5226 = vmatpush1.msra.mxu0 0.0
    %5227 = vmatprep.subr.mxu0 0.0
    %5228 = vmatpush1.msra.mxu0 0.0
    %5229 = vmatprep.subr.mxu0 0.0
    %5230 = vmatpush1.msra.mxu0 0.0
    %5231 = vmatprep.subr.mxu0 0.0
    %5232 = vmatpush1.msra.mxu0 0.0
    %5233 = vmatprep.subr.mxu0 0.0
    %5234 = vmatpush1.msra.mxu0 0.0
    %5235 = vmatprep.subr.mxu0 0.0
    %5236 = vmatpush1.msra.mxu0 0.0
    %5237 = vmatprep.subr.mxu0 0.0
    %5238 = vmatpush1.msra.mxu0 0.0
    %5239 = vmatprep.subr.mxu0 0.0
    %5240 = vmatpush1.msra.mxu0 0.0
    %5241 = vmatprep.subr.mxu0 0.0
    %5242 = vmatpush1.msra.mxu0 0.0
    %5243 = vmatprep.subr.mxu0 0.0
    %5244 = vmatpush1.msra.mxu0 0.0
    %5245 = vmatprep.subr.mxu0 0.0
    %5246 = vmatpush1.msra.mxu0 0.0
    %5247 = vmatprep.subr.mxu0 0.0
    %5248 = vmatpush1.msra.mxu0 0.0
    %5249 = vmatprep.subr.mxu0 0.0
    %5250 = vmatpush1.msra.mxu0 0.0
    %5251 = vmatprep.subr.mxu0 0.0
    %5252 = vmatpush1.msra.mxu0 0.0
    %5253 = vmatprep.subr.mxu0 0.0
    %5254 = vmatpush1.msra.mxu0 0.0
    %5255 = vmatprep.subr.mxu0 0.0
    %5256 = vmatpush1.msra.mxu0 0.0
    %5257 = vmatprep.mubr.f32.mxu0 0.0
    %5258 = vmatmul.mubr.f32.gmra.mrb[0].mxu0 %v4407
    %v5259 = vpop.f32.mrb[0].mxu0
    %v5260 = vadd.f32 %v1409, %v5259
    %v5261 = vpop.f32.mrb[0].mxu0
    %v5262 = vadd.f32 %v1413, %v5261
    %5263 = vdwg.mxu0
    %5264 = vmatprep.subr.mxu0 0.0
    %5265 = vmatpush1.msra.mxu0 %v174
    %5266 = vmatprep.subr.mxu0 0.0
    %5267 = vmatpush1.msra.mxu0 %v177
    %5268 = vmatprep.subr.mxu0 0.0
    %5269 = vmatpush1.msra.mxu0 %v180
    %5270 = vmatprep.subr.mxu0 0.0
    %5271 = vmatpush1.msra.mxu0 %v183
    %5272 = vmatprep.subr.mxu0 0.0
    %5273 = vmatpush1.msra.mxu0 %v186
    %5274 = vmatprep.subr.mxu0 0.0
    %5275 = vmatpush1.msra.mxu0 %v189
    %5276 = vmatprep.subr.mxu0 0.0
    %5277 = vmatpush1.msra.mxu0 %v192
    %5278 = vmatprep.subr.mxu0 0.0
    %5279 = vmatpush1.msra.mxu0 %v195
    %5280 = vmatprep.subr.mxu0 0.0
    %5281 = vmatpush1.msra.mxu0 %v198
    %5282 = vmatprep.subr.mxu0 0.0
    %5283 = vmatpush1.msra.mxu0 %v201
    %5284 = vmatprep.subr.mxu0 0.0
    %5285 = vmatpush1.msra.mxu0 %v204
    %5286 = vmatprep.subr.mxu0 0.0
    %5287 = vmatpush1.msra.mxu0 %v207
    %5288 = vmatprep.subr.mxu0 0.0
    %5289 = vmatpush1.msra.mxu0 %v210
    %5290 = vmatprep.subr.mxu0 0.0
    %5291 = vmatpush1.msra.mxu0 %v213
    %5292 = vmatprep.subr.mxu0 0.0
    %5293 = vmatpush1.msra.mxu0 %v216
    %5294 = vmatprep.subr.mxu0 0.0
    %5295 = vmatpush1.msra.mxu0 %v219
    %5296 = vmatprep.subr.mxu0 0.0
    %5297 = vmatpush1.msra.mxu0 0.0
    %5298 = vmatprep.subr.mxu0 0.0
    %5299 = vmatpush1.msra.mxu0 0.0
    %5300 = vmatprep.subr.mxu0 0.0
    %5301 = vmatpush1.msra.mxu0 0.0
    %5302 = vmatprep.subr.mxu0 0.0
    %5303 = vmatpush1.msra.mxu0 0.0
    %5304 = vmatprep.subr.mxu0 0.0
    %5305 = vmatpush1.msra.mxu0 0.0
    %5306 = vmatprep.subr.mxu0 0.0
    %5307 = vmatpush1.msra.mxu0 0.0
    %5308 = vmatprep.subr.mxu0 0.0
    %5309 = vmatpush1.msra.mxu0 0.0
    %5310 = vmatprep.subr.mxu0 0.0
    %5311 = vmatpush1.msra.mxu0 0.0
    %5312 = vmatprep.subr.mxu0 0.0
    %5313 = vmatpush1.msra.mxu0 0.0
    %5314 = vmatprep.subr.mxu0 0.0
    %5315 = vmatpush1.msra.mxu0 0.0
    %5316 = vmatprep.subr.mxu0 0.0
    %5317 = vmatpush1.msra.mxu0 0.0
    %5318 = vmatprep.subr.mxu0 0.0
    %5319 = vmatpush1.msra.mxu0 0.0
    %5320 = vmatprep.subr.mxu0 0.0
    %5321 = vmatpush1.msra.mxu0 0.0
    %5322 = vmatprep.subr.mxu0 0.0
    %5323 = vmatpush1.msra.mxu0 0.0
    %5324 = vmatprep.subr.mxu0 0.0
    %5325 = vmatpush1.msra.mxu0 0.0
    %5326 = vmatprep.subr.mxu0 0.0
    %5327 = vmatpush1.msra.mxu0 0.0
    %5328 = vmatprep.mubr.f32.mxu0 0.0
    %5329 = vmatmul.mubr.f32.gmra.mrb[0].mxu0 %v4407
    %v5330 = vpop.f32.mrb[0].mxu0
    %v5331 = vadd.f32 %v1417, %v5330
    %v5332 = vpop.f32.mrb[0].mxu0
    %5333 = vdwg.mxu0
    %5334 = vmatprep.subr.mxu0 %v319
    %5335 = vmatpush1.msra.mxu0 %v318
    %5336 = vmatprep.subr.mxu0 %v322
    %5337 = vmatpush1.msra.mxu0 %v321
    %5338 = vmatprep.subr.mxu0 %v325
    %5339 = vmatpush1.msra.mxu0 %v324
    %5340 = vmatprep.subr.mxu0 %v328
    %5341 = vmatpush1.msra.mxu0 %v327
    %5342 = vmatprep.subr.mxu0 %v331
    %5343 = vmatpush1.msra.mxu0 %v330
    %5344 = vmatprep.subr.mxu0 %v334
    %5345 = vmatpush1.msra.mxu0 %v333
    %5346 = vmatprep.subr.mxu0 %v337
    %5347 = vmatpush1.msra.mxu0 %v336
    %5348 = vmatprep.subr.mxu0 %v340
    %5349 = vmatpush1.msra.mxu0 %v339
    %5350 = vmatprep.subr.mxu0 %v343
    %5351 = vmatpush1.msra.mxu0 %v342
    %5352 = vmatprep.subr.mxu0 %v346
    %5353 = vmatpush1.msra.mxu0 %v345
    %5354 = vmatprep.subr.mxu0 %v349
    %5355 = vmatpush1.msra.mxu0 %v348
    %5356 = vmatprep.subr.mxu0 %v352
    %5357 = vmatpush1.msra.mxu0 %v351
    %5358 = vmatprep.subr.mxu0 %v355
    %5359 = vmatpush1.msra.mxu0 %v354
    %5360 = vmatprep.subr.mxu0 %v358
    %5361 = vmatpush1.msra.mxu0 %v357
    %5362 = vmatprep.subr.mxu0 %v361
    %5363 = vmatpush1.msra.mxu0 %v360
    %5364 = vmatprep.subr.mxu0 %v364
    %5365 = vmatpush1.msra.mxu0 %v363
    %5366 = vmatprep.subr.mxu0 0.0
    %5367 = vmatpush1.msra.mxu0 0.0
    %5368 = vmatprep.subr.mxu0 0.0
    %5369 = vmatpush1.msra.mxu0 0.0
    %5370 = vmatprep.subr.mxu0 0.0
    %5371 = vmatpush1.msra.mxu0 0.0
    %5372 = vmatprep.subr.mxu0 0.0
    %5373 = vmatpush1.msra.mxu0 0.0
    %5374 = vmatprep.subr.mxu0 0.0
    %5375 = vmatpush1.msra.mxu0 0.0
    %5376 = vmatprep.subr.mxu0 0.0
    %5377 = vmatpush1.msra.mxu0 0.0
    %5378 = vmatprep.subr.mxu0 0.0
    %5379 = vmatpush1.msra.mxu0 0.0
    %5380 = vmatprep.subr.mxu0 0.0
    %5381 = vmatpush1.msra.mxu0 0.0
    %5382 = vmatprep.subr.mxu0 0.0
    %5383 = vmatpush1.msra.mxu0 0.0
    %5384 = vmatprep.subr.mxu0 0.0
    %5385 = vmatpush1.msra.mxu0 0.0
    %5386 = vmatprep.subr.mxu0 0.0
    %5387 = vmatpush1.msra.mxu0 0.0
    %5388 = vmatprep.subr.mxu0 0.0
    %5389 = vmatpush1.msra.mxu0 0.0
    %5390 = vmatprep.subr.mxu0 0.0
    %5391 = vmatpush1.msra.mxu0 0.0
    %5392 = vmatprep.subr.mxu0 0.0
    %5393 = vmatpush1.msra.mxu0 0.0
    %5394 = vmatprep.subr.mxu0 0.0
    %5395 = vmatpush1.msra.mxu0 0.0
    %5396 = vmatprep.subr.mxu0 0.0
    %5397 = vmatpush1.msra.mxu0 0.0
    %5398 = vmatprep.mubr.f32.mxu0 0.0
    %5399 = vmatmul.mubr.f32.gmra.mrb[0].mxu0 %v4711
    %v5400 = vpop.f32.mrb[0].mxu0
    %v5401 = vadd.f32 0.0, %v5400
    %v5402 = vpop.f32.mrb[0].mxu0
    %v5403 = vadd.f32 0.0, %v5402
    %5404 = vdwg.mxu0
    %5405 = vmatprep.subr.mxu0 0.0
    %5406 = vmatpush1.msra.mxu0 %v320
    %5407 = vmatprep.subr.mxu0 0.0
    %5408 = vmatpush1.msra.mxu0 %v323
    %5409 = vmatprep.subr.mxu0 0.0
    %5410 = vmatpush1.msra.mxu0 %v326
    %5411 = vmatprep.subr.mxu0 0.0
    %5412 = vmatpush1.msra.mxu0 %v329
    %5413 = vmatprep.subr.mxu0 0.0
    %5414 = vmatpush1.msra.mxu0 %v332
    %5415 = vmatprep.subr.mxu0 0.0
    %5416 = vmatpush1.msra.mxu0 %v335
    %5417 = vmatprep.subr.mxu0 0.0
    %5418 = vmatpush1.msra.mxu0 %v338
    %5419 = vmatprep.subr.mxu0 0.0
    %5420 = vmatpush1.msra.mxu0 %v341
    %5421 = vmatprep.subr.mxu0 0.0
    %5422 = vmatpush1.msra.mxu0 %v344
    %5423 = vmatprep.subr.mxu0 0.0
    %5424 = vmatpush1.msra.mxu0 %v347
    %5425 = vmatprep.subr.mxu0 0.0
    %5426 = vmatpush1.msra.mxu0 %v350
    %5427 = vmatprep.subr.mxu0 0.0
    %5428 = vmatpush1.msra.mxu0 %v353
    %5429 = vmatprep.subr.mxu0 0.0
    %5430 = vmatpush1.msra.mxu0 %v356
    %5431 = vmatprep.subr.mxu0 0.0
    %5432 = vmatpush1.msra.mxu0 %v359
    %5433 = vmatprep.subr.mxu0 0.0
    %5434 = vmatpush1.msra.mxu0 %v362
    %5435 = vmatprep.subr.mxu0 0.0
    %5436 = vmatpush1.msra.mxu0 %v365
    %5437 = vmatprep.subr.mxu0 0.0
    %5438 = vmatpush1.msra.mxu0 0.0
    %5439 = vmatprep.subr.mxu0 0.0
    %5440 = vmatpush1.msra.mxu0 0.0
    %5441 = vmatprep.subr.mxu0 0.0
    %5442 = vmatpush1.msra.mxu0 0.0
    %5443 = vmatprep.subr.mxu0 0.0
    %5444 = vmatpush1.msra.mxu0 0.0
    %5445 = vmatprep.subr.mxu0 0.0
    %5446 = vmatpush1.msra.mxu0 0.0
    %5447 = vmatprep.subr.mxu0 0.0
    %5448 = vmatpush1.msra.mxu0 0.0
    %5449 = vmatprep.subr.mxu0 0.0
    %5450 = vmatpush1.msra.mxu0 0.0
    %5451 = vmatprep.subr.mxu0 0.0
    %5452 = vmatpush1.msra.mxu0 0.0
    %5453 = vmatprep.subr.mxu0 0.0
    %5454 = vmatpush1.msra.mxu0 0.0
    %5455 = vmatprep.subr.mxu0 0.0
    %5456 = vmatpush1.msra.mxu0 0.0
    %5457 = vmatprep.subr.mxu0 0.0
    %5458 = vmatpush1.msra.mxu0 0.0
    %5459 = vmatprep.subr.mxu0 0.0
    %5460 = vmatpush1.msra.mxu0 0.0
    %5461 = vmatprep.subr.mxu0 0.0
    %5462 = vmatpush1.msra.mxu0 0.0
    %5463 = vmatprep.subr.mxu0 0.0
    %5464 = vmatpush1.msra.mxu0 0.0
    %5465 = vmatprep.subr.mxu0 0.0
    %5466 = vmatpush1.msra.mxu0 0.0
    %5467 = vmatprep.subr.mxu0 0.0
    %5468 = vmatpush1.msra.mxu0 0.0
    %5469 = vmatprep.mubr.f32.mxu0 0.0
    %5470 = vmatmul.mubr.f32.gmra.mrb[0].mxu0 %v4711
    %v5471 = vpop.f32.mrb[0].mxu0
    %v5472 = vadd.f32 0.0, %v5471
    %v5473 = vpop.f32.mrb[0].mxu0
    %5474 = vdwg.mxu0
    %v5475 = vadd.f32 %v5260, %v5401
    %v5476 = vadd.f32 %v5262, %v5403
    %v5477 = vxor.u32 %v5475, 2147483648
    %v5478 = vxor.u32 %v5476, 2147483648
    %v5479 = vmul.f32 %v5477, 1.442695
    %v5480 = vpow.pop %v5479
    %v5481 = vmul.f32 %v5478, 1.442695
    %v5482 = vpow.pop %v5481
    %v5483 = vadd.f32 %v5480, 1.0
    %v5484 = vadd.f32 %v5482, 1.0
    %v5485 = vrcp.pop %v5483
    %v5486 = vmul.f32 1.0, %v5485
    %v5487 = vrcp.pop %v5484
    %v5488 = vmul.f32 1.0, %v5487
    %v5489 = vadd.f32 %v5472, %v1578
    %v5490 = vmul.f32 %v5486, %v5489
    %v5491 = vadd.f32 %v5331, %v5490
    %v5492 = vtanh.pop %v5491
    %v5493 = vsub.f32 1.0, %v5488
    %v5494 = vmul.f32 %v5493, %v5492
    %v5495 = vmul.f32 %v5488, %v4711
    %v5496 = vadd.f32 %v5494, %v5495
    %v5498 = vrot.slane %v4888, 6
    %5500 = vmatprep.subr.mxu0 %v124
    %5501 = vmatpush1.msra.mxu0 %v123
    %5502 = vmatprep.subr.mxu0 %v127
    %5503 = vmatpush1.msra.mxu0 %v126
    %5504 = vmatprep.subr.mxu0 %v130
    %5505 = vmatpush1.msra.mxu0 %v129
    %5506 = vmatprep.subr.mxu0 %v133
    %5507 = vmatpush1.msra.mxu0 %v132
    %5508 = vmatprep.subr.mxu0 %v136
    %5509 = vmatpush1.msra.mxu0 %v135
    %5510 = vmatprep.subr.mxu0 %v139
    %5511 = vmatpush1.msra.mxu0 %v138
    %5512 = vmatprep.subr.mxu0 %v142
    %5513 = vmatpush1.msra.mxu0 %v141
    %5514 = vmatprep.subr.mxu0 %v145
    %5515 = vmatpush1.msra.mxu0 %v144
    %5516 = vmatprep.subr.mxu0 %v148
    %5517 = vmatpush1.msra.mxu0 %v147
    %5518 = vmatprep.subr.mxu0 %v151
    %5519 = vmatpush1.msra.mxu0 %v150
    %5520 = vmatprep.subr.mxu0 %v154
    %5521 = vmatpush1.msra.mxu0 %v153
    %5522 = vmatprep.subr.mxu0 %v157
    %5523 = vmatpush1.msra.mxu0 %v156
    %5524 = vmatprep.subr.mxu0 %v160
    %5525 = vmatpush1.msra.mxu0 %v159
    %5526 = vmatprep.subr.mxu0 %v163
    %5527 = vmatpush1.msra.mxu0 %v162
    %5528 = vmatprep.subr.mxu0 %v166
    %5529 = vmatpush1.msra.mxu0 %v165
    %5530 = vmatprep.subr.mxu0 %v169
    %5531 = vmatpush1.msra.mxu0 %v168
    %5532 = vmatprep.subr.mxu0 0.0
    %5533 = vmatpush1.msra.mxu0 0.0
    %5534 = vmatprep.subr.mxu0 0.0
    %5535 = vmatpush1.msra.mxu0 0.0
    %5536 = vmatprep.subr.mxu0 0.0
    %5537 = vmatpush1.msra.mxu0 0.0
    %5538 = vmatprep.subr.mxu0 0.0
    %5539 = vmatpush1.msra.mxu0 0.0
    %5540 = vmatprep.subr.mxu0 0.0
    %5541 = vmatpush1.msra.mxu0 0.0
    %5542 = vmatprep.subr.mxu0 0.0
    %5543 = vmatpush1.msra.mxu0 0.0
    %5544 = vmatprep.subr.mxu0 0.0
    %5545 = vmatpush1.msra.mxu0 0.0
    %5546 = vmatprep.subr.mxu0 0.0
    %5547 = vmatpush1.msra.mxu0 0.0
    %5548 = vmatprep.subr.mxu0 0.0
    %5549 = vmatpush1.msra.mxu0 0.0
    %5550 = vmatprep.subr.mxu0 0.0
    %5551 = vmatpush1.msra.mxu0 0.0
    %5552 = vmatprep.subr.mxu0 0.0
    %5553 = vmatpush1.msra.mxu0 0.0
    %5554 = vmatprep.subr.mxu0 0.0
    %5555 = vmatpush1.msra.mxu0 0.0
    %5556 = vmatprep.subr.mxu0 0.0
    %5557 = vmatpush1.msra.mxu0 0.0
    %5558 = vmatprep.subr.mxu0 0.0
    %5559 = vmatpush1.msra.mxu0 0.0
    %5560 = vmatprep.subr.mxu0 0.0
    %5561 = vmatpush1.msra.mxu0 0.0
    %5562 = vmatprep.subr.mxu0 0.0
    %5563 = vmatpush1.msra.mxu0 0.0
    %5564 = vmatprep.mubr.f32.mxu0 0.0
    %5565 = vmatmul.mubr.f32.gmra.mrb[0].mxu0 %v5498
    %v5566 = vpop.f32.mrb[0].mxu0
    %v5567 = vadd.f32 %v748, %v5566
    %v5568 = vpop.f32.mrb[0].mxu0
    %v5569 = vadd.f32 %v752, %v5568
    %5570 = vdwg.mxu0
    %5571 = vmatprep.subr.mxu0 0.0
    %5572 = vmatpush1.msra.mxu0 %v125
    %5573 = vmatprep.subr.mxu0 0.0
    %5574 = vmatpush1.msra.mxu0 %v128
    %5575 = vmatprep.subr.mxu0 0.0
    %5576 = vmatpush1.msra.mxu0 %v131
    %5577 = vmatprep.subr.mxu0 0.0
    %5578 = vmatpush1.msra.mxu0 %v134
    %5579 = vmatprep.subr.mxu0 0.0
    %5580 = vmatpush1.msra.mxu0 %v137
    %5581 = vmatprep.subr.mxu0 0.0
    %5582 = vmatpush1.msra.mxu0 %v140
    %5583 = vmatprep.subr.mxu0 0.0
    %5584 = vmatpush1.msra.mxu0 %v143
    %5585 = vmatprep.subr.mxu0 0.0
    %5586 = vmatpush1.msra.mxu0 %v146
    %5587 = vmatprep.subr.mxu0 0.0
    %5588 = vmatpush1.msra.mxu0 %v149
    %5589 = vmatprep.subr.mxu0 0.0
    %5590 = vmatpush1.msra.mxu0 %v152
    %5591 = vmatprep.subr.mxu0 0.0
    %5592 = vmatpush1.msra.mxu0 %v155
    %5593 = vmatprep.subr.mxu0 0.0
    %5594 = vmatpush1.msra.mxu0 %v158
    %5595 = vmatprep.subr.mxu0 0.0
    %5596 = vmatpush1.msra.mxu0 %v161
    %5597 = vmatprep.subr.mxu0 0.0
    %5598 = vmatpush1.msra.mxu0 %v164
    %5599 = vmatprep.subr.mxu0 0.0
    %5600 = vmatpush1.msra.mxu0 %v167
    %5601 = vmatprep.subr.mxu0 0.0
    %5602 = vmatpush1.msra.mxu0 %v170
    %5603 = vmatprep.subr.mxu0 0.0
    %5604 = vmatpush1.msra.mxu0 0.0
    %5605 = vmatprep.subr.mxu0 0.0
    %5606 = vmatpush1.msra.mxu0 0.0
    %5607 = vmatprep.subr.mxu0 0.0
    %5608 = vmatpush1.msra.mxu0 0.0
    %5609 = vmatprep.subr.mxu0 0.0
    %5610 = vmatpush1.msra.mxu0 0.0
    %5611 = vmatprep.subr.mxu0 0.0
    %5612 = vmatpush1.msra.mxu0 0.0
    %5613 = vmatprep.subr.mxu0 0.0
    %5614 = vmatpush1.msra.mxu0 0.0
    %5615 = vmatprep.subr.mxu0 0.0
    %5616 = vmatpush1.msra.mxu0 0.0
    %5617 = vmatprep.subr.mxu0 0.0
    %5618 = vmatpush1.msra.mxu0 0.0
    %5619 = vmatprep.subr.mxu0 0.0
    %5620 = vmatpush1.msra.mxu0 0.0
    %5621 = vmatprep.subr.mxu0 0.0
    %5622 = vmatpush1.msra.mxu0 0.0
    %5623 = vmatprep.subr.mxu0 0.0
    %5624 = vmatpush1.msra.mxu0 0.0
    %5625 = vmatprep.subr.mxu0 0.0
    %5626 = vmatpush1.msra.mxu0 0.0
    %5627 = vmatprep.subr.mxu0 0.0
    %5628 = vmatpush1.msra.mxu0 0.0
    %5629 = vmatprep.subr.mxu0 0.0
    %5630 = vmatpush1.msra.mxu0 0.0
    %5631 = vmatprep.subr.mxu0 0.0
    %5632 = vmatpush1.msra.mxu0 0.0
    %5633 = vmatprep.subr.mxu0 0.0
    %5634 = vmatpush1.msra.mxu0 0.0
    %5635 = vmatprep.mubr.f32.mxu0 0.0
    %5636 = vmatmul.mubr.f32.gmra.mrb[0].mxu0 %v5498
    %v5637 = vpop.f32.mrb[0].mxu0
    %v5638 = vadd.f32 %v756, %v5637
    %v5639 = vpop.f32.mrb[0].mxu0
    %5640 = vdwg.mxu0
    %5641 = vmatprep.subr.mxu0 %v270
    %5642 = vmatpush1.msra.mxu0 %v269
    %5643 = vmatprep.subr.mxu0 %v273
    %5644 = vmatpush1.msra.mxu0 %v272
    %5645 = vmatprep.subr.mxu0 %v276
    %5646 = vmatpush1.msra.mxu0 %v275
    %5647 = vmatprep.subr.mxu0 %v279
    %5648 = vmatpush1.msra.mxu0 %v278
    %5649 = vmatprep.subr.mxu0 %v282
    %5650 = vmatpush1.msra.mxu0 %v281
    %5651 = vmatprep.subr.mxu0 %v285
    %5652 = vmatpush1.msra.mxu0 %v284
    %5653 = vmatprep.subr.mxu0 %v288
    %5654 = vmatpush1.msra.mxu0 %v287
    %5655 = vmatprep.subr.mxu0 %v291
    %5656 = vmatpush1.msra.mxu0 %v290
    %5657 = vmatprep.subr.mxu0 %v294
    %5658 = vmatpush1.msra.mxu0 %v293
    %5659 = vmatprep.subr.mxu0 %v297
    %5660 = vmatpush1.msra.mxu0 %v296
    %5661 = vmatprep.subr.mxu0 %v300
    %5662 = vmatpush1.msra.mxu0 %v299
    %5663 = vmatprep.subr.mxu0 %v303
    %5664 = vmatpush1.msra.mxu0 %v302
    %5665 = vmatprep.subr.mxu0 %v306
    %5666 = vmatpush1.msra.mxu0 %v305
    %5667 = vmatprep.subr.mxu0 %v309
    %5668 = vmatpush1.msra.mxu0 %v308
    %5669 = vmatprep.subr.mxu0 %v312
    %5670 = vmatpush1.msra.mxu0 %v311
    %5671 = vmatprep.subr.mxu0 %v315
    %5672 = vmatpush1.msra.mxu0 %v314
    %5673 = vmatprep.subr.mxu0 0.0
    %5674 = vmatpush1.msra.mxu0 0.0
    %5675 = vmatprep.subr.mxu0 0.0
    %5676 = vmatpush1.msra.mxu0 0.0
    %5677 = vmatprep.subr.mxu0 0.0
    %5678 = vmatpush1.msra.mxu0 0.0
    %5679 = vmatprep.subr.mxu0 0.0
    %5680 = vmatpush1.msra.mxu0 0.0
    %5681 = vmatprep.subr.mxu0 0.0
    %5682 = vmatpush1.msra.mxu0 0.0
    %5683 = vmatprep.subr.mxu0 0.0
    %5684 = vmatpush1.msra.mxu0 0.0
    %5685 = vmatprep.subr.mxu0 0.0
    %5686 = vmatpush1.msra.mxu0 0.0
    %5687 = vmatprep.subr.mxu0 0.0
    %5688 = vmatpush1.msra.mxu0 0.0
    %5689 = vmatprep.subr.mxu0 0.0
    %5690 = vmatpush1.msra.mxu0 0.0
    %5691 = vmatprep.subr.mxu0 0.0
    %5692 = vmatpush1.msra.mxu0 0.0
    %5693 = vmatprep.subr.mxu0 0.0
    %5694 = vmatpush1.msra.mxu0 0.0
    %5695 = vmatprep.subr.mxu0 0.0
    %5696 = vmatpush1.msra.mxu0 0.0
    %5697 = vmatprep.subr.mxu0 0.0
    %5698 = vmatpush1.msra.mxu0 0.0
    %5699 = vmatprep.subr.mxu0 0.0
    %5700 = vmatpush1.msra.mxu0 0.0
    %5701 = vmatprep.subr.mxu0 0.0
    %5702 = vmatpush1.msra.mxu0 0.0
    %5703 = vmatprep.subr.mxu0 0.0
    %5704 = vmatpush1.msra.mxu0 0.0
    %5705 = vmatprep.mubr.f32.mxu0 0.0
    %5706 = vmatmul.mubr.f32.gmra.mrb[0].mxu0 %v5192
    %v5707 = vpop.f32.mrb[0].mxu0
    %v5708 = vadd.f32 0.0, %v5707
    %v5709 = vpop.f32.mrb[0].mxu0
    %v5710 = vadd.f32 0.0, %v5709
    %5711 = vdwg.mxu0
    %5712 = vmatprep.subr.mxu0 0.0
    %5713 = vmatpush1.msra.mxu0 %v271
    %5714 = vmatprep.subr.mxu0 0.0
    %5715 = vmatpush1.msra.mxu0 %v274
    %5716 = vmatprep.subr.mxu0 0.0
    %5717 = vmatpush1.msra.mxu0 %v277
    %5718 = vmatprep.subr.mxu0 0.0
    %5719 = vmatpush1.msra.mxu0 %v280
    %5720 = vmatprep.subr.mxu0 0.0
    %5721 = vmatpush1.msra.mxu0 %v283
    %5722 = vmatprep.subr.mxu0 0.0
    %5723 = vmatpush1.msra.mxu0 %v286
    %5724 = vmatprep.subr.mxu0 0.0
    %5725 = vmatpush1.msra.mxu0 %v289
    %5726 = vmatprep.subr.mxu0 0.0
    %5727 = vmatpush1.msra.mxu0 %v292
    %5728 = vmatprep.subr.mxu0 0.0
    %5729 = vmatpush1.msra.mxu0 %v295
    %5730 = vmatprep.subr.mxu0 0.0
    %5731 = vmatpush1.msra.mxu0 %v298
    %5732 = vmatprep.subr.mxu0 0.0
    %5733 = vmatpush1.msra.mxu0 %v301
    %5734 = vmatprep.subr.mxu0 0.0
    %5735 = vmatpush1.msra.mxu0 %v304
    %5736 = vmatprep.subr.mxu0 0.0
    %5737 = vmatpush1.msra.mxu0 %v307
    %5738 = vmatprep.subr.mxu0 0.0
    %5739 = vmatpush1.msra.mxu0 %v310
    %5740 = vmatprep.subr.mxu0 0.0
    %5741 = vmatpush1.msra.mxu0 %v313
    %5742 = vmatprep.subr.mxu0 0.0
    %5743 = vmatpush1.msra.mxu0 %v316
    %5744 = vmatprep.subr.mxu0 0.0
    %5745 = vmatpush1.msra.mxu0 0.0
    %5746 = vmatprep.subr.mxu0 0.0
    %5747 = vmatpush1.msra.mxu0 0.0
    %5748 = vmatprep.subr.mxu0 0.0
    %5749 = vmatpush1.msra.mxu0 0.0
    %5750 = vmatprep.subr.mxu0 0.0
    %5751 = vmatpush1.msra.mxu0 0.0
    %5752 = vmatprep.subr.mxu0 0.0
    %5753 = vmatpush1.msra.mxu0 0.0
    %5754 = vmatprep.subr.mxu0 0.0
    %5755 = vmatpush1.msra.mxu0 0.0
    %5756 = vmatprep.subr.mxu0 0.0
    %5757 = vmatpush1.msra.mxu0 0.0
    %5758 = vmatprep.subr.mxu0 0.0
    %5759 = vmatpush1.msra.mxu0 0.0
    %5760 = vmatprep.subr.mxu0 0.0
    %5761 = vmatpush1.msra.mxu0 0.0
    %5762 = vmatprep.subr.mxu0 0.0
    %5763 = vmatpush1.msra.mxu0 0.0
    %5764 = vmatprep.subr.mxu0 0.0
    %5765 = vmatpush1.msra.mxu0 0.0
    %5766 = vmatprep.subr.mxu0 0.0
    %5767 = vmatpush1.msra.mxu0 0.0
    %5768 = vmatprep.subr.mxu0 0.0
    %5769 = vmatpush1.msra.mxu0 0.0
    %5770 = vmatprep.subr.mxu0 0.0
    %5771 = vmatpush1.msra.mxu0 0.0
    %5772 = vmatprep.subr.mxu0 0.0
    %5773 = vmatpush1.msra.mxu0 0.0
    %5774 = vmatprep.subr.mxu0 0.0
    %5775 = vmatpush1.msra.mxu0 0.0
    %5776 = vmatprep.mubr.f32.mxu0 0.0
    %5777 = vmatmul.mubr.f32.gmra.mrb[0].mxu0 %v5192
    %v5778 = vpop.f32.mrb[0].mxu0
    %v5779 = vadd.f32 0.0, %v5778
    %v5780 = vpop.f32.mrb[0].mxu0
    %5781 = vdwg.mxu0
    %v5782 = vadd.f32 %v5567, %v5708
    %v5783 = vadd.f32 %v5569, %v5710
    %v5784 = vxor.u32 %v5782, 2147483648
    %v5785 = vxor.u32 %v5783, 2147483648
    %v5786 = vmul.f32 %v5784, 1.442695
    %v5787 = vpow.pop %v5786
    %v5788 = vmul.f32 %v5785, 1.442695
    %v5789 = vpow.pop %v5788
    %v5790 = vadd.f32 %v5787, 1.0
    %v5791 = vadd.f32 %v5789, 1.0
    %v5792 = vrcp.pop %v5790
    %v5793 = vmul.f32 1.0, %v5792
    %v5794 = vrcp.pop %v5791
    %v5795 = vmul.f32 1.0, %v5794
    %v5796 = vadd.f32 %v5779, %v917
    %v5797 = vmul.f32 %v5793, %v5796
    %v5798 = vadd.f32 %v5638, %v5797
    %v5799 = vtanh.pop %v5798
    %v5800 = vsub.f32 1.0, %v5795
    %v5801 = vmul.f32 %v5800, %v5799
    %v5802 = vmul.f32 %v5795, %v5192
    %v5803 = vadd.f32 %v5801, %v5802
    %5804 = vmatprep.subr.mxu0 %v173
    %5805 = vmatpush1.msra.mxu0 %v172
    %5806 = vmatprep.subr.mxu0 %v176
    %5807 = vmatpush1.msra.mxu0 %v175
    %5808 = vmatprep.subr.mxu0 %v179
    %5809 = vmatpush1.msra.mxu0 %v178
    %5810 = vmatprep.subr.mxu0 %v182
    %5811 = vmatpush1.msra.mxu0 %v181
    %5812 = vmatprep.subr.mxu0 %v185
    %5813 = vmatpush1.msra.mxu0 %v184
    %5814 = vmatprep.subr.mxu0 %v188
    %5815 = vmatpush1.msra.mxu0 %v187
    %5816 = vmatprep.subr.mxu0 %v191
    %5817 = vmatpush1.msra.mxu0 %v190
    %5818 = vmatprep.subr.mxu0 %v194
    %5819 = vmatpush1.msra.mxu0 %v193
    %5820 = vmatprep.subr.mxu0 %v197
    %5821 = vmatpush1.msra.mxu0 %v196
    %5822 = vmatprep.subr.mxu0 %v200
    %5823 = vmatpush1.msra.mxu0 %v199
    %5824 = vmatprep.subr.mxu0 %v203
    %5825 = vmatpush1.msra.mxu0 %v202
    %5826 = vmatprep.subr.mxu0 %v206
    %5827 = vmatpush1.msra.mxu0 %v205
    %5828 = vmatprep.subr.mxu0 %v209
    %5829 = vmatpush1.msra.mxu0 %v208
    %5830 = vmatprep.subr.mxu0 %v212
    %5831 = vmatpush1.msra.mxu0 %v211
    %5832 = vmatprep.subr.mxu0 %v215
    %5833 = vmatpush1.msra.mxu0 %v214
    %5834 = vmatprep.subr.mxu0 %v218
    %5835 = vmatpush1.msra.mxu0 %v217
    %5836 = vmatprep.subr.mxu0 0.0
    %5837 = vmatpush1.msra.mxu0 0.0
    %5838 = vmatprep.subr.mxu0 0.0
    %5839 = vmatpush1.msra.mxu0 0.0
    %5840 = vmatprep.subr.mxu0 0.0
    %5841 = vmatpush1.msra.mxu0 0.0
    %5842 = vmatprep.subr.mxu0 0.0
    %5843 = vmatpush1.msra.mxu0 0.0
    %5844 = vmatprep.subr.mxu0 0.0
    %5845 = vmatpush1.msra.mxu0 0.0
    %5846 = vmatprep.subr.mxu0 0.0
    %5847 = vmatpush1.msra.mxu0 0.0
    %5848 = vmatprep.subr.mxu0 0.0
    %5849 = vmatpush1.msra.mxu0 0.0
    %5850 = vmatprep.subr.mxu0 0.0
    %5851 = vmatpush1.msra.mxu0 0.0
    %5852 = vmatprep.subr.mxu0 0.0
    %5853 = vmatpush1.msra.mxu0 0.0
    %5854 = vmatprep.subr.mxu0 0.0
    %5855 = vmatpush1.msra.mxu0 0.0
    %5856 = vmatprep.subr.mxu0 0.0
    %5857 = vmatpush1.msra.mxu0 0.0
    %5858 = vmatprep.subr.mxu0 0.0
    %5859 = vmatpush1.msra.mxu0 0.0
    %5860 = vmatprep.subr.mxu0 0.0
    %5861 = vmatpush1.msra.mxu0 0.0
    %5862 = vmatprep.subr.mxu0 0.0
    %5863 = vmatpush1.msra.mxu0 0.0
    %5864 = vmatprep.subr.mxu0 0.0
    %5865 = vmatpush1.msra.mxu0 0.0
    %5866 = vmatprep.subr.mxu0 0.0
    %5867 = vmatpush1.msra.mxu0 0.0
    %5868 = vmatprep.mubr.f32.mxu0 0.0
    %5869 = vmatmul.mubr.f32.gmra.mrb[0].mxu0 %v5192
    %v5870 = vpop.f32.mrb[0].mxu0
    %v5871 = vadd.f32 %v1409, %v5870
    %v5872 = vpop.f32.mrb[0].mxu0
    %v5873 = vadd.f32 %v1413, %v5872
    %5874 = vdwg.mxu0
    %5875 = vmatprep.subr.mxu0 0.0
    %5876 = vmatpush1.msra.mxu0 %v174
    %5877 = vmatprep.subr.mxu0 0.0
    %5878 = vmatpush1.msra.mxu0 %v177
    %5879 = vmatprep.subr.mxu0 0.0
    %5880 = vmatpush1.msra.mxu0 %v180
    %5881 = vmatprep.subr.mxu0 0.0
    %5882 = vmatpush1.msra.mxu0 %v183
    %5883 = vmatprep.subr.mxu0 0.0
    %5884 = vmatpush1.msra.mxu0 %v186
    %5885 = vmatprep.subr.mxu0 0.0
    %5886 = vmatpush1.msra.mxu0 %v189
    %5887 = vmatprep.subr.mxu0 0.0
    %5888 = vmatpush1.msra.mxu0 %v192
    %5889 = vmatprep.subr.mxu0 0.0
    %5890 = vmatpush1.msra.mxu0 %v195
    %5891 = vmatprep.subr.mxu0 0.0
    %5892 = vmatpush1.msra.mxu0 %v198
    %5893 = vmatprep.subr.mxu0 0.0
    %5894 = vmatpush1.msra.mxu0 %v201
    %5895 = vmatprep.subr.mxu0 0.0
    %5896 = vmatpush1.msra.mxu0 %v204
    %5897 = vmatprep.subr.mxu0 0.0
    %5898 = vmatpush1.msra.mxu0 %v207
    %5899 = vmatprep.subr.mxu0 0.0
    %5900 = vmatpush1.msra.mxu0 %v210
    %5901 = vmatprep.subr.mxu0 0.0
    %5902 = vmatpush1.msra.mxu0 %v213
    %5903 = vmatprep.subr.mxu0 0.0
    %5904 = vmatpush1.msra.mxu0 %v216
    %5905 = vmatprep.subr.mxu0 0.0
    %5906 = vmatpush1.msra.mxu0 %v219
    %5907 = vmatprep.subr.mxu0 0.0
    %5908 = vmatpush1.msra.mxu0 0.0
    %5909 = vmatprep.subr.mxu0 0.0
    %5910 = vmatpush1.msra.mxu0 0.0
    %5911 = vmatprep.subr.mxu0 0.0
    %5912 = vmatpush1.msra.mxu0 0.0
    %5913 = vmatprep.subr.mxu0 0.0
    %5914 = vmatpush1.msra.mxu0 0.0
    %5915 = vmatprep.subr.mxu0 0.0
    %5916 = vmatpush1.msra.mxu0 0.0
    %5917 = vmatprep.subr.mxu0 0.0
    %5918 = vmatpush1.msra.mxu0 0.0
    %5919 = vmatprep.subr.mxu0 0.0
    %5920 = vmatpush1.msra.mxu0 0.0
    %5921 = vmatprep.subr.mxu0 0.0
    %5922 = vmatpush1.msra.mxu0 0.0
    %5923 = vmatprep.subr.mxu0 0.0
    %5924 = vmatpush1.msra.mxu0 0.0
    %5925 = vmatprep.subr.mxu0 0.0
    %5926 = vmatpush1.msra.mxu0 0.0
    %5927 = vmatprep.subr.mxu0 0.0
    %5928 = vmatpush1.msra.mxu0 0.0
    %5929 = vmatprep.subr.mxu0 0.0
    %5930 = vmatpush1.msra.mxu0 0.0
    %5931 = vmatprep.subr.mxu0 0.0
    %5932 = vmatpush1.msra.mxu0 0.0
    %5933 = vmatprep.subr.mxu0 0.0
    %5934 = vmatpush1.msra.mxu0 0.0
    %5935 = vmatprep.subr.mxu0 0.0
    %5936 = vmatpush1.msra.mxu0 0.0
    %5937 = vmatprep.subr.mxu0 0.0
    %5938 = vmatpush1.msra.mxu0 0.0
    %5939 = vmatprep.mubr.f32.mxu0 0.0
    %5940 = vmatmul.mubr.f32.gmra.mrb[0].mxu0 %v5192
    %v5941 = vpop.f32.mrb[0].mxu0
    %v5942 = vadd.f32 %v1417, %v5941
    %v5943 = vpop.f32.mrb[0].mxu0
    %5944 = vdwg.mxu0
    %5945 = vmatprep.subr.mxu0 %v319
    %5946 = vmatpush1.msra.mxu0 %v318
    %5947 = vmatprep.subr.mxu0 %v322
    %5948 = vmatpush1.msra.mxu0 %v321
    %5949 = vmatprep.subr.mxu0 %v325
    %5950 = vmatpush1.msra.mxu0 %v324
    %5951 = vmatprep.subr.mxu0 %v328
    %5952 = vmatpush1.msra.mxu0 %v327
    %5953 = vmatprep.subr.mxu0 %v331
    %5954 = vmatpush1.msra.mxu0 %v330
    %5955 = vmatprep.subr.mxu0 %v334
    %5956 = vmatpush1.msra.mxu0 %v333
    %5957 = vmatprep.subr.mxu0 %v337
    %5958 = vmatpush1.msra.mxu0 %v336
    %5959 = vmatprep.subr.mxu0 %v340
    %5960 = vmatpush1.msra.mxu0 %v339
    %5961 = vmatprep.subr.mxu0 %v343
    %5962 = vmatpush1.msra.mxu0 %v342
    %5963 = vmatprep.subr.mxu0 %v346
    %5964 = vmatpush1.msra.mxu0 %v345
    %5965 = vmatprep.subr.mxu0 %v349
    %5966 = vmatpush1.msra.mxu0 %v348
    %5967 = vmatprep.subr.mxu0 %v352
    %5968 = vmatpush1.msra.mxu0 %v351
    %5969 = vmatprep.subr.mxu0 %v355
    %5970 = vmatpush1.msra.mxu0 %v354
    %5971 = vmatprep.subr.mxu0 %v358
    %5972 = vmatpush1.msra.mxu0 %v357
    %5973 = vmatprep.subr.mxu0 %v361
    %5974 = vmatpush1.msra.mxu0 %v360
    %5975 = vmatprep.subr.mxu0 %v364
    %5976 = vmatpush1.msra.mxu0 %v363
    %5977 = vmatprep.subr.mxu0 0.0
    %5978 = vmatpush1.msra.mxu0 0.0
    %5979 = vmatprep.subr.mxu0 0.0
    %5980 = vmatpush1.msra.mxu0 0.0
    %5981 = vmatprep.subr.mxu0 0.0
    %5982 = vmatpush1.msra.mxu0 0.0
    %5983 = vmatprep.subr.mxu0 0.0
    %5984 = vmatpush1.msra.mxu0 0.0
    %5985 = vmatprep.subr.mxu0 0.0
    %5986 = vmatpush1.msra.mxu0 0.0
    %5987 = vmatprep.subr.mxu0 0.0
    %5988 = vmatpush1.msra.mxu0 0.0
    %5989 = vmatprep.subr.mxu0 0.0
    %5990 = vmatpush1.msra.mxu0 0.0
    %5991 = vmatprep.subr.mxu0 0.0
    %5992 = vmatpush1.msra.mxu0 0.0
    %5993 = vmatprep.subr.mxu0 0.0
    %5994 = vmatpush1.msra.mxu0 0.0
    %5995 = vmatprep.subr.mxu0 0.0
    %5996 = vmatpush1.msra.mxu0 0.0
    %5997 = vmatprep.subr.mxu0 0.0
    %5998 = vmatpush1.msra.mxu0 0.0
    %5999 = vmatprep.subr.mxu0 0.0
    %6000 = vmatpush1.msra.mxu0 0.0
    %6001 = vmatprep.subr.mxu0 0.0
    %6002 = vmatpush1.msra.mxu0 0.0
    %6003 = vmatprep.subr.mxu0 0.0
    %6004 = vmatpush1.msra.mxu0 0.0
    %6005 = vmatprep.subr.mxu0 0.0
    %6006 = vmatpush1.msra.mxu0 0.0
    %6007 = vmatprep.subr.mxu0 0.0
    %6008 = vmatpush1.msra.mxu0 0.0
    %6009 = vmatprep.mubr.f32.mxu0 0.0
    %6010 = vmatmul.mubr.f32.gmra.mrb[0].mxu0 %v5496
    %v6011 = vpop.f32.mrb[0].mxu0
    %v6012 = vadd.f32 0.0, %v6011
    %v6013 = vpop.f32.mrb[0].mxu0
    %v6014 = vadd.f32 0.0, %v6013
    %6015 = vdwg.mxu0
    %6016 = vmatprep.subr.mxu0 0.0
    %6017 = vmatpush1.msra.mxu0 %v320
    %6018 = vmatprep.subr.mxu0 0.0
    %6019 = vmatpush1.msra.mxu0 %v323
    %6020 = vmatprep.subr.mxu0 0.0
    %6021 = vmatpush1.msra.mxu0 %v326
    %6022 = vmatprep.subr.mxu0 0.0
    %6023 = vmatpush1.msra.mxu0 %v329
    %6024 = vmatprep.subr.mxu0 0.0
    %6025 = vmatpush1.msra.mxu0 %v332
    %6026 = vmatprep.subr.mxu0 0.0
    %6027 = vmatpush1.msra.mxu0 %v335
    %6028 = vmatprep.subr.mxu0 0.0
    %6029 = vmatpush1.msra.mxu0 %v338
    %6030 = vmatprep.subr.mxu0 0.0
    %6031 = vmatpush1.msra.mxu0 %v341
    %6032 = vmatprep.subr.mxu0 0.0
    %6033 = vmatpush1.msra.mxu0 %v344
    %6034 = vmatprep.subr.mxu0 0.0
    %6035 = vmatpush1.msra.mxu0 %v347
    %6036 = vmatprep.subr.mxu0 0.0
    %6037 = vmatpush1.msra.mxu0 %v350
    %6038 = vmatprep.subr.mxu0 0.0
    %6039 = vmatpush1.msra.mxu0 %v353
    %6040 = vmatprep.subr.mxu0 0.0
    %6041 = vmatpush1.msra.mxu0 %v356
    %6042 = vmatprep.subr.mxu0 0.0
    %6043 = vmatpush1.msra.mxu0 %v359
    %6044 = vmatprep.subr.mxu0 0.0
    %6045 = vmatpush1.msra.mxu0 %v362
    %6046 = vmatprep.subr.mxu0 0.0
    %6047 = vmatpush1.msra.mxu0 %v365
    %6048 = vmatprep.subr.mxu0 0.0
    %6049 = vmatpush1.msra.mxu0 0.0
    %6050 = vmatprep.subr.mxu0 0.0
    %6051 = vmatpush1.msra.mxu0 0.0
    %6052 = vmatprep.subr.mxu0 0.0
    %6053 = vmatpush1.msra.mxu0 0.0
    %6054 = vmatprep.subr.mxu0 0.0
    %6055 = vmatpush1.msra.mxu0 0.0
    %6056 = vmatprep.subr.mxu0 0.0
    %6057 = vmatpush1.msra.mxu0 0.0
    %6058 = vmatprep.subr.mxu0 0.0
    %6059 = vmatpush1.msra.mxu0 0.0
    %6060 = vmatprep.subr.mxu0 0.0
    %6061 = vmatpush1.msra.mxu0 0.0
    %6062 = vmatprep.subr.mxu0 0.0
    %6063 = vmatpush1.msra.mxu0 0.0
    %6064 = vmatprep.subr.mxu0 0.0
    %6065 = vmatpush1.msra.mxu0 0.0
    %6066 = vmatprep.subr.mxu0 0.0
    %6067 = vmatpush1.msra.mxu0 0.0
    %6068 = vmatprep.subr.mxu0 0.0
    %6069 = vmatpush1.msra.mxu0 0.0
    %6070 = vmatprep.subr.mxu0 0.0
    %6071 = vmatpush1.msra.mxu0 0.0
    %6072 = vmatprep.subr.mxu0 0.0
    %6073 = vmatpush1.msra.mxu0 0.0
    %6074 = vmatprep.subr.mxu0 0.0
    %6075 = vmatpush1.msra.mxu0 0.0
    %6076 = vmatprep.subr.mxu0 0.0
    %6077 = vmatpush1.msra.mxu0 0.0
    %6078 = vmatprep.subr.mxu0 0.0
    %6079 = vmatpush1.msra.mxu0 0.0
    %6080 = vmatprep.mubr.f32.mxu0 0.0
    %6081 = vmatmul.mubr.f32.gmra.mrb[0].mxu0 %v5496
    %v6082 = vpop.f32.mrb[0].mxu0
    %v6083 = vadd.f32 0.0, %v6082
    %v6084 = vpop.f32.mrb[0].mxu0
    %6085 = vdwg.mxu0
    %v6086 = vadd.f32 %v5871, %v6012
    %v6087 = vadd.f32 %v5873, %v6014
    %v6088 = vxor.u32 %v6086, 2147483648
    %v6089 = vxor.u32 %v6087, 2147483648
    %v6090 = vmul.f32 %v6088, 1.442695
    %v6091 = vpow.pop %v6090
    %v6092 = vmul.f32 %v6089, 1.442695
    %v6093 = vpow.pop %v6092
    %v6094 = vadd.f32 %v6091, 1.0
    %v6095 = vadd.f32 %v6093, 1.0
    %v6096 = vrcp.pop %v6094
    %v6097 = vmul.f32 1.0, %v6096
    %v6098 = vrcp.pop %v6095
    %v6099 = vmul.f32 1.0, %v6098
    %v6100 = vadd.f32 %v6083, %v1578
    %v6101 = vmul.f32 %v6097, %v6100
    %v6102 = vadd.f32 %v5942, %v6101
    %v6103 = vtanh.pop %v6102
    %v6104 = vsub.f32 1.0, %v6099
    %v6105 = vmul.f32 %v6104, %v6103
    %v6106 = vmul.f32 %v6099, %v5496
    %v6107 = vadd.f32 %v6105, %v6106
    %6108 = vmatprep.subr.mxu0 %v173
    %6109 = vmatpush1.msra.mxu0 %v172
    %6110 = vmatprep.subr.mxu0 %v176
    %6111 = vmatpush1.msra.mxu0 %v175
    %6112 = vmatprep.subr.mxu0 %v179
    %6113 = vmatpush1.msra.mxu0 %v178
    %6114 = vmatprep.subr.mxu0 %v182
    %6115 = vmatpush1.msra.mxu0 %v181
    %6116 = vmatprep.subr.mxu0 %v185
    %6117 = vmatpush1.msra.mxu0 %v184
    %6118 = vmatprep.subr.mxu0 %v188
    %6119 = vmatpush1.msra.mxu0 %v187
    %6120 = vmatprep.subr.mxu0 %v191
    %6121 = vmatpush1.msra.mxu0 %v190
    %6122 = vmatprep.subr.mxu0 %v194
    %6123 = vmatpush1.msra.mxu0 %v193
    %6124 = vmatprep.subr.mxu0 %v197
    %6125 = vmatpush1.msra.mxu0 %v196
    %6126 = vmatprep.subr.mxu0 %v200
    %6127 = vmatpush1.msra.mxu0 %v199
    %6128 = vmatprep.subr.mxu0 %v203
    %6129 = vmatpush1.msra.mxu0 %v202
    %6130 = vmatprep.subr.mxu0 %v206
    %6131 = vmatpush1.msra.mxu0 %v205
    %6132 = vmatprep.subr.mxu0 %v209
    %6133 = vmatpush1.msra.mxu0 %v208
    %6134 = vmatprep.subr.mxu0 %v212
    %6135 = vmatpush1.msra.mxu0 %v211
    %6136 = vmatprep.subr.mxu0 %v215
    %6137 = vmatpush1.msra.mxu0 %v214
    %6138 = vmatprep.subr.mxu0 %v218
    %6139 = vmatpush1.msra.mxu0 %v217
    %6140 = vmatprep.subr.mxu0 0.0
    %6141 = vmatpush1.msra.mxu0 0.0
    %6142 = vmatprep.subr.mxu0 0.0
    %6143 = vmatpush1.msra.mxu0 0.0
    %6144 = vmatprep.subr.mxu0 0.0
    %6145 = vmatpush1.msra.mxu0 0.0
    %6146 = vmatprep.subr.mxu0 0.0
    %6147 = vmatpush1.msra.mxu0 0.0
    %6148 = vmatprep.subr.mxu0 0.0
    %6149 = vmatpush1.msra.mxu0 0.0
    %6150 = vmatprep.subr.mxu0 0.0
    %6151 = vmatpush1.msra.mxu0 0.0
    %6152 = vmatprep.subr.mxu0 0.0
    %6153 = vmatpush1.msra.mxu0 0.0
    %6154 = vmatprep.subr.mxu0 0.0
    %6155 = vmatpush1.msra.mxu0 0.0
    %6156 = vmatprep.subr.mxu0 0.0
    %6157 = vmatpush1.msra.mxu0 0.0
    %6158 = vmatprep.subr.mxu0 0.0
    %6159 = vmatpush1.msra.mxu0 0.0
    %6160 = vmatprep.subr.mxu0 0.0
    %6161 = vmatpush1.msra.mxu0 0.0
    %6162 = vmatprep.subr.mxu0 0.0
    %6163 = vmatpush1.msra.mxu0 0.0
    %6164 = vmatprep.subr.mxu0 0.0
    %6165 = vmatpush1.msra.mxu0 0.0
    %6166 = vmatprep.subr.mxu0 0.0
    %6167 = vmatpush1.msra.mxu0 0.0
    %6168 = vmatprep.subr.mxu0 0.0
    %6169 = vmatpush1.msra.mxu0 0.0
    %6170 = vmatprep.subr.mxu0 0.0
    %6171 = vmatpush1.msra.mxu0 0.0
    %6172 = vmatprep.mubr.f32.mxu0 0.0
    %6173 = vmatmul.mubr.f32.gmra.mrb[0].mxu0 %v5803
    %v6174 = vpop.f32.mrb[0].mxu0
    %v6175 = vadd.f32 %v1409, %v6174
    %v6176 = vpop.f32.mrb[0].mxu0
    %v6177 = vadd.f32 %v1413, %v6176
    %6178 = vdwg.mxu0
    %6179 = vmatprep.subr.mxu0 0.0
    %6180 = vmatpush1.msra.mxu0 %v174
    %6181 = vmatprep.subr.mxu0 0.0
    %6182 = vmatpush1.msra.mxu0 %v177
    %6183 = vmatprep.subr.mxu0 0.0
    %6184 = vmatpush1.msra.mxu0 %v180
    %6185 = vmatprep.subr.mxu0 0.0
    %6186 = vmatpush1.msra.mxu0 %v183
    %6187 = vmatprep.subr.mxu0 0.0
    %6188 = vmatpush1.msra.mxu0 %v186
    %6189 = vmatprep.subr.mxu0 0.0
    %6190 = vmatpush1.msra.mxu0 %v189
    %6191 = vmatprep.subr.mxu0 0.0
    %6192 = vmatpush1.msra.mxu0 %v192
    %6193 = vmatprep.subr.mxu0 0.0
    %6194 = vmatpush1.msra.mxu0 %v195
    %6195 = vmatprep.subr.mxu0 0.0
    %6196 = vmatpush1.msra.mxu0 %v198
    %6197 = vmatprep.subr.mxu0 0.0
    %6198 = vmatpush1.msra.mxu0 %v201
    %6199 = vmatprep.subr.mxu0 0.0
    %6200 = vmatpush1.msra.mxu0 %v204
    %6201 = vmatprep.subr.mxu0 0.0
    %6202 = vmatpush1.msra.mxu0 %v207
    %6203 = vmatprep.subr.mxu0 0.0
    %6204 = vmatpush1.msra.mxu0 %v210
    %6205 = vmatprep.subr.mxu0 0.0
    %6206 = vmatpush1.msra.mxu0 %v213
    %6207 = vmatprep.subr.mxu0 0.0
    %6208 = vmatpush1.msra.mxu0 %v216
    %6209 = vmatprep.subr.mxu0 0.0
    %6210 = vmatpush1.msra.mxu0 %v219
    %6211 = vmatprep.subr.mxu0 0.0
    %6212 = vmatpush1.msra.mxu0 0.0
    %6213 = vmatprep.subr.mxu0 0.0
    %6214 = vmatpush1.msra.mxu0 0.0
    %6215 = vmatprep.subr.mxu0 0.0
    %6216 = vmatpush1.msra.mxu0 0.0
    %6217 = vmatprep.subr.mxu0 0.0
    %6218 = vmatpush1.msra.mxu0 0.0
    %6219 = vmatprep.subr.mxu0 0.0
    %6220 = vmatpush1.msra.mxu0 0.0
    %6221 = vmatprep.subr.mxu0 0.0
    %6222 = vmatpush1.msra.mxu0 0.0
    %6223 = vmatprep.subr.mxu0 0.0
    %6224 = vmatpush1.msra.mxu0 0.0
    %6225 = vmatprep.subr.mxu0 0.0
    %6226 = vmatpush1.msra.mxu0 0.0
    %6227 = vmatprep.subr.mxu0 0.0
    %6228 = vmatpush1.msra.mxu0 0.0
    %6229 = vmatprep.subr.mxu0 0.0
    %6230 = vmatpush1.msra.mxu0 0.0
    %6231 = vmatprep.subr.mxu0 0.0
    %6232 = vmatpush1.msra.mxu0 0.0
    %6233 = vmatprep.subr.mxu0 0.0
    %6234 = vmatpush1.msra.mxu0 0.0
    %6235 = vmatprep.subr.mxu0 0.0
    %6236 = vmatpush1.msra.mxu0 0.0
    %6237 = vmatprep.subr.mxu0 0.0
    %6238 = vmatpush1.msra.mxu0 0.0
    %6239 = vmatprep.subr.mxu0 0.0
    %6240 = vmatpush1.msra.mxu0 0.0
    %6241 = vmatprep.subr.mxu0 0.0
    %6242 = vmatpush1.msra.mxu0 0.0
    %6243 = vmatprep.mubr.f32.mxu0 0.0
    %6244 = vmatmul.mubr.f32.gmra.mrb[0].mxu0 %v5803
    %v6245 = vpop.f32.mrb[0].mxu0
    %v6246 = vadd.f32 %v1417, %v6245
    %v6247 = vpop.f32.mrb[0].mxu0
    %6248 = vdwg.mxu0
    %6249 = vmatprep.subr.mxu0 %v319
    %6250 = vmatpush1.msra.mxu0 %v318
    %6251 = vmatprep.subr.mxu0 %v322
    %6252 = vmatpush1.msra.mxu0 %v321
    %6253 = vmatprep.subr.mxu0 %v325
    %6254 = vmatpush1.msra.mxu0 %v324
    %6255 = vmatprep.subr.mxu0 %v328
    %6256 = vmatpush1.msra.mxu0 %v327
    %6257 = vmatprep.subr.mxu0 %v331
    %6258 = vmatpush1.msra.mxu0 %v330
    %6259 = vmatprep.subr.mxu0 %v334
    %6260 = vmatpush1.msra.mxu0 %v333
    %6261 = vmatprep.subr.mxu0 %v337
    %6262 = vmatpush1.msra.mxu0 %v336
    %6263 = vmatprep.subr.mxu0 %v340
    %6264 = vmatpush1.msra.mxu0 %v339
    %6265 = vmatprep.subr.mxu0 %v343
    %6266 = vmatpush1.msra.mxu0 %v342
    %6267 = vmatprep.subr.mxu0 %v346
    %6268 = vmatpush1.msra.mxu0 %v345
    %6269 = vmatprep.subr.mxu0 %v349
    %6270 = vmatpush1.msra.mxu0 %v348
    %6271 = vmatprep.subr.mxu0 %v352
    %6272 = vmatpush1.msra.mxu0 %v351
    %6273 = vmatprep.subr.mxu0 %v355
    %6274 = vmatpush1.msra.mxu0 %v354
    %6275 = vmatprep.subr.mxu0 %v358
    %6276 = vmatpush1.msra.mxu0 %v357
    %6277 = vmatprep.subr.mxu0 %v361
    %6278 = vmatpush1.msra.mxu0 %v360
    %6279 = vmatprep.subr.mxu0 %v364
    %6280 = vmatpush1.msra.mxu0 %v363
    %6281 = vmatprep.subr.mxu0 0.0
    %6282 = vmatpush1.msra.mxu0 0.0
    %6283 = vmatprep.subr.mxu0 0.0
    %6284 = vmatpush1.msra.mxu0 0.0
    %6285 = vmatprep.subr.mxu0 0.0
    %6286 = vmatpush1.msra.mxu0 0.0
    %6287 = vmatprep.subr.mxu0 0.0
    %6288 = vmatpush1.msra.mxu0 0.0
    %6289 = vmatprep.subr.mxu0 0.0
    %6290 = vmatpush1.msra.mxu0 0.0
    %6291 = vmatprep.subr.mxu0 0.0
    %6292 = vmatpush1.msra.mxu0 0.0
    %6293 = vmatprep.subr.mxu0 0.0
    %6294 = vmatpush1.msra.mxu0 0.0
    %6295 = vmatprep.subr.mxu0 0.0
    %6296 = vmatpush1.msra.mxu0 0.0
    %6297 = vmatprep.subr.mxu0 0.0
    %6298 = vmatpush1.msra.mxu0 0.0
    %6299 = vmatprep.subr.mxu0 0.0
    %6300 = vmatpush1.msra.mxu0 0.0
    %6301 = vmatprep.subr.mxu0 0.0
    %6302 = vmatpush1.msra.mxu0 0.0
    %6303 = vmatprep.subr.mxu0 0.0
    %6304 = vmatpush1.msra.mxu0 0.0
    %6305 = vmatprep.subr.mxu0 0.0
    %6306 = vmatpush1.msra.mxu0 0.0
    %6307 = vmatprep.subr.mxu0 0.0
    %6308 = vmatpush1.msra.mxu0 0.0
    %6309 = vmatprep.subr.mxu0 0.0
    %6310 = vmatpush1.msra.mxu0 0.0
    %6311 = vmatprep.subr.mxu0 0.0
    %6312 = vmatpush1.msra.mxu0 0.0
    %6313 = vmatprep.mubr.f32.mxu0 0.0
    %6314 = vmatmul.mubr.f32.gmra.mrb[0].mxu0 %v6107
    %v6315 = vpop.f32.mrb[0].mxu0
    %v6316 = vadd.f32 0.0, %v6315
    %v6317 = vpop.f32.mrb[0].mxu0
    %v6318 = vadd.f32 0.0, %v6317
    %6319 = vdwg.mxu0
    %6320 = vmatprep.subr.mxu0 0.0
    %6321 = vmatpush1.msra.mxu0 %v320
    %6322 = vmatprep.subr.mxu0 0.0
    %6323 = vmatpush1.msra.mxu0 %v323
    %6324 = vmatprep.subr.mxu0 0.0
    %6325 = vmatpush1.msra.mxu0 %v326
    %6326 = vmatprep.subr.mxu0 0.0
    %6327 = vmatpush1.msra.mxu0 %v329
    %6328 = vmatprep.subr.mxu0 0.0
    %6329 = vmatpush1.msra.mxu0 %v332
    %6330 = vmatprep.subr.mxu0 0.0
    %6331 = vmatpush1.msra.mxu0 %v335
    %6332 = vmatprep.subr.mxu0 0.0
    %6333 = vmatpush1.msra.mxu0 %v338
    %6334 = vmatprep.subr.mxu0 0.0
    %6335 = vmatpush1.msra.mxu0 %v341
    %6336 = vmatprep.subr.mxu0 0.0
    %6337 = vmatpush1.msra.mxu0 %v344
    %6338 = vmatprep.subr.mxu0 0.0
    %6339 = vmatpush1.msra.mxu0 %v347
    %6340 = vmatprep.subr.mxu0 0.0
    %6341 = vmatpush1.msra.mxu0 %v350
    %6342 = vmatprep.subr.mxu0 0.0
    %6343 = vmatpush1.msra.mxu0 %v353
    %6344 = vmatprep.subr.mxu0 0.0
    %6345 = vmatpush1.msra.mxu0 %v356
    %6346 = vmatprep.subr.mxu0 0.0
    %6347 = vmatpush1.msra.mxu0 %v359
    %6348 = vmatprep.subr.mxu0 0.0
    %6349 = vmatpush1.msra.mxu0 %v362
    %6350 = vmatprep.subr.mxu0 0.0
    %6351 = vmatpush1.msra.mxu0 %v365
    %6352 = vmatprep.subr.mxu0 0.0
    %6353 = vmatpush1.msra.mxu0 0.0
    %6354 = vmatprep.subr.mxu0 0.0
    %6355 = vmatpush1.msra.mxu0 0.0
    %6356 = vmatprep.subr.mxu0 0.0
    %6357 = vmatpush1.msra.mxu0 0.0
    %6358 = vmatprep.subr.mxu0 0.0
    %6359 = vmatpush1.msra.mxu0 0.0
    %6360 = vmatprep.subr.mxu0 0.0
    %6361 = vmatpush1.msra.mxu0 0.0
    %6362 = vmatprep.subr.mxu0 0.0
    %6363 = vmatpush1.msra.mxu0 0.0
    %6364 = vmatprep.subr.mxu0 0.0
    %6365 = vmatpush1.msra.mxu0 0.0
    %6366 = vmatprep.subr.mxu0 0.0
    %6367 = vmatpush1.msra.mxu0 0.0
    %6368 = vmatprep.subr.mxu0 0.0
    %6369 = vmatpush1.msra.mxu0 0.0
    %6370 = vmatprep.subr.mxu0 0.0
    %6371 = vmatpush1.msra.mxu0 0.0
    %6372 = vmatprep.subr.mxu0 0.0
    %6373 = vmatpush1.msra.mxu0 0.0
    %6374 = vmatprep.subr.mxu0 0.0
    %6375 = vmatpush1.msra.mxu0 0.0
    %6376 = vmatprep.subr.mxu0 0.0
    %6377 = vmatpush1.msra.mxu0 0.0
    %6378 = vmatprep.subr.mxu0 0.0
    %6379 = vmatpush1.msra.mxu0 0.0
    %6380 = vmatprep.subr.mxu0 0.0
    %6381 = vmatpush1.msra.mxu0 0.0
    %6382 = vmatprep.subr.mxu0 0.0
    %6383 = vmatpush1.msra.mxu0 0.0
    %6384 = vmatprep.mubr.f32.mxu0 0.0
    %6385 = vmatmul.mubr.f32.gmra.mrb[0].mxu0 %v6107
    %v6386 = vpop.f32.mrb[0].mxu0
    %v6387 = vadd.f32 0.0, %v6386
    %v6388 = vpop.f32.mrb[0].mxu0
    %6389 = vdwg.mxu0
    %v6390 = vadd.f32 %v6175, %v6316
    %v6391 = vadd.f32 %v6177, %v6318
    %v6392 = vxor.u32 %v6390, 2147483648
    %v6393 = vxor.u32 %v6391, 2147483648
    %v6394 = vmul.f32 %v6392, 1.442695
    %v6395 = vpow.pop %v6394
    %v6396 = vmul.f32 %v6393, 1.442695
    %v6397 = vpow.pop %v6396
    %v6398 = vadd.f32 %v6395, 1.0
    %v6399 = vadd.f32 %v6397, 1.0
    %v6400 = vrcp.pop %v6398
    %v6401 = vmul.f32 1.0, %v6400
    %v6402 = vrcp.pop %v6399
    %v6403 = vmul.f32 1.0, %v6402
    %v6404 = vadd.f32 %v6387, %v1578
    %v6405 = vmul.f32 %v6401, %v6404
    %v6406 = vadd.f32 %v6246, %v6405
    %v6407 = vtanh.pop %v6406
    %v6408 = vsub.f32 1.0, %v6403
    %v6409 = vmul.f32 %v6408, %v6407
    %v6410 = vmul.f32 %v6403, %v6107
    %v6411 = vadd.f32 %v6409, %v6410
    %v6414 = vunpack.c.l.s4 1966171168
    %v6415 = vunpack.c.0.s8 %v6414
    %v6416 = vlaneseq
    %v6417 = vshrl.u32 %v6416, 7
    %v6418 = vsub.s32 %v6415, %v6417
    %v6419 = vrot.slane %v1584, %v6418
    %v6420 = vcombine.high %v6419, %v6419
    %v6422 = vunpack.c.l.s4 1966171168
    %v6423 = vunpack.c.0.s8 %v6422
    %v6424 = vlaneseq
    %v6425 = vshrl.u32 %v6424, 7
    %v6426 = vsub.s32 %v6423, %v6425
    %v6427 = vrot.slane %v6419, %v6426
    %v6429 = vunpack.c.l.s4 1966171168
    %v6430 = vunpack.c.0.s8 %v6429
    %v6431 = vlaneseq
    %v6432 = vshrl.u32 %v6431, 7
    %v6433 = vsub.s32 %v6430, %v6432
    %v6434 = vrot.slane %v6420, %v6433
    %v6439 = vunpack.c.l.s4 1966171168
    %v6440 = vunpack.c.0.s8 %v6439
    %v6441 = vlaneseq
    %v6442 = vshrl.u32 %v6441, 7
    %v6443 = vsub.s32 %v6440, %v6442
    %v6444 = vrot.slane %v2369, %v6443
    %v6445 = vcombine.high %v6444, %v6444
    %v6447 = vunpack.c.l.s4 1966171168
    %v6448 = vunpack.c.0.s8 %v6447
    %v6449 = vlaneseq
    %v6450 = vshrl.u32 %v6449, 7
    %v6451 = vsub.s32 %v6448, %v6450
    %v6452 = vrot.slane %v6444, %v6451
    %v6454 = vunpack.c.l.s4 1966171168
    %v6455 = vunpack.c.0.s8 %v6454
    %v6456 = vlaneseq
    %v6457 = vshrl.u32 %v6456, 7
    %v6458 = vsub.s32 %v6455, %v6457
    %v6459 = vrot.slane %v6445, %v6458
    %v6462 = vunpack.c.l.s4 1966171168
    %v6463 = vunpack.c.0.s8 %v6462
    %v6464 = vlaneseq
    %v6465 = vshrl.u32 %v6464, 7
    %v6466 = vsub.s32 %v6463, %v6465
    %v6467 = vrot.slane %v3143, %v6466
    %v6468 = vcombine.high %v6467, %v6467
    %v6470 = vunpack.c.l.s4 1966171168
    %v6471 = vunpack.c.0.s8 %v6470
    %v6472 = vlaneseq
    %v6473 = vshrl.u32 %v6472, 7
    %v6474 = vsub.s32 %v6471, %v6473
    %v6475 = vrot.slane %v6467, %v6474
    %v6477 = vunpack.c.l.s4 1966171168
    %v6478 = vunpack.c.0.s8 %v6477
    %v6479 = vlaneseq
    %v6480 = vshrl.u32 %v6479, 7
    %v6481 = vsub.s32 %v6478, %v6480
    %v6482 = vrot.slane %v6468, %v6481
    %v6485 = vunpack.c.l.s4 1966171168
    %v6486 = vunpack.c.0.s8 %v6485
    %v6487 = vlaneseq
    %v6488 = vshrl.u32 %v6487, 7
    %v6489 = vsub.s32 %v6486, %v6488
    %v6490 = vrot.slane %v3926, %v6489
    %v6491 = vcombine.high %v6490, %v6490
    %v6493 = vunpack.c.l.s4 1966171168
    %v6494 = vunpack.c.0.s8 %v6493
    %v6495 = vlaneseq
    %v6496 = vshrl.u32 %v6495, 7
    %v6497 = vsub.s32 %v6494, %v6496
    %v6498 = vrot.slane %v6490, %v6497
    %v6500 = vunpack.c.l.s4 1966171168
    %v6501 = vunpack.c.0.s8 %v6500
    %v6502 = vlaneseq
    %v6503 = vshrl.u32 %v6502, 7
    %v6504 = vsub.s32 %v6501, %v6503
    %v6505 = vrot.slane %v6491, %v6504
    %v6508 = vunpack.c.l.s4 1966171168
    %v6509 = vunpack.c.0.s8 %v6508
    %v6510 = vlaneseq
    %v6511 = vshrl.u32 %v6510, 7
    %v6512 = vsub.s32 %v6509, %v6511
    %v6513 = vrot.slane %v4711, %v6512
    %v6514 = vcombine.high %v6513, %v6513
    %v6516 = vunpack.c.l.s4 1966171168
    %v6517 = vunpack.c.0.s8 %v6516
    %v6518 = vlaneseq
    %v6519 = vshrl.u32 %v6518, 7
    %v6520 = vsub.s32 %v6517, %v6519
    %v6521 = vrot.slane %v6513, %v6520
    %v6523 = vunpack.c.l.s4 1966171168
    %v6524 = vunpack.c.0.s8 %v6523
    %v6525 = vlaneseq
    %v6526 = vshrl.u32 %v6525, 7
    %v6527 = vsub.s32 %v6524, %v6526
    %v6528 = vrot.slane %v6514, %v6527
    %v6531 = vunpack.c.l.s4 1966171168
    %v6532 = vunpack.c.0.s8 %v6531
    %v6533 = vlaneseq
    %v6534 = vshrl.u32 %v6533, 7
    %v6535 = vsub.s32 %v6532, %v6534
    %v6536 = vrot.slane %v5496, %v6535
    %v6537 = vcombine.high %v6536, %v6536
    %v6539 = vunpack.c.l.s4 1966171168
    %v6540 = vunpack.c.0.s8 %v6539
    %v6541 = vlaneseq
    %v6542 = vshrl.u32 %v6541, 7
    %v6543 = vsub.s32 %v6540, %v6542
    %v6544 = vrot.slane %v6536, %v6543
    %v6546 = vunpack.c.l.s4 1966171168
    %v6547 = vunpack.c.0.s8 %v6546
    %v6548 = vlaneseq
    %v6549 = vshrl.u32 %v6548, 7
    %v6550 = vsub.s32 %v6547, %v6549
    %v6551 = vrot.slane %v6537, %v6550
    %v6554 = vunpack.c.l.s4 1966171168
    %v6555 = vunpack.c.0.s8 %v6554
    %v6556 = vlaneseq
    %v6557 = vshrl.u32 %v6556, 7
    %v6558 = vsub.s32 %v6555, %v6557
    %v6559 = vrot.slane %v6107, %v6558
    %v6560 = vcombine.high %v6559, %v6559
    %v6562 = vunpack.c.l.s4 1966171168
    %v6563 = vunpack.c.0.s8 %v6562
    %v6564 = vlaneseq
    %v6565 = vshrl.u32 %v6564, 7
    %v6566 = vsub.s32 %v6563, %v6565
    %v6567 = vrot.slane %v6559, %v6566
    %v6569 = vunpack.c.l.s4 1966171168
    %v6570 = vunpack.c.0.s8 %v6569
    %v6571 = vlaneseq
    %v6572 = vshrl.u32 %v6571, 7
    %v6573 = vsub.s32 %v6570, %v6572
    %v6574 = vrot.slane %v6560, %v6573
    %v6577 = vunpack.c.l.s4 1966171168
    %v6578 = vunpack.c.0.s8 %v6577
    %v6579 = vlaneseq
    %v6580 = vshrl.u32 %v6579, 7
    %v6581 = vsub.s32 %v6578, %v6580
    %v6582 = vrot.slane %v6411, %v6581
    %v6583 = vcombine.high %v6582, %v6582
    %v6585 = vunpack.c.l.s4 1966171168
    %v6586 = vunpack.c.0.s8 %v6585
    %v6587 = vlaneseq
    %v6588 = vshrl.u32 %v6587, 7
    %v6589 = vsub.s32 %v6586, %v6588
    %v6590 = vrot.slane %v6582, %v6589
    %v6592 = vunpack.c.l.s4 1966171168
    %v6593 = vunpack.c.0.s8 %v6592
    %v6594 = vlaneseq
    %v6595 = vshrl.u32 %v6594, 7
    %v6596 = vsub.s32 %v6593, %v6595
    %v6597 = vrot.slane %v6583, %v6596
    %v6598 = vlaneseq
    %v6599 = vshrl.u32 %v6598, 7
    %v6600 = vsub.s32 0, %v6599
    %v6601 = vrot.slane %v6452, %v6600
    %v6602 = vlaneseq
    %v6603 = vshrl.u32 %v6602, 7
    %v6604 = vsub.s32 0, %v6603
    %v6605 = vrot.slane %v6459, %v6604
    %v6608 = vlaneseq
    %v6609 = vshrl.u32 %v6608, 7
    %v6610 = vsub.s32 0, %v6609
    %v6611 = vrot.slane %v6475, %v6610
    %v6612 = vlaneseq
    %v6613 = vshrl.u32 %v6612, 7
    %v6614 = vsub.s32 0, %v6613
    %v6615 = vrot.slane %v6482, %v6614
    %v6618 = vlaneseq
    %v6619 = vshrl.u32 %v6618, 7
    %v6620 = vsub.s32 0, %v6619
    %v6621 = vrot.slane %v6498, %v6620
    %v6622 = vlaneseq
    %v6623 = vshrl.u32 %v6622, 7
    %v6624 = vsub.s32 0, %v6623
    %v6625 = vrot.slane %v6505, %v6624
    %v6628 = vlaneseq
    %v6629 = vshrl.u32 %v6628, 7
    %v6630 = vsub.s32 0, %v6629
    %v6631 = vrot.slane %v6521, %v6630
    %v6632 = vlaneseq
    %v6633 = vshrl.u32 %v6632, 7
    %v6634 = vsub.s32 0, %v6633
    %v6635 = vrot.slane %v6528, %v6634
    %v6638 = vlaneseq
    %v6639 = vshrl.u32 %v6638, 7
    %v6640 = vsub.s32 0, %v6639
    %v6641 = vrot.slane %v6544, %v6640
    %v6642 = vlaneseq
    %v6643 = vshrl.u32 %v6642, 7
    %v6644 = vsub.s32 0, %v6643
    %v6645 = vrot.slane %v6551, %v6644
    %v6648 = vlaneseq
    %v6649 = vshrl.u32 %v6648, 7
    %v6650 = vsub.s32 0, %v6649
    %v6651 = vrot.slane %v6567, %v6650
    %v6652 = vlaneseq
    %v6653 = vshrl.u32 %v6652, 7
    %v6654 = vsub.s32 0, %v6653
    %v6655 = vrot.slane %v6574, %v6654
    %v6658 = vlaneseq
    %v6659 = vshrl.u32 %v6658, 7
    %v6660 = vsub.s32 0, %v6659
    %v6661 = vrot.slane %v6590, %v6660
    %v6662 = vlaneseq
    %v6663 = vshrl.u32 %v6662, 7
    %v6664 = vsub.s32 0, %v6663
    %v6665 = vrot.slane %v6597, %v6664
    %vm6668 = vcmask 1040384
    %v6669 = vsel %vm6668, %v6427, %v6601
    %v6670 = vsel %vm6668, %v6434, %v6605
    %vm6671 = vcmask 1041408
    %v6672 = vsel %vm6671, %v6669, %v6611
    %v6673 = vsel %vm6671, %v6670, %v6615
    %vm6674 = vcmask 1042432
    %v6675 = vsel %vm6674, %v6672, %v6621
    %v6676 = vsel %vm6674, %v6673, %v6625
    %vm6677 = vcmask 1043456
    %v6678 = vsel %vm6677, %v6675, %v6631
    %v6679 = vsel %vm6677, %v6676, %v6635
    %vm6680 = vcmask 1044480
    %v6681 = vsel %vm6680, %v6678, %v6641
    %v6682 = vsel %vm6680, %v6679, %v6645
    %vm6683 = vcmask 1045504
    %v6684 = vsel %vm6683, %v6681, %v6651
    %v6685 = vsel %vm6683, %v6682, %v6655
    %vm6686 = vcmask 1046528
    %v6687 = vsel %vm6686, %v6684, %v6661
    %v6688 = vsel %vm6686, %v6685, %v6665
    %v6689 = vld [vmem:[%s5] sm:$0xff]
    %v6690 = vld [vmem:[%s5 + $0x8] sm:$0xff]
    %v6691 = vld [vmem:[%s5 + $0x10] sm:$0xff]
    %v6692 = vld [vmem:[%s5 + $0x18] sm:$0xff]
    %v6693 = vld [vmem:[%s5 + $0x20] sm:$0xff]
    %v6694 = vld [vmem:[%s5 + $0x28] sm:$0xff]
    %v6695 = vld [vmem:[%s5 + $0x30] sm:$0xff]
    %v6696 = vld [vmem:[%s5 + $0x38] sm:$0xff]
    %v6697 = vld [vmem:[%s5 + $0x40] sm:$0xff]
    %v6698 = vld [vmem:[%s5 + $0x48] sm:$0xff]
    %v6699 = vld [vmem:[%s5 + $0x50] sm:$0xff]
    %v6700 = vld [vmem:[%s5 + $0x58] sm:$0xff]
    %v6701 = vld [vmem:[%s5 + $0x60] sm:$0xff]
    %v6702 = vld [vmem:[%s5 + $0x68] sm:$0xff]
    %v6703 = vld [vmem:[%s5 + $0x70] sm:$0xff]
    %v6704 = vld [vmem:[%s5 + $0x78] sm:$0xff]
    %v6705 = vld [vmem:[%s6] sm:$0x1]
    %v6707 = vlaneseq
    %v6708 = vshrl.u32 %v6707, 7
    %v6709 = vsub.s32 0, %v6708
    %v6710 = vrot.slane %v6705, %v6709
    %6712 = vmatprep.subr.mxu0 0.0
    %6713 = vmatpush1.msra.mxu0 %v6689
    %6714 = vmatprep.subr.mxu0 0.0
    %6715 = vmatpush1.msra.mxu0 %v6690
    %6716 = vmatprep.subr.mxu0 0.0
    %6717 = vmatpush1.msra.mxu0 %v6691
    %6718 = vmatprep.subr.mxu0 0.0
    %6719 = vmatpush1.msra.mxu0 %v6692
    %6720 = vmatprep.subr.mxu0 0.0
    %6721 = vmatpush1.msra.mxu0 %v6693
    %6722 = vmatprep.subr.mxu0 0.0
    %6723 = vmatpush1.msra.mxu0 %v6694
    %6724 = vmatprep.subr.mxu0 0.0
    %6725 = vmatpush1.msra.mxu0 %v6695
    %6726 = vmatprep.subr.mxu0 0.0
    %6727 = vmatpush1.msra.mxu0 %v6696
    %6728 = vmatprep.subr.mxu0 0.0
    %6729 = vmatpush1.msra.mxu0 %v6697
    %6730 = vmatprep.subr.mxu0 0.0
    %6731 = vmatpush1.msra.mxu0 %v6698
    %6732 = vmatprep.subr.mxu0 0.0
    %6733 = vmatpush1.msra.mxu0 %v6699
    %6734 = vmatprep.subr.mxu0 0.0
    %6735 = vmatpush1.msra.mxu0 %v6700
    %6736 = vmatprep.subr.mxu0 0.0
    %6737 = vmatpush1.msra.mxu0 %v6701
    %6738 = vmatprep.subr.mxu0 0.0
    %6739 = vmatpush1.msra.mxu0 %v6702
    %6740 = vmatprep.subr.mxu0 0.0
    %6741 = vmatpush1.msra.mxu0 %v6703
    %6742 = vmatprep.subr.mxu0 0.0
    %6743 = vmatpush1.msra.mxu0 %v6704
    %6744 = vmatprep.subr.mxu0 0.0
    %6745 = vmatpush1.msra.mxu0 0.0
    %6746 = vmatprep.subr.mxu0 0.0
    %6747 = vmatpush1.msra.mxu0 0.0
    %6748 = vmatprep.subr.mxu0 0.0
    %6749 = vmatpush1.msra.mxu0 0.0
    %6750 = vmatprep.subr.mxu0 0.0
    %6751 = vmatpush1.msra.mxu0 0.0
    %6752 = vmatprep.subr.mxu0 0.0
    %6753 = vmatpush1.msra.mxu0 0.0
    %6754 = vmatprep.subr.mxu0 0.0
    %6755 = vmatpush1.msra.mxu0 0.0
    %6756 = vmatprep.subr.mxu0 0.0
    %6757 = vmatpush1.msra.mxu0 0.0
    %6758 = vmatprep.subr.mxu0 0.0
    %6759 = vmatpush1.msra.mxu0 0.0
    %6760 = vmatprep.subr.mxu0 0.0
    %6761 = vmatpush1.msra.mxu0 0.0
    %6762 = vmatprep.subr.mxu0 0.0
    %6763 = vmatpush1.msra.mxu0 0.0
    %6764 = vmatprep.subr.mxu0 0.0
    %6765 = vmatpush1.msra.mxu0 0.0
    %6766 = vmatprep.subr.mxu0 0.0
    %6767 = vmatpush1.msra.mxu0 0.0
    %6768 = vmatprep.subr.mxu0 0.0
    %6769 = vmatpush1.msra.mxu0 0.0
    %6770 = vmatprep.subr.mxu0 0.0
    %6771 = vmatpush1.msra.mxu0 0.0
    %6772 = vmatprep.subr.mxu0 0.0
    %6773 = vmatpush1.msra.mxu0 0.0
    %6774 = vmatprep.subr.mxu0 0.0
    %6775 = vmatpush1.msra.mxu0 0.0
    %6776 = vmatprep.mubr.f32.mxu0 0.0
    %6777 = vmatmul.mubr.f32.gmra.mrb[0].mxu0 %v6687
    %v6778 = vpop.f32.mrb[0].mxu0
    %v6779 = vadd.f32 %v6710, %v6778
    %v6780 = vpop.f32.mrb[0].mxu0
    %6781 = vmatprep.mubr.f32.mxu0 0.0
    %6782 = vmatmul.mubr.f32.gmra.mrb[0].mxu0 %v6688
    %v6783 = vpop.f32.mrb[0].mxu0
    %v6784 = vadd.f32 %v6710, %v6783
    %v6785 = vpop.f32.mrb[0].mxu0
    %6786 = vdwg.mxu0
    %v6787 = vmax.f32 %v6779, 0.0
    %v6788 = vmax.f32 %v6784, 0.0
    %v6789 = vld [vmem:[#allocation7] sm:$0xff]
    %v6790 = vld [vmem:[#allocation7 + $0x8] sm:$0xff]
    %v6791 = vld [vmem:[#allocation7 + $0x10] sm:$0xff]
    %v6792 = vld [vmem:[#allocation7 + $0x18] sm:$0xff]
    %v6793 = vld [vmem:[#allocation7 + $0x20] sm:$0xff]
    %v6794 = vld [vmem:[#allocation7 + $0x28] sm:$0xff]
    %v6795 = vld [vmem:[#allocation7 + $0x30] sm:$0xff]
    %v6796 = vld [vmem:[#allocation7 + $0x38] sm:$0xff]
    %v6797 = vld [vmem:[#allocation7 + $0x40] sm:$0xff]
    %v6798 = vld [vmem:[#allocation7 + $0x48] sm:$0xff]
    %v6799 = vld [vmem:[#allocation7 + $0x50] sm:$0xff]
    %v6800 = vld [vmem:[#allocation7 + $0x58] sm:$0xff]
    %v6801 = vld [vmem:[#allocation7 + $0x60] sm:$0xff]
    %v6802 = vld [vmem:[#allocation7 + $0x68] sm:$0xff]
    %v6803 = vld [vmem:[#allocation7 + $0x70] sm:$0xff]
    %v6804 = vld [vmem:[#allocation7 + $0x78] sm:$0xff]
    %v6805 = vld [vmem:[%s8] sm:$0x1]
    %v6807 = vlaneseq
    %v6808 = vshrl.u32 %v6807, 7
    %v6809 = vsub.s32 0, %v6808
    %v6810 = vrot.slane %v6805, %v6809
    %6812 = vmatprep.subr.mxu0 0.0
    %6813 = vmatpush1.msra.mxu0 %v6789
    %6814 = vmatprep.subr.mxu0 0.0
    %6815 = vmatpush1.msra.mxu0 %v6790
    %6816 = vmatprep.subr.mxu0 0.0
    %6817 = vmatpush1.msra.mxu0 %v6791
    %6818 = vmatprep.subr.mxu0 0.0
    %6819 = vmatpush1.msra.mxu0 %v6792
    %6820 = vmatprep.subr.mxu0 0.0
    %6821 = vmatpush1.msra.mxu0 %v6793
    %6822 = vmatprep.subr.mxu0 0.0
    %6823 = vmatpush1.msra.mxu0 %v6794
    %6824 = vmatprep.subr.mxu0 0.0
    %6825 = vmatpush1.msra.mxu0 %v6795
    %6826 = vmatprep.subr.mxu0 0.0
    %6827 = vmatpush1.msra.mxu0 %v6796
    %6828 = vmatprep.subr.mxu0 0.0
    %6829 = vmatpush1.msra.mxu0 %v6797
    %6830 = vmatprep.subr.mxu0 0.0
    %6831 = vmatpush1.msra.mxu0 %v6798
    %6832 = vmatprep.subr.mxu0 0.0
    %6833 = vmatpush1.msra.mxu0 %v6799
    %6834 = vmatprep.subr.mxu0 0.0
    %6835 = vmatpush1.msra.mxu0 %v6800
    %6836 = vmatprep.subr.mxu0 0.0
    %6837 = vmatpush1.msra.mxu0 %v6801
    %6838 = vmatprep.subr.mxu0 0.0
    %6839 = vmatpush1.msra.mxu0 %v6802
    %6840 = vmatprep.subr.mxu0 0.0
    %6841 = vmatpush1.msra.mxu0 %v6803
    %6842 = vmatprep.subr.mxu0 0.0
    %6843 = vmatpush1.msra.mxu0 %v6804
    %6844 = vmatprep.subr.mxu0 0.0
    %6845 = vmatpush1.msra.mxu0 0.0
    %6846 = vmatprep.subr.mxu0 0.0
    %6847 = vmatpush1.msra.mxu0 0.0
    %6848 = vmatprep.subr.mxu0 0.0
    %6849 = vmatpush1.msra.mxu0 0.0
    %6850 = vmatprep.subr.mxu0 0.0
    %6851 = vmatpush1.msra.mxu0 0.0
    %6852 = vmatprep.subr.mxu0 0.0
    %6853 = vmatpush1.msra.mxu0 0.0
    %6854 = vmatprep.subr.mxu0 0.0
    %6855 = vmatpush1.msra.mxu0 0.0
    %6856 = vmatprep.subr.mxu0 0.0
    %6857 = vmatpush1.msra.mxu0 0.0
    %6858 = vmatprep.subr.mxu0 0.0
    %6859 = vmatpush1.msra.mxu0 0.0
    %6860 = vmatprep.subr.mxu0 0.0
    %6861 = vmatpush1.msra.mxu0 0.0
    %6862 = vmatprep.subr.mxu0 0.0
    %6863 = vmatpush1.msra.mxu0 0.0
    %6864 = vmatprep.subr.mxu0 0.0
    %6865 = vmatpush1.msra.mxu0 0.0
    %6866 = vmatprep.subr.mxu0 0.0
    %6867 = vmatpush1.msra.mxu0 0.0
    %6868 = vmatprep.subr.mxu0 0.0
    %6869 = vmatpush1.msra.mxu0 0.0
    %6870 = vmatprep.subr.mxu0 0.0
    %6871 = vmatpush1.msra.mxu0 0.0
    %6872 = vmatprep.subr.mxu0 0.0
    %6873 = vmatpush1.msra.mxu0 0.0
    %6874 = vmatprep.subr.mxu0 0.0
    %6875 = vmatpush1.msra.mxu0 0.0
    %6876 = vmatprep.mubr.f32.mxu0 0.0
    %6877 = vmatmul.mubr.f32.gmra.mrb[0].mxu0 %v6787
    %v6878 = vpop.f32.mrb[0].mxu0
    %v6879 = vadd.f32 %v6810, %v6878
    %v6880 = vpop.f32.mrb[0].mxu0
    %6881 = vmatprep.mubr.f32.mxu0 0.0
    %6882 = vmatmul.mubr.f32.gmra.mrb[0].mxu0 %v6788
    %v6883 = vpop.f32.mrb[0].mxu0
    %v6884 = vadd.f32 %v6810, %v6883
    %v6885 = vpop.f32.mrb[0].mxu0
    %6886 = vdwg.mxu0
    %6887 = vst [vmem:[#allocation8] sm:$0xff] %v6879
    %6888 = vst [vmem:[#allocation8 + $0x8] sm:$0xff] %v6884
    // Predicated region
    $region50: #{recurrent_net_forward.1} parent=1 // pred_check
      _
    $region51: #{recurrent_net_forward.1} parent=1 // pred_check_branch
      %6890 = sbr.rel (0) target = $region53
    $region52: #{recurrent_net_forward.1} parent=1 // pred_region
      %s6892 = ssub.s32 256, 256
      %6893 = vsyncadd [#allocation4], %s6892
      %s6894 = sshll.u32 [#allocation8], 4
      %s6895 = int_to_ptr.vmem [resolvable:$true] %s6894
      %6900 = dma.vmem_to_hbm [thread:$0]  %s6895, 256, %s9, [#allocation4], 128, 128, 8
    $region53: #{recurrent_net_forward.1} parent=1 // pred_fallthru
      _
    // Predicated region
    $region54: #{recurrent_net_forward.1} parent=1 // pred_check
      _
    $region55: #{recurrent_net_forward.1} parent=1 // pred_check_branch
      %6902 = sbr.rel (0) target = $region57
    $region56: #{recurrent_net_forward.1} parent=1 // pred_region
      %6903 = dma.done [#allocation4], 256
    $region57: #{recurrent_net_forward.1} parent=1 // pred_fallthru
      _
    %6904 = vsyncpa [#allocation3], 1
    %6905 = vsyncpa [#allocation6], 1
    %6906 = vsyncpa [#allocation4], 1

</llo_original>
